<compile_context>
chip_gen: v7x
topology: tpu7x:2x2x1
jax: 0.10.0
libtpu: 0.0.40
codegen_flags: <defaults>
</compile_context>

<pallas_src>
import jax
import jax.numpy as jnp
from jax.experimental import pallas as pl
from jax.experimental.pallas import tpu as pltpu

# Small-but-consistent shapes (input_size shrunk from 1024 -> 128; the
# hard-coded internal channel counts of the module are kept).
B = 2            # batch
T = 16           # sequence length (time)
BT = B * T       # flattened batch*time rows
C_IN = 128       # stands in for input_size=1024
C1 = 512         # conv1/2/3 channels (as in module)
C4 = 1536        # conv4 channels (as in module)
LIN = 192        # lin_neurons
LIN_PAD = 256    # lane-dense padded fc width


def ecapa_kernel(x_ref,
                 w1_hbm, w2_hbm, w3_hbm, w4_hbm, wfc_hbm,
                 t1_ref, t2_ref, t3_ref, t4_ref, bfc_ref, avg_ref,
                 out_ref,
                 w1_v, w2_v, w3_v, w4_v, wfc_v, sems):
    # ---- issue ALL weight DMAs up front (in use order), overlap with compute
    cp1 = pltpu.make_async_copy(w1_hbm, w1_v, sems.at[0]); cp1.start()
    cp2 = pltpu.make_async_copy(w2_hbm, w2_v, sems.at[1]); cp2.start()
    cp3 = pltpu.make_async_copy(w3_hbm, w3_v, sems.at[2]); cp3.start()
    cp4 = pltpu.make_async_copy(w4_hbm, w4_v, sems.at[3]); cp4.start()
    cpf = pltpu.make_async_copy(wfc_hbm, wfc_v, sems.at[4]); cpf.start()

    # ---- hoisted time-position masks: only 4 distinct shifts ever occur
    tpos = jax.lax.broadcasted_iota(jnp.int32, (BT, 1), 0) % T
    masks = {s: (tpos >= s) if s > 0 else (tpos < T + s)
             for s in (2, 1, -1, -2)}

    def shifted_tap(h, s):
        """bf16 tap: out[r] = h[r-s] within each T-row segment, 0 outside."""
        if s == 0:
            return h.astype(jnp.bfloat16)
        rolled = pltpu.roll(h, s % BT, axis=0)                 # f32 XLU rotate
        return jnp.where(masks[s], rolled, 0.0).astype(jnp.bfloat16)

    def conv_layer(h, w_vmem, t_ref, K, P, cp):
        """'same' Conv1d (kernel K, pad P) with BN scale pre-folded into w,
        + shift + ReLU. K taps fused into one bf16 im2col matmul."""
        if K == 1:
            hcat = h.astype(jnp.bfloat16)
        else:
            hcat = jnp.concatenate(
                [shifted_tap(h, P - k) for k in range(K)], axis=-1)
        cp.wait()                                              # weight landed?
        acc = jnp.dot(hcat, w_vmem[...], preferred_element_type=jnp.float32)
        return jnp.maximum(acc + t_ref[...], 0.0)              # f32 activation

    x = x_ref[...]                                             # (BT, C_IN) f32
    h = conv_layer(x, w1_v, t1_ref, 5, 2, cp1)                 # (BT, 512)
    h = conv_layer(h, w2_v, t2_ref, 3, 1, cp2)                 # (BT, 512)
    h = conv_layer(h, w3_v, t3_ref, 3, 1, cp3)                 # (BT, 512)
    h4 = conv_layer(h, w4_v, t4_ref, 1, 0, cp4)                # (BT, 1536)

    # AdaptiveAvgPool1d(1) as one matmul with a constant per-segment averaging
    # matrix, then the (padded) fc -> single lane-dense (B, 256) store.
    pooled = jnp.dot(avg_ref[...], h4.astype(jnp.bfloat16),
                     preferred_element_type=jnp.float32)       # (B, 1536)
    cpf.wait()
    out_ref[...] = (jnp.dot(pooled.astype(jnp.bfloat16), wfc_v[...],
                            preferred_element_type=jnp.float32)
                    + bfc_ref[...])                            # (B, 256)


def ecapa_forward(x, params):
    (w1, s1, t1, w2, s2, t2, w3, s3, t3, w4, s4, t4, wfc, bfc) = params

    # Host-side prep: fold BN scale into weight columns, flatten conv taps
    # (K, Cin, Cout) -> (K*Cin, Cout), cast weights to bf16, pad fc to a
    # lane-dense 256-wide output, build the per-segment averaging matrix.
    w1c = (w1.reshape(5 * C_IN, C1) * s1).astype(jnp.bfloat16)
    w2c = (w2.reshape(3 * C1, C1) * s2).astype(jnp.bfloat16)
    w3c = (w3.reshape(3 * C1, C1) * s3).astype(jnp.bfloat16)
    w4c = (w4 * s4).astype(jnp.bfloat16)
    wfc_p = jnp.pad(wfc, ((0, 0), (0, LIN_PAD - LIN))).astype(jnp.bfloat16)
    bfc_p = jnp.pad(bfc, ((0, 0), (0, LIN_PAD - LIN)))
    avg = jnp.kron(jnp.eye(B, dtype=jnp.float32),
                   jnp.full((1, T), 1.0 / T, jnp.float32)).astype(jnp.bfloat16)

    x_flat = x.reshape(BT, C_IN)                               # (B*T, C_IN)

    inputs = (x_flat,
              w1c, w2c, w3c, w4c, wfc_p,
              t1, t2, t3, t4, bfc_p, avg)

    vmem = pl.BlockSpec(memory_space=pltpu.MemorySpace.VMEM)
    hbm = pl.BlockSpec(memory_space=pl.ANY)                    # manual DMA

    out = pl.pallas_call(
        ecapa_kernel,
        out_shape=jax.ShapeDtypeStruct((B, LIN_PAD), jnp.float32),
        # No grid: single invocation; small operands land in VMEM before the
        # body, the ~5.9 MiB of bf16 weights stay in HBM and are DMA'd
        # manually so their transfer overlaps the compute.
        in_specs=[vmem, hbm, hbm, hbm, hbm, hbm,
                  vmem, vmem, vmem, vmem, vmem, vmem],
        out_specs=vmem,
        scratch_shapes=[
            pltpu.VMEM((5 * C_IN, C1), jnp.bfloat16),          # w1
            pltpu.VMEM((3 * C1, C1), jnp.bfloat16),            # w2
            pltpu.VMEM((3 * C1, C1), jnp.bfloat16),            # w3
            pltpu.VMEM((C1, C4), jnp.bfloat16),                # w4
            pltpu.VMEM((C4, LIN_PAD), jnp.bfloat16),           # wfc
            pltpu.SemaphoreType.DMA((5,)),
        ],
        compiler_params=pltpu.CompilerParams(
            vmem_limit_bytes=32 * 1024 * 1024),
    )(*inputs)
    return out[:, :LIN]                                        # (B, 192)


# ---------------- deterministic synthetic parameters ----------------
def make_params(key):
    eps = 1e-5
    ks = iter(jax.random.split(key, 20))

    def conv_bn(cin, cout, k):
        w = 0.05 * jax.random.normal(next(ks), (k, cin, cout), jnp.float32)
        b = 0.05 * jax.random.normal(next(ks), (cout,), jnp.float32)
        gamma = 1.0 + 0.1 * jax.random.normal(next(ks), (cout,), jnp.float32)
        beta = 0.05 * jax.random.normal(next(ks), (cout,), jnp.float32)
        rmean = jnp.zeros((cout,), jnp.float32)
        rvar = jnp.ones((cout,), jnp.float32)
        scale = gamma / jnp.sqrt(rvar + eps)
        shift = (b - rmean) * scale + beta
        return w, scale.reshape(1, cout), shift.reshape(1, cout)

    w1, s1, t1 = conv_bn(C_IN, C1, 5)
    w2, s2, t2 = conv_bn(C1, C1, 3)
    w3, s3, t3 = conv_bn(C1, C1, 3)
    w4_, s4, t4 = conv_bn(C1, C4, 1)
    w4 = w4_[0]                                                # (C1, C4)
    wfc = 0.05 * jax.random.normal(next(ks), (C4, LIN), jnp.float32)
    bfc = 0.05 * jax.random.normal(next(ks), (1, LIN), jnp.float32)
    return (w1, s1, t1, w2, s2, t2, w3, s3, t3, w4, s4, t4, wfc, bfc)


# ---------------- pure-JAX reference for verification ----------------
def ref_forward(x, params):
    (w1, s1, t1, w2, s2, t2, w3, s3, t3, w4, s4, t4, wfc, bfc) = params
    hi = jax.lax.Precision.HIGHEST

    def conv_bn_relu(h, w, s, t, pad):
        Tn = h.shape[1]
        hp = jnp.pad(h, ((0, 0), (pad, pad), (0, 0)))
        acc = 0.0
        for k in range(w.shape[0]):
            acc = acc + jnp.einsum('btc,cd->btd', hp[:, k:k + Tn, :], w[k],
                                   precision=hi)
        return jnp.maximum(acc * s + t, 0.0)

    h = conv_bn_relu(x, w1, s1, t1, 2)
    h = conv_bn_relu(h, w2, s2, t2, 1)
    h = conv_bn_relu(h, w3, s3, t3, 1)
    h = jnp.maximum(jnp.einsum('btc,cd->btd', h, w4, precision=hi) * s4 + t4,
                    0.0)
    pooled = jnp.mean(h, axis=1)
    return jnp.dot(pooled, wfc, precision=hi) + bfc


if __name__ == "__main__":
    key = jax.random.PRNGKey(0)
    kx, kp = jax.random.split(key)
    # module forward takes x of shape (B, T, input_size) and transposes to NCL
    x = 0.1 * jax.random.normal(kx, (B, T, C_IN), jnp.float32)
    params = make_params(kp)

    out = ecapa_forward(x, params)
    out = jax.block_until_ready(out)

    ref = ref_forward(x, params)
    assert out.shape == (B, LIN), out.shape
    assert bool(jnp.all(jnp.isfinite(out)))
    assert bool(jnp.allclose(out, ref, atol=2e-2, rtol=2e-2)), \
        float(jnp.max(jnp.abs(out - ref)))
    print("KERNEL_OK")
</pallas_src>

<mosaic_0001>
module attributes {stable_mosaic.version = 11 : i64} {
  func.func @ecapa_kernel(%arg0: memref<32x128xf32, #tpu.memory_space<vmem>>, %arg1: memref<640x512xbf16, #tpu.memory_space<any>>, %arg2: memref<1536x512xbf16, #tpu.memory_space<any>>, %arg3: memref<1536x512xbf16, #tpu.memory_space<any>>, %arg4: memref<512x1536xbf16, #tpu.memory_space<any>>, %arg5: memref<1536x256xbf16, #tpu.memory_space<any>>, %arg6: memref<1x512xf32, #tpu.memory_space<vmem>>, %arg7: memref<1x512xf32, #tpu.memory_space<vmem>>, %arg8: memref<1x512xf32, #tpu.memory_space<vmem>>, %arg9: memref<1x1536xf32, #tpu.memory_space<vmem>>, %arg10: memref<1x256xf32, #tpu.memory_space<vmem>>, %arg11: memref<2x32xbf16, #tpu.memory_space<vmem>>, %arg12: memref<2x256xf32, #tpu.memory_space<vmem>>, %arg13: memref<640x512xbf16, #tpu.memory_space<vmem>>, %arg14: memref<1536x512xbf16, #tpu.memory_space<vmem>>, %arg15: memref<1536x512xbf16, #tpu.memory_space<vmem>>, %arg16: memref<512x1536xbf16, #tpu.memory_space<vmem>>, %arg17: memref<1536x256xbf16, #tpu.memory_space<vmem>>, %arg18: memref<5x!tpu.dma_semaphore, #tpu.memory_space<semaphore_mem>>) attributes {dimension_semantics = [], scalar_prefetch = 0 : i64, scratch_operands = 6 : i64, tpu.core_type = #tpu.core_type<tc>} {
    %c0_i32 = arith.constant 0 : i32
    %0 = tpu.memref_slice %arg18[%c0_i32] : memref<5x!tpu.dma_semaphore, #tpu.memory_space<semaphore_mem>> -> memref<1x!tpu.dma_semaphore, #tpu.memory_space<semaphore_mem>>
    %1 = tpu.memref_squeeze %0 : memref<1x!tpu.dma_semaphore, #tpu.memory_space<semaphore_mem>> -> memref<!tpu.dma_semaphore, #tpu.memory_space<semaphore_mem>>
    tpu.enqueue_dma source(%arg1 : memref<640x512xbf16, #tpu.memory_space<any>>) target(%arg13 : memref<640x512xbf16, #tpu.memory_space<vmem>>) target_semaphore(%1 : memref<!tpu.dma_semaphore, #tpu.memory_space<semaphore_mem>>)
    %c1_i32 = arith.constant 1 : i32
    %2 = tpu.memref_slice %arg18[%c1_i32] : memref<5x!tpu.dma_semaphore, #tpu.memory_space<semaphore_mem>> -> memref<1x!tpu.dma_semaphore, #tpu.memory_space<semaphore_mem>>
    %3 = tpu.memref_squeeze %2 : memref<1x!tpu.dma_semaphore, #tpu.memory_space<semaphore_mem>> -> memref<!tpu.dma_semaphore, #tpu.memory_space<semaphore_mem>>
    tpu.enqueue_dma source(%arg2 : memref<1536x512xbf16, #tpu.memory_space<any>>) target(%arg14 : memref<1536x512xbf16, #tpu.memory_space<vmem>>) target_semaphore(%3 : memref<!tpu.dma_semaphore, #tpu.memory_space<semaphore_mem>>)
    %c2_i32 = arith.constant 2 : i32
    %4 = tpu.memref_slice %arg18[%c2_i32] : memref<5x!tpu.dma_semaphore, #tpu.memory_space<semaphore_mem>> -> memref<1x!tpu.dma_semaphore, #tpu.memory_space<semaphore_mem>>
    %5 = tpu.memref_squeeze %4 : memref<1x!tpu.dma_semaphore, #tpu.memory_space<semaphore_mem>> -> memref<!tpu.dma_semaphore, #tpu.memory_space<semaphore_mem>>
    tpu.enqueue_dma source(%arg3 : memref<1536x512xbf16, #tpu.memory_space<any>>) target(%arg15 : memref<1536x512xbf16, #tpu.memory_space<vmem>>) target_semaphore(%5 : memref<!tpu.dma_semaphore, #tpu.memory_space<semaphore_mem>>)
    %c3_i32 = arith.constant 3 : i32
    %6 = tpu.memref_slice %arg18[%c3_i32] : memref<5x!tpu.dma_semaphore, #tpu.memory_space<semaphore_mem>> -> memref<1x!tpu.dma_semaphore, #tpu.memory_space<semaphore_mem>>
    %7 = tpu.memref_squeeze %6 : memref<1x!tpu.dma_semaphore, #tpu.memory_space<semaphore_mem>> -> memref<!tpu.dma_semaphore, #tpu.memory_space<semaphore_mem>>
    tpu.enqueue_dma source(%arg4 : memref<512x1536xbf16, #tpu.memory_space<any>>) target(%arg16 : memref<512x1536xbf16, #tpu.memory_space<vmem>>) target_semaphore(%7 : memref<!tpu.dma_semaphore, #tpu.memory_space<semaphore_mem>>)
    %c4_i32 = arith.constant 4 : i32
    %8 = tpu.memref_slice %arg18[%c4_i32] : memref<5x!tpu.dma_semaphore, #tpu.memory_space<semaphore_mem>> -> memref<1x!tpu.dma_semaphore, #tpu.memory_space<semaphore_mem>>
    %9 = tpu.memref_squeeze %8 : memref<1x!tpu.dma_semaphore, #tpu.memory_space<semaphore_mem>> -> memref<!tpu.dma_semaphore, #tpu.memory_space<semaphore_mem>>
    tpu.enqueue_dma source(%arg5 : memref<1536x256xbf16, #tpu.memory_space<any>>) target(%arg17 : memref<1536x256xbf16, #tpu.memory_space<vmem>>) target_semaphore(%9 : memref<!tpu.dma_semaphore, #tpu.memory_space<semaphore_mem>>)
    %10 = tpu.iota {dimensions = array<i32: 0>} : vector<32x1xi32>
    %c16_i32 = arith.constant 16 : i32
    %c0_i32_0 = arith.constant 0 : i32
    %11 = arith.cmpi eq, %c16_i32, %c0_i32_0 : i32
    %c1_i32_1 = arith.constant 1 : i32
    %12 = arith.select %11, %c1_i32_1, %c16_i32 : i32
    %13 = vector.broadcast %12 : i32 to vector<32x1xi32>
    %14 = arith.remsi %10, %13 : vector<32x1xi32>
    %c0_i32_2 = arith.constant 0 : i32
    %15 = vector.broadcast %c0_i32_2 : i32 to vector<32x1xi32>
    %16 = arith.cmpi ne, %14, %15 : vector<32x1xi32>
    %c0_i32_3 = arith.constant 0 : i32
    %17 = vector.broadcast %c0_i32_3 : i32 to vector<32x1xi32>
    %18 = arith.cmpi slt, %14, %17 : vector<32x1xi32>
    %c0_i32_4 = arith.constant 0 : i32
    %19 = arith.cmpi slt, %12, %c0_i32_4 : i32
    %20 = vector.broadcast %19 : i1 to vector<32x1xi1>
    %21 = vector.broadcast %20 : vector<32x1xi1> to vector<32x1xi1>
    %22 = arith.xori %18, %21 : vector<32x1xi1>
    %23 = arith.andi %22, %16 : vector<32x1xi1>
    %24 = vector.broadcast %12 : i32 to vector<32x1xi32>
    %25 = arith.addi %14, %24 : vector<32x1xi32>
    %26 = arith.select %23, %25, %14 : vector<32x1xi1>, vector<32x1xi32>
    %c2_i32_5 = arith.constant 2 : i32
    %27 = vector.broadcast %c2_i32_5 : i32 to vector<32x1xi32>
    %28 = arith.cmpi sge, %26, %27 : vector<32x1xi32>
    %c1_i32_6 = arith.constant 1 : i32
    %29 = vector.broadcast %c1_i32_6 : i32 to vector<32x1xi32>
    %30 = arith.cmpi sge, %26, %29 : vector<32x1xi32>
    %c15_i32 = arith.constant 15 : i32
    %31 = vector.broadcast %c15_i32 : i32 to vector<32x1xi32>
    %32 = arith.cmpi slt, %26, %31 : vector<32x1xi32>
    %c14_i32 = arith.constant 14 : i32
    %33 = vector.broadcast %c14_i32 : i32 to vector<32x1xi32>
    %34 = arith.cmpi slt, %26, %33 : vector<32x1xi32>
    %c0 = arith.constant 0 : index
    %c0_7 = arith.constant 0 : index
    %35 = vector.load %arg0[%c0, %c0_7] : memref<32x128xf32, #tpu.memory_space<vmem>>, vector<32x128xf32>
    %c2_i32_8 = arith.constant 2 : i32
    %36 = tpu.dynamic_rotate %35 by %c2_i32_8 dim 0 : vector<32x128xf32>, i32 -> vector<32x128xf32>
    %cst = arith.constant 0.000000e+00 : f32
    %37 = vector.shape_cast %28 : vector<32x1xi1> to vector<32x1xi1>
    %38 = vector.broadcast %37 : vector<32x1xi1> to vector<32x128xi1>
    %39 = vector.broadcast %cst : f32 to vector<32x128xf32>
    %40 = arith.select %38, %36, %39 : vector<32x128xi1>, vector<32x128xf32>
    %41 = arith.truncf %40 : vector<32x128xf32> to vector<32x128xbf16>
    %c1_i32_9 = arith.constant 1 : i32
    %42 = tpu.dynamic_rotate %35 by %c1_i32_9 dim 0 : vector<32x128xf32>, i32 -> vector<32x128xf32>
    %cst_10 = arith.constant 0.000000e+00 : f32
    %43 = vector.shape_cast %30 : vector<32x1xi1> to vector<32x1xi1>
    %44 = vector.broadcast %43 : vector<32x1xi1> to vector<32x128xi1>
    %45 = vector.broadcast %cst_10 : f32 to vector<32x128xf32>
    %46 = arith.select %44, %42, %45 : vector<32x128xi1>, vector<32x128xf32>
    %47 = arith.truncf %46 : vector<32x128xf32> to vector<32x128xbf16>
    %48 = arith.truncf %35 : vector<32x128xf32> to vector<32x128xbf16>
    %c31_i32 = arith.constant 31 : i32
    %49 = tpu.dynamic_rotate %35 by %c31_i32 dim 0 : vector<32x128xf32>, i32 -> vector<32x128xf32>
    %cst_11 = arith.constant 0.000000e+00 : f32
    %50 = vector.shape_cast %32 : vector<32x1xi1> to vector<32x1xi1>
    %51 = vector.broadcast %50 : vector<32x1xi1> to vector<32x128xi1>
    %52 = vector.broadcast %cst_11 : f32 to vector<32x128xf32>
    %53 = arith.select %51, %49, %52 : vector<32x128xi1>, vector<32x128xf32>
    %54 = arith.truncf %53 : vector<32x128xf32> to vector<32x128xbf16>
    %c30_i32 = arith.constant 30 : i32
    %55 = tpu.dynamic_rotate %35 by %c30_i32 dim 0 : vector<32x128xf32>, i32 -> vector<32x128xf32>
    %cst_12 = arith.constant 0.000000e+00 : f32
    %56 = vector.shape_cast %34 : vector<32x1xi1> to vector<32x1xi1>
    %57 = vector.broadcast %56 : vector<32x1xi1> to vector<32x128xi1>
    %58 = vector.broadcast %cst_12 : f32 to vector<32x128xf32>
    %59 = arith.select %57, %55, %58 : vector<32x128xi1>, vector<32x128xf32>
    %60 = arith.truncf %59 : vector<32x128xf32> to vector<32x128xbf16>
    %61 = tpu.concatenate %41, %47, %48, %54, %60 in 1 : vector<32x128xbf16>, vector<32x128xbf16>, vector<32x128xbf16>, vector<32x128xbf16>, vector<32x128xbf16> -> vector<32x640xbf16>
    %c0_i32_13 = arith.constant 0 : i32
    %62 = tpu.memref_slice %arg18[%c0_i32_13] : memref<5x!tpu.dma_semaphore, #tpu.memory_space<semaphore_mem>> -> memref<1x!tpu.dma_semaphore, #tpu.memory_space<semaphore_mem>>
    %63 = tpu.memref_squeeze %62 : memref<1x!tpu.dma_semaphore, #tpu.memory_space<semaphore_mem>> -> memref<!tpu.dma_semaphore, #tpu.memory_space<semaphore_mem>>
    tpu.wait_dma2 semaphore(%63 : memref<!tpu.dma_semaphore, #tpu.memory_space<semaphore_mem>>) src(%arg1 : memref<640x512xbf16, #tpu.memory_space<any>>) dst(%arg13 : memref<640x512xbf16, #tpu.memory_space<vmem>>)
    %c0_14 = arith.constant 0 : index
    %c0_15 = arith.constant 0 : index
    %64 = vector.load %arg13[%c0_14, %c0_15] : memref<640x512xbf16, #tpu.memory_space<vmem>>, vector<640x512xbf16>
    %cst_16 = arith.constant dense<0.000000e+00> : vector<32x512xf32>
    %65 = tpu.matmul %61, %64, %cst_16 {dimension_numbers = #tpu.dot_dimension_numbers<[1], [0], [0], [1], [0, 0, 1, 1], [], []>} : vector<32x640xbf16>, vector<640x512xbf16>, vector<32x512xf32> -> vector<32x512xf32>
    %c0_17 = arith.constant 0 : index
    %c0_18 = arith.constant 0 : index
    %66 = vector.load %arg6[%c0_17, %c0_18] : memref<1x512xf32, #tpu.memory_space<vmem>>, vector<1x512xf32>
    %67 = vector.broadcast %66 : vector<1x512xf32> to vector<32x512xf32>
    %68 = arith.addf %65, %67 : vector<32x512xf32>
    %cst_19 = arith.constant 0.000000e+00 : f32
    %69 = vector.broadcast %cst_19 : f32 to vector<32x512xf32>
    %70 = arith.maximumf %68, %69 : vector<32x512xf32>
    %c1_i32_20 = arith.constant 1 : i32
    %71 = tpu.dynamic_rotate %70 by %c1_i32_20 dim 0 : vector<32x512xf32>, i32 -> vector<32x512xf32>
    %cst_21 = arith.constant 0.000000e+00 : f32
    %72 = vector.shape_cast %30 : vector<32x1xi1> to vector<32x1xi1>
    %73 = vector.broadcast %72 : vector<32x1xi1> to vector<32x512xi1>
    %74 = vector.broadcast %cst_21 : f32 to vector<32x512xf32>
    %75 = arith.select %73, %71, %74 : vector<32x512xi1>, vector<32x512xf32>
    %76 = arith.truncf %75 : vector<32x512xf32> to vector<32x512xbf16>
    %77 = arith.truncf %70 : vector<32x512xf32> to vector<32x512xbf16>
    %c31_i32_22 = arith.constant 31 : i32
    %78 = tpu.dynamic_rotate %70 by %c31_i32_22 dim 0 : vector<32x512xf32>, i32 -> vector<32x512xf32>
    %cst_23 = arith.constant 0.000000e+00 : f32
    %79 = vector.shape_cast %32 : vector<32x1xi1> to vector<32x1xi1>
    %80 = vector.broadcast %79 : vector<32x1xi1> to vector<32x512xi1>
    %81 = vector.broadcast %cst_23 : f32 to vector<32x512xf32>
    %82 = arith.select %80, %78, %81 : vector<32x512xi1>, vector<32x512xf32>
    %83 = arith.truncf %82 : vector<32x512xf32> to vector<32x512xbf16>
    %84 = tpu.concatenate %76, %77, %83 in 1 : vector<32x512xbf16>, vector<32x512xbf16>, vector<32x512xbf16> -> vector<32x1536xbf16>
    %c1_i32_24 = arith.constant 1 : i32
    %85 = tpu.memref_slice %arg18[%c1_i32_24] : memref<5x!tpu.dma_semaphore, #tpu.memory_space<semaphore_mem>> -> memref<1x!tpu.dma_semaphore, #tpu.memory_space<semaphore_mem>>
    %86 = tpu.memref_squeeze %85 : memref<1x!tpu.dma_semaphore, #tpu.memory_space<semaphore_mem>> -> memref<!tpu.dma_semaphore, #tpu.memory_space<semaphore_mem>>
    tpu.wait_dma2 semaphore(%86 : memref<!tpu.dma_semaphore, #tpu.memory_space<semaphore_mem>>) src(%arg2 : memref<1536x512xbf16, #tpu.memory_space<any>>) dst(%arg14 : memref<1536x512xbf16, #tpu.memory_space<vmem>>)
    %c0_25 = arith.constant 0 : index
    %c0_26 = arith.constant 0 : index
    %87 = vector.load %arg14[%c0_25, %c0_26] : memref<1536x512xbf16, #tpu.memory_space<vmem>>, vector<1536x512xbf16>
    %cst_27 = arith.constant dense<0.000000e+00> : vector<32x512xf32>
    %88 = tpu.matmul %84, %87, %cst_27 {dimension_numbers = #tpu.dot_dimension_numbers<[1], [0], [0], [1], [0, 0, 1, 1], [], []>} : vector<32x1536xbf16>, vector<1536x512xbf16>, vector<32x512xf32> -> vector<32x512xf32>
    %c0_28 = arith.constant 0 : index
    %c0_29 = arith.constant 0 : index
    %89 = vector.load %arg7[%c0_28, %c0_29] : memref<1x512xf32, #tpu.memory_space<vmem>>, vector<1x512xf32>
    %90 = vector.broadcast %89 : vector<1x512xf32> to vector<32x512xf32>
    %91 = arith.addf %88, %90 : vector<32x512xf32>
    %cst_30 = arith.constant 0.000000e+00 : f32
    %92 = vector.broadcast %cst_30 : f32 to vector<32x512xf32>
    %93 = arith.maximumf %91, %92 : vector<32x512xf32>
    %c1_i32_31 = arith.constant 1 : i32
    %94 = tpu.dynamic_rotate %93 by %c1_i32_31 dim 0 : vector<32x512xf32>, i32 -> vector<32x512xf32>
    %cst_32 = arith.constant 0.000000e+00 : f32
    %95 = vector.shape_cast %30 : vector<32x1xi1> to vector<32x1xi1>
    %96 = vector.broadcast %95 : vector<32x1xi1> to vector<32x512xi1>
    %97 = vector.broadcast %cst_32 : f32 to vector<32x512xf32>
    %98 = arith.select %96, %94, %97 : vector<32x512xi1>, vector<32x512xf32>
    %99 = arith.truncf %98 : vector<32x512xf32> to vector<32x512xbf16>
    %100 = arith.truncf %93 : vector<32x512xf32> to vector<32x512xbf16>
    %c31_i32_33 = arith.constant 31 : i32
    %101 = tpu.dynamic_rotate %93 by %c31_i32_33 dim 0 : vector<32x512xf32>, i32 -> vector<32x512xf32>
    %cst_34 = arith.constant 0.000000e+00 : f32
    %102 = vector.shape_cast %32 : vector<32x1xi1> to vector<32x1xi1>
    %103 = vector.broadcast %102 : vector<32x1xi1> to vector<32x512xi1>
    %104 = vector.broadcast %cst_34 : f32 to vector<32x512xf32>
    %105 = arith.select %103, %101, %104 : vector<32x512xi1>, vector<32x512xf32>
    %106 = arith.truncf %105 : vector<32x512xf32> to vector<32x512xbf16>
    %107 = tpu.concatenate %99, %100, %106 in 1 : vector<32x512xbf16>, vector<32x512xbf16>, vector<32x512xbf16> -> vector<32x1536xbf16>
    %c2_i32_35 = arith.constant 2 : i32
    %108 = tpu.memref_slice %arg18[%c2_i32_35] : memref<5x!tpu.dma_semaphore, #tpu.memory_space<semaphore_mem>> -> memref<1x!tpu.dma_semaphore, #tpu.memory_space<semaphore_mem>>
    %109 = tpu.memref_squeeze %108 : memref<1x!tpu.dma_semaphore, #tpu.memory_space<semaphore_mem>> -> memref<!tpu.dma_semaphore, #tpu.memory_space<semaphore_mem>>
    tpu.wait_dma2 semaphore(%109 : memref<!tpu.dma_semaphore, #tpu.memory_space<semaphore_mem>>) src(%arg3 : memref<1536x512xbf16, #tpu.memory_space<any>>) dst(%arg15 : memref<1536x512xbf16, #tpu.memory_space<vmem>>)
    %c0_36 = arith.constant 0 : index
    %c0_37 = arith.constant 0 : index
    %110 = vector.load %arg15[%c0_36, %c0_37] : memref<1536x512xbf16, #tpu.memory_space<vmem>>, vector<1536x512xbf16>
    %cst_38 = arith.constant dense<0.000000e+00> : vector<32x512xf32>
    %111 = tpu.matmul %107, %110, %cst_38 {dimension_numbers = #tpu.dot_dimension_numbers<[1], [0], [0], [1], [0, 0, 1, 1], [], []>} : vector<32x1536xbf16>, vector<1536x512xbf16>, vector<32x512xf32> -> vector<32x512xf32>
    %c0_39 = arith.constant 0 : index
    %c0_40 = arith.constant 0 : index
    %112 = vector.load %arg8[%c0_39, %c0_40] : memref<1x512xf32, #tpu.memory_space<vmem>>, vector<1x512xf32>
    %113 = vector.broadcast %112 : vector<1x512xf32> to vector<32x512xf32>
    %114 = arith.addf %111, %113 : vector<32x512xf32>
    %cst_41 = arith.constant 0.000000e+00 : f32
    %115 = vector.broadcast %cst_41 : f32 to vector<32x512xf32>
    %116 = arith.maximumf %114, %115 : vector<32x512xf32>
    %117 = arith.truncf %116 : vector<32x512xf32> to vector<32x512xbf16>
    %c3_i32_42 = arith.constant 3 : i32
    %118 = tpu.memref_slice %arg18[%c3_i32_42] : memref<5x!tpu.dma_semaphore, #tpu.memory_space<semaphore_mem>> -> memref<1x!tpu.dma_semaphore, #tpu.memory_space<semaphore_mem>>
    %119 = tpu.memref_squeeze %118 : memref<1x!tpu.dma_semaphore, #tpu.memory_space<semaphore_mem>> -> memref<!tpu.dma_semaphore, #tpu.memory_space<semaphore_mem>>
    tpu.wait_dma2 semaphore(%119 : memref<!tpu.dma_semaphore, #tpu.memory_space<semaphore_mem>>) src(%arg4 : memref<512x1536xbf16, #tpu.memory_space<any>>) dst(%arg16 : memref<512x1536xbf16, #tpu.memory_space<vmem>>)
    %c0_43 = arith.constant 0 : index
    %c0_44 = arith.constant 0 : index
    %120 = vector.load %arg16[%c0_43, %c0_44] : memref<512x1536xbf16, #tpu.memory_space<vmem>>, vector<512x1536xbf16>
    %cst_45 = arith.constant dense<0.000000e+00> : vector<32x1536xf32>
    %121 = tpu.matmul %117, %120, %cst_45 {dimension_numbers = #tpu.dot_dimension_numbers<[1], [0], [0], [1], [0, 0, 1, 1], [], []>} : vector<32x512xbf16>, vector<512x1536xbf16>, vector<32x1536xf32> -> vector<32x1536xf32>
    %c0_46 = arith.constant 0 : index
    %c0_47 = arith.constant 0 : index
    %122 = vector.load %arg9[%c0_46, %c0_47] : memref<1x1536xf32, #tpu.memory_space<vmem>>, vector<1x1536xf32>
    %123 = vector.broadcast %122 : vector<1x1536xf32> to vector<32x1536xf32>
    %124 = arith.addf %121, %123 : vector<32x1536xf32>
    %cst_48 = arith.constant 0.000000e+00 : f32
    %125 = vector.broadcast %cst_48 : f32 to vector<32x1536xf32>
    %126 = arith.maximumf %124, %125 : vector<32x1536xf32>
    %c0_49 = arith.constant 0 : index
    %c0_50 = arith.constant 0 : index
    %127 = vector.load %arg11[%c0_49, %c0_50] : memref<2x32xbf16, #tpu.memory_space<vmem>>, vector<2x32xbf16>
    %128 = arith.truncf %126 : vector<32x1536xf32> to vector<32x1536xbf16>
    %cst_51 = arith.constant dense<0.000000e+00> : vector<2x1536xf32>
    %129 = tpu.matmul %127, %128, %cst_51 {dimension_numbers = #tpu.dot_dimension_numbers<[1], [0], [0], [1], [0, 0, 1, 1], [], []>} : vector<2x32xbf16>, vector<32x1536xbf16>, vector<2x1536xf32> -> vector<2x1536xf32>
    %c4_i32_52 = arith.constant 4 : i32
    %130 = tpu.memref_slice %arg18[%c4_i32_52] : memref<5x!tpu.dma_semaphore, #tpu.memory_space<semaphore_mem>> -> memref<1x!tpu.dma_semaphore, #tpu.memory_space<semaphore_mem>>
    %131 = tpu.memref_squeeze %130 : memref<1x!tpu.dma_semaphore, #tpu.memory_space<semaphore_mem>> -> memref<!tpu.dma_semaphore, #tpu.memory_space<semaphore_mem>>
    tpu.wait_dma2 semaphore(%131 : memref<!tpu.dma_semaphore, #tpu.memory_space<semaphore_mem>>) src(%arg5 : memref<1536x256xbf16, #tpu.memory_space<any>>) dst(%arg17 : memref<1536x256xbf16, #tpu.memory_space<vmem>>)
    %132 = arith.truncf %129 : vector<2x1536xf32> to vector<2x1536xbf16>
    %c0_53 = arith.constant 0 : index
    %c0_54 = arith.constant 0 : index
    %133 = vector.load %arg17[%c0_53, %c0_54] : memref<1536x256xbf16, #tpu.memory_space<vmem>>, vector<1536x256xbf16>
    %cst_55 = arith.constant dense<0.000000e+00> : vector<2x256xf32>
    %134 = tpu.matmul %132, %133, %cst_55 {dimension_numbers = #tpu.dot_dimension_numbers<[1], [0], [0], [1], [0, 0, 1, 1], [], []>} : vector<2x1536xbf16>, vector<1536x256xbf16>, vector<2x256xf32> -> vector<2x256xf32>
    %c0_56 = arith.constant 0 : index
    %c0_57 = arith.constant 0 : index
    %135 = vector.load %arg10[%c0_56, %c0_57] : memref<1x256xf32, #tpu.memory_space<vmem>>, vector<1x256xf32>
    %136 = vector.broadcast %135 : vector<1x256xf32> to vector<2x256xf32>
    %137 = arith.addf %134, %136 : vector<2x256xf32>
    %c0_58 = arith.constant 0 : index
    %c0_59 = arith.constant 0 : index
    %138 = vector.load %arg12[%c0_58, %c0_59] : memref<2x256xf32, #tpu.memory_space<vmem>>, vector<2x256xf32>
    tpu.vector_store %arg12[%c0_58, %c0_59], %137 {strides = array<i32>} : memref<2x256xf32, #tpu.memory_space<vmem>>, vector<2x256xf32>,
    return
  }
}

</mosaic_0001>

<llo_original>
// kernel: tpu_custom_call.1
$region0: #{tpu_custom_call.1}
  #allocation0 [shape = 'u32[]', space=smem, size = 0x4, offset = 0x4, fixed_abs, tag = 'smem constant byte address 0x4 - core index']
  #allocation1 [shape = 'u32[144,128]{1,0:T(1,128)}', space=vmem, size = 0x12000, scoped, tag = 'internal scratch']
  #allocation2 [shape = 'bf16[640,512]{1,0:T(16,128)(2,1)}', space=vmem, size = 0xa0000, scoped, tag = 'scratch operand']
  #allocation3 [shape = 'bf16[1536,512]{1,0:T(16,128)(2,1)}', space=vmem, size = 0x180000, scoped, tag = 'scratch operand']
  #allocation4 [shape = 'bf16[1536,512]{1,0:T(16,128)(2,1)}', space=vmem, size = 0x180000, scoped, tag = 'scratch operand']
  #allocation5 [shape = 'bf16[512,1536]{1,0:T(16,128)(2,1)}', space=vmem, size = 0x180000, scoped, tag = 'scratch operand']
  #allocation6 [shape = 'bf16[1536,256]{1,0:T(16,128)(2,1)}', space=vmem, size = 0xc0000, scoped, tag = 'scratch operand']
  #allocation7 [shape = 's32[5]{0}', space=sflag, size = 0x14, scoped, tag = 'scratch operand']
  #allocation21 [shape = 's32[]', space=sflag, size = 0x4, offset = 0, fixed_abs, tag = 'sflag constant byte address 0x0 - dummy sync flag']
  #allocation23 [shape = 's32[]', space=sflag, size = 0x4, offset = 0, fixed_abs, tag = 'sflag constant byte address 0x0 - dummy sync flag']
  #allocation25 [shape = 's32[]', space=sflag, size = 0x4, offset = 0, fixed_abs, tag = 'sflag constant byte address 0x0 - dummy sync flag']
  #allocation27 [shape = 's32[]', space=sflag, size = 0x4, offset = 0, fixed_abs, tag = 'sflag constant byte address 0x0 - dummy sync flag']
  #allocation29 [shape = 's32[]', space=sflag, size = 0x4, offset = 0, fixed_abs, tag = 'sflag constant byte address 0x0 - dummy sync flag']
  %s0 = inlined_call_operand.hbm [shape: f32[32,128], index: 0, kind: input, shape index: {}]
  %s1 = inlined_call_operand.hbm [shape: bf16[640,512], index: 1, kind: input, shape index: {}]
  %s2 = inlined_call_operand.hbm [shape: bf16[1536,512], index: 2, kind: input, shape index: {}]
  %s3 = inlined_call_operand.hbm [shape: bf16[1536,512], index: 3, kind: input, shape index: {}]
  %s4 = inlined_call_operand.hbm [shape: bf16[512,1536], index: 4, kind: input, shape index: {}]
  %s5 = inlined_call_operand.hbm [shape: bf16[1536,256], index: 5, kind: input, shape index: {}]
  %s6 = inlined_call_operand.hbm [shape: f32[1,512], index: 6, kind: input, shape index: {}]
  %s7 = inlined_call_operand.hbm [shape: f32[1,512], index: 7, kind: input, shape index: {}]
  %s8 = inlined_call_operand.hbm [shape: f32[1,512], index: 8, kind: input, shape index: {}]
  %s9 = inlined_call_operand.hbm [shape: f32[1,1536], index: 9, kind: input, shape index: {}]
  %s10 = inlined_call_operand.hbm [shape: f32[1,256], index: 10, kind: input, shape index: {}]
  %s11 = inlined_call_operand.hbm [shape: bf16[2,32], index: 11, kind: input, shape index: {}]
  %s12 = inlined_call_operand.hbm [shape: f32[2,256], index: 12, kind: output, shape index: {}]
  %s13 = sld [smem:[#allocation0]]
  $region66: #{tpu_custom_call.1} parent=0
    _
  %s15 = ssub.s32 1, %s13
  %s16 = scalar_select 0, %s15, %s13
  $region1: #{tpu_custom_call.1} parent=0
    #allocation8 [shape = 'u8[16384]{0}', space=vmem, size = 0x4000, scoped, tag = 'input window, operand 0, single buffered']
    #allocation9 [shape = 's32[1]{0}', space=sflag, size = 0x4, scoped, tag = 'scoped memory for tpu_custom_call.1']
    #allocation10 [shape = 's32[1]{0}', space=sflag, size = 0x4, scoped, tag = 'scoped memory for tpu_custom_call.1']
    #allocation11 [shape = 'u8[2048]{0}', space=vmem, size = 0x800, scoped, tag = 'input window, operand 6, single buffered']
    #allocation12 [shape = 's32[1]{0}', space=sflag, size = 0x4, scoped, tag = 'scoped memory for tpu_custom_call.1']
    #allocation13 [shape = 'u8[2048]{0}', space=vmem, size = 0x800, scoped, tag = 'input window, operand 7, single buffered']
    #allocation14 [shape = 'u8[2048]{0}', space=vmem, size = 0x800, scoped, tag = 'input window, operand 8, single buffered']
    #allocation15 [shape = 's32[1]{0}', space=sflag, size = 0x4, scoped, tag = 'scoped memory for tpu_custom_call.1']
    #allocation16 [shape = 'u8[6144]{0}', space=vmem, size = 0x1800, scoped, tag = 'input window, operand 9, single buffered']
    #allocation17 [shape = 'u8[1024]{0}', space=vmem, size = 0x400, scoped, tag = 'input window, operand 10, single buffered']
    #allocation18 [shape = 's32[1]{0}', space=sflag, size = 0x4, scoped, tag = 'scoped memory for tpu_custom_call.1']
    #allocation19 [shape = 'u8[512]{0}', space=vmem, size = 0x400, scoped, tag = 'input window, operand 11, single buffered']
    #allocation20 [shape = 'u8[2048]{0}', space=vmem, size = 0x800, scoped, tag = 'output window, operand 0, single buffered']
    #allocation22 [shape = 'u32[9]{0}', space=smem, size = 0x24, scoped, tag = 'DMA stride descriptor']
    #allocation24 [shape = 'u32[9]{0}', space=smem, size = 0x24, scoped, tag = 'DMA stride descriptor']
    #allocation26 [shape = 'u32[9]{0}', space=smem, size = 0x24, scoped, tag = 'DMA stride descriptor']
    #allocation28 [shape = 'u32[9]{0}', space=smem, size = 0x24, scoped, tag = 'DMA stride descriptor']
    #allocation30 [shape = 'u32[9]{0}', space=smem, size = 0x24, scoped, tag = 'DMA stride descriptor']
    %17 = vsyncpa [#allocation9], 0
    %18 = vsyncpa [#allocation12], 0
    %19 = vsyncpa [#allocation15], 0
    %20 = vsyncpa [#allocation18], 0
    %21 = vsyncpa [#allocation10], 0
    // Predicated region
    $region2: #{tpu_custom_call.1} parent=1 // pred_check
      _
    $region3: #{tpu_custom_call.1} parent=1 // pred_check_branch
      %23 = sbr.rel (0) target = $region5
    $region4: #{tpu_custom_call.1} parent=1 // pred_region
      %s25 = ssub.s32 512, 512
      %26 = vsyncadd [#allocation9], %s25
      %s27 = sshll.u32 [#allocation8], 4
      %s28 = int_to_ptr.vmem [resolvable:$true] %s27
      %33 = dma.hbm_to_vmem [thread:$0]  %s0, 512, %s28, [#allocation9], 128, 128, 8
    $region5: #{tpu_custom_call.1} parent=1 // pred_fallthru
      _
    // Predicated region
    $region6: #{tpu_custom_call.1} parent=1 // pred_check
      _
    $region7: #{tpu_custom_call.1} parent=1 // pred_check_branch
      %35 = sbr.rel (0) target = $region9
    $region8: #{tpu_custom_call.1} parent=1 // pred_region
      %s37 = ssub.s32 64, 64
      %38 = vsyncadd [#allocation12], %s37
      %s40 = sshll.u32 [#allocation11], 4
      %s41 = int_to_ptr.vmem [resolvable:$true] %s40
      %43 = dma.hbm_to_vmem [thread:$0]  %s6, 64, %s41, [#allocation12]
    $region9: #{tpu_custom_call.1} parent=1 // pred_fallthru
      _
    // Predicated region
    $region10: #{tpu_custom_call.1} parent=1 // pred_check
      _
    $region11: #{tpu_custom_call.1} parent=1 // pred_check_branch
      %45 = sbr.rel (0) target = $region13
    $region12: #{tpu_custom_call.1} parent=1 // pred_region
      %s47 = ssub.s32 64, 64
      %48 = vsyncadd [#allocation12], %s47
      %s50 = sshll.u32 [#allocation13], 4
      %s51 = int_to_ptr.vmem [resolvable:$true] %s50
      %53 = dma.hbm_to_vmem [thread:$0]  %s7, 64, %s51, [#allocation12]
    $region13: #{tpu_custom_call.1} parent=1 // pred_fallthru
      _
    // Predicated region
    $region14: #{tpu_custom_call.1} parent=1 // pred_check
      _
    $region15: #{tpu_custom_call.1} parent=1 // pred_check_branch
      %55 = sbr.rel (0) target = $region17
    $region16: #{tpu_custom_call.1} parent=1 // pred_region
      %s57 = ssub.s32 64, 64
      %58 = vsyncadd [#allocation15], %s57
      %s60 = sshll.u32 [#allocation14], 4
      %s61 = int_to_ptr.vmem [resolvable:$true] %s60
      %63 = dma.hbm_to_vmem [thread:$0]  %s8, 64, %s61, [#allocation15]
    $region17: #{tpu_custom_call.1} parent=1 // pred_fallthru
      _
    // Predicated region
    $region18: #{tpu_custom_call.1} parent=1 // pred_check
      _
    $region19: #{tpu_custom_call.1} parent=1 // pred_check_branch
      %65 = sbr.rel (0) target = $region21
    $region20: #{tpu_custom_call.1} parent=1 // pred_region
      %s67 = ssub.s32 192, 192
      %68 = vsyncadd [#allocation15], %s67
      %s70 = sshll.u32 [#allocation16], 4
      %s71 = int_to_ptr.vmem [resolvable:$true] %s70
      %73 = dma.hbm_to_vmem [thread:$0]  %s9, 192, %s71, [#allocation15]
    $region21: #{tpu_custom_call.1} parent=1 // pred_fallthru
      _
    // Predicated region
    $region22: #{tpu_custom_call.1} parent=1 // pred_check
      _
    $region23: #{tpu_custom_call.1} parent=1 // pred_check_branch
      %75 = sbr.rel (0) target = $region25
    $region24: #{tpu_custom_call.1} parent=1 // pred_region
      %s77 = ssub.s32 32, 32
      %78 = vsyncadd [#allocation18], %s77
      %s80 = sshll.u32 [#allocation17], 4
      %s81 = int_to_ptr.vmem [resolvable:$true] %s80
      %83 = dma.hbm_to_vmem [thread:$0]  %s10, 32, %s81, [#allocation18]
    $region25: #{tpu_custom_call.1} parent=1 // pred_fallthru
      _
    // Predicated region
    $region26: #{tpu_custom_call.1} parent=1 // pred_check
      _
    $region27: #{tpu_custom_call.1} parent=1 // pred_check_branch
      %85 = sbr.rel (0) target = $region29
    $region28: #{tpu_custom_call.1} parent=1 // pred_region
      %s87 = ssub.s32 16, 16
      %88 = vsyncadd [#allocation18], %s87
      %s90 = sshll.u32 [#allocation19], 4
      %s91 = int_to_ptr.vmem [resolvable:$true] %s90
      %93 = dma.hbm_to_vmem [thread:$0]  %s11, 16, %s91, [#allocation18]
    $region29: #{tpu_custom_call.1} parent=1 // pred_fallthru
      _
    // Predicated region
    $region30: #{tpu_custom_call.1} parent=1 // pred_check
      _
    $region31: #{tpu_custom_call.1} parent=1 // pred_check_branch
      %95 = sbr.rel (0) target = $region33
    $region32: #{tpu_custom_call.1} parent=1 // pred_region
      %96 = dma.done [#allocation9], 512
    $region33: #{tpu_custom_call.1} parent=1 // pred_fallthru
      _
    // Predicated region
    $region34: #{tpu_custom_call.1} parent=1 // pred_check
      _
    $region35: #{tpu_custom_call.1} parent=1 // pred_check_branch
      %98 = sbr.rel (0) target = $region37
    $region36: #{tpu_custom_call.1} parent=1 // pred_region
      %99 = dma.done [#allocation12], 64
    $region37: #{tpu_custom_call.1} parent=1 // pred_fallthru
      _
    // Predicated region
    $region38: #{tpu_custom_call.1} parent=1 // pred_check
      _
    $region39: #{tpu_custom_call.1} parent=1 // pred_check_branch
      %101 = sbr.rel (0) target = $region41
    $region40: #{tpu_custom_call.1} parent=1 // pred_region
      %102 = dma.done [#allocation12], 64
    $region41: #{tpu_custom_call.1} parent=1 // pred_fallthru
      _
    // Predicated region
    $region42: #{tpu_custom_call.1} parent=1 // pred_check
      _
    $region43: #{tpu_custom_call.1} parent=1 // pred_check_branch
      %104 = sbr.rel (0) target = $region45
    $region44: #{tpu_custom_call.1} parent=1 // pred_region
      %105 = dma.done [#allocation15], 64
    $region45: #{tpu_custom_call.1} parent=1 // pred_fallthru
      _
    // Predicated region
    $region46: #{tpu_custom_call.1} parent=1 // pred_check
      _
    $region47: #{tpu_custom_call.1} parent=1 // pred_check_branch
      %107 = sbr.rel (0) target = $region49
    $region48: #{tpu_custom_call.1} parent=1 // pred_region
      %108 = dma.done [#allocation15], 192
    $region49: #{tpu_custom_call.1} parent=1 // pred_fallthru
      _
    // Predicated region
    $region50: #{tpu_custom_call.1} parent=1 // pred_check
      _
    $region51: #{tpu_custom_call.1} parent=1 // pred_check_branch
      %110 = sbr.rel (0) target = $region53
    $region52: #{tpu_custom_call.1} parent=1 // pred_region
      %111 = dma.done [#allocation18], 32
    $region53: #{tpu_custom_call.1} parent=1 // pred_fallthru
      _
    // Predicated region
    $region54: #{tpu_custom_call.1} parent=1 // pred_check
      _
    $region55: #{tpu_custom_call.1} parent=1 // pred_check_branch
      %113 = sbr.rel (0) target = $region57
    $region56: #{tpu_custom_call.1} parent=1 // pred_region
      %114 = dma.done [#allocation18], 16
    $region57: #{tpu_custom_call.1} parent=1 // pred_fallthru
      _
    %s117 = sshll.u32 1, 14
    %s118 = sxor.u32 4294967295, %s117
    %s120 = sld [smem:[#allocation0]]
    %s121 = sadd.s32 2, %s120
    %s123 = sshll.u32 7, 26
    %s124 = sxor.u32 4294967295, %s123
    %s125 = sand.u32 0, %s124
    %s126 = sshll.u32 %s121, 26
    %s127 = sor.u32 %s125, %s126
    %s128 = sshll.u32 [#allocation2], 4
    %s129 = int_to_ptr.vmem [resolvable:$true] %s128
    %132 = sst [smem:[#allocation22]] 512
    %s133 = scalar_lea.smem [#allocation22], 1
    %134 = sst [smem:[%s133]] 512
    %s135 = scalar_lea.smem [#allocation22], 2
    %136 = sst [smem:[%s135]] 4
    %s137 = scalar_lea.smem [#allocation22], 3
    %138 = sst [smem:[%s137]] 64
    %s139 = scalar_lea.smem [#allocation22], 4
    %140 = sst [smem:[%s139]] 128
    %s141 = scalar_lea.smem [#allocation22], 5
    %142 = sst [smem:[%s141]] 2
    %s143 = scalar_lea.smem [#allocation22], 6
    %144 = sst [smem:[%s143]] 256
    %s145 = scalar_lea.smem [#allocation22], 7
    %146 = sst [smem:[%s145]] 64
    %s147 = scalar_lea.smem [#allocation22], 8
    %148 = sst [smem:[%s147]] 4
    %150 = dma.general %s1, 20480, %s129, [#allocation7], [#allocation21], [#allocation22], %s127, 0
    %s151 = scalar_lea.sflag [#allocation7], 1
    %s153 = sshll.u32 1, 14
    %s154 = sxor.u32 4294967295, %s153
    %s156 = sadd.s32 2, %s120
    %s158 = sshll.u32 7, 26
    %s159 = sxor.u32 4294967295, %s158
    %s160 = sand.u32 0, %s159
    %s161 = sshll.u32 %s156, 26
    %s162 = sor.u32 %s160, %s161
    %s163 = sshll.u32 [#allocation3], 4
    %s164 = int_to_ptr.vmem [resolvable:$true] %s163
    %167 = sst [smem:[#allocation24]] 512
    %s168 = scalar_lea.smem [#allocation24], 1
    %169 = sst [smem:[%s168]] 512
    %s170 = scalar_lea.smem [#allocation24], 2
    %171 = sst [smem:[%s170]] 4
    %s172 = scalar_lea.smem [#allocation24], 3
    %173 = sst [smem:[%s172]] 64
    %s174 = scalar_lea.smem [#allocation24], 4
    %175 = sst [smem:[%s174]] 128
    %s176 = scalar_lea.smem [#allocation24], 5
    %177 = sst [smem:[%s176]] 2
    %s178 = scalar_lea.smem [#allocation24], 6
    %179 = sst [smem:[%s178]] 256
    %s180 = scalar_lea.smem [#allocation24], 7
    %181 = sst [smem:[%s180]] 64
    %s182 = scalar_lea.smem [#allocation24], 8
    %183 = sst [smem:[%s182]] 4
    %185 = dma.general %s2, 49152, %s164, %s151, [#allocation23], [#allocation24], %s162, 0
    %s186 = scalar_lea.sflag [#allocation7], 2
    %s188 = sshll.u32 1, 14
    %s189 = sxor.u32 4294967295, %s188
    %s191 = sadd.s32 2, %s120
    %s193 = sshll.u32 7, 26
    %s194 = sxor.u32 4294967295, %s193
    %s195 = sand.u32 0, %s194
    %s196 = sshll.u32 %s191, 26
    %s197 = sor.u32 %s195, %s196
    %s198 = sshll.u32 [#allocation4], 4
    %s199 = int_to_ptr.vmem [resolvable:$true] %s198
    %202 = sst [smem:[#allocation26]] 512
    %s203 = scalar_lea.smem [#allocation26], 1
    %204 = sst [smem:[%s203]] 512
    %s205 = scalar_lea.smem [#allocation26], 2
    %206 = sst [smem:[%s205]] 4
    %s207 = scalar_lea.smem [#allocation26], 3
    %208 = sst [smem:[%s207]] 64
    %s209 = scalar_lea.smem [#allocation26], 4
    %210 = sst [smem:[%s209]] 128
    %s211 = scalar_lea.smem [#allocation26], 5
    %212 = sst [smem:[%s211]] 2
    %s213 = scalar_lea.smem [#allocation26], 6
    %214 = sst [smem:[%s213]] 256
    %s215 = scalar_lea.smem [#allocation26], 7
    %216 = sst [smem:[%s215]] 64
    %s217 = scalar_lea.smem [#allocation26], 8
    %218 = sst [smem:[%s217]] 4
    %220 = dma.general %s3, 49152, %s199, %s186, [#allocation25], [#allocation26], %s197, 0
    %s221 = scalar_lea.sflag [#allocation7], 3
    %s223 = sshll.u32 1, 14
    %s224 = sxor.u32 4294967295, %s223
    %s226 = sadd.s32 2, %s120
    %s228 = sshll.u32 7, 26
    %s229 = sxor.u32 4294967295, %s228
    %s230 = sand.u32 0, %s229
    %s231 = sshll.u32 %s226, 26
    %s232 = sor.u32 %s230, %s231
    %s233 = sshll.u32 [#allocation5], 4
    %s234 = int_to_ptr.vmem [resolvable:$true] %s233
    %237 = sst [smem:[#allocation28]] 1536
    %s238 = scalar_lea.smem [#allocation28], 1
    %239 = sst [smem:[%s238]] 1536
    %s240 = scalar_lea.smem [#allocation28], 2
    %241 = sst [smem:[%s240]] 12
    %s242 = scalar_lea.smem [#allocation28], 3
    %243 = sst [smem:[%s242]] 64
    %s244 = scalar_lea.smem [#allocation28], 4
    %245 = sst [smem:[%s244]] 128
    %s246 = scalar_lea.smem [#allocation28], 5
    %247 = sst [smem:[%s246]] 2
    %s248 = scalar_lea.smem [#allocation28], 6
    %249 = sst [smem:[%s248]] 768
    %s250 = scalar_lea.smem [#allocation28], 7
    %251 = sst [smem:[%s250]] 64
    %s252 = scalar_lea.smem [#allocation28], 8
    %253 = sst [smem:[%s252]] 4
    %255 = dma.general %s4, 49152, %s234, %s221, [#allocation27], [#allocation28], %s232, 0
    %s256 = scalar_lea.sflag [#allocation7], 4
    %s258 = sshll.u32 1, 14
    %s259 = sxor.u32 4294967295, %s258
    %s261 = sadd.s32 2, %s120
    %s263 = sshll.u32 7, 26
    %s264 = sxor.u32 4294967295, %s263
    %s265 = sand.u32 0, %s264
    %s266 = sshll.u32 %s261, 26
    %s267 = sor.u32 %s265, %s266
    %s268 = sshll.u32 [#allocation6], 4
    %s269 = int_to_ptr.vmem [resolvable:$true] %s268
    %272 = sst [smem:[#allocation30]] 256
    %s273 = scalar_lea.smem [#allocation30], 1
    %274 = sst [smem:[%s273]] 256
    %s275 = scalar_lea.smem [#allocation30], 2
    %276 = sst [smem:[%s275]] 2
    %s277 = scalar_lea.smem [#allocation30], 3
    %278 = sst [smem:[%s277]] 64
    %s279 = scalar_lea.smem [#allocation30], 4
    %280 = sst [smem:[%s279]] 128
    %s281 = scalar_lea.smem [#allocation30], 5
    %282 = sst [smem:[%s281]] 2
    %s283 = scalar_lea.smem [#allocation30], 6
    %284 = sst [smem:[%s283]] 128
    %s285 = scalar_lea.smem [#allocation30], 7
    %286 = sst [smem:[%s285]] 64
    %s287 = scalar_lea.smem [#allocation30], 8
    %288 = sst [smem:[%s287]] 4
    %290 = dma.general %s5, 24576, %s269, %s256, [#allocation29], [#allocation30], %s267, 0
    %v291 = vlaneseq
    %v292 = vshrl.u32 %v291, 7
    %v293 = vadd.s32 %v292, 8
    %v294 = vadd.s32 %v292, 16
    %v295 = vadd.s32 %v292, 24
    %vm296 = vcmp.lt.s32.totalorder %v292, 0
    %v297 = vsub.s32 0, %v292
    %v298 = vsel %vm296, %v297, %v292
    %v299 = vshrl.u32 %v298, 4
    %v300 = vand.u32 %v298, 15
    %v301 = vsub.s32 0, %v300
    %v302 = vsel %vm296, %v301, %v300
    %vm303 = vcmp.lt.s32.totalorder %v293, 0
    %v304 = vsub.s32 0, %v293
    %v305 = vsel %vm303, %v304, %v293
    %v306 = vshrl.u32 %v305, 4
    %v307 = vand.u32 %v305, 15
    %v308 = vsub.s32 0, %v307
    %v309 = vsel %vm303, %v308, %v307
    %vm310 = vcmp.lt.s32.totalorder %v294, 0
    %v311 = vsub.s32 0, %v294
    %v312 = vsel %vm310, %v311, %v294
    %v313 = vshrl.u32 %v312, 4
    %v314 = vand.u32 %v312, 15
    %v315 = vsub.s32 0, %v314
    %v316 = vsel %vm310, %v315, %v314
    %vm317 = vcmp.lt.s32.totalorder %v295, 0
    %v318 = vsub.s32 0, %v295
    %v319 = vsel %vm317, %v318, %v295
    %v320 = vshrl.u32 %v319, 4
    %v321 = vand.u32 %v319, 15
    %v322 = vsub.s32 0, %v321
    %v323 = vsel %vm317, %v322, %v321
    %vm324 = vcmp.ne.s32.totalorder %v302, 0
    %vm325 = vcmp.ne.s32.totalorder %v309, 0
    %vm326 = vcmp.ne.s32.totalorder %v316, 0
    %vm327 = vcmp.ne.s32.totalorder %v323, 0
    %vm328 = vcmp.lt.s32.totalorder %v302, 0
    %vm329 = vcmp.lt.s32.totalorder %v309, 0
    %vm330 = vcmp.lt.s32.totalorder %v316, 0
    %vm331 = vcmp.lt.s32.totalorder %v323, 0
    %vm332 = vmand %vm328, %vm324
    %vm333 = vmand %vm329, %vm325
    %vm334 = vmand %vm330, %vm326
    %vm335 = vmand %vm331, %vm327
    %v336 = vadd.s32 %v302, 16
    %v337 = vadd.s32 %v309, 16
    %v338 = vadd.s32 %v316, 16
    %v339 = vadd.s32 %v323, 16
    %v340 = vsel %vm332, %v336, %v302
    %v341 = vsel %vm333, %v337, %v309
    %v342 = vsel %vm334, %v338, %v316
    %v343 = vsel %vm335, %v339, %v323
    %vm344 = vcmp.ge.s32.totalorder %v340, 2
    %vm345 = vcmp.ge.s32.totalorder %v341, 2
    %vm346 = vcmp.ge.s32.totalorder %v342, 2
    %vm347 = vcmp.ge.s32.totalorder %v343, 2
    %vm348 = vcmp.ge.s32.totalorder %v340, 1
    %vm349 = vcmp.ge.s32.totalorder %v341, 1
    %vm350 = vcmp.ge.s32.totalorder %v342, 1
    %vm351 = vcmp.ge.s32.totalorder %v343, 1
    %vm352 = vcmp.lt.s32.totalorder %v340, 15
    %vm353 = vcmp.lt.s32.totalorder %v341, 15
    %vm354 = vcmp.lt.s32.totalorder %v342, 15
    %vm355 = vcmp.lt.s32.totalorder %v343, 15
    %vm356 = vcmp.lt.s32.totalorder %v340, 14
    %vm357 = vcmp.lt.s32.totalorder %v341, 14
    %vm358 = vcmp.lt.s32.totalorder %v342, 14
    %vm359 = vcmp.lt.s32.totalorder %v343, 14
    %v360 = vld [vmem:[#allocation8] sm:$0xff]
    %v361 = vld [vmem:[#allocation8 + $0x8] sm:$0xff]
    %v362 = vld [vmem:[#allocation8 + $0x10] sm:$0xff]
    %v363 = vld [vmem:[#allocation8 + $0x18] sm:$0xff]
    %v364 = vrot.slane %v360, 6
    %v365 = vrot.slane %v361, 6
    %v366 = vrot.slane %v362, 6
    %v367 = vrot.slane %v363, 6
    %vm368 = vcmp.lt.s32.totalorder %v292, 2
    %v369 = vsel %vm368, %v366, %v367
    %v370 = vsel %vm368, %v365, %v366
    %v371 = vsel %vm368, %v364, %v365
    %v372 = vsel %vm368, %v367, %v364
    %v373 = vsel %vm344, 1, 0
    %v374 = vsel %vm345, 1, 0
    %v375 = vsel %vm346, 1, 0
    %v376 = vsel %vm347, 1, 0
    %vm377 = vcmp.eq.s32.totalorder %v373, 1
    %vm378 = vcmp.eq.s32.totalorder %v374, 1
    %vm379 = vcmp.eq.s32.totalorder %v375, 1
    %vm380 = vcmp.eq.s32.totalorder %v376, 1
    %v381 = vsel %vm377, %v372, 0.0
    %v382 = vsel %vm378, %v371, 0.0
    %v383 = vsel %vm379, %v370, 0.0
    %v384 = vsel %vm380, %v369, 0.0
    %v385 = vpack.c.bf16 %v382, %v381
    %v386 = vpack.c.bf16 %v384, %v383
    %v387 = vrot.slane %v360, 7
    %v388 = vrot.slane %v361, 7
    %v389 = vrot.slane %v362, 7
    %v390 = vrot.slane %v363, 7
    %vm391 = vcmp.lt.s32.totalorder %v292, 1
    %v392 = vsel %vm391, %v389, %v390
    %v393 = vsel %vm391, %v388, %v389
    %v394 = vsel %vm391, %v387, %v388
    %v395 = vsel %vm391, %v390, %v387
    %v396 = vsel %vm348, 1, 0
    %v397 = vsel %vm349, 1, 0
    %v398 = vsel %vm350, 1, 0
    %v399 = vsel %vm351, 1, 0
    %vm400 = vcmp.eq.s32.totalorder %v396, 1
    %vm401 = vcmp.eq.s32.totalorder %v397, 1
    %vm402 = vcmp.eq.s32.totalorder %v398, 1
    %vm403 = vcmp.eq.s32.totalorder %v399, 1
    %v404 = vsel %vm400, %v395, 0.0
    %v405 = vsel %vm401, %v394, 0.0
    %v406 = vsel %vm402, %v393, 0.0
    %v407 = vsel %vm403, %v392, 0.0
    %v408 = vpack.c.bf16 %v405, %v404
    %v409 = vpack.c.bf16 %v407, %v406
    %v410 = vpack.c.bf16 %v361, %v360
    %v411 = vpack.c.bf16 %v363, %v362
    %v412 = vrot.slane %v360, 1
    %v413 = vrot.slane %v361, 1
    %v414 = vrot.slane %v362, 1
    %v415 = vrot.slane %v363, 1
    %vm416 = vcmp.lt.s32.totalorder %v292, 7
    %v417 = vsel %vm416, %v414, %v415
    %v418 = vsel %vm416, %v413, %v414
    %v419 = vsel %vm416, %v412, %v413
    %v420 = vsel %vm416, %v415, %v412
    %v421 = vsel %vm352, 1, 0
    %v422 = vsel %vm353, 1, 0
    %v423 = vsel %vm354, 1, 0
    %v424 = vsel %vm355, 1, 0
    %vm425 = vcmp.eq.s32.totalorder %v421, 1
    %vm426 = vcmp.eq.s32.totalorder %v422, 1
    %vm427 = vcmp.eq.s32.totalorder %v423, 1
    %vm428 = vcmp.eq.s32.totalorder %v424, 1
    %v429 = vsel %vm425, %v419, 0.0
    %v430 = vsel %vm426, %v418, 0.0
    %v431 = vsel %vm427, %v417, 0.0
    %v432 = vsel %vm428, %v420, 0.0
    %v433 = vpack.c.bf16 %v430, %v429
    %v434 = vpack.c.bf16 %v432, %v431
    %v435 = vrot.slane %v360, 2
    %v436 = vrot.slane %v361, 2
    %v437 = vrot.slane %v362, 2
    %v438 = vrot.slane %v363, 2
    %vm439 = vcmp.lt.s32.totalorder %v292, 6
    %v440 = vsel %vm439, %v437, %v438
    %v441 = vsel %vm439, %v436, %v437
    %v442 = vsel %vm439, %v435, %v436
    %v443 = vsel %vm439, %v438, %v435
    %v444 = vsel %vm356, 1, 0
    %v445 = vsel %vm357, 1, 0
    %v446 = vsel %vm358, 1, 0
    %v447 = vsel %vm359, 1, 0
    %vm448 = vcmp.eq.s32.totalorder %v444, 1
    %vm449 = vcmp.eq.s32.totalorder %v445, 1
    %vm450 = vcmp.eq.s32.totalorder %v446, 1
    %vm451 = vcmp.eq.s32.totalorder %v447, 1
    %v452 = vsel %vm448, %v442, 0.0
    %v453 = vsel %vm449, %v441, 0.0
    %v454 = vsel %vm450, %v440, 0.0
    %v455 = vsel %vm451, %v443, 0.0
    %v456 = vpack.c.bf16 %v453, %v452
    %v457 = vpack.c.bf16 %v455, %v454
    %s458 = smul.u32 4, 80
    %s459 = smul.u32 %s458, 4
    %s460 = sshll.u32 %s459, 4
    %461 = dma.done [#allocation7], %s460
    %v462 = vld [vmem:[#allocation2] sm:$0xff]
    %v463 = vld [vmem:[#allocation2 + $0x8] sm:$0xff]
    %v464 = vld [vmem:[#allocation2 + $0x10] sm:$0xff]
    %v465 = vld [vmem:[#allocation2 + $0x18] sm:$0xff]
    %v466 = vld [vmem:[#allocation2 + $0x20] sm:$0xff]
    %v467 = vld [vmem:[#allocation2 + $0x28] sm:$0xff]
    %v468 = vld [vmem:[#allocation2 + $0x30] sm:$0xff]
    %v469 = vld [vmem:[#allocation2 + $0x38] sm:$0xff]
    %v470 = vld [vmem:[#allocation2 + $0x40] sm:$0xff]
    %v471 = vld [vmem:[#allocation2 + $0x48] sm:$0xff]
    %v472 = vld [vmem:[#allocation2 + $0x50] sm:$0xff]
    %v473 = vld [vmem:[#allocation2 + $0x58] sm:$0xff]
    %v474 = vld [vmem:[#allocation2 + $0x60] sm:$0xff]
    %v475 = vld [vmem:[#allocation2 + $0x68] sm:$0xff]
    %v476 = vld [vmem:[#allocation2 + $0x70] sm:$0xff]
    %v477 = vld [vmem:[#allocation2 + $0x78] sm:$0xff]
    %v478 = vld [vmem:[#allocation2 + $0x80] sm:$0xff]
    %v479 = vld [vmem:[#allocation2 + $0x88] sm:$0xff]
    %v480 = vld [vmem:[#allocation2 + $0x90] sm:$0xff]
    %v481 = vld [vmem:[#allocation2 + $0x98] sm:$0xff]
    %v482 = vld [vmem:[#allocation2 + $0xa0] sm:$0xff]
    %v483 = vld [vmem:[#allocation2 + $0xa8] sm:$0xff]
    %v484 = vld [vmem:[#allocation2 + $0xb0] sm:$0xff]
    %v485 = vld [vmem:[#allocation2 + $0xb8] sm:$0xff]
    %v486 = vld [vmem:[#allocation2 + $0xc0] sm:$0xff]
    %v487 = vld [vmem:[#allocation2 + $0xc8] sm:$0xff]
    %v488 = vld [vmem:[#allocation2 + $0xd0] sm:$0xff]
    %v489 = vld [vmem:[#allocation2 + $0xd8] sm:$0xff]
    %v490 = vld [vmem:[#allocation2 + $0xe0] sm:$0xff]
    %v491 = vld [vmem:[#allocation2 + $0xe8] sm:$0xff]
    %v492 = vld [vmem:[#allocation2 + $0xf0] sm:$0xff]
    %v493 = vld [vmem:[#allocation2 + $0xf8] sm:$0xff]
    %v494 = vld [vmem:[#allocation2 + $0x100] sm:$0xff]
    %v495 = vld [vmem:[#allocation2 + $0x108] sm:$0xff]
    %v496 = vld [vmem:[#allocation2 + $0x110] sm:$0xff]
    %v497 = vld [vmem:[#allocation2 + $0x118] sm:$0xff]
    %v498 = vld [vmem:[#allocation2 + $0x120] sm:$0xff]
    %v499 = vld [vmem:[#allocation2 + $0x128] sm:$0xff]
    %v500 = vld [vmem:[#allocation2 + $0x130] sm:$0xff]
    %v501 = vld [vmem:[#allocation2 + $0x138] sm:$0xff]
    %v502 = vld [vmem:[#allocation2 + $0x140] sm:$0xff]
    %v503 = vld [vmem:[#allocation2 + $0x148] sm:$0xff]
    %v504 = vld [vmem:[#allocation2 + $0x150] sm:$0xff]
    %v505 = vld [vmem:[#allocation2 + $0x158] sm:$0xff]
    %v506 = vld [vmem:[#allocation2 + $0x160] sm:$0xff]
    %v507 = vld [vmem:[#allocation2 + $0x168] sm:$0xff]
    %v508 = vld [vmem:[#allocation2 + $0x170] sm:$0xff]
    %v509 = vld [vmem:[#allocation2 + $0x178] sm:$0xff]
    %v510 = vld [vmem:[#allocation2 + $0x180] sm:$0xff]
    %v511 = vld [vmem:[#allocation2 + $0x188] sm:$0xff]
    %v512 = vld [vmem:[#allocation2 + $0x190] sm:$0xff]
    %v513 = vld [vmem:[#allocation2 + $0x198] sm:$0xff]
    %v514 = vld [vmem:[#allocation2 + $0x1a0] sm:$0xff]
    %v515 = vld [vmem:[#allocation2 + $0x1a8] sm:$0xff]
    %v516 = vld [vmem:[#allocation2 + $0x1b0] sm:$0xff]
    %v517 = vld [vmem:[#allocation2 + $0x1b8] sm:$0xff]
    %v518 = vld [vmem:[#allocation2 + $0x1c0] sm:$0xff]
    %v519 = vld [vmem:[#allocation2 + $0x1c8] sm:$0xff]
    %v520 = vld [vmem:[#allocation2 + $0x1d0] sm:$0xff]
    %v521 = vld [vmem:[#allocation2 + $0x1d8] sm:$0xff]
    %v522 = vld [vmem:[#allocation2 + $0x1e0] sm:$0xff]
    %v523 = vld [vmem:[#allocation2 + $0x1e8] sm:$0xff]
    %v524 = vld [vmem:[#allocation2 + $0x1f0] sm:$0xff]
    %v525 = vld [vmem:[#allocation2 + $0x1f8] sm:$0xff]
    %v526 = vld [vmem:[#allocation2 + $0x200] sm:$0xff]
    %v527 = vld [vmem:[#allocation2 + $0x208] sm:$0xff]
    %v528 = vld [vmem:[#allocation2 + $0x210] sm:$0xff]
    %v529 = vld [vmem:[#allocation2 + $0x218] sm:$0xff]
    %v530 = vld [vmem:[#allocation2 + $0x220] sm:$0xff]
    %v531 = vld [vmem:[#allocation2 + $0x228] sm:$0xff]
    %v532 = vld [vmem:[#allocation2 + $0x230] sm:$0xff]
    %v533 = vld [vmem:[#allocation2 + $0x238] sm:$0xff]
    %v534 = vld [vmem:[#allocation2 + $0x240] sm:$0xff]
    %v535 = vld [vmem:[#allocation2 + $0x248] sm:$0xff]
    %v536 = vld [vmem:[#allocation2 + $0x250] sm:$0xff]
    %v537 = vld [vmem:[#allocation2 + $0x258] sm:$0xff]
    %v538 = vld [vmem:[#allocation2 + $0x260] sm:$0xff]
    %v539 = vld [vmem:[#allocation2 + $0x268] sm:$0xff]
    %v540 = vld [vmem:[#allocation2 + $0x270] sm:$0xff]
    %v541 = vld [vmem:[#allocation2 + $0x278] sm:$0xff]
    %v542 = vld [vmem:[#allocation2 + $0x280] sm:$0xff]
    %v543 = vld [vmem:[#allocation2 + $0x288] sm:$0xff]
    %v544 = vld [vmem:[#allocation2 + $0x290] sm:$0xff]
    %v545 = vld [vmem:[#allocation2 + $0x298] sm:$0xff]
    %v546 = vld [vmem:[#allocation2 + $0x2a0] sm:$0xff]
    %v547 = vld [vmem:[#allocation2 + $0x2a8] sm:$0xff]
    %v548 = vld [vmem:[#allocation2 + $0x2b0] sm:$0xff]
    %v549 = vld [vmem:[#allocation2 + $0x2b8] sm:$0xff]
    %v550 = vld [vmem:[#allocation2 + $0x2c0] sm:$0xff]
    %v551 = vld [vmem:[#allocation2 + $0x2c8] sm:$0xff]
    %v552 = vld [vmem:[#allocation2 + $0x2d0] sm:$0xff]
    %v553 = vld [vmem:[#allocation2 + $0x2d8] sm:$0xff]
    %v554 = vld [vmem:[#allocation2 + $0x2e0] sm:$0xff]
    %v555 = vld [vmem:[#allocation2 + $0x2e8] sm:$0xff]
    %v556 = vld [vmem:[#allocation2 + $0x2f0] sm:$0xff]
    %v557 = vld [vmem:[#allocation2 + $0x2f8] sm:$0xff]
    %v558 = vld [vmem:[#allocation2 + $0x300] sm:$0xff]
    %v559 = vld [vmem:[#allocation2 + $0x308] sm:$0xff]
    %v560 = vld [vmem:[#allocation2 + $0x310] sm:$0xff]
    %v561 = vld [vmem:[#allocation2 + $0x318] sm:$0xff]
    %v562 = vld [vmem:[#allocation2 + $0x320] sm:$0xff]
    %v563 = vld [vmem:[#allocation2 + $0x328] sm:$0xff]
    %v564 = vld [vmem:[#allocation2 + $0x330] sm:$0xff]
    %v565 = vld [vmem:[#allocation2 + $0x338] sm:$0xff]
    %v566 = vld [vmem:[#allocation2 + $0x340] sm:$0xff]
    %v567 = vld [vmem:[#allocation2 + $0x348] sm:$0xff]
    %v568 = vld [vmem:[#allocation2 + $0x350] sm:$0xff]
    %v569 = vld [vmem:[#allocation2 + $0x358] sm:$0xff]
    %v570 = vld [vmem:[#allocation2 + $0x360] sm:$0xff]
    %v571 = vld [vmem:[#allocation2 + $0x368] sm:$0xff]
    %v572 = vld [vmem:[#allocation2 + $0x370] sm:$0xff]
    %v573 = vld [vmem:[#allocation2 + $0x378] sm:$0xff]
    %v574 = vld [vmem:[#allocation2 + $0x380] sm:$0xff]
    %v575 = vld [vmem:[#allocation2 + $0x388] sm:$0xff]
    %v576 = vld [vmem:[#allocation2 + $0x390] sm:$0xff]
    %v577 = vld [vmem:[#allocation2 + $0x398] sm:$0xff]
    %v578 = vld [vmem:[#allocation2 + $0x3a0] sm:$0xff]
    %v579 = vld [vmem:[#allocation2 + $0x3a8] sm:$0xff]
    %v580 = vld [vmem:[#allocation2 + $0x3b0] sm:$0xff]
    %v581 = vld [vmem:[#allocation2 + $0x3b8] sm:$0xff]
    %v582 = vld [vmem:[#allocation2 + $0x3c0] sm:$0xff]
    %v583 = vld [vmem:[#allocation2 + $0x3c8] sm:$0xff]
    %v584 = vld [vmem:[#allocation2 + $0x3d0] sm:$0xff]
    %v585 = vld [vmem:[#allocation2 + $0x3d8] sm:$0xff]
    %v586 = vld [vmem:[#allocation2 + $0x3e0] sm:$0xff]
    %v587 = vld [vmem:[#allocation2 + $0x3e8] sm:$0xff]
    %v588 = vld [vmem:[#allocation2 + $0x3f0] sm:$0xff]
    %v589 = vld [vmem:[#allocation2 + $0x3f8] sm:$0xff]
    %v590 = vld [vmem:[#allocation2 + $0x400] sm:$0xff]
    %v591 = vld [vmem:[#allocation2 + $0x408] sm:$0xff]
    %v592 = vld [vmem:[#allocation2 + $0x410] sm:$0xff]
    %v593 = vld [vmem:[#allocation2 + $0x418] sm:$0xff]
    %v594 = vld [vmem:[#allocation2 + $0x420] sm:$0xff]
    %v595 = vld [vmem:[#allocation2 + $0x428] sm:$0xff]
    %v596 = vld [vmem:[#allocation2 + $0x430] sm:$0xff]
    %v597 = vld [vmem:[#allocation2 + $0x438] sm:$0xff]
    %v598 = vld [vmem:[#allocation2 + $0x440] sm:$0xff]
    %v599 = vld [vmem:[#allocation2 + $0x448] sm:$0xff]
    %v600 = vld [vmem:[#allocation2 + $0x450] sm:$0xff]
    %v601 = vld [vmem:[#allocation2 + $0x458] sm:$0xff]
    %v602 = vld [vmem:[#allocation2 + $0x460] sm:$0xff]
    %v603 = vld [vmem:[#allocation2 + $0x468] sm:$0xff]
    %v604 = vld [vmem:[#allocation2 + $0x470] sm:$0xff]
    %v605 = vld [vmem:[#allocation2 + $0x478] sm:$0xff]
    %v606 = vld [vmem:[#allocation2 + $0x480] sm:$0xff]
    %v607 = vld [vmem:[#allocation2 + $0x488] sm:$0xff]
    %v608 = vld [vmem:[#allocation2 + $0x490] sm:$0xff]
    %v609 = vld [vmem:[#allocation2 + $0x498] sm:$0xff]
    %v610 = vld [vmem:[#allocation2 + $0x4a0] sm:$0xff]
    %v611 = vld [vmem:[#allocation2 + $0x4a8] sm:$0xff]
    %v612 = vld [vmem:[#allocation2 + $0x4b0] sm:$0xff]
    %v613 = vld [vmem:[#allocation2 + $0x4b8] sm:$0xff]
    %v614 = vld [vmem:[#allocation2 + $0x4c0] sm:$0xff]
    %v615 = vld [vmem:[#allocation2 + $0x4c8] sm:$0xff]
    %v616 = vld [vmem:[#allocation2 + $0x4d0] sm:$0xff]
    %v617 = vld [vmem:[#allocation2 + $0x4d8] sm:$0xff]
    %v618 = vld [vmem:[#allocation2 + $0x4e0] sm:$0xff]
    %v619 = vld [vmem:[#allocation2 + $0x4e8] sm:$0xff]
    %v620 = vld [vmem:[#allocation2 + $0x4f0] sm:$0xff]
    %v621 = vld [vmem:[#allocation2 + $0x4f8] sm:$0xff]
    %v622 = vld [vmem:[#allocation11] sm:$0xf]
    %v624 = vlaneseq
    %v625 = vshrl.u32 %v624, 7
    %v626 = vsub.s32 0, %v625
    %v627 = vrot.slane %v622, %v626
    %v628 = vlaneseq
    %v629 = vshrl.u32 %v628, 7
    %v630 = vsub.s32 1, %v629
    %v631 = vrot.slane %v622, %v630
    %v632 = vlaneseq
    %v633 = vshrl.u32 %v632, 7
    %v634 = vsub.s32 2, %v633
    %v635 = vrot.slane %v622, %v634
    %v636 = vlaneseq
    %v637 = vshrl.u32 %v636, 7
    %v638 = vsub.s32 3, %v637
    %v639 = vrot.slane %v622, %v638
    %644 = vmatprep.subr.bf16.mxu0 %v463
    %645 = vmatpush1.bf16.msra.mxu0 %v462
    %646 = vmatprep.subr.bf16.mxu0 %v467
    %647 = vmatpush1.bf16.msra.mxu0 %v466
    %648 = vmatprep.subr.bf16.mxu0 %v471
    %649 = vmatpush1.bf16.msra.mxu0 %v470
    %650 = vmatprep.subr.bf16.mxu0 %v475
    %651 = vmatpush1.bf16.msra.mxu0 %v474
    %652 = vmatprep.subr.bf16.mxu0 %v479
    %653 = vmatpush1.bf16.msra.mxu0 %v478
    %654 = vmatprep.subr.bf16.mxu0 %v483
    %655 = vmatpush1.bf16.msra.mxu0 %v482
    %656 = vmatprep.subr.bf16.mxu0 %v487
    %657 = vmatpush1.bf16.msra.mxu0 %v486
    %658 = vmatprep.subr.bf16.mxu0 %v491
    %659 = vmatpush1.bf16.msra.mxu0 %v490
    %660 = vmatprep.subr.bf16.mxu0 %v495
    %661 = vmatpush1.bf16.msra.mxu0 %v494
    %662 = vmatprep.subr.bf16.mxu0 %v499
    %663 = vmatpush1.bf16.msra.mxu0 %v498
    %664 = vmatprep.subr.bf16.mxu0 %v503
    %665 = vmatpush1.bf16.msra.mxu0 %v502
    %666 = vmatprep.subr.bf16.mxu0 %v507
    %667 = vmatpush1.bf16.msra.mxu0 %v506
    %668 = vmatprep.subr.bf16.mxu0 %v511
    %669 = vmatpush1.bf16.msra.mxu0 %v510
    %670 = vmatprep.subr.bf16.mxu0 %v515
    %671 = vmatpush1.bf16.msra.mxu0 %v514
    %672 = vmatprep.subr.bf16.mxu0 %v519
    %673 = vmatpush1.bf16.msra.mxu0 %v518
    %674 = vmatprep.subr.bf16.mxu0 %v523
    %675 = vmatpush1.bf16.msra.mxu0 %v522
    %676 = vmatprep.mubr.bf16.mxu0 %v408
    %677 = vmatmul.mubr.bf16.gmra.mrb[0].mxu0 %v385
    %v678 = vpop.f32.mrb[0].mxu0
    %v679 = vadd.f32 %v627, %v678
    %v680 = vpop.f32.mrb[0].mxu0
    %v681 = vadd.f32 %v631, %v680
    %v682 = vpop.f32.mrb[0].mxu0
    %v683 = vadd.f32 %v627, %v682
    %v684 = vpop.f32.mrb[0].mxu0
    %v685 = vadd.f32 %v631, %v684
    %686 = vmatprep.mubr.bf16.mxu0 %v409
    %687 = vmatmul.mubr.bf16.gmra.mrb[0].mxu0 %v386
    %v688 = vpop.f32.mrb[0].mxu0
    %v689 = vadd.f32 %v627, %v688
    %v690 = vpop.f32.mrb[0].mxu0
    %v691 = vadd.f32 %v631, %v690
    %v692 = vpop.f32.mrb[0].mxu0
    %v693 = vadd.f32 %v627, %v692
    %v694 = vpop.f32.mrb[0].mxu0
    %v695 = vadd.f32 %v631, %v694
    %696 = vdwg.mxu0
    %697 = vmatprep.subr.bf16.mxu0 %v527
    %698 = vmatpush1.bf16.msra.mxu0 %v526
    %699 = vmatprep.subr.bf16.mxu0 %v531
    %700 = vmatpush1.bf16.msra.mxu0 %v530
    %701 = vmatprep.subr.bf16.mxu0 %v535
    %702 = vmatpush1.bf16.msra.mxu0 %v534
    %703 = vmatprep.subr.bf16.mxu0 %v539
    %704 = vmatpush1.bf16.msra.mxu0 %v538
    %705 = vmatprep.subr.bf16.mxu0 %v543
    %706 = vmatpush1.bf16.msra.mxu0 %v542
    %707 = vmatprep.subr.bf16.mxu0 %v547
    %708 = vmatpush1.bf16.msra.mxu0 %v546
    %709 = vmatprep.subr.bf16.mxu0 %v551
    %710 = vmatpush1.bf16.msra.mxu0 %v550
    %711 = vmatprep.subr.bf16.mxu0 %v555
    %712 = vmatpush1.bf16.msra.mxu0 %v554
    %713 = vmatprep.subr.bf16.mxu0 %v559
    %714 = vmatpush1.bf16.msra.mxu0 %v558
    %715 = vmatprep.subr.bf16.mxu0 %v563
    %716 = vmatpush1.bf16.msra.mxu0 %v562
    %717 = vmatprep.subr.bf16.mxu0 %v567
    %718 = vmatpush1.bf16.msra.mxu0 %v566
    %719 = vmatprep.subr.bf16.mxu0 %v571
    %720 = vmatpush1.bf16.msra.mxu0 %v570
    %721 = vmatprep.subr.bf16.mxu0 %v575
    %722 = vmatpush1.bf16.msra.mxu0 %v574
    %723 = vmatprep.subr.bf16.mxu0 %v579
    %724 = vmatpush1.bf16.msra.mxu0 %v578
    %725 = vmatprep.subr.bf16.mxu0 %v583
    %726 = vmatpush1.bf16.msra.mxu0 %v582
    %727 = vmatprep.subr.bf16.mxu0 %v587
    %728 = vmatpush1.bf16.msra.mxu0 %v586
    %729 = vmatprep.mubr.bf16.mxu0 %v433
    %730 = vmatmul.mubr.bf16.gmra.mrb[0].mxu0 %v410
    %v731 = vpop.f32.mrb[0].mxu0
    %v732 = vadd.f32 %v679, %v731
    %v733 = vpop.f32.mrb[0].mxu0
    %v734 = vadd.f32 %v681, %v733
    %v735 = vpop.f32.mrb[0].mxu0
    %v736 = vadd.f32 %v683, %v735
    %v737 = vpop.f32.mrb[0].mxu0
    %v738 = vadd.f32 %v685, %v737
    %739 = vmatprep.mubr.bf16.mxu0 %v434
    %740 = vmatmul.mubr.bf16.gmra.mrb[0].mxu0 %v411
    %v741 = vpop.f32.mrb[0].mxu0
    %v742 = vadd.f32 %v689, %v741
    %v743 = vpop.f32.mrb[0].mxu0
    %v744 = vadd.f32 %v691, %v743
    %v745 = vpop.f32.mrb[0].mxu0
    %v746 = vadd.f32 %v693, %v745
    %v747 = vpop.f32.mrb[0].mxu0
    %v748 = vadd.f32 %v695, %v747
    %749 = vdwg.mxu0
    %750 = vmatprep.subr.bf16.mxu0 %v591
    %751 = vmatpush1.bf16.msra.mxu0 %v590
    %752 = vmatprep.subr.bf16.mxu0 %v595
    %753 = vmatpush1.bf16.msra.mxu0 %v594
    %754 = vmatprep.subr.bf16.mxu0 %v599
    %755 = vmatpush1.bf16.msra.mxu0 %v598
    %756 = vmatprep.subr.bf16.mxu0 %v603
    %757 = vmatpush1.bf16.msra.mxu0 %v602
    %758 = vmatprep.subr.bf16.mxu0 %v607
    %759 = vmatpush1.bf16.msra.mxu0 %v606
    %760 = vmatprep.subr.bf16.mxu0 %v611
    %761 = vmatpush1.bf16.msra.mxu0 %v610
    %762 = vmatprep.subr.bf16.mxu0 %v615
    %763 = vmatpush1.bf16.msra.mxu0 %v614
    %764 = vmatprep.subr.bf16.mxu0 %v619
    %765 = vmatpush1.bf16.msra.mxu0 %v618
    %766 = vmatprep.subr.bf16.mxu0 0
    %767 = vmatpush1.bf16.msra.mxu0 0
    %768 = vmatprep.subr.bf16.mxu0 0
    %769 = vmatpush1.bf16.msra.mxu0 0
    %770 = vmatprep.subr.bf16.mxu0 0
    %771 = vmatpush1.bf16.msra.mxu0 0
    %772 = vmatprep.subr.bf16.mxu0 0
    %773 = vmatpush1.bf16.msra.mxu0 0
    %774 = vmatprep.subr.bf16.mxu0 0
    %775 = vmatpush1.bf16.msra.mxu0 0
    %776 = vmatprep.subr.bf16.mxu0 0
    %777 = vmatpush1.bf16.msra.mxu0 0
    %778 = vmatprep.subr.bf16.mxu0 0
    %779 = vmatpush1.bf16.msra.mxu0 0
    %780 = vmatprep.subr.bf16.mxu0 0
    %781 = vmatpush1.bf16.msra.mxu0 0
    %782 = vmatprep.mubr.bf16.mxu0 0
    %783 = vmatmul.mubr.bf16.gmra.mrb[0].mxu0 %v456
    %v784 = vpop.f32.mrb[0].mxu0
    %v785 = vadd.f32 %v732, %v784
    %v786 = vpop.f32.mrb[0].mxu0
    %v787 = vadd.f32 %v734, %v786
    %v788 = vpop.f32.mrb[0].mxu0
    %v789 = vadd.f32 %v736, %v788
    %v790 = vpop.f32.mrb[0].mxu0
    %v791 = vadd.f32 %v738, %v790
    %792 = vmatprep.mubr.bf16.mxu0 0
    %793 = vmatmul.mubr.bf16.gmra.mrb[0].mxu0 %v457
    %v794 = vpop.f32.mrb[0].mxu0
    %v795 = vadd.f32 %v742, %v794
    %v796 = vpop.f32.mrb[0].mxu0
    %v797 = vadd.f32 %v744, %v796
    %v798 = vpop.f32.mrb[0].mxu0
    %v799 = vadd.f32 %v746, %v798
    %v800 = vpop.f32.mrb[0].mxu0
    %v801 = vadd.f32 %v748, %v800
    %802 = vdwg.mxu0
    %803 = vmatprep.subr.bf16.mxu0 %v465
    %804 = vmatpush1.bf16.msra.mxu0 %v464
    %805 = vmatprep.subr.bf16.mxu0 %v469
    %806 = vmatpush1.bf16.msra.mxu0 %v468
    %807 = vmatprep.subr.bf16.mxu0 %v473
    %808 = vmatpush1.bf16.msra.mxu0 %v472
    %809 = vmatprep.subr.bf16.mxu0 %v477
    %810 = vmatpush1.bf16.msra.mxu0 %v476
    %811 = vmatprep.subr.bf16.mxu0 %v481
    %812 = vmatpush1.bf16.msra.mxu0 %v480
    %813 = vmatprep.subr.bf16.mxu0 %v485
    %814 = vmatpush1.bf16.msra.mxu0 %v484
    %815 = vmatprep.subr.bf16.mxu0 %v489
    %816 = vmatpush1.bf16.msra.mxu0 %v488
    %817 = vmatprep.subr.bf16.mxu0 %v493
    %818 = vmatpush1.bf16.msra.mxu0 %v492
    %819 = vmatprep.subr.bf16.mxu0 %v497
    %820 = vmatpush1.bf16.msra.mxu0 %v496
    %821 = vmatprep.subr.bf16.mxu0 %v501
    %822 = vmatpush1.bf16.msra.mxu0 %v500
    %823 = vmatprep.subr.bf16.mxu0 %v505
    %824 = vmatpush1.bf16.msra.mxu0 %v504
    %825 = vmatprep.subr.bf16.mxu0 %v509
    %826 = vmatpush1.bf16.msra.mxu0 %v508
    %827 = vmatprep.subr.bf16.mxu0 %v513
    %828 = vmatpush1.bf16.msra.mxu0 %v512
    %829 = vmatprep.subr.bf16.mxu0 %v517
    %830 = vmatpush1.bf16.msra.mxu0 %v516
    %831 = vmatprep.subr.bf16.mxu0 %v521
    %832 = vmatpush1.bf16.msra.mxu0 %v520
    %833 = vmatprep.subr.bf16.mxu0 %v525
    %834 = vmatpush1.bf16.msra.mxu0 %v524
    %835 = vmatprep.mubr.bf16.mxu0 %v408
    %836 = vmatmul.mubr.bf16.gmra.mrb[0].mxu0 %v385
    %v837 = vpop.f32.mrb[0].mxu0
    %v838 = vadd.f32 %v635, %v837
    %v839 = vpop.f32.mrb[0].mxu0
    %v840 = vadd.f32 %v639, %v839
    %v841 = vpop.f32.mrb[0].mxu0
    %v842 = vadd.f32 %v635, %v841
    %v843 = vpop.f32.mrb[0].mxu0
    %v844 = vadd.f32 %v639, %v843
    %845 = vmatprep.mubr.bf16.mxu0 %v409
    %846 = vmatmul.mubr.bf16.gmra.mrb[0].mxu0 %v386
    %v847 = vpop.f32.mrb[0].mxu0
    %v848 = vadd.f32 %v635, %v847
    %v849 = vpop.f32.mrb[0].mxu0
    %v850 = vadd.f32 %v639, %v849
    %v851 = vpop.f32.mrb[0].mxu0
    %v852 = vadd.f32 %v635, %v851
    %v853 = vpop.f32.mrb[0].mxu0
    %v854 = vadd.f32 %v639, %v853
    %855 = vdwg.mxu0
    %856 = vmatprep.subr.bf16.mxu0 %v529
    %857 = vmatpush1.bf16.msra.mxu0 %v528
    %858 = vmatprep.subr.bf16.mxu0 %v533
    %859 = vmatpush1.bf16.msra.mxu0 %v532
    %860 = vmatprep.subr.bf16.mxu0 %v537
    %861 = vmatpush1.bf16.msra.mxu0 %v536
    %862 = vmatprep.subr.bf16.mxu0 %v541
    %863 = vmatpush1.bf16.msra.mxu0 %v540
    %864 = vmatprep.subr.bf16.mxu0 %v545
    %865 = vmatpush1.bf16.msra.mxu0 %v544
    %866 = vmatprep.subr.bf16.mxu0 %v549
    %867 = vmatpush1.bf16.msra.mxu0 %v548
    %868 = vmatprep.subr.bf16.mxu0 %v553
    %869 = vmatpush1.bf16.msra.mxu0 %v552
    %870 = vmatprep.subr.bf16.mxu0 %v557
    %871 = vmatpush1.bf16.msra.mxu0 %v556
    %872 = vmatprep.subr.bf16.mxu0 %v561
    %873 = vmatpush1.bf16.msra.mxu0 %v560
    %874 = vmatprep.subr.bf16.mxu0 %v565
    %875 = vmatpush1.bf16.msra.mxu0 %v564
    %876 = vmatprep.subr.bf16.mxu0 %v569
    %877 = vmatpush1.bf16.msra.mxu0 %v568
    %878 = vmatprep.subr.bf16.mxu0 %v573
    %879 = vmatpush1.bf16.msra.mxu0 %v572
    %880 = vmatprep.subr.bf16.mxu0 %v577
    %881 = vmatpush1.bf16.msra.mxu0 %v576
    %882 = vmatprep.subr.bf16.mxu0 %v581
    %883 = vmatpush1.bf16.msra.mxu0 %v580
    %884 = vmatprep.subr.bf16.mxu0 %v585
    %885 = vmatpush1.bf16.msra.mxu0 %v584
    %886 = vmatprep.subr.bf16.mxu0 %v589
    %887 = vmatpush1.bf16.msra.mxu0 %v588
    %888 = vmatprep.mubr.bf16.mxu0 %v433
    %889 = vmatmul.mubr.bf16.gmra.mrb[0].mxu0 %v410
    %v890 = vpop.f32.mrb[0].mxu0
    %v891 = vadd.f32 %v838, %v890
    %v892 = vpop.f32.mrb[0].mxu0
    %v893 = vadd.f32 %v840, %v892
    %v894 = vpop.f32.mrb[0].mxu0
    %v895 = vadd.f32 %v842, %v894
    %v896 = vpop.f32.mrb[0].mxu0
    %v897 = vadd.f32 %v844, %v896
    %898 = vmatprep.mubr.bf16.mxu0 %v434
    %899 = vmatmul.mubr.bf16.gmra.mrb[0].mxu0 %v411
    %v900 = vpop.f32.mrb[0].mxu0
    %v901 = vadd.f32 %v848, %v900
    %v902 = vpop.f32.mrb[0].mxu0
    %v903 = vadd.f32 %v850, %v902
    %v904 = vpop.f32.mrb[0].mxu0
    %v905 = vadd.f32 %v852, %v904
    %v906 = vpop.f32.mrb[0].mxu0
    %v907 = vadd.f32 %v854, %v906
    %908 = vdwg.mxu0
    %909 = vmatprep.subr.bf16.mxu0 %v593
    %910 = vmatpush1.bf16.msra.mxu0 %v592
    %911 = vmatprep.subr.bf16.mxu0 %v597
    %912 = vmatpush1.bf16.msra.mxu0 %v596
    %913 = vmatprep.subr.bf16.mxu0 %v601
    %914 = vmatpush1.bf16.msra.mxu0 %v600
    %915 = vmatprep.subr.bf16.mxu0 %v605
    %916 = vmatpush1.bf16.msra.mxu0 %v604
    %917 = vmatprep.subr.bf16.mxu0 %v609
    %918 = vmatpush1.bf16.msra.mxu0 %v608
    %919 = vmatprep.subr.bf16.mxu0 %v613
    %920 = vmatpush1.bf16.msra.mxu0 %v612
    %921 = vmatprep.subr.bf16.mxu0 %v617
    %922 = vmatpush1.bf16.msra.mxu0 %v616
    %923 = vmatprep.subr.bf16.mxu0 %v621
    %924 = vmatpush1.bf16.msra.mxu0 %v620
    %925 = vmatprep.subr.bf16.mxu0 0
    %926 = vmatpush1.bf16.msra.mxu0 0
    %927 = vmatprep.subr.bf16.mxu0 0
    %928 = vmatpush1.bf16.msra.mxu0 0
    %929 = vmatprep.subr.bf16.mxu0 0
    %930 = vmatpush1.bf16.msra.mxu0 0
    %931 = vmatprep.subr.bf16.mxu0 0
    %932 = vmatpush1.bf16.msra.mxu0 0
    %933 = vmatprep.subr.bf16.mxu0 0
    %934 = vmatpush1.bf16.msra.mxu0 0
    %935 = vmatprep.subr.bf16.mxu0 0
    %936 = vmatpush1.bf16.msra.mxu0 0
    %937 = vmatprep.subr.bf16.mxu0 0
    %938 = vmatpush1.bf16.msra.mxu0 0
    %939 = vmatprep.subr.bf16.mxu0 0
    %940 = vmatpush1.bf16.msra.mxu0 0
    %941 = vmatprep.mubr.bf16.mxu0 0
    %942 = vmatmul.mubr.bf16.gmra.mrb[0].mxu0 %v456
    %v943 = vpop.f32.mrb[0].mxu0
    %v944 = vadd.f32 %v891, %v943
    %v945 = vpop.f32.mrb[0].mxu0
    %v946 = vadd.f32 %v893, %v945
    %v947 = vpop.f32.mrb[0].mxu0
    %v948 = vadd.f32 %v895, %v947
    %v949 = vpop.f32.mrb[0].mxu0
    %v950 = vadd.f32 %v897, %v949
    %951 = vmatprep.mubr.bf16.mxu0 0
    %952 = vmatmul.mubr.bf16.gmra.mrb[0].mxu0 %v457
    %v953 = vpop.f32.mrb[0].mxu0
    %v954 = vadd.f32 %v901, %v953
    %v955 = vpop.f32.mrb[0].mxu0
    %v956 = vadd.f32 %v903, %v955
    %v957 = vpop.f32.mrb[0].mxu0
    %v958 = vadd.f32 %v905, %v957
    %v959 = vpop.f32.mrb[0].mxu0
    %v960 = vadd.f32 %v907, %v959
    %961 = vdwg.mxu0
    %v962 = vmax.f32 %v785, 0.0
    %v963 = vmax.f32 %v787, 0.0
    %v964 = vmax.f32 %v944, 0.0
    %v965 = vmax.f32 %v946, 0.0
    %v966 = vmax.f32 %v789, 0.0
    %v967 = vmax.f32 %v791, 0.0
    %v968 = vmax.f32 %v948, 0.0
    %v969 = vmax.f32 %v950, 0.0
    %v970 = vmax.f32 %v795, 0.0
    %v971 = vmax.f32 %v797, 0.0
    %v972 = vmax.f32 %v954, 0.0
    %v973 = vmax.f32 %v956, 0.0
    %v974 = vmax.f32 %v799, 0.0
    %v975 = vmax.f32 %v801, 0.0
    %v976 = vmax.f32 %v958, 0.0
    %v977 = vmax.f32 %v960, 0.0
    %v978 = vrot.slane %v962, 7
    %v979 = vrot.slane %v963, 7
    %v980 = vrot.slane %v964, 7
    %v981 = vrot.slane %v965, 7
    %v982 = vrot.slane %v966, 7
    %v983 = vrot.slane %v967, 7
    %v984 = vrot.slane %v968, 7
    %v985 = vrot.slane %v969, 7
    %v986 = vrot.slane %v970, 7
    %v987 = vrot.slane %v971, 7
    %v988 = vrot.slane %v972, 7
    %v989 = vrot.slane %v973, 7
    %v990 = vrot.slane %v974, 7
    %v991 = vrot.slane %v975, 7
    %v992 = vrot.slane %v976, 7
    %v993 = vrot.slane %v977, 7
    %v994 = vsel %vm391, %v986, %v990
    %v995 = vsel %vm391, %v987, %v991
    %v996 = vsel %vm391, %v988, %v992
    %v997 = vsel %vm391, %v989, %v993
    %v998 = vsel %vm391, %v982, %v986
    %v999 = vsel %vm391, %v983, %v987
    %v1000 = vsel %vm391, %v984, %v988
    %v1001 = vsel %vm391, %v985, %v989
    %v1002 = vsel %vm391, %v978, %v982
    %v1003 = vsel %vm391, %v979, %v983
    %v1004 = vsel %vm391, %v980, %v984
    %v1005 = vsel %vm391, %v981, %v985
    %v1006 = vsel %vm391, %v990, %v978
    %v1007 = vsel %vm391, %v991, %v979
    %v1008 = vsel %vm391, %v992, %v980
    %v1009 = vsel %vm391, %v993, %v981
    %v1010 = vsel %vm400, %v1006, 0.0
    %v1011 = vsel %vm400, %v1007, 0.0
    %v1012 = vsel %vm400, %v1008, 0.0
    %v1013 = vsel %vm400, %v1009, 0.0
    %v1014 = vsel %vm401, %v1002, 0.0
    %v1015 = vsel %vm401, %v1003, 0.0
    %v1016 = vsel %vm401, %v1004, 0.0
    %v1017 = vsel %vm401, %v1005, 0.0
    %v1018 = vsel %vm402, %v998, 0.0
    %v1019 = vsel %vm402, %v999, 0.0
    %v1020 = vsel %vm402, %v1000, 0.0
    %v1021 = vsel %vm402, %v1001, 0.0
    %v1022 = vsel %vm403, %v994, 0.0
    %v1023 = vsel %vm403, %v995, 0.0
    %v1024 = vsel %vm403, %v996, 0.0
    %v1025 = vsel %vm403, %v997, 0.0
    %v1026 = vpack.c.bf16 %v1014, %v1010
    %v1027 = vpack.c.bf16 %v1015, %v1011
    %v1028 = vpack.c.bf16 %v1016, %v1012
    %v1029 = vpack.c.bf16 %v1017, %v1013
    %v1030 = vpack.c.bf16 %v1022, %v1018
    %v1031 = vpack.c.bf16 %v1023, %v1019
    %v1032 = vpack.c.bf16 %v1024, %v1020
    %v1033 = vpack.c.bf16 %v1025, %v1021
    %v1034 = vpack.c.bf16 %v966, %v962
    %v1035 = vpack.c.bf16 %v967, %v963
    %v1036 = vpack.c.bf16 %v968, %v964
    %v1037 = vpack.c.bf16 %v969, %v965
    %v1038 = vpack.c.bf16 %v974, %v970
    %v1039 = vpack.c.bf16 %v975, %v971
    %v1040 = vpack.c.bf16 %v976, %v972
    %v1041 = vpack.c.bf16 %v977, %v973
    %v1042 = vrot.slane %v962, 1
    %v1043 = vrot.slane %v963, 1
    %v1044 = vrot.slane %v964, 1
    %v1045 = vrot.slane %v965, 1
    %v1046 = vrot.slane %v966, 1
    %v1047 = vrot.slane %v967, 1
    %v1048 = vrot.slane %v968, 1
    %v1049 = vrot.slane %v969, 1
    %v1050 = vrot.slane %v970, 1
    %v1051 = vrot.slane %v971, 1
    %v1052 = vrot.slane %v972, 1
    %v1053 = vrot.slane %v973, 1
    %v1054 = vrot.slane %v974, 1
    %v1055 = vrot.slane %v975, 1
    %v1056 = vrot.slane %v976, 1
    %v1057 = vrot.slane %v977, 1
    %v1058 = vsel %vm416, %v1050, %v1054
    %v1059 = vsel %vm416, %v1051, %v1055
    %v1060 = vsel %vm416, %v1052, %v1056
    %v1061 = vsel %vm416, %v1053, %v1057
    %v1062 = vsel %vm416, %v1046, %v1050
    %v1063 = vsel %vm416, %v1047, %v1051
    %v1064 = vsel %vm416, %v1048, %v1052
    %v1065 = vsel %vm416, %v1049, %v1053
    %v1066 = vsel %vm416, %v1042, %v1046
    %v1067 = vsel %vm416, %v1043, %v1047
    %v1068 = vsel %vm416, %v1044, %v1048
    %v1069 = vsel %vm416, %v1045, %v1049
    %v1070 = vsel %vm416, %v1054, %v1042
    %v1071 = vsel %vm416, %v1055, %v1043
    %v1072 = vsel %vm416, %v1056, %v1044
    %v1073 = vsel %vm416, %v1057, %v1045
    %v1074 = vsel %vm425, %v1066, 0.0
    %v1075 = vsel %vm425, %v1067, 0.0
    %v1076 = vsel %vm425, %v1068, 0.0
    %v1077 = vsel %vm425, %v1069, 0.0
    %v1078 = vsel %vm426, %v1062, 0.0
    %v1079 = vsel %vm426, %v1063, 0.0
    %v1080 = vsel %vm426, %v1064, 0.0
    %v1081 = vsel %vm426, %v1065, 0.0
    %v1082 = vsel %vm427, %v1058, 0.0
    %v1083 = vsel %vm427, %v1059, 0.0
    %v1084 = vsel %vm427, %v1060, 0.0
    %v1085 = vsel %vm427, %v1061, 0.0
    %v1086 = vsel %vm428, %v1070, 0.0
    %v1087 = vsel %vm428, %v1071, 0.0
    %v1088 = vsel %vm428, %v1072, 0.0
    %v1089 = vsel %vm428, %v1073, 0.0
    %v1090 = vpack.c.bf16 %v1078, %v1074
    %v1091 = vpack.c.bf16 %v1079, %v1075
    %v1092 = vpack.c.bf16 %v1080, %v1076
    %v1093 = vpack.c.bf16 %v1081, %v1077
    %v1094 = vpack.c.bf16 %v1086, %v1082
    %v1095 = vpack.c.bf16 %v1087, %v1083
    %v1096 = vpack.c.bf16 %v1088, %v1084
    %v1097 = vpack.c.bf16 %v1089, %v1085
    %s1098 = smul.u32 4, 192
    %s1099 = smul.u32 %s1098, 4
    %s1100 = sshll.u32 %s1099, 4
    %1101 = dma.done %s151, %s1100
    %v1102 = vld [vmem:[#allocation3] sm:$0xff]
    %v1103 = vld [vmem:[#allocation3 + $0x8] sm:$0xff]
    %v1104 = vld [vmem:[#allocation3 + $0x10] sm:$0xff]
    %v1105 = vld [vmem:[#allocation3 + $0x18] sm:$0xff]
    %v1106 = vld [vmem:[#allocation3 + $0x20] sm:$0xff]
    %v1107 = vld [vmem:[#allocation3 + $0x28] sm:$0xff]
    %v1108 = vld [vmem:[#allocation3 + $0x30] sm:$0xff]
    %v1109 = vld [vmem:[#allocation3 + $0x38] sm:$0xff]
    %v1110 = vld [vmem:[#allocation3 + $0x40] sm:$0xff]
    %v1111 = vld [vmem:[#allocation3 + $0x48] sm:$0xff]
    %v1112 = vld [vmem:[#allocation3 + $0x50] sm:$0xff]
    %v1113 = vld [vmem:[#allocation3 + $0x58] sm:$0xff]
    %v1114 = vld [vmem:[#allocation3 + $0x60] sm:$0xff]
    %v1115 = vld [vmem:[#allocation3 + $0x68] sm:$0xff]
    %v1116 = vld [vmem:[#allocation3 + $0x70] sm:$0xff]
    %v1117 = vld [vmem:[#allocation3 + $0x78] sm:$0xff]
    %v1118 = vld [vmem:[#allocation3 + $0x80] sm:$0xff]
    %v1119 = vld [vmem:[#allocation3 + $0x88] sm:$0xff]
    %v1120 = vld [vmem:[#allocation3 + $0x90] sm:$0xff]
    %v1121 = vld [vmem:[#allocation3 + $0x98] sm:$0xff]
    %v1122 = vld [vmem:[#allocation3 + $0xa0] sm:$0xff]
    %v1123 = vld [vmem:[#allocation3 + $0xa8] sm:$0xff]
    %v1124 = vld [vmem:[#allocation3 + $0xb0] sm:$0xff]
    %v1125 = vld [vmem:[#allocation3 + $0xb8] sm:$0xff]
    %v1126 = vld [vmem:[#allocation3 + $0xc0] sm:$0xff]
    %v1127 = vld [vmem:[#allocation3 + $0xc8] sm:$0xff]
    %v1128 = vld [vmem:[#allocation3 + $0xd0] sm:$0xff]
    %v1129 = vld [vmem:[#allocation3 + $0xd8] sm:$0xff]
    %v1130 = vld [vmem:[#allocation3 + $0xe0] sm:$0xff]
    %v1131 = vld [vmem:[#allocation3 + $0xe8] sm:$0xff]
    %v1132 = vld [vmem:[#allocation3 + $0xf0] sm:$0xff]
    %v1133 = vld [vmem:[#allocation3 + $0xf8] sm:$0xff]
    %v1134 = vld [vmem:[#allocation3 + $0x100] sm:$0xff]
    %v1135 = vld [vmem:[#allocation3 + $0x108] sm:$0xff]
    %v1136 = vld [vmem:[#allocation3 + $0x110] sm:$0xff]
    %v1137 = vld [vmem:[#allocation3 + $0x118] sm:$0xff]
    %v1138 = vld [vmem:[#allocation3 + $0x120] sm:$0xff]
    %v1139 = vld [vmem:[#allocation3 + $0x128] sm:$0xff]
    %v1140 = vld [vmem:[#allocation3 + $0x130] sm:$0xff]
    %v1141 = vld [vmem:[#allocation3 + $0x138] sm:$0xff]
    %v1142 = vld [vmem:[#allocation3 + $0x140] sm:$0xff]
    %v1143 = vld [vmem:[#allocation3 + $0x148] sm:$0xff]
    %v1144 = vld [vmem:[#allocation3 + $0x150] sm:$0xff]
    %v1145 = vld [vmem:[#allocation3 + $0x158] sm:$0xff]
    %v1146 = vld [vmem:[#allocation3 + $0x160] sm:$0xff]
    %v1147 = vld [vmem:[#allocation3 + $0x168] sm:$0xff]
    %v1148 = vld [vmem:[#allocation3 + $0x170] sm:$0xff]
    %v1149 = vld [vmem:[#allocation3 + $0x178] sm:$0xff]
    %v1150 = vld [vmem:[#allocation3 + $0x180] sm:$0xff]
    %v1151 = vld [vmem:[#allocation3 + $0x188] sm:$0xff]
    %v1152 = vld [vmem:[#allocation3 + $0x190] sm:$0xff]
    %v1153 = vld [vmem:[#allocation3 + $0x198] sm:$0xff]
    %v1154 = vld [vmem:[#allocation3 + $0x1a0] sm:$0xff]
    %v1155 = vld [vmem:[#allocation3 + $0x1a8] sm:$0xff]
    %v1156 = vld [vmem:[#allocation3 + $0x1b0] sm:$0xff]
    %v1157 = vld [vmem:[#allocation3 + $0x1b8] sm:$0xff]
    %v1158 = vld [vmem:[#allocation3 + $0x1c0] sm:$0xff]
    %v1159 = vld [vmem:[#allocation3 + $0x1c8] sm:$0xff]
    %v1160 = vld [vmem:[#allocation3 + $0x1d0] sm:$0xff]
    %v1161 = vld [vmem:[#allocation3 + $0x1d8] sm:$0xff]
    %v1162 = vld [vmem:[#allocation3 + $0x1e0] sm:$0xff]
    %v1163 = vld [vmem:[#allocation3 + $0x1e8] sm:$0xff]
    %v1164 = vld [vmem:[#allocation3 + $0x1f0] sm:$0xff]
    %v1165 = vld [vmem:[#allocation3 + $0x1f8] sm:$0xff]
    %v1166 = vld [vmem:[#allocation3 + $0x200] sm:$0xff]
    %v1167 = vld [vmem:[#allocation3 + $0x208] sm:$0xff]
    %v1168 = vld [vmem:[#allocation3 + $0x210] sm:$0xff]
    %v1169 = vld [vmem:[#allocation3 + $0x218] sm:$0xff]
    %v1170 = vld [vmem:[#allocation3 + $0x220] sm:$0xff]
    %v1171 = vld [vmem:[#allocation3 + $0x228] sm:$0xff]
    %v1172 = vld [vmem:[#allocation3 + $0x230] sm:$0xff]
    %v1173 = vld [vmem:[#allocation3 + $0x238] sm:$0xff]
    %v1174 = vld [vmem:[#allocation3 + $0x240] sm:$0xff]
    %v1175 = vld [vmem:[#allocation3 + $0x248] sm:$0xff]
    %v1176 = vld [vmem:[#allocation3 + $0x250] sm:$0xff]
    %v1177 = vld [vmem:[#allocation3 + $0x258] sm:$0xff]
    %v1178 = vld [vmem:[#allocation3 + $0x260] sm:$0xff]
    %v1179 = vld [vmem:[#allocation3 + $0x268] sm:$0xff]
    %v1180 = vld [vmem:[#allocation3 + $0x270] sm:$0xff]
    %v1181 = vld [vmem:[#allocation3 + $0x278] sm:$0xff]
    %v1182 = vld [vmem:[#allocation3 + $0x280] sm:$0xff]
    %v1183 = vld [vmem:[#allocation3 + $0x288] sm:$0xff]
    %v1184 = vld [vmem:[#allocation3 + $0x290] sm:$0xff]
    %v1185 = vld [vmem:[#allocation3 + $0x298] sm:$0xff]
    %v1186 = vld [vmem:[#allocation3 + $0x2a0] sm:$0xff]
    %v1187 = vld [vmem:[#allocation3 + $0x2a8] sm:$0xff]
    %v1188 = vld [vmem:[#allocation3 + $0x2b0] sm:$0xff]
    %v1189 = vld [vmem:[#allocation3 + $0x2b8] sm:$0xff]
    %v1190 = vld [vmem:[#allocation3 + $0x2c0] sm:$0xff]
    %v1191 = vld [vmem:[#allocation3 + $0x2c8] sm:$0xff]
    %v1192 = vld [vmem:[#allocation3 + $0x2d0] sm:$0xff]
    %v1193 = vld [vmem:[#allocation3 + $0x2d8] sm:$0xff]
    %v1194 = vld [vmem:[#allocation3 + $0x2e0] sm:$0xff]
    %v1195 = vld [vmem:[#allocation3 + $0x2e8] sm:$0xff]
    %v1196 = vld [vmem:[#allocation3 + $0x2f0] sm:$0xff]
    %v1197 = vld [vmem:[#allocation3 + $0x2f8] sm:$0xff]
    %v1198 = vld [vmem:[#allocation3 + $0x300] sm:$0xff]
    %v1199 = vld [vmem:[#allocation3 + $0x308] sm:$0xff]
    %v1200 = vld [vmem:[#allocation3 + $0x310] sm:$0xff]
    %v1201 = vld [vmem:[#allocation3 + $0x318] sm:$0xff]
    %v1202 = vld [vmem:[#allocation3 + $0x320] sm:$0xff]
    %v1203 = vld [vmem:[#allocation3 + $0x328] sm:$0xff]
    %v1204 = vld [vmem:[#allocation3 + $0x330] sm:$0xff]
    %v1205 = vld [vmem:[#allocation3 + $0x338] sm:$0xff]
    %v1206 = vld [vmem:[#allocation3 + $0x340] sm:$0xff]
    %v1207 = vld [vmem:[#allocation3 + $0x348] sm:$0xff]
    %v1208 = vld [vmem:[#allocation3 + $0x350] sm:$0xff]
    %v1209 = vld [vmem:[#allocation3 + $0x358] sm:$0xff]
    %v1210 = vld [vmem:[#allocation3 + $0x360] sm:$0xff]
    %v1211 = vld [vmem:[#allocation3 + $0x368] sm:$0xff]
    %v1212 = vld [vmem:[#allocation3 + $0x370] sm:$0xff]
    %v1213 = vld [vmem:[#allocation3 + $0x378] sm:$0xff]
    %v1214 = vld [vmem:[#allocation3 + $0x380] sm:$0xff]
    %v1215 = vld [vmem:[#allocation3 + $0x388] sm:$0xff]
    %v1216 = vld [vmem:[#allocation3 + $0x390] sm:$0xff]
    %v1217 = vld [vmem:[#allocation3 + $0x398] sm:$0xff]
    %v1218 = vld [vmem:[#allocation3 + $0x3a0] sm:$0xff]
    %v1219 = vld [vmem:[#allocation3 + $0x3a8] sm:$0xff]
    %v1220 = vld [vmem:[#allocation3 + $0x3b0] sm:$0xff]
    %v1221 = vld [vmem:[#allocation3 + $0x3b8] sm:$0xff]
    %v1222 = vld [vmem:[#allocation3 + $0x3c0] sm:$0xff]
    %v1223 = vld [vmem:[#allocation3 + $0x3c8] sm:$0xff]
    %v1224 = vld [vmem:[#allocation3 + $0x3d0] sm:$0xff]
    %v1225 = vld [vmem:[#allocation3 + $0x3d8] sm:$0xff]
    %v1226 = vld [vmem:[#allocation3 + $0x3e0] sm:$0xff]
    %v1227 = vld [vmem:[#allocation3 + $0x3e8] sm:$0xff]
    %v1228 = vld [vmem:[#allocation3 + $0x3f0] sm:$0xff]
    %v1229 = vld [vmem:[#allocation3 + $0x3f8] sm:$0xff]
    %v1230 = vld [vmem:[#allocation3 + $0x400] sm:$0xff]
    %v1231 = vld [vmem:[#allocation3 + $0x408] sm:$0xff]
    %v1232 = vld [vmem:[#allocation3 + $0x410] sm:$0xff]
    %v1233 = vld [vmem:[#allocation3 + $0x418] sm:$0xff]
    %v1234 = vld [vmem:[#allocation3 + $0x420] sm:$0xff]
    %v1235 = vld [vmem:[#allocation3 + $0x428] sm:$0xff]
    %v1236 = vld [vmem:[#allocation3 + $0x430] sm:$0xff]
    %v1237 = vld [vmem:[#allocation3 + $0x438] sm:$0xff]
    %v1238 = vld [vmem:[#allocation3 + $0x440] sm:$0xff]
    %v1239 = vld [vmem:[#allocation3 + $0x448] sm:$0xff]
    %v1240 = vld [vmem:[#allocation3 + $0x450] sm:$0xff]
    %v1241 = vld [vmem:[#allocation3 + $0x458] sm:$0xff]
    %v1242 = vld [vmem:[#allocation3 + $0x460] sm:$0xff]
    %v1243 = vld [vmem:[#allocation3 + $0x468] sm:$0xff]
    %v1244 = vld [vmem:[#allocation3 + $0x470] sm:$0xff]
    %v1245 = vld [vmem:[#allocation3 + $0x478] sm:$0xff]
    %v1246 = vld [vmem:[#allocation3 + $0x480] sm:$0xff]
    %v1247 = vld [vmem:[#allocation3 + $0x488] sm:$0xff]
    %v1248 = vld [vmem:[#allocation3 + $0x490] sm:$0xff]
    %v1249 = vld [vmem:[#allocation3 + $0x498] sm:$0xff]
    %v1250 = vld [vmem:[#allocation3 + $0x4a0] sm:$0xff]
    %v1251 = vld [vmem:[#allocation3 + $0x4a8] sm:$0xff]
    %v1252 = vld [vmem:[#allocation3 + $0x4b0] sm:$0xff]
    %v1253 = vld [vmem:[#allocation3 + $0x4b8] sm:$0xff]
    %v1254 = vld [vmem:[#allocation3 + $0x4c0] sm:$0xff]
    %v1255 = vld [vmem:[#allocation3 + $0x4c8] sm:$0xff]
    %v1256 = vld [vmem:[#allocation3 + $0x4d0] sm:$0xff]
    %v1257 = vld [vmem:[#allocation3 + $0x4d8] sm:$0xff]
    %v1258 = vld [vmem:[#allocation3 + $0x4e0] sm:$0xff]
    %v1259 = vld [vmem:[#allocation3 + $0x4e8] sm:$0xff]
    %v1260 = vld [vmem:[#allocation3 + $0x4f0] sm:$0xff]
    %v1261 = vld [vmem:[#allocation3 + $0x4f8] sm:$0xff]
    %v1262 = vld [vmem:[#allocation3 + $0x500] sm:$0xff]
    %v1263 = vld [vmem:[#allocation3 + $0x508] sm:$0xff]
    %v1264 = vld [vmem:[#allocation3 + $0x510] sm:$0xff]
    %v1265 = vld [vmem:[#allocation3 + $0x518] sm:$0xff]
    %v1266 = vld [vmem:[#allocation3 + $0x520] sm:$0xff]
    %v1267 = vld [vmem:[#allocation3 + $0x528] sm:$0xff]
    %v1268 = vld [vmem:[#allocation3 + $0x530] sm:$0xff]
    %v1269 = vld [vmem:[#allocation3 + $0x538] sm:$0xff]
    %v1270 = vld [vmem:[#allocation3 + $0x540] sm:$0xff]
    %v1271 = vld [vmem:[#allocation3 + $0x548] sm:$0xff]
    %v1272 = vld [vmem:[#allocation3 + $0x550] sm:$0xff]
    %v1273 = vld [vmem:[#allocation3 + $0x558] sm:$0xff]
    %v1274 = vld [vmem:[#allocation3 + $0x560] sm:$0xff]
    %v1275 = vld [vmem:[#allocation3 + $0x568] sm:$0xff]
    %v1276 = vld [vmem:[#allocation3 + $0x570] sm:$0xff]
    %v1277 = vld [vmem:[#allocation3 + $0x578] sm:$0xff]
    %v1278 = vld [vmem:[#allocation3 + $0x580] sm:$0xff]
    %v1279 = vld [vmem:[#allocation3 + $0x588] sm:$0xff]
    %v1280 = vld [vmem:[#allocation3 + $0x590] sm:$0xff]
    %v1281 = vld [vmem:[#allocation3 + $0x598] sm:$0xff]
    %v1282 = vld [vmem:[#allocation3 + $0x5a0] sm:$0xff]
    %v1283 = vld [vmem:[#allocation3 + $0x5a8] sm:$0xff]
    %v1284 = vld [vmem:[#allocation3 + $0x5b0] sm:$0xff]
    %v1285 = vld [vmem:[#allocation3 + $0x5b8] sm:$0xff]
    %v1286 = vld [vmem:[#allocation3 + $0x5c0] sm:$0xff]
    %v1287 = vld [vmem:[#allocation3 + $0x5c8] sm:$0xff]
    %v1288 = vld [vmem:[#allocation3 + $0x5d0] sm:$0xff]
    %v1289 = vld [vmem:[#allocation3 + $0x5d8] sm:$0xff]
    %v1290 = vld [vmem:[#allocation3 + $0x5e0] sm:$0xff]
    %v1291 = vld [vmem:[#allocation3 + $0x5e8] sm:$0xff]
    %v1292 = vld [vmem:[#allocation3 + $0x5f0] sm:$0xff]
    %v1293 = vld [vmem:[#allocation3 + $0x5f8] sm:$0xff]
    %v1294 = vld [vmem:[#allocation3 + $0x600] sm:$0xff]
    %v1295 = vld [vmem:[#allocation3 + $0x608] sm:$0xff]
    %v1296 = vld [vmem:[#allocation3 + $0x610] sm:$0xff]
    %v1297 = vld [vmem:[#allocation3 + $0x618] sm:$0xff]
    %v1298 = vld [vmem:[#allocation3 + $0x620] sm:$0xff]
    %v1299 = vld [vmem:[#allocation3 + $0x628] sm:$0xff]
    %v1300 = vld [vmem:[#allocation3 + $0x630] sm:$0xff]
    %v1301 = vld [vmem:[#allocation3 + $0x638] sm:$0xff]
    %v1302 = vld [vmem:[#allocation3 + $0x640] sm:$0xff]
    %v1303 = vld [vmem:[#allocation3 + $0x648] sm:$0xff]
    %v1304 = vld [vmem:[#allocation3 + $0x650] sm:$0xff]
    %v1305 = vld [vmem:[#allocation3 + $0x658] sm:$0xff]
    %v1306 = vld [vmem:[#allocation3 + $0x660] sm:$0xff]
    %v1307 = vld [vmem:[#allocation3 + $0x668] sm:$0xff]
    %v1308 = vld [vmem:[#allocation3 + $0x670] sm:$0xff]
    %v1309 = vld [vmem:[#allocation3 + $0x678] sm:$0xff]
    %v1310 = vld [vmem:[#allocation3 + $0x680] sm:$0xff]
    %v1311 = vld [vmem:[#allocation3 + $0x688] sm:$0xff]
    %v1312 = vld [vmem:[#allocation3 + $0x690] sm:$0xff]
    %v1313 = vld [vmem:[#allocation3 + $0x698] sm:$0xff]
    %v1314 = vld [vmem:[#allocation3 + $0x6a0] sm:$0xff]
    %v1315 = vld [vmem:[#allocation3 + $0x6a8] sm:$0xff]
    %v1316 = vld [vmem:[#allocation3 + $0x6b0] sm:$0xff]
    %v1317 = vld [vmem:[#allocation3 + $0x6b8] sm:$0xff]
    %v1318 = vld [vmem:[#allocation3 + $0x6c0] sm:$0xff]
    %v1319 = vld [vmem:[#allocation3 + $0x6c8] sm:$0xff]
    %v1320 = vld [vmem:[#allocation3 + $0x6d0] sm:$0xff]
    %v1321 = vld [vmem:[#allocation3 + $0x6d8] sm:$0xff]
    %v1322 = vld [vmem:[#allocation3 + $0x6e0] sm:$0xff]
    %v1323 = vld [vmem:[#allocation3 + $0x6e8] sm:$0xff]
    %v1324 = vld [vmem:[#allocation3 + $0x6f0] sm:$0xff]
    %v1325 = vld [vmem:[#allocation3 + $0x6f8] sm:$0xff]
    %v1326 = vld [vmem:[#allocation3 + $0x700] sm:$0xff]
    %v1327 = vld [vmem:[#allocation3 + $0x708] sm:$0xff]
    %v1328 = vld [vmem:[#allocation3 + $0x710] sm:$0xff]
    %v1329 = vld [vmem:[#allocation3 + $0x718] sm:$0xff]
    %v1330 = vld [vmem:[#allocation3 + $0x720] sm:$0xff]
    %v1331 = vld [vmem:[#allocation3 + $0x728] sm:$0xff]
    %v1332 = vld [vmem:[#allocation3 + $0x730] sm:$0xff]
    %v1333 = vld [vmem:[#allocation3 + $0x738] sm:$0xff]
    %v1334 = vld [vmem:[#allocation3 + $0x740] sm:$0xff]
    %v1335 = vld [vmem:[#allocation3 + $0x748] sm:$0xff]
    %v1336 = vld [vmem:[#allocation3 + $0x750] sm:$0xff]
    %v1337 = vld [vmem:[#allocation3 + $0x758] sm:$0xff]
    %v1338 = vld [vmem:[#allocation3 + $0x760] sm:$0xff]
    %v1339 = vld [vmem:[#allocation3 + $0x768] sm:$0xff]
    %v1340 = vld [vmem:[#allocation3 + $0x770] sm:$0xff]
    %v1341 = vld [vmem:[#allocation3 + $0x778] sm:$0xff]
    %v1342 = vld [vmem:[#allocation3 + $0x780] sm:$0xff]
    %v1343 = vld [vmem:[#allocation3 + $0x788] sm:$0xff]
    %v1344 = vld [vmem:[#allocation3 + $0x790] sm:$0xff]
    %v1345 = vld [vmem:[#allocation3 + $0x798] sm:$0xff]
    %v1346 = vld [vmem:[#allocation3 + $0x7a0] sm:$0xff]
    %v1347 = vld [vmem:[#allocation3 + $0x7a8] sm:$0xff]
    %v1348 = vld [vmem:[#allocation3 + $0x7b0] sm:$0xff]
    %v1349 = vld [vmem:[#allocation3 + $0x7b8] sm:$0xff]
    %v1350 = vld [vmem:[#allocation3 + $0x7c0] sm:$0xff]
    %v1351 = vld [vmem:[#allocation3 + $0x7c8] sm:$0xff]
    %v1352 = vld [vmem:[#allocation3 + $0x7d0] sm:$0xff]
    %v1353 = vld [vmem:[#allocation3 + $0x7d8] sm:$0xff]
    %v1354 = vld [vmem:[#allocation3 + $0x7e0] sm:$0xff]
    %v1355 = vld [vmem:[#allocation3 + $0x7e8] sm:$0xff]
    %v1356 = vld [vmem:[#allocation3 + $0x7f0] sm:$0xff]
    %v1357 = vld [vmem:[#allocation3 + $0x7f8] sm:$0xff]
    %v1358 = vld [vmem:[#allocation3 + $0x800] sm:$0xff]
    %v1359 = vld [vmem:[#allocation3 + $0x808] sm:$0xff]
    %v1360 = vld [vmem:[#allocation3 + $0x810] sm:$0xff]
    %v1361 = vld [vmem:[#allocation3 + $0x818] sm:$0xff]
    %v1362 = vld [vmem:[#allocation3 + $0x820] sm:$0xff]
    %v1363 = vld [vmem:[#allocation3 + $0x828] sm:$0xff]
    %v1364 = vld [vmem:[#allocation3 + $0x830] sm:$0xff]
    %v1365 = vld [vmem:[#allocation3 + $0x838] sm:$0xff]
    %v1366 = vld [vmem:[#allocation3 + $0x840] sm:$0xff]
    %v1367 = vld [vmem:[#allocation3 + $0x848] sm:$0xff]
    %v1368 = vld [vmem:[#allocation3 + $0x850] sm:$0xff]
    %v1369 = vld [vmem:[#allocation3 + $0x858] sm:$0xff]
    %v1370 = vld [vmem:[#allocation3 + $0x860] sm:$0xff]
    %v1371 = vld [vmem:[#allocation3 + $0x868] sm:$0xff]
    %v1372 = vld [vmem:[#allocation3 + $0x870] sm:$0xff]
    %v1373 = vld [vmem:[#allocation3 + $0x878] sm:$0xff]
    %v1374 = vld [vmem:[#allocation3 + $0x880] sm:$0xff]
    %v1375 = vld [vmem:[#allocation3 + $0x888] sm:$0xff]
    %v1376 = vld [vmem:[#allocation3 + $0x890] sm:$0xff]
    %v1377 = vld [vmem:[#allocation3 + $0x898] sm:$0xff]
    %v1378 = vld [vmem:[#allocation3 + $0x8a0] sm:$0xff]
    %v1379 = vld [vmem:[#allocation3 + $0x8a8] sm:$0xff]
    %v1380 = vld [vmem:[#allocation3 + $0x8b0] sm:$0xff]
    %v1381 = vld [vmem:[#allocation3 + $0x8b8] sm:$0xff]
    %v1382 = vld [vmem:[#allocation3 + $0x8c0] sm:$0xff]
    %v1383 = vld [vmem:[#allocation3 + $0x8c8] sm:$0xff]
    %v1384 = vld [vmem:[#allocation3 + $0x8d0] sm:$0xff]
    %v1385 = vld [vmem:[#allocation3 + $0x8d8] sm:$0xff]
    %v1386 = vld [vmem:[#allocation3 + $0x8e0] sm:$0xff]
    %v1387 = vld [vmem:[#allocation3 + $0x8e8] sm:$0xff]
    %v1388 = vld [vmem:[#allocation3 + $0x8f0] sm:$0xff]
    %v1389 = vld [vmem:[#allocation3 + $0x8f8] sm:$0xff]
    %v1390 = vld [vmem:[#allocation3 + $0x900] sm:$0xff]
    %v1391 = vld [vmem:[#allocation3 + $0x908] sm:$0xff]
    %v1392 = vld [vmem:[#allocation3 + $0x910] sm:$0xff]
    %v1393 = vld [vmem:[#allocation3 + $0x918] sm:$0xff]
    %v1394 = vld [vmem:[#allocation3 + $0x920] sm:$0xff]
    %v1395 = vld [vmem:[#allocation3 + $0x928] sm:$0xff]
    %v1396 = vld [vmem:[#allocation3 + $0x930] sm:$0xff]
    %v1397 = vld [vmem:[#allocation3 + $0x938] sm:$0xff]
    %v1398 = vld [vmem:[#allocation3 + $0x940] sm:$0xff]
    %v1399 = vld [vmem:[#allocation3 + $0x948] sm:$0xff]
    %v1400 = vld [vmem:[#allocation3 + $0x950] sm:$0xff]
    %v1401 = vld [vmem:[#allocation3 + $0x958] sm:$0xff]
    %v1402 = vld [vmem:[#allocation3 + $0x960] sm:$0xff]
    %v1403 = vld [vmem:[#allocation3 + $0x968] sm:$0xff]
    %v1404 = vld [vmem:[#allocation3 + $0x970] sm:$0xff]
    %v1405 = vld [vmem:[#allocation3 + $0x978] sm:$0xff]
    %v1406 = vld [vmem:[#allocation3 + $0x980] sm:$0xff]
    %v1407 = vld [vmem:[#allocation3 + $0x988] sm:$0xff]
    %v1408 = vld [vmem:[#allocation3 + $0x990] sm:$0xff]
    %v1409 = vld [vmem:[#allocation3 + $0x998] sm:$0xff]
    %v1410 = vld [vmem:[#allocation3 + $0x9a0] sm:$0xff]
    %v1411 = vld [vmem:[#allocation3 + $0x9a8] sm:$0xff]
    %v1412 = vld [vmem:[#allocation3 + $0x9b0] sm:$0xff]
    %v1413 = vld [vmem:[#allocation3 + $0x9b8] sm:$0xff]
    %v1414 = vld [vmem:[#allocation3 + $0x9c0] sm:$0xff]
    %v1415 = vld [vmem:[#allocation3 + $0x9c8] sm:$0xff]
    %v1416 = vld [vmem:[#allocation3 + $0x9d0] sm:$0xff]
    %v1417 = vld [vmem:[#allocation3 + $0x9d8] sm:$0xff]
    %v1418 = vld [vmem:[#allocation3 + $0x9e0] sm:$0xff]
    %v1419 = vld [vmem:[#allocation3 + $0x9e8] sm:$0xff]
    %v1420 = vld [vmem:[#allocation3 + $0x9f0] sm:$0xff]
    %v1421 = vld [vmem:[#allocation3 + $0x9f8] sm:$0xff]
    %v1422 = vld [vmem:[#allocation3 + $0xa00] sm:$0xff]
    %v1423 = vld [vmem:[#allocation3 + $0xa08] sm:$0xff]
    %v1424 = vld [vmem:[#allocation3 + $0xa10] sm:$0xff]
    %v1425 = vld [vmem:[#allocation3 + $0xa18] sm:$0xff]
    %v1426 = vld [vmem:[#allocation3 + $0xa20] sm:$0xff]
    %v1427 = vld [vmem:[#allocation3 + $0xa28] sm:$0xff]
    %v1428 = vld [vmem:[#allocation3 + $0xa30] sm:$0xff]
    %v1429 = vld [vmem:[#allocation3 + $0xa38] sm:$0xff]
    %v1430 = vld [vmem:[#allocation3 + $0xa40] sm:$0xff]
    %v1431 = vld [vmem:[#allocation3 + $0xa48] sm:$0xff]
    %v1432 = vld [vmem:[#allocation3 + $0xa50] sm:$0xff]
    %v1433 = vld [vmem:[#allocation3 + $0xa58] sm:$0xff]
    %v1434 = vld [vmem:[#allocation3 + $0xa60] sm:$0xff]
    %v1435 = vld [vmem:[#allocation3 + $0xa68] sm:$0xff]
    %v1436 = vld [vmem:[#allocation3 + $0xa70] sm:$0xff]
    %v1437 = vld [vmem:[#allocation3 + $0xa78] sm:$0xff]
    %v1438 = vld [vmem:[#allocation3 + $0xa80] sm:$0xff]
    %v1439 = vld [vmem:[#allocation3 + $0xa88] sm:$0xff]
    %v1440 = vld [vmem:[#allocation3 + $0xa90] sm:$0xff]
    %v1441 = vld [vmem:[#allocation3 + $0xa98] sm:$0xff]
    %v1442 = vld [vmem:[#allocation3 + $0xaa0] sm:$0xff]
    %v1443 = vld [vmem:[#allocation3 + $0xaa8] sm:$0xff]
    %v1444 = vld [vmem:[#allocation3 + $0xab0] sm:$0xff]
    %v1445 = vld [vmem:[#allocation3 + $0xab8] sm:$0xff]
    %v1446 = vld [vmem:[#allocation3 + $0xac0] sm:$0xff]
    %v1447 = vld [vmem:[#allocation3 + $0xac8] sm:$0xff]
    %v1448 = vld [vmem:[#allocation3 + $0xad0] sm:$0xff]
    %v1449 = vld [vmem:[#allocation3 + $0xad8] sm:$0xff]
    %v1450 = vld [vmem:[#allocation3 + $0xae0] sm:$0xff]
    %v1451 = vld [vmem:[#allocation3 + $0xae8] sm:$0xff]
    %v1452 = vld [vmem:[#allocation3 + $0xaf0] sm:$0xff]
    %v1453 = vld [vmem:[#allocation3 + $0xaf8] sm:$0xff]
    %v1454 = vld [vmem:[#allocation3 + $0xb00] sm:$0xff]
    %v1455 = vld [vmem:[#allocation3 + $0xb08] sm:$0xff]
    %v1456 = vld [vmem:[#allocation3 + $0xb10] sm:$0xff]
    %v1457 = vld [vmem:[#allocation3 + $0xb18] sm:$0xff]
    %v1458 = vld [vmem:[#allocation3 + $0xb20] sm:$0xff]
    %v1459 = vld [vmem:[#allocation3 + $0xb28] sm:$0xff]
    %v1460 = vld [vmem:[#allocation3 + $0xb30] sm:$0xff]
    %v1461 = vld [vmem:[#allocation3 + $0xb38] sm:$0xff]
    %v1462 = vld [vmem:[#allocation3 + $0xb40] sm:$0xff]
    %v1463 = vld [vmem:[#allocation3 + $0xb48] sm:$0xff]
    %v1464 = vld [vmem:[#allocation3 + $0xb50] sm:$0xff]
    %v1465 = vld [vmem:[#allocation3 + $0xb58] sm:$0xff]
    %v1466 = vld [vmem:[#allocation3 + $0xb60] sm:$0xff]
    %v1467 = vld [vmem:[#allocation3 + $0xb68] sm:$0xff]
    %v1468 = vld [vmem:[#allocation3 + $0xb70] sm:$0xff]
    %v1469 = vld [vmem:[#allocation3 + $0xb78] sm:$0xff]
    %v1470 = vld [vmem:[#allocation3 + $0xb80] sm:$0xff]
    %v1471 = vld [vmem:[#allocation3 + $0xb88] sm:$0xff]
    %v1472 = vld [vmem:[#allocation3 + $0xb90] sm:$0xff]
    %v1473 = vld [vmem:[#allocation3 + $0xb98] sm:$0xff]
    %v1474 = vld [vmem:[#allocation3 + $0xba0] sm:$0xff]
    %v1475 = vld [vmem:[#allocation3 + $0xba8] sm:$0xff]
    %v1476 = vld [vmem:[#allocation3 + $0xbb0] sm:$0xff]
    %v1477 = vld [vmem:[#allocation3 + $0xbb8] sm:$0xff]
    %v1478 = vld [vmem:[#allocation3 + $0xbc0] sm:$0xff]
    %v1479 = vld [vmem:[#allocation3 + $0xbc8] sm:$0xff]
    %v1480 = vld [vmem:[#allocation3 + $0xbd0] sm:$0xff]
    %v1481 = vld [vmem:[#allocation3 + $0xbd8] sm:$0xff]
    %v1482 = vld [vmem:[#allocation3 + $0xbe0] sm:$0xff]
    %v1483 = vld [vmem:[#allocation3 + $0xbe8] sm:$0xff]
    %v1484 = vld [vmem:[#allocation3 + $0xbf0] sm:$0xff]
    %v1485 = vld [vmem:[#allocation3 + $0xbf8] sm:$0xff]
    %v1486 = vld [vmem:[#allocation13] sm:$0xf]
    %v1488 = vlaneseq
    %v1489 = vshrl.u32 %v1488, 7
    %v1490 = vsub.s32 0, %v1489
    %v1491 = vrot.slane %v1486, %v1490
    %v1492 = vlaneseq
    %v1493 = vshrl.u32 %v1492, 7
    %v1494 = vsub.s32 1, %v1493
    %v1495 = vrot.slane %v1486, %v1494
    %v1496 = vlaneseq
    %v1497 = vshrl.u32 %v1496, 7
    %v1498 = vsub.s32 2, %v1497
    %v1499 = vrot.slane %v1486, %v1498
    %v1500 = vlaneseq
    %v1501 = vshrl.u32 %v1500, 7
    %v1502 = vsub.s32 3, %v1501
    %v1503 = vrot.slane %v1486, %v1502
    %1508 = vmatprep.subr.bf16.mxu0 %v1103
    %1509 = vmatpush1.bf16.msra.mxu0 %v1102
    %1510 = vmatprep.subr.bf16.mxu0 %v1107
    %1511 = vmatpush1.bf16.msra.mxu0 %v1106
    %1512 = vmatprep.subr.bf16.mxu0 %v1111
    %1513 = vmatpush1.bf16.msra.mxu0 %v1110
    %1514 = vmatprep.subr.bf16.mxu0 %v1115
    %1515 = vmatpush1.bf16.msra.mxu0 %v1114
    %1516 = vmatprep.subr.bf16.mxu0 %v1119
    %1517 = vmatpush1.bf16.msra.mxu0 %v1118
    %1518 = vmatprep.subr.bf16.mxu0 %v1123
    %1519 = vmatpush1.bf16.msra.mxu0 %v1122
    %1520 = vmatprep.subr.bf16.mxu0 %v1127
    %1521 = vmatpush1.bf16.msra.mxu0 %v1126
    %1522 = vmatprep.subr.bf16.mxu0 %v1131
    %1523 = vmatpush1.bf16.msra.mxu0 %v1130
    %1524 = vmatprep.subr.bf16.mxu0 %v1135
    %1525 = vmatpush1.bf16.msra.mxu0 %v1134
    %1526 = vmatprep.subr.bf16.mxu0 %v1139
    %1527 = vmatpush1.bf16.msra.mxu0 %v1138
    %1528 = vmatprep.subr.bf16.mxu0 %v1143
    %1529 = vmatpush1.bf16.msra.mxu0 %v1142
    %1530 = vmatprep.subr.bf16.mxu0 %v1147
    %1531 = vmatpush1.bf16.msra.mxu0 %v1146
    %1532 = vmatprep.subr.bf16.mxu0 %v1151
    %1533 = vmatpush1.bf16.msra.mxu0 %v1150
    %1534 = vmatprep.subr.bf16.mxu0 %v1155
    %1535 = vmatpush1.bf16.msra.mxu0 %v1154
    %1536 = vmatprep.subr.bf16.mxu0 %v1159
    %1537 = vmatpush1.bf16.msra.mxu0 %v1158
    %1538 = vmatprep.subr.bf16.mxu0 %v1163
    %1539 = vmatpush1.bf16.msra.mxu0 %v1162
    %1540 = vmatprep.mubr.bf16.mxu0 %v1027
    %1541 = vmatmul.mubr.bf16.gmra.mrb[0].mxu0 %v1026
    %v1542 = vpop.f32.mrb[0].mxu0
    %v1543 = vadd.f32 %v1491, %v1542
    %v1544 = vpop.f32.mrb[0].mxu0
    %v1545 = vadd.f32 %v1495, %v1544
    %v1546 = vpop.f32.mrb[0].mxu0
    %v1547 = vadd.f32 %v1491, %v1546
    %v1548 = vpop.f32.mrb[0].mxu0
    %v1549 = vadd.f32 %v1495, %v1548
    %1550 = vmatprep.mubr.bf16.mxu0 %v1031
    %1551 = vmatmul.mubr.bf16.gmra.mrb[0].mxu0 %v1030
    %v1552 = vpop.f32.mrb[0].mxu0
    %v1553 = vadd.f32 %v1491, %v1552
    %v1554 = vpop.f32.mrb[0].mxu0
    %v1555 = vadd.f32 %v1495, %v1554
    %v1556 = vpop.f32.mrb[0].mxu0
    %v1557 = vadd.f32 %v1491, %v1556
    %v1558 = vpop.f32.mrb[0].mxu0
    %v1559 = vadd.f32 %v1495, %v1558
    %1560 = vdwg.mxu0
    %1561 = vmatprep.subr.bf16.mxu0 %v1167
    %1562 = vmatpush1.bf16.msra.mxu0 %v1166
    %1563 = vmatprep.subr.bf16.mxu0 %v1171
    %1564 = vmatpush1.bf16.msra.mxu0 %v1170
    %1565 = vmatprep.subr.bf16.mxu0 %v1175
    %1566 = vmatpush1.bf16.msra.mxu0 %v1174
    %1567 = vmatprep.subr.bf16.mxu0 %v1179
    %1568 = vmatpush1.bf16.msra.mxu0 %v1178
    %1569 = vmatprep.subr.bf16.mxu0 %v1183
    %1570 = vmatpush1.bf16.msra.mxu0 %v1182
    %1571 = vmatprep.subr.bf16.mxu0 %v1187
    %1572 = vmatpush1.bf16.msra.mxu0 %v1186
    %1573 = vmatprep.subr.bf16.mxu0 %v1191
    %1574 = vmatpush1.bf16.msra.mxu0 %v1190
    %1575 = vmatprep.subr.bf16.mxu0 %v1195
    %1576 = vmatpush1.bf16.msra.mxu0 %v1194
    %1577 = vmatprep.subr.bf16.mxu0 %v1199
    %1578 = vmatpush1.bf16.msra.mxu0 %v1198
    %1579 = vmatprep.subr.bf16.mxu0 %v1203
    %1580 = vmatpush1.bf16.msra.mxu0 %v1202
    %1581 = vmatprep.subr.bf16.mxu0 %v1207
    %1582 = vmatpush1.bf16.msra.mxu0 %v1206
    %1583 = vmatprep.subr.bf16.mxu0 %v1211
    %1584 = vmatpush1.bf16.msra.mxu0 %v1210
    %1585 = vmatprep.subr.bf16.mxu0 %v1215
    %1586 = vmatpush1.bf16.msra.mxu0 %v1214
    %1587 = vmatprep.subr.bf16.mxu0 %v1219
    %1588 = vmatpush1.bf16.msra.mxu0 %v1218
    %1589 = vmatprep.subr.bf16.mxu0 %v1223
    %1590 = vmatpush1.bf16.msra.mxu0 %v1222
    %1591 = vmatprep.subr.bf16.mxu0 %v1227
    %1592 = vmatpush1.bf16.msra.mxu0 %v1226
    %1593 = vmatprep.mubr.bf16.mxu0 %v1029
    %1594 = vmatmul.mubr.bf16.gmra.mrb[0].mxu0 %v1028
    %v1595 = vpop.f32.mrb[0].mxu0
    %v1596 = vadd.f32 %v1543, %v1595
    %v1597 = vpop.f32.mrb[0].mxu0
    %v1598 = vadd.f32 %v1545, %v1597
    %v1599 = vpop.f32.mrb[0].mxu0
    %v1600 = vadd.f32 %v1547, %v1599
    %v1601 = vpop.f32.mrb[0].mxu0
    %v1602 = vadd.f32 %v1549, %v1601
    %1603 = vmatprep.mubr.bf16.mxu0 %v1033
    %1604 = vmatmul.mubr.bf16.gmra.mrb[0].mxu0 %v1032
    %v1605 = vpop.f32.mrb[0].mxu0
    %v1606 = vadd.f32 %v1553, %v1605
    %v1607 = vpop.f32.mrb[0].mxu0
    %v1608 = vadd.f32 %v1555, %v1607
    %v1609 = vpop.f32.mrb[0].mxu0
    %v1610 = vadd.f32 %v1557, %v1609
    %v1611 = vpop.f32.mrb[0].mxu0
    %v1612 = vadd.f32 %v1559, %v1611
    %1613 = vdwg.mxu0
    %1614 = vmatprep.subr.bf16.mxu0 %v1231
    %1615 = vmatpush1.bf16.msra.mxu0 %v1230
    %1616 = vmatprep.subr.bf16.mxu0 %v1235
    %1617 = vmatpush1.bf16.msra.mxu0 %v1234
    %1618 = vmatprep.subr.bf16.mxu0 %v1239
    %1619 = vmatpush1.bf16.msra.mxu0 %v1238
    %1620 = vmatprep.subr.bf16.mxu0 %v1243
    %1621 = vmatpush1.bf16.msra.mxu0 %v1242
    %1622 = vmatprep.subr.bf16.mxu0 %v1247
    %1623 = vmatpush1.bf16.msra.mxu0 %v1246
    %1624 = vmatprep.subr.bf16.mxu0 %v1251
    %1625 = vmatpush1.bf16.msra.mxu0 %v1250
    %1626 = vmatprep.subr.bf16.mxu0 %v1255
    %1627 = vmatpush1.bf16.msra.mxu0 %v1254
    %1628 = vmatprep.subr.bf16.mxu0 %v1259
    %1629 = vmatpush1.bf16.msra.mxu0 %v1258
    %1630 = vmatprep.subr.bf16.mxu0 %v1263
    %1631 = vmatpush1.bf16.msra.mxu0 %v1262
    %1632 = vmatprep.subr.bf16.mxu0 %v1267
    %1633 = vmatpush1.bf16.msra.mxu0 %v1266
    %1634 = vmatprep.subr.bf16.mxu0 %v1271
    %1635 = vmatpush1.bf16.msra.mxu0 %v1270
    %1636 = vmatprep.subr.bf16.mxu0 %v1275
    %1637 = vmatpush1.bf16.msra.mxu0 %v1274
    %1638 = vmatprep.subr.bf16.mxu0 %v1279
    %1639 = vmatpush1.bf16.msra.mxu0 %v1278
    %1640 = vmatprep.subr.bf16.mxu0 %v1283
    %1641 = vmatpush1.bf16.msra.mxu0 %v1282
    %1642 = vmatprep.subr.bf16.mxu0 %v1287
    %1643 = vmatpush1.bf16.msra.mxu0 %v1286
    %1644 = vmatprep.subr.bf16.mxu0 %v1291
    %1645 = vmatpush1.bf16.msra.mxu0 %v1290
    %1646 = vmatprep.mubr.bf16.mxu0 %v1035
    %1647 = vmatmul.mubr.bf16.gmra.mrb[0].mxu0 %v1034
    %v1648 = vpop.f32.mrb[0].mxu0
    %v1649 = vadd.f32 %v1596, %v1648
    %v1650 = vpop.f32.mrb[0].mxu0
    %v1651 = vadd.f32 %v1598, %v1650
    %v1652 = vpop.f32.mrb[0].mxu0
    %v1653 = vadd.f32 %v1600, %v1652
    %v1654 = vpop.f32.mrb[0].mxu0
    %v1655 = vadd.f32 %v1602, %v1654
    %1656 = vmatprep.mubr.bf16.mxu0 %v1039
    %1657 = vmatmul.mubr.bf16.gmra.mrb[0].mxu0 %v1038
    %v1658 = vpop.f32.mrb[0].mxu0
    %v1659 = vadd.f32 %v1606, %v1658
    %v1660 = vpop.f32.mrb[0].mxu0
    %v1661 = vadd.f32 %v1608, %v1660
    %v1662 = vpop.f32.mrb[0].mxu0
    %v1663 = vadd.f32 %v1610, %v1662
    %v1664 = vpop.f32.mrb[0].mxu0
    %v1665 = vadd.f32 %v1612, %v1664
    %1666 = vdwg.mxu0
    %1667 = vmatprep.subr.bf16.mxu0 %v1295
    %1668 = vmatpush1.bf16.msra.mxu0 %v1294
    %1669 = vmatprep.subr.bf16.mxu0 %v1299
    %1670 = vmatpush1.bf16.msra.mxu0 %v1298
    %1671 = vmatprep.subr.bf16.mxu0 %v1303
    %1672 = vmatpush1.bf16.msra.mxu0 %v1302
    %1673 = vmatprep.subr.bf16.mxu0 %v1307
    %1674 = vmatpush1.bf16.msra.mxu0 %v1306
    %1675 = vmatprep.subr.bf16.mxu0 %v1311
    %1676 = vmatpush1.bf16.msra.mxu0 %v1310
    %1677 = vmatprep.subr.bf16.mxu0 %v1315
    %1678 = vmatpush1.bf16.msra.mxu0 %v1314
    %1679 = vmatprep.subr.bf16.mxu0 %v1319
    %1680 = vmatpush1.bf16.msra.mxu0 %v1318
    %1681 = vmatprep.subr.bf16.mxu0 %v1323
    %1682 = vmatpush1.bf16.msra.mxu0 %v1322
    %1683 = vmatprep.subr.bf16.mxu0 %v1327
    %1684 = vmatpush1.bf16.msra.mxu0 %v1326
    %1685 = vmatprep.subr.bf16.mxu0 %v1331
    %1686 = vmatpush1.bf16.msra.mxu0 %v1330
    %1687 = vmatprep.subr.bf16.mxu0 %v1335
    %1688 = vmatpush1.bf16.msra.mxu0 %v1334
    %1689 = vmatprep.subr.bf16.mxu0 %v1339
    %1690 = vmatpush1.bf16.msra.mxu0 %v1338
    %1691 = vmatprep.subr.bf16.mxu0 %v1343
    %1692 = vmatpush1.bf16.msra.mxu0 %v1342
    %1693 = vmatprep.subr.bf16.mxu0 %v1347
    %1694 = vmatpush1.bf16.msra.mxu0 %v1346
    %1695 = vmatprep.subr.bf16.mxu0 %v1351
    %1696 = vmatpush1.bf16.msra.mxu0 %v1350
    %1697 = vmatprep.subr.bf16.mxu0 %v1355
    %1698 = vmatpush1.bf16.msra.mxu0 %v1354
    %1699 = vmatprep.mubr.bf16.mxu0 %v1037
    %1700 = vmatmul.mubr.bf16.gmra.mrb[0].mxu0 %v1036
    %v1701 = vpop.f32.mrb[0].mxu0
    %v1702 = vadd.f32 %v1649, %v1701
    %v1703 = vpop.f32.mrb[0].mxu0
    %v1704 = vadd.f32 %v1651, %v1703
    %v1705 = vpop.f32.mrb[0].mxu0
    %v1706 = vadd.f32 %v1653, %v1705
    %v1707 = vpop.f32.mrb[0].mxu0
    %v1708 = vadd.f32 %v1655, %v1707
    %1709 = vmatprep.mubr.bf16.mxu0 %v1041
    %1710 = vmatmul.mubr.bf16.gmra.mrb[0].mxu0 %v1040
    %v1711 = vpop.f32.mrb[0].mxu0
    %v1712 = vadd.f32 %v1659, %v1711
    %v1713 = vpop.f32.mrb[0].mxu0
    %v1714 = vadd.f32 %v1661, %v1713
    %v1715 = vpop.f32.mrb[0].mxu0
    %v1716 = vadd.f32 %v1663, %v1715
    %v1717 = vpop.f32.mrb[0].mxu0
    %v1718 = vadd.f32 %v1665, %v1717
    %1719 = vdwg.mxu0
    %1720 = vmatprep.subr.bf16.mxu0 %v1359
    %1721 = vmatpush1.bf16.msra.mxu0 %v1358
    %1722 = vmatprep.subr.bf16.mxu0 %v1363
    %1723 = vmatpush1.bf16.msra.mxu0 %v1362
    %1724 = vmatprep.subr.bf16.mxu0 %v1367
    %1725 = vmatpush1.bf16.msra.mxu0 %v1366
    %1726 = vmatprep.subr.bf16.mxu0 %v1371
    %1727 = vmatpush1.bf16.msra.mxu0 %v1370
    %1728 = vmatprep.subr.bf16.mxu0 %v1375
    %1729 = vmatpush1.bf16.msra.mxu0 %v1374
    %1730 = vmatprep.subr.bf16.mxu0 %v1379
    %1731 = vmatpush1.bf16.msra.mxu0 %v1378
    %1732 = vmatprep.subr.bf16.mxu0 %v1383
    %1733 = vmatpush1.bf16.msra.mxu0 %v1382
    %1734 = vmatprep.subr.bf16.mxu0 %v1387
    %1735 = vmatpush1.bf16.msra.mxu0 %v1386
    %1736 = vmatprep.subr.bf16.mxu0 %v1391
    %1737 = vmatpush1.bf16.msra.mxu0 %v1390
    %1738 = vmatprep.subr.bf16.mxu0 %v1395
    %1739 = vmatpush1.bf16.msra.mxu0 %v1394
    %1740 = vmatprep.subr.bf16.mxu0 %v1399
    %1741 = vmatpush1.bf16.msra.mxu0 %v1398
    %1742 = vmatprep.subr.bf16.mxu0 %v1403
    %1743 = vmatpush1.bf16.msra.mxu0 %v1402
    %1744 = vmatprep.subr.bf16.mxu0 %v1407
    %1745 = vmatpush1.bf16.msra.mxu0 %v1406
    %1746 = vmatprep.subr.bf16.mxu0 %v1411
    %1747 = vmatpush1.bf16.msra.mxu0 %v1410
    %1748 = vmatprep.subr.bf16.mxu0 %v1415
    %1749 = vmatpush1.bf16.msra.mxu0 %v1414
    %1750 = vmatprep.subr.bf16.mxu0 %v1419
    %1751 = vmatpush1.bf16.msra.mxu0 %v1418
    %1752 = vmatprep.mubr.bf16.mxu0 %v1091
    %1753 = vmatmul.mubr.bf16.gmra.mrb[0].mxu0 %v1090
    %v1754 = vpop.f32.mrb[0].mxu0
    %v1755 = vadd.f32 %v1702, %v1754
    %v1756 = vpop.f32.mrb[0].mxu0
    %v1757 = vadd.f32 %v1704, %v1756
    %v1758 = vpop.f32.mrb[0].mxu0
    %v1759 = vadd.f32 %v1706, %v1758
    %v1760 = vpop.f32.mrb[0].mxu0
    %v1761 = vadd.f32 %v1708, %v1760
    %1762 = vmatprep.mubr.bf16.mxu0 %v1095
    %1763 = vmatmul.mubr.bf16.gmra.mrb[0].mxu0 %v1094
    %v1764 = vpop.f32.mrb[0].mxu0
    %v1765 = vadd.f32 %v1712, %v1764
    %v1766 = vpop.f32.mrb[0].mxu0
    %v1767 = vadd.f32 %v1714, %v1766
    %v1768 = vpop.f32.mrb[0].mxu0
    %v1769 = vadd.f32 %v1716, %v1768
    %v1770 = vpop.f32.mrb[0].mxu0
    %v1771 = vadd.f32 %v1718, %v1770
    %1772 = vdwg.mxu0
    %1773 = vmatprep.subr.bf16.mxu0 %v1423
    %1774 = vmatpush1.bf16.msra.mxu0 %v1422
    %1775 = vmatprep.subr.bf16.mxu0 %v1427
    %1776 = vmatpush1.bf16.msra.mxu0 %v1426
    %1777 = vmatprep.subr.bf16.mxu0 %v1431
    %1778 = vmatpush1.bf16.msra.mxu0 %v1430
    %1779 = vmatprep.subr.bf16.mxu0 %v1435
    %1780 = vmatpush1.bf16.msra.mxu0 %v1434
    %1781 = vmatprep.subr.bf16.mxu0 %v1439
    %1782 = vmatpush1.bf16.msra.mxu0 %v1438
    %1783 = vmatprep.subr.bf16.mxu0 %v1443
    %1784 = vmatpush1.bf16.msra.mxu0 %v1442
    %1785 = vmatprep.subr.bf16.mxu0 %v1447
    %1786 = vmatpush1.bf16.msra.mxu0 %v1446
    %1787 = vmatprep.subr.bf16.mxu0 %v1451
    %1788 = vmatpush1.bf16.msra.mxu0 %v1450
    %1789 = vmatprep.subr.bf16.mxu0 %v1455
    %1790 = vmatpush1.bf16.msra.mxu0 %v1454
    %1791 = vmatprep.subr.bf16.mxu0 %v1459
    %1792 = vmatpush1.bf16.msra.mxu0 %v1458
    %1793 = vmatprep.subr.bf16.mxu0 %v1463
    %1794 = vmatpush1.bf16.msra.mxu0 %v1462
    %1795 = vmatprep.subr.bf16.mxu0 %v1467
    %1796 = vmatpush1.bf16.msra.mxu0 %v1466
    %1797 = vmatprep.subr.bf16.mxu0 %v1471
    %1798 = vmatpush1.bf16.msra.mxu0 %v1470
    %1799 = vmatprep.subr.bf16.mxu0 %v1475
    %1800 = vmatpush1.bf16.msra.mxu0 %v1474
    %1801 = vmatprep.subr.bf16.mxu0 %v1479
    %1802 = vmatpush1.bf16.msra.mxu0 %v1478
    %1803 = vmatprep.subr.bf16.mxu0 %v1483
    %1804 = vmatpush1.bf16.msra.mxu0 %v1482
    %1805 = vmatprep.mubr.bf16.mxu0 %v1093
    %1806 = vmatmul.mubr.bf16.gmra.mrb[0].mxu0 %v1092
    %v1807 = vpop.f32.mrb[0].mxu0
    %v1808 = vadd.f32 %v1755, %v1807
    %v1809 = vpop.f32.mrb[0].mxu0
    %v1810 = vadd.f32 %v1757, %v1809
    %v1811 = vpop.f32.mrb[0].mxu0
    %v1812 = vadd.f32 %v1759, %v1811
    %v1813 = vpop.f32.mrb[0].mxu0
    %v1814 = vadd.f32 %v1761, %v1813
    %1815 = vmatprep.mubr.bf16.mxu0 %v1097
    %1816 = vmatmul.mubr.bf16.gmra.mrb[0].mxu0 %v1096
    %v1817 = vpop.f32.mrb[0].mxu0
    %v1818 = vadd.f32 %v1765, %v1817
    %v1819 = vpop.f32.mrb[0].mxu0
    %v1820 = vadd.f32 %v1767, %v1819
    %v1821 = vpop.f32.mrb[0].mxu0
    %v1822 = vadd.f32 %v1769, %v1821
    %v1823 = vpop.f32.mrb[0].mxu0
    %v1824 = vadd.f32 %v1771, %v1823
    %1825 = vdwg.mxu0
    %1826 = vmatprep.subr.bf16.mxu0 %v1105
    %1827 = vmatpush1.bf16.msra.mxu0 %v1104
    %1828 = vmatprep.subr.bf16.mxu0 %v1109
    %1829 = vmatpush1.bf16.msra.mxu0 %v1108
    %1830 = vmatprep.subr.bf16.mxu0 %v1113
    %1831 = vmatpush1.bf16.msra.mxu0 %v1112
    %1832 = vmatprep.subr.bf16.mxu0 %v1117
    %1833 = vmatpush1.bf16.msra.mxu0 %v1116
    %1834 = vmatprep.subr.bf16.mxu0 %v1121
    %1835 = vmatpush1.bf16.msra.mxu0 %v1120
    %1836 = vmatprep.subr.bf16.mxu0 %v1125
    %1837 = vmatpush1.bf16.msra.mxu0 %v1124
    %1838 = vmatprep.subr.bf16.mxu0 %v1129
    %1839 = vmatpush1.bf16.msra.mxu0 %v1128
    %1840 = vmatprep.subr.bf16.mxu0 %v1133
    %1841 = vmatpush1.bf16.msra.mxu0 %v1132
    %1842 = vmatprep.subr.bf16.mxu0 %v1137
    %1843 = vmatpush1.bf16.msra.mxu0 %v1136
    %1844 = vmatprep.subr.bf16.mxu0 %v1141
    %1845 = vmatpush1.bf16.msra.mxu0 %v1140
    %1846 = vmatprep.subr.bf16.mxu0 %v1145
    %1847 = vmatpush1.bf16.msra.mxu0 %v1144
    %1848 = vmatprep.subr.bf16.mxu0 %v1149
    %1849 = vmatpush1.bf16.msra.mxu0 %v1148
    %1850 = vmatprep.subr.bf16.mxu0 %v1153
    %1851 = vmatpush1.bf16.msra.mxu0 %v1152
    %1852 = vmatprep.subr.bf16.mxu0 %v1157
    %1853 = vmatpush1.bf16.msra.mxu0 %v1156
    %1854 = vmatprep.subr.bf16.mxu0 %v1161
    %1855 = vmatpush1.bf16.msra.mxu0 %v1160
    %1856 = vmatprep.subr.bf16.mxu0 %v1165
    %1857 = vmatpush1.bf16.msra.mxu0 %v1164
    %1858 = vmatprep.mubr.bf16.mxu0 %v1027
    %1859 = vmatmul.mubr.bf16.gmra.mrb[0].mxu0 %v1026
    %v1860 = vpop.f32.mrb[0].mxu0
    %v1861 = vadd.f32 %v1499, %v1860
    %v1862 = vpop.f32.mrb[0].mxu0
    %v1863 = vadd.f32 %v1503, %v1862
    %v1864 = vpop.f32.mrb[0].mxu0
    %v1865 = vadd.f32 %v1499, %v1864
    %v1866 = vpop.f32.mrb[0].mxu0
    %v1867 = vadd.f32 %v1503, %v1866
    %1868 = vmatprep.mubr.bf16.mxu0 %v1031
    %1869 = vmatmul.mubr.bf16.gmra.mrb[0].mxu0 %v1030
    %v1870 = vpop.f32.mrb[0].mxu0
    %v1871 = vadd.f32 %v1499, %v1870
    %v1872 = vpop.f32.mrb[0].mxu0
    %v1873 = vadd.f32 %v1503, %v1872
    %v1874 = vpop.f32.mrb[0].mxu0
    %v1875 = vadd.f32 %v1499, %v1874
    %v1876 = vpop.f32.mrb[0].mxu0
    %v1877 = vadd.f32 %v1503, %v1876
    %1878 = vdwg.mxu0
    %1879 = vmatprep.subr.bf16.mxu0 %v1169
    %1880 = vmatpush1.bf16.msra.mxu0 %v1168
    %1881 = vmatprep.subr.bf16.mxu0 %v1173
    %1882 = vmatpush1.bf16.msra.mxu0 %v1172
    %1883 = vmatprep.subr.bf16.mxu0 %v1177
    %1884 = vmatpush1.bf16.msra.mxu0 %v1176
    %1885 = vmatprep.subr.bf16.mxu0 %v1181
    %1886 = vmatpush1.bf16.msra.mxu0 %v1180
    %1887 = vmatprep.subr.bf16.mxu0 %v1185
    %1888 = vmatpush1.bf16.msra.mxu0 %v1184
    %1889 = vmatprep.subr.bf16.mxu0 %v1189
    %1890 = vmatpush1.bf16.msra.mxu0 %v1188
    %1891 = vmatprep.subr.bf16.mxu0 %v1193
    %1892 = vmatpush1.bf16.msra.mxu0 %v1192
    %1893 = vmatprep.subr.bf16.mxu0 %v1197
    %1894 = vmatpush1.bf16.msra.mxu0 %v1196
    %1895 = vmatprep.subr.bf16.mxu0 %v1201
    %1896 = vmatpush1.bf16.msra.mxu0 %v1200
    %1897 = vmatprep.subr.bf16.mxu0 %v1205
    %1898 = vmatpush1.bf16.msra.mxu0 %v1204
    %1899 = vmatprep.subr.bf16.mxu0 %v1209
    %1900 = vmatpush1.bf16.msra.mxu0 %v1208
    %1901 = vmatprep.subr.bf16.mxu0 %v1213
    %1902 = vmatpush1.bf16.msra.mxu0 %v1212
    %1903 = vmatprep.subr.bf16.mxu0 %v1217
    %1904 = vmatpush1.bf16.msra.mxu0 %v1216
    %1905 = vmatprep.subr.bf16.mxu0 %v1221
    %1906 = vmatpush1.bf16.msra.mxu0 %v1220
    %1907 = vmatprep.subr.bf16.mxu0 %v1225
    %1908 = vmatpush1.bf16.msra.mxu0 %v1224
    %1909 = vmatprep.subr.bf16.mxu0 %v1229
    %1910 = vmatpush1.bf16.msra.mxu0 %v1228
    %1911 = vmatprep.mubr.bf16.mxu0 %v1029
    %1912 = vmatmul.mubr.bf16.gmra.mrb[0].mxu0 %v1028
    %v1913 = vpop.f32.mrb[0].mxu0
    %v1914 = vadd.f32 %v1861, %v1913
    %v1915 = vpop.f32.mrb[0].mxu0
    %v1916 = vadd.f32 %v1863, %v1915
    %v1917 = vpop.f32.mrb[0].mxu0
    %v1918 = vadd.f32 %v1865, %v1917
    %v1919 = vpop.f32.mrb[0].mxu0
    %v1920 = vadd.f32 %v1867, %v1919
    %1921 = vmatprep.mubr.bf16.mxu0 %v1033
    %1922 = vmatmul.mubr.bf16.gmra.mrb[0].mxu0 %v1032
    %v1923 = vpop.f32.mrb[0].mxu0
    %v1924 = vadd.f32 %v1871, %v1923
    %v1925 = vpop.f32.mrb[0].mxu0
    %v1926 = vadd.f32 %v1873, %v1925
    %v1927 = vpop.f32.mrb[0].mxu0
    %v1928 = vadd.f32 %v1875, %v1927
    %v1929 = vpop.f32.mrb[0].mxu0
    %v1930 = vadd.f32 %v1877, %v1929
    %1931 = vdwg.mxu0
    %1932 = vmatprep.subr.bf16.mxu0 %v1233
    %1933 = vmatpush1.bf16.msra.mxu0 %v1232
    %1934 = vmatprep.subr.bf16.mxu0 %v1237
    %1935 = vmatpush1.bf16.msra.mxu0 %v1236
    %1936 = vmatprep.subr.bf16.mxu0 %v1241
    %1937 = vmatpush1.bf16.msra.mxu0 %v1240
    %1938 = vmatprep.subr.bf16.mxu0 %v1245
    %1939 = vmatpush1.bf16.msra.mxu0 %v1244
    %1940 = vmatprep.subr.bf16.mxu0 %v1249
    %1941 = vmatpush1.bf16.msra.mxu0 %v1248
    %1942 = vmatprep.subr.bf16.mxu0 %v1253
    %1943 = vmatpush1.bf16.msra.mxu0 %v1252
    %1944 = vmatprep.subr.bf16.mxu0 %v1257
    %1945 = vmatpush1.bf16.msra.mxu0 %v1256
    %1946 = vmatprep.subr.bf16.mxu0 %v1261
    %1947 = vmatpush1.bf16.msra.mxu0 %v1260
    %1948 = vmatprep.subr.bf16.mxu0 %v1265
    %1949 = vmatpush1.bf16.msra.mxu0 %v1264
    %1950 = vmatprep.subr.bf16.mxu0 %v1269
    %1951 = vmatpush1.bf16.msra.mxu0 %v1268
    %1952 = vmatprep.subr.bf16.mxu0 %v1273
    %1953 = vmatpush1.bf16.msra.mxu0 %v1272
    %1954 = vmatprep.subr.bf16.mxu0 %v1277
    %1955 = vmatpush1.bf16.msra.mxu0 %v1276
    %1956 = vmatprep.subr.bf16.mxu0 %v1281
    %1957 = vmatpush1.bf16.msra.mxu0 %v1280
    %1958 = vmatprep.subr.bf16.mxu0 %v1285
    %1959 = vmatpush1.bf16.msra.mxu0 %v1284
    %1960 = vmatprep.subr.bf16.mxu0 %v1289
    %1961 = vmatpush1.bf16.msra.mxu0 %v1288
    %1962 = vmatprep.subr.bf16.mxu0 %v1293
    %1963 = vmatpush1.bf16.msra.mxu0 %v1292
    %1964 = vmatprep.mubr.bf16.mxu0 %v1035
    %1965 = vmatmul.mubr.bf16.gmra.mrb[0].mxu0 %v1034
    %v1966 = vpop.f32.mrb[0].mxu0
    %v1967 = vadd.f32 %v1914, %v1966
    %v1968 = vpop.f32.mrb[0].mxu0
    %v1969 = vadd.f32 %v1916, %v1968
    %v1970 = vpop.f32.mrb[0].mxu0
    %v1971 = vadd.f32 %v1918, %v1970
    %v1972 = vpop.f32.mrb[0].mxu0
    %v1973 = vadd.f32 %v1920, %v1972
    %1974 = vmatprep.mubr.bf16.mxu0 %v1039
    %1975 = vmatmul.mubr.bf16.gmra.mrb[0].mxu0 %v1038
    %v1976 = vpop.f32.mrb[0].mxu0
    %v1977 = vadd.f32 %v1924, %v1976
    %v1978 = vpop.f32.mrb[0].mxu0
    %v1979 = vadd.f32 %v1926, %v1978
    %v1980 = vpop.f32.mrb[0].mxu0
    %v1981 = vadd.f32 %v1928, %v1980
    %v1982 = vpop.f32.mrb[0].mxu0
    %v1983 = vadd.f32 %v1930, %v1982
    %1984 = vdwg.mxu0
    %1985 = vmatprep.subr.bf16.mxu0 %v1297
    %1986 = vmatpush1.bf16.msra.mxu0 %v1296
    %1987 = vmatprep.subr.bf16.mxu0 %v1301
    %1988 = vmatpush1.bf16.msra.mxu0 %v1300
    %1989 = vmatprep.subr.bf16.mxu0 %v1305
    %1990 = vmatpush1.bf16.msra.mxu0 %v1304
    %1991 = vmatprep.subr.bf16.mxu0 %v1309
    %1992 = vmatpush1.bf16.msra.mxu0 %v1308
    %1993 = vmatprep.subr.bf16.mxu0 %v1313
    %1994 = vmatpush1.bf16.msra.mxu0 %v1312
    %1995 = vmatprep.subr.bf16.mxu0 %v1317
    %1996 = vmatpush1.bf16.msra.mxu0 %v1316
    %1997 = vmatprep.subr.bf16.mxu0 %v1321
    %1998 = vmatpush1.bf16.msra.mxu0 %v1320
    %1999 = vmatprep.subr.bf16.mxu0 %v1325
    %2000 = vmatpush1.bf16.msra.mxu0 %v1324
    %2001 = vmatprep.subr.bf16.mxu0 %v1329
    %2002 = vmatpush1.bf16.msra.mxu0 %v1328
    %2003 = vmatprep.subr.bf16.mxu0 %v1333
    %2004 = vmatpush1.bf16.msra.mxu0 %v1332
    %2005 = vmatprep.subr.bf16.mxu0 %v1337
    %2006 = vmatpush1.bf16.msra.mxu0 %v1336
    %2007 = vmatprep.subr.bf16.mxu0 %v1341
    %2008 = vmatpush1.bf16.msra.mxu0 %v1340
    %2009 = vmatprep.subr.bf16.mxu0 %v1345
    %2010 = vmatpush1.bf16.msra.mxu0 %v1344
    %2011 = vmatprep.subr.bf16.mxu0 %v1349
    %2012 = vmatpush1.bf16.msra.mxu0 %v1348
    %2013 = vmatprep.subr.bf16.mxu0 %v1353
    %2014 = vmatpush1.bf16.msra.mxu0 %v1352
    %2015 = vmatprep.subr.bf16.mxu0 %v1357
    %2016 = vmatpush1.bf16.msra.mxu0 %v1356
    %2017 = vmatprep.mubr.bf16.mxu0 %v1037
    %2018 = vmatmul.mubr.bf16.gmra.mrb[0].mxu0 %v1036
    %v2019 = vpop.f32.mrb[0].mxu0
    %v2020 = vadd.f32 %v1967, %v2019
    %v2021 = vpop.f32.mrb[0].mxu0
    %v2022 = vadd.f32 %v1969, %v2021
    %v2023 = vpop.f32.mrb[0].mxu0
    %v2024 = vadd.f32 %v1971, %v2023
    %v2025 = vpop.f32.mrb[0].mxu0
    %v2026 = vadd.f32 %v1973, %v2025
    %2027 = vmatprep.mubr.bf16.mxu0 %v1041
    %2028 = vmatmul.mubr.bf16.gmra.mrb[0].mxu0 %v1040
    %v2029 = vpop.f32.mrb[0].mxu0
    %v2030 = vadd.f32 %v1977, %v2029
    %v2031 = vpop.f32.mrb[0].mxu0
    %v2032 = vadd.f32 %v1979, %v2031
    %v2033 = vpop.f32.mrb[0].mxu0
    %v2034 = vadd.f32 %v1981, %v2033
    %v2035 = vpop.f32.mrb[0].mxu0
    %v2036 = vadd.f32 %v1983, %v2035
    %2037 = vdwg.mxu0
    %2038 = vmatprep.subr.bf16.mxu0 %v1361
    %2039 = vmatpush1.bf16.msra.mxu0 %v1360
    %2040 = vmatprep.subr.bf16.mxu0 %v1365
    %2041 = vmatpush1.bf16.msra.mxu0 %v1364
    %2042 = vmatprep.subr.bf16.mxu0 %v1369
    %2043 = vmatpush1.bf16.msra.mxu0 %v1368
    %2044 = vmatprep.subr.bf16.mxu0 %v1373
    %2045 = vmatpush1.bf16.msra.mxu0 %v1372
    %2046 = vmatprep.subr.bf16.mxu0 %v1377
    %2047 = vmatpush1.bf16.msra.mxu0 %v1376
    %2048 = vmatprep.subr.bf16.mxu0 %v1381
    %2049 = vmatpush1.bf16.msra.mxu0 %v1380
    %2050 = vmatprep.subr.bf16.mxu0 %v1385
    %2051 = vmatpush1.bf16.msra.mxu0 %v1384
    %2052 = vmatprep.subr.bf16.mxu0 %v1389
    %2053 = vmatpush1.bf16.msra.mxu0 %v1388
    %2054 = vmatprep.subr.bf16.mxu0 %v1393
    %2055 = vmatpush1.bf16.msra.mxu0 %v1392
    %2056 = vmatprep.subr.bf16.mxu0 %v1397
    %2057 = vmatpush1.bf16.msra.mxu0 %v1396
    %2058 = vmatprep.subr.bf16.mxu0 %v1401
    %2059 = vmatpush1.bf16.msra.mxu0 %v1400
    %2060 = vmatprep.subr.bf16.mxu0 %v1405
    %2061 = vmatpush1.bf16.msra.mxu0 %v1404
    %2062 = vmatprep.subr.bf16.mxu0 %v1409
    %2063 = vmatpush1.bf16.msra.mxu0 %v1408
    %2064 = vmatprep.subr.bf16.mxu0 %v1413
    %2065 = vmatpush1.bf16.msra.mxu0 %v1412
    %2066 = vmatprep.subr.bf16.mxu0 %v1417
    %2067 = vmatpush1.bf16.msra.mxu0 %v1416
    %2068 = vmatprep.subr.bf16.mxu0 %v1421
    %2069 = vmatpush1.bf16.msra.mxu0 %v1420
    %2070 = vmatprep.mubr.bf16.mxu0 %v1091
    %2071 = vmatmul.mubr.bf16.gmra.mrb[0].mxu0 %v1090
    %v2072 = vpop.f32.mrb[0].mxu0
    %v2073 = vadd.f32 %v2020, %v2072
    %v2074 = vpop.f32.mrb[0].mxu0
    %v2075 = vadd.f32 %v2022, %v2074
    %v2076 = vpop.f32.mrb[0].mxu0
    %v2077 = vadd.f32 %v2024, %v2076
    %v2078 = vpop.f32.mrb[0].mxu0
    %v2079 = vadd.f32 %v2026, %v2078
    %2080 = vmatprep.mubr.bf16.mxu0 %v1095
    %2081 = vmatmul.mubr.bf16.gmra.mrb[0].mxu0 %v1094
    %v2082 = vpop.f32.mrb[0].mxu0
    %v2083 = vadd.f32 %v2030, %v2082
    %v2084 = vpop.f32.mrb[0].mxu0
    %v2085 = vadd.f32 %v2032, %v2084
    %v2086 = vpop.f32.mrb[0].mxu0
    %v2087 = vadd.f32 %v2034, %v2086
    %v2088 = vpop.f32.mrb[0].mxu0
    %v2089 = vadd.f32 %v2036, %v2088
    %2090 = vdwg.mxu0
    %2091 = vmatprep.subr.bf16.mxu0 %v1425
    %2092 = vmatpush1.bf16.msra.mxu0 %v1424
    %2093 = vmatprep.subr.bf16.mxu0 %v1429
    %2094 = vmatpush1.bf16.msra.mxu0 %v1428
    %2095 = vmatprep.subr.bf16.mxu0 %v1433
    %2096 = vmatpush1.bf16.msra.mxu0 %v1432
    %2097 = vmatprep.subr.bf16.mxu0 %v1437
    %2098 = vmatpush1.bf16.msra.mxu0 %v1436
    %2099 = vmatprep.subr.bf16.mxu0 %v1441
    %2100 = vmatpush1.bf16.msra.mxu0 %v1440
    %2101 = vmatprep.subr.bf16.mxu0 %v1445
    %2102 = vmatpush1.bf16.msra.mxu0 %v1444
    %2103 = vmatprep.subr.bf16.mxu0 %v1449
    %2104 = vmatpush1.bf16.msra.mxu0 %v1448
    %2105 = vmatprep.subr.bf16.mxu0 %v1453
    %2106 = vmatpush1.bf16.msra.mxu0 %v1452
    %2107 = vmatprep.subr.bf16.mxu0 %v1457
    %2108 = vmatpush1.bf16.msra.mxu0 %v1456
    %2109 = vmatprep.subr.bf16.mxu0 %v1461
    %2110 = vmatpush1.bf16.msra.mxu0 %v1460
    %2111 = vmatprep.subr.bf16.mxu0 %v1465
    %2112 = vmatpush1.bf16.msra.mxu0 %v1464
    %2113 = vmatprep.subr.bf16.mxu0 %v1469
    %2114 = vmatpush1.bf16.msra.mxu0 %v1468
    %2115 = vmatprep.subr.bf16.mxu0 %v1473
    %2116 = vmatpush1.bf16.msra.mxu0 %v1472
    %2117 = vmatprep.subr.bf16.mxu0 %v1477
    %2118 = vmatpush1.bf16.msra.mxu0 %v1476
    %2119 = vmatprep.subr.bf16.mxu0 %v1481
    %2120 = vmatpush1.bf16.msra.mxu0 %v1480
    %2121 = vmatprep.subr.bf16.mxu0 %v1485
    %2122 = vmatpush1.bf16.msra.mxu0 %v1484
    %2123 = vmatprep.mubr.bf16.mxu0 %v1093
    %2124 = vmatmul.mubr.bf16.gmra.mrb[0].mxu0 %v1092
    %v2125 = vpop.f32.mrb[0].mxu0
    %v2126 = vadd.f32 %v2073, %v2125
    %v2127 = vpop.f32.mrb[0].mxu0
    %v2128 = vadd.f32 %v2075, %v2127
    %v2129 = vpop.f32.mrb[0].mxu0
    %v2130 = vadd.f32 %v2077, %v2129
    %v2131 = vpop.f32.mrb[0].mxu0
    %v2132 = vadd.f32 %v2079, %v2131
    %2133 = vmatprep.mubr.bf16.mxu0 %v1097
    %2134 = vmatmul.mubr.bf16.gmra.mrb[0].mxu0 %v1096
    %v2135 = vpop.f32.mrb[0].mxu0
    %v2136 = vadd.f32 %v2083, %v2135
    %v2137 = vpop.f32.mrb[0].mxu0
    %v2138 = vadd.f32 %v2085, %v2137
    %v2139 = vpop.f32.mrb[0].mxu0
    %v2140 = vadd.f32 %v2087, %v2139
    %v2141 = vpop.f32.mrb[0].mxu0
    %v2142 = vadd.f32 %v2089, %v2141
    %2143 = vdwg.mxu0
    %v2144 = vmax.f32 %v1808, 0.0
    %v2145 = vmax.f32 %v1810, 0.0
    %v2146 = vmax.f32 %v2126, 0.0
    %v2147 = vmax.f32 %v2128, 0.0
    %v2148 = vmax.f32 %v1812, 0.0
    %v2149 = vmax.f32 %v1814, 0.0
    %v2150 = vmax.f32 %v2130, 0.0
    %v2151 = vmax.f32 %v2132, 0.0
    %v2152 = vmax.f32 %v1818, 0.0
    %v2153 = vmax.f32 %v1820, 0.0
    %v2154 = vmax.f32 %v2136, 0.0
    %v2155 = vmax.f32 %v2138, 0.0
    %v2156 = vmax.f32 %v1822, 0.0
    %v2157 = vmax.f32 %v1824, 0.0
    %v2158 = vmax.f32 %v2140, 0.0
    %v2159 = vmax.f32 %v2142, 0.0
    %v2160 = vrot.slane %v2144, 7
    %v2161 = vrot.slane %v2145, 7
    %v2162 = vrot.slane %v2146, 7
    %v2163 = vrot.slane %v2147, 7
    %v2164 = vrot.slane %v2148, 7
    %v2165 = vrot.slane %v2149, 7
    %v2166 = vrot.slane %v2150, 7
    %v2167 = vrot.slane %v2151, 7
    %v2168 = vrot.slane %v2152, 7
    %v2169 = vrot.slane %v2153, 7
    %v2170 = vrot.slane %v2154, 7
    %v2171 = vrot.slane %v2155, 7
    %v2172 = vrot.slane %v2156, 7
    %v2173 = vrot.slane %v2157, 7
    %v2174 = vrot.slane %v2158, 7
    %v2175 = vrot.slane %v2159, 7
    %v2176 = vsel %vm391, %v2168, %v2172
    %v2177 = vsel %vm391, %v2169, %v2173
    %v2178 = vsel %vm391, %v2170, %v2174
    %v2179 = vsel %vm391, %v2171, %v2175
    %v2180 = vsel %vm391, %v2164, %v2168
    %v2181 = vsel %vm391, %v2165, %v2169
    %v2182 = vsel %vm391, %v2166, %v2170
    %v2183 = vsel %vm391, %v2167, %v2171
    %v2184 = vsel %vm391, %v2160, %v2164
    %v2185 = vsel %vm391, %v2161, %v2165
    %v2186 = vsel %vm391, %v2162, %v2166
    %v2187 = vsel %vm391, %v2163, %v2167
    %v2188 = vsel %vm391, %v2172, %v2160
    %v2189 = vsel %vm391, %v2173, %v2161
    %v2190 = vsel %vm391, %v2174, %v2162
    %v2191 = vsel %vm391, %v2175, %v2163
    %v2192 = vsel %vm400, %v2188, 0.0
    %v2193 = vsel %vm400, %v2189, 0.0
    %v2194 = vsel %vm400, %v2190, 0.0
    %v2195 = vsel %vm400, %v2191, 0.0
    %v2196 = vsel %vm401, %v2184, 0.0
    %v2197 = vsel %vm401, %v2185, 0.0
    %v2198 = vsel %vm401, %v2186, 0.0
    %v2199 = vsel %vm401, %v2187, 0.0
    %v2200 = vsel %vm402, %v2180, 0.0
    %v2201 = vsel %vm402, %v2181, 0.0
    %v2202 = vsel %vm402, %v2182, 0.0
    %v2203 = vsel %vm402, %v2183, 0.0
    %v2204 = vsel %vm403, %v2176, 0.0
    %v2205 = vsel %vm403, %v2177, 0.0
    %v2206 = vsel %vm403, %v2178, 0.0
    %v2207 = vsel %vm403, %v2179, 0.0
    %v2208 = vpack.c.bf16 %v2196, %v2192
    %v2209 = vpack.c.bf16 %v2197, %v2193
    %v2210 = vpack.c.bf16 %v2198, %v2194
    %v2211 = vpack.c.bf16 %v2199, %v2195
    %v2212 = vpack.c.bf16 %v2204, %v2200
    %v2213 = vpack.c.bf16 %v2205, %v2201
    %v2214 = vpack.c.bf16 %v2206, %v2202
    %v2215 = vpack.c.bf16 %v2207, %v2203
    %v2216 = vpack.c.bf16 %v2148, %v2144
    %v2217 = vpack.c.bf16 %v2149, %v2145
    %v2218 = vpack.c.bf16 %v2150, %v2146
    %v2219 = vpack.c.bf16 %v2151, %v2147
    %v2220 = vpack.c.bf16 %v2156, %v2152
    %v2221 = vpack.c.bf16 %v2157, %v2153
    %v2222 = vpack.c.bf16 %v2158, %v2154
    %v2223 = vpack.c.bf16 %v2159, %v2155
    %v2224 = vrot.slane %v2144, 1
    %v2225 = vrot.slane %v2145, 1
    %v2226 = vrot.slane %v2146, 1
    %v2227 = vrot.slane %v2147, 1
    %v2228 = vrot.slane %v2148, 1
    %v2229 = vrot.slane %v2149, 1
    %v2230 = vrot.slane %v2150, 1
    %v2231 = vrot.slane %v2151, 1
    %v2232 = vrot.slane %v2152, 1
    %v2233 = vrot.slane %v2153, 1
    %v2234 = vrot.slane %v2154, 1
    %v2235 = vrot.slane %v2155, 1
    %v2236 = vrot.slane %v2156, 1
    %v2237 = vrot.slane %v2157, 1
    %v2238 = vrot.slane %v2158, 1
    %v2239 = vrot.slane %v2159, 1
    %v2240 = vsel %vm416, %v2232, %v2236
    %v2241 = vsel %vm416, %v2233, %v2237
    %v2242 = vsel %vm416, %v2234, %v2238
    %v2243 = vsel %vm416, %v2235, %v2239
    %v2244 = vsel %vm416, %v2228, %v2232
    %v2245 = vsel %vm416, %v2229, %v2233
    %v2246 = vsel %vm416, %v2230, %v2234
    %v2247 = vsel %vm416, %v2231, %v2235
    %v2248 = vsel %vm416, %v2224, %v2228
    %v2249 = vsel %vm416, %v2225, %v2229
    %v2250 = vsel %vm416, %v2226, %v2230
    %v2251 = vsel %vm416, %v2227, %v2231
    %v2252 = vsel %vm416, %v2236, %v2224
    %v2253 = vsel %vm416, %v2237, %v2225
    %v2254 = vsel %vm416, %v2238, %v2226
    %v2255 = vsel %vm416, %v2239, %v2227
    %v2256 = vsel %vm425, %v2248, 0.0
    %v2257 = vsel %vm425, %v2249, 0.0
    %v2258 = vsel %vm425, %v2250, 0.0
    %v2259 = vsel %vm425, %v2251, 0.0
    %v2260 = vsel %vm426, %v2244, 0.0
    %v2261 = vsel %vm426, %v2245, 0.0
    %v2262 = vsel %vm426, %v2246, 0.0
    %v2263 = vsel %vm426, %v2247, 0.0
    %v2264 = vsel %vm427, %v2240, 0.0
    %v2265 = vsel %vm427, %v2241, 0.0
    %v2266 = vsel %vm427, %v2242, 0.0
    %v2267 = vsel %vm427, %v2243, 0.0
    %v2268 = vsel %vm428, %v2252, 0.0
    %v2269 = vsel %vm428, %v2253, 0.0
    %v2270 = vsel %vm428, %v2254, 0.0
    %v2271 = vsel %vm428, %v2255, 0.0
    %v2272 = vpack.c.bf16 %v2260, %v2256
    %v2273 = vpack.c.bf16 %v2261, %v2257
    %v2274 = vpack.c.bf16 %v2262, %v2258
    %v2275 = vpack.c.bf16 %v2263, %v2259
    %v2276 = vpack.c.bf16 %v2268, %v2264
    %v2277 = vpack.c.bf16 %v2269, %v2265
    %v2278 = vpack.c.bf16 %v2270, %v2266
    %v2279 = vpack.c.bf16 %v2271, %v2267
    %s2280 = sshll.u32 %s1099, 4
    %2281 = dma.done %s186, %s2280
    %v2282 = vld [vmem:[#allocation4] sm:$0xff]
    %v2283 = vld [vmem:[#allocation4 + $0x8] sm:$0xff]
    %v2284 = vld [vmem:[#allocation4 + $0x10] sm:$0xff]
    %v2285 = vld [vmem:[#allocation4 + $0x18] sm:$0xff]
    %v2286 = vld [vmem:[#allocation4 + $0x20] sm:$0xff]
    %v2287 = vld [vmem:[#allocation4 + $0x28] sm:$0xff]
    %v2288 = vld [vmem:[#allocation4 + $0x30] sm:$0xff]
    %v2289 = vld [vmem:[#allocation4 + $0x38] sm:$0xff]
    %v2290 = vld [vmem:[#allocation4 + $0x40] sm:$0xff]
    %v2291 = vld [vmem:[#allocation4 + $0x48] sm:$0xff]
    %v2292 = vld [vmem:[#allocation4 + $0x50] sm:$0xff]
    %v2293 = vld [vmem:[#allocation4 + $0x58] sm:$0xff]
    %v2294 = vld [vmem:[#allocation4 + $0x60] sm:$0xff]
    %v2295 = vld [vmem:[#allocation4 + $0x68] sm:$0xff]
    %v2296 = vld [vmem:[#allocation4 + $0x70] sm:$0xff]
    %v2297 = vld [vmem:[#allocation4 + $0x78] sm:$0xff]
    %v2298 = vld [vmem:[#allocation4 + $0x80] sm:$0xff]
    %v2299 = vld [vmem:[#allocation4 + $0x88] sm:$0xff]
    %v2300 = vld [vmem:[#allocation4 + $0x90] sm:$0xff]
    %v2301 = vld [vmem:[#allocation4 + $0x98] sm:$0xff]
    %v2302 = vld [vmem:[#allocation4 + $0xa0] sm:$0xff]
    %v2303 = vld [vmem:[#allocation4 + $0xa8] sm:$0xff]
    %v2304 = vld [vmem:[#allocation4 + $0xb0] sm:$0xff]
    %v2305 = vld [vmem:[#allocation4 + $0xb8] sm:$0xff]
    %v2306 = vld [vmem:[#allocation4 + $0xc0] sm:$0xff]
    %v2307 = vld [vmem:[#allocation4 + $0xc8] sm:$0xff]
    %v2308 = vld [vmem:[#allocation4 + $0xd0] sm:$0xff]
    %v2309 = vld [vmem:[#allocation4 + $0xd8] sm:$0xff]
    %v2310 = vld [vmem:[#allocation4 + $0xe0] sm:$0xff]
    %v2311 = vld [vmem:[#allocation4 + $0xe8] sm:$0xff]
    %v2312 = vld [vmem:[#allocation4 + $0xf0] sm:$0xff]
    %v2313 = vld [vmem:[#allocation4 + $0xf8] sm:$0xff]
    %v2314 = vld [vmem:[#allocation4 + $0x100] sm:$0xff]
    %v2315 = vld [vmem:[#allocation4 + $0x108] sm:$0xff]
    %v2316 = vld [vmem:[#allocation4 + $0x110] sm:$0xff]
    %v2317 = vld [vmem:[#allocation4 + $0x118] sm:$0xff]
    %v2318 = vld [vmem:[#allocation4 + $0x120] sm:$0xff]
    %v2319 = vld [vmem:[#allocation4 + $0x128] sm:$0xff]
    %v2320 = vld [vmem:[#allocation4 + $0x130] sm:$0xff]
    %v2321 = vld [vmem:[#allocation4 + $0x138] sm:$0xff]
    %v2322 = vld [vmem:[#allocation4 + $0x140] sm:$0xff]
    %v2323 = vld [vmem:[#allocation4 + $0x148] sm:$0xff]
    %v2324 = vld [vmem:[#allocation4 + $0x150] sm:$0xff]
    %v2325 = vld [vmem:[#allocation4 + $0x158] sm:$0xff]
    %v2326 = vld [vmem:[#allocation4 + $0x160] sm:$0xff]
    %v2327 = vld [vmem:[#allocation4 + $0x168] sm:$0xff]
    %v2328 = vld [vmem:[#allocation4 + $0x170] sm:$0xff]
    %v2329 = vld [vmem:[#allocation4 + $0x178] sm:$0xff]
    %v2330 = vld [vmem:[#allocation4 + $0x180] sm:$0xff]
    %v2331 = vld [vmem:[#allocation4 + $0x188] sm:$0xff]
    %v2332 = vld [vmem:[#allocation4 + $0x190] sm:$0xff]
    %v2333 = vld [vmem:[#allocation4 + $0x198] sm:$0xff]
    %v2334 = vld [vmem:[#allocation4 + $0x1a0] sm:$0xff]
    %v2335 = vld [vmem:[#allocation4 + $0x1a8] sm:$0xff]
    %v2336 = vld [vmem:[#allocation4 + $0x1b0] sm:$0xff]
    %v2337 = vld [vmem:[#allocation4 + $0x1b8] sm:$0xff]
    %v2338 = vld [vmem:[#allocation4 + $0x1c0] sm:$0xff]
    %v2339 = vld [vmem:[#allocation4 + $0x1c8] sm:$0xff]
    %v2340 = vld [vmem:[#allocation4 + $0x1d0] sm:$0xff]
    %v2341 = vld [vmem:[#allocation4 + $0x1d8] sm:$0xff]
    %v2342 = vld [vmem:[#allocation4 + $0x1e0] sm:$0xff]
    %v2343 = vld [vmem:[#allocation4 + $0x1e8] sm:$0xff]
    %v2344 = vld [vmem:[#allocation4 + $0x1f0] sm:$0xff]
    %v2345 = vld [vmem:[#allocation4 + $0x1f8] sm:$0xff]
    %v2346 = vld [vmem:[#allocation4 + $0x200] sm:$0xff]
    %v2347 = vld [vmem:[#allocation4 + $0x208] sm:$0xff]
    %v2348 = vld [vmem:[#allocation4 + $0x210] sm:$0xff]
    %v2349 = vld [vmem:[#allocation4 + $0x218] sm:$0xff]
    %v2350 = vld [vmem:[#allocation4 + $0x220] sm:$0xff]
    %v2351 = vld [vmem:[#allocation4 + $0x228] sm:$0xff]
    %v2352 = vld [vmem:[#allocation4 + $0x230] sm:$0xff]
    %v2353 = vld [vmem:[#allocation4 + $0x238] sm:$0xff]
    %v2354 = vld [vmem:[#allocation4 + $0x240] sm:$0xff]
    %v2355 = vld [vmem:[#allocation4 + $0x248] sm:$0xff]
    %v2356 = vld [vmem:[#allocation4 + $0x250] sm:$0xff]
    %v2357 = vld [vmem:[#allocation4 + $0x258] sm:$0xff]
    %v2358 = vld [vmem:[#allocation4 + $0x260] sm:$0xff]
    %v2359 = vld [vmem:[#allocation4 + $0x268] sm:$0xff]
    %v2360 = vld [vmem:[#allocation4 + $0x270] sm:$0xff]
    %v2361 = vld [vmem:[#allocation4 + $0x278] sm:$0xff]
    %v2362 = vld [vmem:[#allocation4 + $0x280] sm:$0xff]
    %v2363 = vld [vmem:[#allocation4 + $0x288] sm:$0xff]
    %v2364 = vld [vmem:[#allocation4 + $0x290] sm:$0xff]
    %v2365 = vld [vmem:[#allocation4 + $0x298] sm:$0xff]
    %v2366 = vld [vmem:[#allocation4 + $0x2a0] sm:$0xff]
    %v2367 = vld [vmem:[#allocation4 + $0x2a8] sm:$0xff]
    %v2368 = vld [vmem:[#allocation4 + $0x2b0] sm:$0xff]
    %v2369 = vld [vmem:[#allocation4 + $0x2b8] sm:$0xff]
    %v2370 = vld [vmem:[#allocation4 + $0x2c0] sm:$0xff]
    %v2371 = vld [vmem:[#allocation4 + $0x2c8] sm:$0xff]
    %v2372 = vld [vmem:[#allocation4 + $0x2d0] sm:$0xff]
    %v2373 = vld [vmem:[#allocation4 + $0x2d8] sm:$0xff]
    %v2374 = vld [vmem:[#allocation4 + $0x2e0] sm:$0xff]
    %v2375 = vld [vmem:[#allocation4 + $0x2e8] sm:$0xff]
    %v2376 = vld [vmem:[#allocation4 + $0x2f0] sm:$0xff]
    %v2377 = vld [vmem:[#allocation4 + $0x2f8] sm:$0xff]
    %v2378 = vld [vmem:[#allocation4 + $0x300] sm:$0xff]
    %v2379 = vld [vmem:[#allocation4 + $0x308] sm:$0xff]
    %v2380 = vld [vmem:[#allocation4 + $0x310] sm:$0xff]
    %v2381 = vld [vmem:[#allocation4 + $0x318] sm:$0xff]
    %v2382 = vld [vmem:[#allocation4 + $0x320] sm:$0xff]
    %v2383 = vld [vmem:[#allocation4 + $0x328] sm:$0xff]
    %v2384 = vld [vmem:[#allocation4 + $0x330] sm:$0xff]
    %v2385 = vld [vmem:[#allocation4 + $0x338] sm:$0xff]
    %v2386 = vld [vmem:[#allocation4 + $0x340] sm:$0xff]
    %v2387 = vld [vmem:[#allocation4 + $0x348] sm:$0xff]
    %v2388 = vld [vmem:[#allocation4 + $0x350] sm:$0xff]
    %v2389 = vld [vmem:[#allocation4 + $0x358] sm:$0xff]
    %v2390 = vld [vmem:[#allocation4 + $0x360] sm:$0xff]
    %v2391 = vld [vmem:[#allocation4 + $0x368] sm:$0xff]
    %v2392 = vld [vmem:[#allocation4 + $0x370] sm:$0xff]
    %v2393 = vld [vmem:[#allocation4 + $0x378] sm:$0xff]
    %v2394 = vld [vmem:[#allocation4 + $0x380] sm:$0xff]
    %v2395 = vld [vmem:[#allocation4 + $0x388] sm:$0xff]
    %v2396 = vld [vmem:[#allocation4 + $0x390] sm:$0xff]
    %v2397 = vld [vmem:[#allocation4 + $0x398] sm:$0xff]
    %v2398 = vld [vmem:[#allocation4 + $0x3a0] sm:$0xff]
    %v2399 = vld [vmem:[#allocation4 + $0x3a8] sm:$0xff]
    %v2400 = vld [vmem:[#allocation4 + $0x3b0] sm:$0xff]
    %v2401 = vld [vmem:[#allocation4 + $0x3b8] sm:$0xff]
    %v2402 = vld [vmem:[#allocation4 + $0x3c0] sm:$0xff]
    %v2403 = vld [vmem:[#allocation4 + $0x3c8] sm:$0xff]
    %v2404 = vld [vmem:[#allocation4 + $0x3d0] sm:$0xff]
    %v2405 = vld [vmem:[#allocation4 + $0x3d8] sm:$0xff]
    %v2406 = vld [vmem:[#allocation4 + $0x3e0] sm:$0xff]
    %v2407 = vld [vmem:[#allocation4 + $0x3e8] sm:$0xff]
    %v2408 = vld [vmem:[#allocation4 + $0x3f0] sm:$0xff]
    %v2409 = vld [vmem:[#allocation4 + $0x3f8] sm:$0xff]
    %v2410 = vld [vmem:[#allocation4 + $0x400] sm:$0xff]
    %v2411 = vld [vmem:[#allocation4 + $0x408] sm:$0xff]
    %v2412 = vld [vmem:[#allocation4 + $0x410] sm:$0xff]
    %v2413 = vld [vmem:[#allocation4 + $0x418] sm:$0xff]
    %v2414 = vld [vmem:[#allocation4 + $0x420] sm:$0xff]
    %v2415 = vld [vmem:[#allocation4 + $0x428] sm:$0xff]
    %v2416 = vld [vmem:[#allocation4 + $0x430] sm:$0xff]
    %v2417 = vld [vmem:[#allocation4 + $0x438] sm:$0xff]
    %v2418 = vld [vmem:[#allocation4 + $0x440] sm:$0xff]
    %v2419 = vld [vmem:[#allocation4 + $0x448] sm:$0xff]
    %v2420 = vld [vmem:[#allocation4 + $0x450] sm:$0xff]
    %v2421 = vld [vmem:[#allocation4 + $0x458] sm:$0xff]
    %v2422 = vld [vmem:[#allocation4 + $0x460] sm:$0xff]
    %v2423 = vld [vmem:[#allocation4 + $0x468] sm:$0xff]
    %v2424 = vld [vmem:[#allocation4 + $0x470] sm:$0xff]
    %v2425 = vld [vmem:[#allocation4 + $0x478] sm:$0xff]
    %v2426 = vld [vmem:[#allocation4 + $0x480] sm:$0xff]
    %v2427 = vld [vmem:[#allocation4 + $0x488] sm:$0xff]
    %v2428 = vld [vmem:[#allocation4 + $0x490] sm:$0xff]
    %v2429 = vld [vmem:[#allocation4 + $0x498] sm:$0xff]
    %v2430 = vld [vmem:[#allocation4 + $0x4a0] sm:$0xff]
    %v2431 = vld [vmem:[#allocation4 + $0x4a8] sm:$0xff]
    %v2432 = vld [vmem:[#allocation4 + $0x4b0] sm:$0xff]
    %v2433 = vld [vmem:[#allocation4 + $0x4b8] sm:$0xff]
    %v2434 = vld [vmem:[#allocation4 + $0x4c0] sm:$0xff]
    %v2435 = vld [vmem:[#allocation4 + $0x4c8] sm:$0xff]
    %v2436 = vld [vmem:[#allocation4 + $0x4d0] sm:$0xff]
    %v2437 = vld [vmem:[#allocation4 + $0x4d8] sm:$0xff]
    %v2438 = vld [vmem:[#allocation4 + $0x4e0] sm:$0xff]
    %v2439 = vld [vmem:[#allocation4 + $0x4e8] sm:$0xff]
    %v2440 = vld [vmem:[#allocation4 + $0x4f0] sm:$0xff]
    %v2441 = vld [vmem:[#allocation4 + $0x4f8] sm:$0xff]
    %v2442 = vld [vmem:[#allocation4 + $0x500] sm:$0xff]
    %v2443 = vld [vmem:[#allocation4 + $0x508] sm:$0xff]
    %v2444 = vld [vmem:[#allocation4 + $0x510] sm:$0xff]
    %v2445 = vld [vmem:[#allocation4 + $0x518] sm:$0xff]
    %v2446 = vld [vmem:[#allocation4 + $0x520] sm:$0xff]
    %v2447 = vld [vmem:[#allocation4 + $0x528] sm:$0xff]
    %v2448 = vld [vmem:[#allocation4 + $0x530] sm:$0xff]
    %v2449 = vld [vmem:[#allocation4 + $0x538] sm:$0xff]
    %v2450 = vld [vmem:[#allocation4 + $0x540] sm:$0xff]
    %v2451 = vld [vmem:[#allocation4 + $0x548] sm:$0xff]
    %v2452 = vld [vmem:[#allocation4 + $0x550] sm:$0xff]
    %v2453 = vld [vmem:[#allocation4 + $0x558] sm:$0xff]
    %v2454 = vld [vmem:[#allocation4 + $0x560] sm:$0xff]
    %v2455 = vld [vmem:[#allocation4 + $0x568] sm:$0xff]
    %v2456 = vld [vmem:[#allocation4 + $0x570] sm:$0xff]
    %v2457 = vld [vmem:[#allocation4 + $0x578] sm:$0xff]
    %v2458 = vld [vmem:[#allocation4 + $0x580] sm:$0xff]
    %v2459 = vld [vmem:[#allocation4 + $0x588] sm:$0xff]
    %v2460 = vld [vmem:[#allocation4 + $0x590] sm:$0xff]
    %v2461 = vld [vmem:[#allocation4 + $0x598] sm:$0xff]
    %v2462 = vld [vmem:[#allocation4 + $0x5a0] sm:$0xff]
    %v2463 = vld [vmem:[#allocation4 + $0x5a8] sm:$0xff]
    %v2464 = vld [vmem:[#allocation4 + $0x5b0] sm:$0xff]
    %v2465 = vld [vmem:[#allocation4 + $0x5b8] sm:$0xff]
    %v2466 = vld [vmem:[#allocation4 + $0x5c0] sm:$0xff]
    %v2467 = vld [vmem:[#allocation4 + $0x5c8] sm:$0xff]
    %v2468 = vld [vmem:[#allocation4 + $0x5d0] sm:$0xff]
    %v2469 = vld [vmem:[#allocation4 + $0x5d8] sm:$0xff]
    %v2470 = vld [vmem:[#allocation4 + $0x5e0] sm:$0xff]
    %v2471 = vld [vmem:[#allocation4 + $0x5e8] sm:$0xff]
    %v2472 = vld [vmem:[#allocation4 + $0x5f0] sm:$0xff]
    %v2473 = vld [vmem:[#allocation4 + $0x5f8] sm:$0xff]
    %v2474 = vld [vmem:[#allocation4 + $0x600] sm:$0xff]
    %v2475 = vld [vmem:[#allocation4 + $0x608] sm:$0xff]
    %v2476 = vld [vmem:[#allocation4 + $0x610] sm:$0xff]
    %v2477 = vld [vmem:[#allocation4 + $0x618] sm:$0xff]
    %v2478 = vld [vmem:[#allocation4 + $0x620] sm:$0xff]
    %v2479 = vld [vmem:[#allocation4 + $0x628] sm:$0xff]
    %v2480 = vld [vmem:[#allocation4 + $0x630] sm:$0xff]
    %v2481 = vld [vmem:[#allocation4 + $0x638] sm:$0xff]
    %v2482 = vld [vmem:[#allocation4 + $0x640] sm:$0xff]
    %v2483 = vld [vmem:[#allocation4 + $0x648] sm:$0xff]
    %v2484 = vld [vmem:[#allocation4 + $0x650] sm:$0xff]
    %v2485 = vld [vmem:[#allocation4 + $0x658] sm:$0xff]
    %v2486 = vld [vmem:[#allocation4 + $0x660] sm:$0xff]
    %v2487 = vld [vmem:[#allocation4 + $0x668] sm:$0xff]
    %v2488 = vld [vmem:[#allocation4 + $0x670] sm:$0xff]
    %v2489 = vld [vmem:[#allocation4 + $0x678] sm:$0xff]
    %v2490 = vld [vmem:[#allocation4 + $0x680] sm:$0xff]
    %v2491 = vld [vmem:[#allocation4 + $0x688] sm:$0xff]
    %v2492 = vld [vmem:[#allocation4 + $0x690] sm:$0xff]
    %v2493 = vld [vmem:[#allocation4 + $0x698] sm:$0xff]
    %v2494 = vld [vmem:[#allocation4 + $0x6a0] sm:$0xff]
    %v2495 = vld [vmem:[#allocation4 + $0x6a8] sm:$0xff]
    %v2496 = vld [vmem:[#allocation4 + $0x6b0] sm:$0xff]
    %v2497 = vld [vmem:[#allocation4 + $0x6b8] sm:$0xff]
    %v2498 = vld [vmem:[#allocation4 + $0x6c0] sm:$0xff]
    %v2499 = vld [vmem:[#allocation4 + $0x6c8] sm:$0xff]
    %v2500 = vld [vmem:[#allocation4 + $0x6d0] sm:$0xff]
    %v2501 = vld [vmem:[#allocation4 + $0x6d8] sm:$0xff]
    %v2502 = vld [vmem:[#allocation4 + $0x6e0] sm:$0xff]
    %v2503 = vld [vmem:[#allocation4 + $0x6e8] sm:$0xff]
    %v2504 = vld [vmem:[#allocation4 + $0x6f0] sm:$0xff]
    %v2505 = vld [vmem:[#allocation4 + $0x6f8] sm:$0xff]
    %v2506 = vld [vmem:[#allocation4 + $0x700] sm:$0xff]
    %v2507 = vld [vmem:[#allocation4 + $0x708] sm:$0xff]
    %v2508 = vld [vmem:[#allocation4 + $0x710] sm:$0xff]
    %v2509 = vld [vmem:[#allocation4 + $0x718] sm:$0xff]
    %v2510 = vld [vmem:[#allocation4 + $0x720] sm:$0xff]
    %v2511 = vld [vmem:[#allocation4 + $0x728] sm:$0xff]
    %v2512 = vld [vmem:[#allocation4 + $0x730] sm:$0xff]
    %v2513 = vld [vmem:[#allocation4 + $0x738] sm:$0xff]
    %v2514 = vld [vmem:[#allocation4 + $0x740] sm:$0xff]
    %v2515 = vld [vmem:[#allocation4 + $0x748] sm:$0xff]
    %v2516 = vld [vmem:[#allocation4 + $0x750] sm:$0xff]
    %v2517 = vld [vmem:[#allocation4 + $0x758] sm:$0xff]
    %v2518 = vld [vmem:[#allocation4 + $0x760] sm:$0xff]
    %v2519 = vld [vmem:[#allocation4 + $0x768] sm:$0xff]
    %v2520 = vld [vmem:[#allocation4 + $0x770] sm:$0xff]
    %v2521 = vld [vmem:[#allocation4 + $0x778] sm:$0xff]
    %v2522 = vld [vmem:[#allocation4 + $0x780] sm:$0xff]
    %v2523 = vld [vmem:[#allocation4 + $0x788] sm:$0xff]
    %v2524 = vld [vmem:[#allocation4 + $0x790] sm:$0xff]
    %v2525 = vld [vmem:[#allocation4 + $0x798] sm:$0xff]
    %v2526 = vld [vmem:[#allocation4 + $0x7a0] sm:$0xff]
    %v2527 = vld [vmem:[#allocation4 + $0x7a8] sm:$0xff]
    %v2528 = vld [vmem:[#allocation4 + $0x7b0] sm:$0xff]
    %v2529 = vld [vmem:[#allocation4 + $0x7b8] sm:$0xff]
    %v2530 = vld [vmem:[#allocation4 + $0x7c0] sm:$0xff]
    %v2531 = vld [vmem:[#allocation4 + $0x7c8] sm:$0xff]
    %v2532 = vld [vmem:[#allocation4 + $0x7d0] sm:$0xff]
    %v2533 = vld [vmem:[#allocation4 + $0x7d8] sm:$0xff]
    %v2534 = vld [vmem:[#allocation4 + $0x7e0] sm:$0xff]
    %v2535 = vld [vmem:[#allocation4 + $0x7e8] sm:$0xff]
    %v2536 = vld [vmem:[#allocation4 + $0x7f0] sm:$0xff]
    %v2537 = vld [vmem:[#allocation4 + $0x7f8] sm:$0xff]
    %v2538 = vld [vmem:[#allocation4 + $0x800] sm:$0xff]
    %v2539 = vld [vmem:[#allocation4 + $0x808] sm:$0xff]
    %v2540 = vld [vmem:[#allocation4 + $0x810] sm:$0xff]
    %v2541 = vld [vmem:[#allocation4 + $0x818] sm:$0xff]
    %v2542 = vld [vmem:[#allocation4 + $0x820] sm:$0xff]
    %v2543 = vld [vmem:[#allocation4 + $0x828] sm:$0xff]
    %v2544 = vld [vmem:[#allocation4 + $0x830] sm:$0xff]
    %v2545 = vld [vmem:[#allocation4 + $0x838] sm:$0xff]
    %v2546 = vld [vmem:[#allocation4 + $0x840] sm:$0xff]
    %v2547 = vld [vmem:[#allocation4 + $0x848] sm:$0xff]
    %v2548 = vld [vmem:[#allocation4 + $0x850] sm:$0xff]
    %v2549 = vld [vmem:[#allocation4 + $0x858] sm:$0xff]
    %v2550 = vld [vmem:[#allocation4 + $0x860] sm:$0xff]
    %v2551 = vld [vmem:[#allocation4 + $0x868] sm:$0xff]
    %v2552 = vld [vmem:[#allocation4 + $0x870] sm:$0xff]
    %v2553 = vld [vmem:[#allocation4 + $0x878] sm:$0xff]
    %v2554 = vld [vmem:[#allocation4 + $0x880] sm:$0xff]
    %v2555 = vld [vmem:[#allocation4 + $0x888] sm:$0xff]
    %v2556 = vld [vmem:[#allocation4 + $0x890] sm:$0xff]
    %v2557 = vld [vmem:[#allocation4 + $0x898] sm:$0xff]
    %v2558 = vld [vmem:[#allocation4 + $0x8a0] sm:$0xff]
    %v2559 = vld [vmem:[#allocation4 + $0x8a8] sm:$0xff]
    %v2560 = vld [vmem:[#allocation4 + $0x8b0] sm:$0xff]
    %v2561 = vld [vmem:[#allocation4 + $0x8b8] sm:$0xff]
    %v2562 = vld [vmem:[#allocation4 + $0x8c0] sm:$0xff]
    %v2563 = vld [vmem:[#allocation4 + $0x8c8] sm:$0xff]
    %v2564 = vld [vmem:[#allocation4 + $0x8d0] sm:$0xff]
    %v2565 = vld [vmem:[#allocation4 + $0x8d8] sm:$0xff]
    %v2566 = vld [vmem:[#allocation4 + $0x8e0] sm:$0xff]
    %v2567 = vld [vmem:[#allocation4 + $0x8e8] sm:$0xff]
    %v2568 = vld [vmem:[#allocation4 + $0x8f0] sm:$0xff]
    %v2569 = vld [vmem:[#allocation4 + $0x8f8] sm:$0xff]
    %v2570 = vld [vmem:[#allocation4 + $0x900] sm:$0xff]
    %v2571 = vld [vmem:[#allocation4 + $0x908] sm:$0xff]
    %v2572 = vld [vmem:[#allocation4 + $0x910] sm:$0xff]
    %v2573 = vld [vmem:[#allocation4 + $0x918] sm:$0xff]
    %v2574 = vld [vmem:[#allocation4 + $0x920] sm:$0xff]
    %v2575 = vld [vmem:[#allocation4 + $0x928] sm:$0xff]
    %v2576 = vld [vmem:[#allocation4 + $0x930] sm:$0xff]
    %v2577 = vld [vmem:[#allocation4 + $0x938] sm:$0xff]
    %v2578 = vld [vmem:[#allocation4 + $0x940] sm:$0xff]
    %v2579 = vld [vmem:[#allocation4 + $0x948] sm:$0xff]
    %v2580 = vld [vmem:[#allocation4 + $0x950] sm:$0xff]
    %v2581 = vld [vmem:[#allocation4 + $0x958] sm:$0xff]
    %v2582 = vld [vmem:[#allocation4 + $0x960] sm:$0xff]
    %v2583 = vld [vmem:[#allocation4 + $0x968] sm:$0xff]
    %v2584 = vld [vmem:[#allocation4 + $0x970] sm:$0xff]
    %v2585 = vld [vmem:[#allocation4 + $0x978] sm:$0xff]
    %v2586 = vld [vmem:[#allocation4 + $0x980] sm:$0xff]
    %v2587 = vld [vmem:[#allocation4 + $0x988] sm:$0xff]
    %v2588 = vld [vmem:[#allocation4 + $0x990] sm:$0xff]
    %v2589 = vld [vmem:[#allocation4 + $0x998] sm:$0xff]
    %v2590 = vld [vmem:[#allocation4 + $0x9a0] sm:$0xff]
    %v2591 = vld [vmem:[#allocation4 + $0x9a8] sm:$0xff]
    %v2592 = vld [vmem:[#allocation4 + $0x9b0] sm:$0xff]
    %v2593 = vld [vmem:[#allocation4 + $0x9b8] sm:$0xff]
    %v2594 = vld [vmem:[#allocation4 + $0x9c0] sm:$0xff]
    %v2595 = vld [vmem:[#allocation4 + $0x9c8] sm:$0xff]
    %v2596 = vld [vmem:[#allocation4 + $0x9d0] sm:$0xff]
    %v2597 = vld [vmem:[#allocation4 + $0x9d8] sm:$0xff]
    %v2598 = vld [vmem:[#allocation4 + $0x9e0] sm:$0xff]
    %v2599 = vld [vmem:[#allocation4 + $0x9e8] sm:$0xff]
    %v2600 = vld [vmem:[#allocation4 + $0x9f0] sm:$0xff]
    %v2601 = vld [vmem:[#allocation4 + $0x9f8] sm:$0xff]
    %v2602 = vld [vmem:[#allocation4 + $0xa00] sm:$0xff]
    %v2603 = vld [vmem:[#allocation4 + $0xa08] sm:$0xff]
    %v2604 = vld [vmem:[#allocation4 + $0xa10] sm:$0xff]
    %v2605 = vld [vmem:[#allocation4 + $0xa18] sm:$0xff]
    %v2606 = vld [vmem:[#allocation4 + $0xa20] sm:$0xff]
    %v2607 = vld [vmem:[#allocation4 + $0xa28] sm:$0xff]
    %v2608 = vld [vmem:[#allocation4 + $0xa30] sm:$0xff]
    %v2609 = vld [vmem:[#allocation4 + $0xa38] sm:$0xff]
    %v2610 = vld [vmem:[#allocation4 + $0xa40] sm:$0xff]
    %v2611 = vld [vmem:[#allocation4 + $0xa48] sm:$0xff]
    %v2612 = vld [vmem:[#allocation4 + $0xa50] sm:$0xff]
    %v2613 = vld [vmem:[#allocation4 + $0xa58] sm:$0xff]
    %v2614 = vld [vmem:[#allocation4 + $0xa60] sm:$0xff]
    %v2615 = vld [vmem:[#allocation4 + $0xa68] sm:$0xff]
    %v2616 = vld [vmem:[#allocation4 + $0xa70] sm:$0xff]
    %v2617 = vld [vmem:[#allocation4 + $0xa78] sm:$0xff]
    %v2618 = vld [vmem:[#allocation4 + $0xa80] sm:$0xff]
    %v2619 = vld [vmem:[#allocation4 + $0xa88] sm:$0xff]
    %v2620 = vld [vmem:[#allocation4 + $0xa90] sm:$0xff]
    %v2621 = vld [vmem:[#allocation4 + $0xa98] sm:$0xff]
    %v2622 = vld [vmem:[#allocation4 + $0xaa0] sm:$0xff]
    %v2623 = vld [vmem:[#allocation4 + $0xaa8] sm:$0xff]
    %v2624 = vld [vmem:[#allocation4 + $0xab0] sm:$0xff]
    %v2625 = vld [vmem:[#allocation4 + $0xab8] sm:$0xff]
    %v2626 = vld [vmem:[#allocation4 + $0xac0] sm:$0xff]
    %v2627 = vld [vmem:[#allocation4 + $0xac8] sm:$0xff]
    %v2628 = vld [vmem:[#allocation4 + $0xad0] sm:$0xff]
    %v2629 = vld [vmem:[#allocation4 + $0xad8] sm:$0xff]
    %v2630 = vld [vmem:[#allocation4 + $0xae0] sm:$0xff]
    %v2631 = vld [vmem:[#allocation4 + $0xae8] sm:$0xff]
    %v2632 = vld [vmem:[#allocation4 + $0xaf0] sm:$0xff]
    %v2633 = vld [vmem:[#allocation4 + $0xaf8] sm:$0xff]
    %v2634 = vld [vmem:[#allocation4 + $0xb00] sm:$0xff]
    %v2635 = vld [vmem:[#allocation4 + $0xb08] sm:$0xff]
    %v2636 = vld [vmem:[#allocation4 + $0xb10] sm:$0xff]
    %v2637 = vld [vmem:[#allocation4 + $0xb18] sm:$0xff]
    %v2638 = vld [vmem:[#allocation4 + $0xb20] sm:$0xff]
    %v2639 = vld [vmem:[#allocation4 + $0xb28] sm:$0xff]
    %v2640 = vld [vmem:[#allocation4 + $0xb30] sm:$0xff]
    %v2641 = vld [vmem:[#allocation4 + $0xb38] sm:$0xff]
    %v2642 = vld [vmem:[#allocation4 + $0xb40] sm:$0xff]
    %v2643 = vld [vmem:[#allocation4 + $0xb48] sm:$0xff]
    %v2644 = vld [vmem:[#allocation4 + $0xb50] sm:$0xff]
    %v2645 = vld [vmem:[#allocation4 + $0xb58] sm:$0xff]
    %v2646 = vld [vmem:[#allocation4 + $0xb60] sm:$0xff]
    %v2647 = vld [vmem:[#allocation4 + $0xb68] sm:$0xff]
    %v2648 = vld [vmem:[#allocation4 + $0xb70] sm:$0xff]
    %v2649 = vld [vmem:[#allocation4 + $0xb78] sm:$0xff]
    %v2650 = vld [vmem:[#allocation4 + $0xb80] sm:$0xff]
    %v2651 = vld [vmem:[#allocation4 + $0xb88] sm:$0xff]
    %v2652 = vld [vmem:[#allocation4 + $0xb90] sm:$0xff]
    %v2653 = vld [vmem:[#allocation4 + $0xb98] sm:$0xff]
    %v2654 = vld [vmem:[#allocation4 + $0xba0] sm:$0xff]
    %v2655 = vld [vmem:[#allocation4 + $0xba8] sm:$0xff]
    %v2656 = vld [vmem:[#allocation4 + $0xbb0] sm:$0xff]
    %v2657 = vld [vmem:[#allocation4 + $0xbb8] sm:$0xff]
    %v2658 = vld [vmem:[#allocation4 + $0xbc0] sm:$0xff]
    %v2659 = vld [vmem:[#allocation4 + $0xbc8] sm:$0xff]
    %v2660 = vld [vmem:[#allocation4 + $0xbd0] sm:$0xff]
    %v2661 = vld [vmem:[#allocation4 + $0xbd8] sm:$0xff]
    %v2662 = vld [vmem:[#allocation4 + $0xbe0] sm:$0xff]
    %v2663 = vld [vmem:[#allocation4 + $0xbe8] sm:$0xff]
    %v2664 = vld [vmem:[#allocation4 + $0xbf0] sm:$0xff]
    %v2665 = vld [vmem:[#allocation4 + $0xbf8] sm:$0xff]
    %v2666 = vld [vmem:[#allocation14] sm:$0xf]
    %v2668 = vlaneseq
    %v2669 = vshrl.u32 %v2668, 7
    %v2670 = vsub.s32 0, %v2669
    %v2671 = vrot.slane %v2666, %v2670
    %v2672 = vlaneseq
    %v2673 = vshrl.u32 %v2672, 7
    %v2674 = vsub.s32 1, %v2673
    %v2675 = vrot.slane %v2666, %v2674
    %v2676 = vlaneseq
    %v2677 = vshrl.u32 %v2676, 7
    %v2678 = vsub.s32 2, %v2677
    %v2679 = vrot.slane %v2666, %v2678
    %v2680 = vlaneseq
    %v2681 = vshrl.u32 %v2680, 7
    %v2682 = vsub.s32 3, %v2681
    %v2683 = vrot.slane %v2666, %v2682
    %2688 = vmatprep.subr.bf16.mxu0 %v2283
    %2689 = vmatpush1.bf16.msra.mxu0 %v2282
    %2690 = vmatprep.subr.bf16.mxu0 %v2287
    %2691 = vmatpush1.bf16.msra.mxu0 %v2286
    %2692 = vmatprep.subr.bf16.mxu0 %v2291
    %2693 = vmatpush1.bf16.msra.mxu0 %v2290
    %2694 = vmatprep.subr.bf16.mxu0 %v2295
    %2695 = vmatpush1.bf16.msra.mxu0 %v2294
    %2696 = vmatprep.subr.bf16.mxu0 %v2299
    %2697 = vmatpush1.bf16.msra.mxu0 %v2298
    %2698 = vmatprep.subr.bf16.mxu0 %v2303
    %2699 = vmatpush1.bf16.msra.mxu0 %v2302
    %2700 = vmatprep.subr.bf16.mxu0 %v2307
    %2701 = vmatpush1.bf16.msra.mxu0 %v2306
    %2702 = vmatprep.subr.bf16.mxu0 %v2311
    %2703 = vmatpush1.bf16.msra.mxu0 %v2310
    %2704 = vmatprep.subr.bf16.mxu0 %v2315
    %2705 = vmatpush1.bf16.msra.mxu0 %v2314
    %2706 = vmatprep.subr.bf16.mxu0 %v2319
    %2707 = vmatpush1.bf16.msra.mxu0 %v2318
    %2708 = vmatprep.subr.bf16.mxu0 %v2323
    %2709 = vmatpush1.bf16.msra.mxu0 %v2322
    %2710 = vmatprep.subr.bf16.mxu0 %v2327
    %2711 = vmatpush1.bf16.msra.mxu0 %v2326
    %2712 = vmatprep.subr.bf16.mxu0 %v2331
    %2713 = vmatpush1.bf16.msra.mxu0 %v2330
    %2714 = vmatprep.subr.bf16.mxu0 %v2335
    %2715 = vmatpush1.bf16.msra.mxu0 %v2334
    %2716 = vmatprep.subr.bf16.mxu0 %v2339
    %2717 = vmatpush1.bf16.msra.mxu0 %v2338
    %2718 = vmatprep.subr.bf16.mxu0 %v2343
    %2719 = vmatpush1.bf16.msra.mxu0 %v2342
    %2720 = vmatprep.mubr.bf16.mxu0 %v2209
    %2721 = vmatmul.mubr.bf16.gmra.mrb[0].mxu0 %v2208
    %v2722 = vpop.f32.mrb[0].mxu0
    %v2723 = vadd.f32 %v2671, %v2722
    %v2724 = vpop.f32.mrb[0].mxu0
    %v2725 = vadd.f32 %v2675, %v2724
    %v2726 = vpop.f32.mrb[0].mxu0
    %v2727 = vadd.f32 %v2671, %v2726
    %v2728 = vpop.f32.mrb[0].mxu0
    %v2729 = vadd.f32 %v2675, %v2728
    %2730 = vmatprep.mubr.bf16.mxu0 %v2213
    %2731 = vmatmul.mubr.bf16.gmra.mrb[0].mxu0 %v2212
    %v2732 = vpop.f32.mrb[0].mxu0
    %v2733 = vadd.f32 %v2671, %v2732
    %v2734 = vpop.f32.mrb[0].mxu0
    %v2735 = vadd.f32 %v2675, %v2734
    %v2736 = vpop.f32.mrb[0].mxu0
    %v2737 = vadd.f32 %v2671, %v2736
    %v2738 = vpop.f32.mrb[0].mxu0
    %v2739 = vadd.f32 %v2675, %v2738
    %2740 = vdwg.mxu0
    %2741 = vmatprep.subr.bf16.mxu0 %v2347
    %2742 = vmatpush1.bf16.msra.mxu0 %v2346
    %2743 = vmatprep.subr.bf16.mxu0 %v2351
    %2744 = vmatpush1.bf16.msra.mxu0 %v2350
    %2745 = vmatprep.subr.bf16.mxu0 %v2355
    %2746 = vmatpush1.bf16.msra.mxu0 %v2354
    %2747 = vmatprep.subr.bf16.mxu0 %v2359
    %2748 = vmatpush1.bf16.msra.mxu0 %v2358
    %2749 = vmatprep.subr.bf16.mxu0 %v2363
    %2750 = vmatpush1.bf16.msra.mxu0 %v2362
    %2751 = vmatprep.subr.bf16.mxu0 %v2367
    %2752 = vmatpush1.bf16.msra.mxu0 %v2366
    %2753 = vmatprep.subr.bf16.mxu0 %v2371
    %2754 = vmatpush1.bf16.msra.mxu0 %v2370
    %2755 = vmatprep.subr.bf16.mxu0 %v2375
    %2756 = vmatpush1.bf16.msra.mxu0 %v2374
    %2757 = vmatprep.subr.bf16.mxu0 %v2379
    %2758 = vmatpush1.bf16.msra.mxu0 %v2378
    %2759 = vmatprep.subr.bf16.mxu0 %v2383
    %2760 = vmatpush1.bf16.msra.mxu0 %v2382
    %2761 = vmatprep.subr.bf16.mxu0 %v2387
    %2762 = vmatpush1.bf16.msra.mxu0 %v2386
    %2763 = vmatprep.subr.bf16.mxu0 %v2391
    %2764 = vmatpush1.bf16.msra.mxu0 %v2390
    %2765 = vmatprep.subr.bf16.mxu0 %v2395
    %2766 = vmatpush1.bf16.msra.mxu0 %v2394
    %2767 = vmatprep.subr.bf16.mxu0 %v2399
    %2768 = vmatpush1.bf16.msra.mxu0 %v2398
    %2769 = vmatprep.subr.bf16.mxu0 %v2403
    %2770 = vmatpush1.bf16.msra.mxu0 %v2402
    %2771 = vmatprep.subr.bf16.mxu0 %v2407
    %2772 = vmatpush1.bf16.msra.mxu0 %v2406
    %2773 = vmatprep.mubr.bf16.mxu0 %v2211
    %2774 = vmatmul.mubr.bf16.gmra.mrb[0].mxu0 %v2210
    %v2775 = vpop.f32.mrb[0].mxu0
    %v2776 = vadd.f32 %v2723, %v2775
    %v2777 = vpop.f32.mrb[0].mxu0
    %v2778 = vadd.f32 %v2725, %v2777
    %v2779 = vpop.f32.mrb[0].mxu0
    %v2780 = vadd.f32 %v2727, %v2779
    %v2781 = vpop.f32.mrb[0].mxu0
    %v2782 = vadd.f32 %v2729, %v2781
    %2783 = vmatprep.mubr.bf16.mxu0 %v2215
    %2784 = vmatmul.mubr.bf16.gmra.mrb[0].mxu0 %v2214
    %v2785 = vpop.f32.mrb[0].mxu0
    %v2786 = vadd.f32 %v2733, %v2785
    %v2787 = vpop.f32.mrb[0].mxu0
    %v2788 = vadd.f32 %v2735, %v2787
    %v2789 = vpop.f32.mrb[0].mxu0
    %v2790 = vadd.f32 %v2737, %v2789
    %v2791 = vpop.f32.mrb[0].mxu0
    %v2792 = vadd.f32 %v2739, %v2791
    %2793 = vdwg.mxu0
    %2794 = vmatprep.subr.bf16.mxu0 %v2411
    %2795 = vmatpush1.bf16.msra.mxu0 %v2410
    %2796 = vmatprep.subr.bf16.mxu0 %v2415
    %2797 = vmatpush1.bf16.msra.mxu0 %v2414
    %2798 = vmatprep.subr.bf16.mxu0 %v2419
    %2799 = vmatpush1.bf16.msra.mxu0 %v2418
    %2800 = vmatprep.subr.bf16.mxu0 %v2423
    %2801 = vmatpush1.bf16.msra.mxu0 %v2422
    %2802 = vmatprep.subr.bf16.mxu0 %v2427
    %2803 = vmatpush1.bf16.msra.mxu0 %v2426
    %2804 = vmatprep.subr.bf16.mxu0 %v2431
    %2805 = vmatpush1.bf16.msra.mxu0 %v2430
    %2806 = vmatprep.subr.bf16.mxu0 %v2435
    %2807 = vmatpush1.bf16.msra.mxu0 %v2434
    %2808 = vmatprep.subr.bf16.mxu0 %v2439
    %2809 = vmatpush1.bf16.msra.mxu0 %v2438
    %2810 = vmatprep.subr.bf16.mxu0 %v2443
    %2811 = vmatpush1.bf16.msra.mxu0 %v2442
    %2812 = vmatprep.subr.bf16.mxu0 %v2447
    %2813 = vmatpush1.bf16.msra.mxu0 %v2446
    %2814 = vmatprep.subr.bf16.mxu0 %v2451
    %2815 = vmatpush1.bf16.msra.mxu0 %v2450
    %2816 = vmatprep.subr.bf16.mxu0 %v2455
    %2817 = vmatpush1.bf16.msra.mxu0 %v2454
    %2818 = vmatprep.subr.bf16.mxu0 %v2459
    %2819 = vmatpush1.bf16.msra.mxu0 %v2458
    %2820 = vmatprep.subr.bf16.mxu0 %v2463
    %2821 = vmatpush1.bf16.msra.mxu0 %v2462
    %2822 = vmatprep.subr.bf16.mxu0 %v2467
    %2823 = vmatpush1.bf16.msra.mxu0 %v2466
    %2824 = vmatprep.subr.bf16.mxu0 %v2471
    %2825 = vmatpush1.bf16.msra.mxu0 %v2470
    %2826 = vmatprep.mubr.bf16.mxu0 %v2217
    %2827 = vmatmul.mubr.bf16.gmra.mrb[0].mxu0 %v2216
    %v2828 = vpop.f32.mrb[0].mxu0
    %v2829 = vadd.f32 %v2776, %v2828
    %v2830 = vpop.f32.mrb[0].mxu0
    %v2831 = vadd.f32 %v2778, %v2830
    %v2832 = vpop.f32.mrb[0].mxu0
    %v2833 = vadd.f32 %v2780, %v2832
    %v2834 = vpop.f32.mrb[0].mxu0
    %v2835 = vadd.f32 %v2782, %v2834
    %2836 = vmatprep.mubr.bf16.mxu0 %v2221
    %2837 = vmatmul.mubr.bf16.gmra.mrb[0].mxu0 %v2220
    %v2838 = vpop.f32.mrb[0].mxu0
    %v2839 = vadd.f32 %v2786, %v2838
    %v2840 = vpop.f32.mrb[0].mxu0
    %v2841 = vadd.f32 %v2788, %v2840
    %v2842 = vpop.f32.mrb[0].mxu0
    %v2843 = vadd.f32 %v2790, %v2842
    %v2844 = vpop.f32.mrb[0].mxu0
    %v2845 = vadd.f32 %v2792, %v2844
    %2846 = vdwg.mxu0
    %2847 = vmatprep.subr.bf16.mxu0 %v2475
    %2848 = vmatpush1.bf16.msra.mxu0 %v2474
    %2849 = vmatprep.subr.bf16.mxu0 %v2479
    %2850 = vmatpush1.bf16.msra.mxu0 %v2478
    %2851 = vmatprep.subr.bf16.mxu0 %v2483
    %2852 = vmatpush1.bf16.msra.mxu0 %v2482
    %2853 = vmatprep.subr.bf16.mxu0 %v2487
    %2854 = vmatpush1.bf16.msra.mxu0 %v2486
    %2855 = vmatprep.subr.bf16.mxu0 %v2491
    %2856 = vmatpush1.bf16.msra.mxu0 %v2490
    %2857 = vmatprep.subr.bf16.mxu0 %v2495
    %2858 = vmatpush1.bf16.msra.mxu0 %v2494
    %2859 = vmatprep.subr.bf16.mxu0 %v2499
    %2860 = vmatpush1.bf16.msra.mxu0 %v2498
    %2861 = vmatprep.subr.bf16.mxu0 %v2503
    %2862 = vmatpush1.bf16.msra.mxu0 %v2502
    %2863 = vmatprep.subr.bf16.mxu0 %v2507
    %2864 = vmatpush1.bf16.msra.mxu0 %v2506
    %2865 = vmatprep.subr.bf16.mxu0 %v2511
    %2866 = vmatpush1.bf16.msra.mxu0 %v2510
    %2867 = vmatprep.subr.bf16.mxu0 %v2515
    %2868 = vmatpush1.bf16.msra.mxu0 %v2514
    %2869 = vmatprep.subr.bf16.mxu0 %v2519
    %2870 = vmatpush1.bf16.msra.mxu0 %v2518
    %2871 = vmatprep.subr.bf16.mxu0 %v2523
    %2872 = vmatpush1.bf16.msra.mxu0 %v2522
    %2873 = vmatprep.subr.bf16.mxu0 %v2527
    %2874 = vmatpush1.bf16.msra.mxu0 %v2526
    %2875 = vmatprep.subr.bf16.mxu0 %v2531
    %2876 = vmatpush1.bf16.msra.mxu0 %v2530
    %2877 = vmatprep.subr.bf16.mxu0 %v2535
    %2878 = vmatpush1.bf16.msra.mxu0 %v2534
    %2879 = vmatprep.mubr.bf16.mxu0 %v2219
    %2880 = vmatmul.mubr.bf16.gmra.mrb[0].mxu0 %v2218
    %v2881 = vpop.f32.mrb[0].mxu0
    %v2882 = vadd.f32 %v2829, %v2881
    %v2883 = vpop.f32.mrb[0].mxu0
    %v2884 = vadd.f32 %v2831, %v2883
    %v2885 = vpop.f32.mrb[0].mxu0
    %v2886 = vadd.f32 %v2833, %v2885
    %v2887 = vpop.f32.mrb[0].mxu0
    %v2888 = vadd.f32 %v2835, %v2887
    %2889 = vmatprep.mubr.bf16.mxu0 %v2223
    %2890 = vmatmul.mubr.bf16.gmra.mrb[0].mxu0 %v2222
    %v2891 = vpop.f32.mrb[0].mxu0
    %v2892 = vadd.f32 %v2839, %v2891
    %v2893 = vpop.f32.mrb[0].mxu0
    %v2894 = vadd.f32 %v2841, %v2893
    %v2895 = vpop.f32.mrb[0].mxu0
    %v2896 = vadd.f32 %v2843, %v2895
    %v2897 = vpop.f32.mrb[0].mxu0
    %v2898 = vadd.f32 %v2845, %v2897
    %2899 = vdwg.mxu0
    %2900 = vmatprep.subr.bf16.mxu0 %v2539
    %2901 = vmatpush1.bf16.msra.mxu0 %v2538
    %2902 = vmatprep.subr.bf16.mxu0 %v2543
    %2903 = vmatpush1.bf16.msra.mxu0 %v2542
    %2904 = vmatprep.subr.bf16.mxu0 %v2547
    %2905 = vmatpush1.bf16.msra.mxu0 %v2546
    %2906 = vmatprep.subr.bf16.mxu0 %v2551
    %2907 = vmatpush1.bf16.msra.mxu0 %v2550
    %2908 = vmatprep.subr.bf16.mxu0 %v2555
    %2909 = vmatpush1.bf16.msra.mxu0 %v2554
    %2910 = vmatprep.subr.bf16.mxu0 %v2559
    %2911 = vmatpush1.bf16.msra.mxu0 %v2558
    %2912 = vmatprep.subr.bf16.mxu0 %v2563
    %2913 = vmatpush1.bf16.msra.mxu0 %v2562
    %2914 = vmatprep.subr.bf16.mxu0 %v2567
    %2915 = vmatpush1.bf16.msra.mxu0 %v2566
    %2916 = vmatprep.subr.bf16.mxu0 %v2571
    %2917 = vmatpush1.bf16.msra.mxu0 %v2570
    %2918 = vmatprep.subr.bf16.mxu0 %v2575
    %2919 = vmatpush1.bf16.msra.mxu0 %v2574
    %2920 = vmatprep.subr.bf16.mxu0 %v2579
    %2921 = vmatpush1.bf16.msra.mxu0 %v2578
    %2922 = vmatprep.subr.bf16.mxu0 %v2583
    %2923 = vmatpush1.bf16.msra.mxu0 %v2582
    %2924 = vmatprep.subr.bf16.mxu0 %v2587
    %2925 = vmatpush1.bf16.msra.mxu0 %v2586
    %2926 = vmatprep.subr.bf16.mxu0 %v2591
    %2927 = vmatpush1.bf16.msra.mxu0 %v2590
    %2928 = vmatprep.subr.bf16.mxu0 %v2595
    %2929 = vmatpush1.bf16.msra.mxu0 %v2594
    %2930 = vmatprep.subr.bf16.mxu0 %v2599
    %2931 = vmatpush1.bf16.msra.mxu0 %v2598
    %2932 = vmatprep.mubr.bf16.mxu0 %v2273
    %2933 = vmatmul.mubr.bf16.gmra.mrb[0].mxu0 %v2272
    %v2934 = vpop.f32.mrb[0].mxu0
    %v2935 = vadd.f32 %v2882, %v2934
    %v2936 = vpop.f32.mrb[0].mxu0
    %v2937 = vadd.f32 %v2884, %v2936
    %v2938 = vpop.f32.mrb[0].mxu0
    %v2939 = vadd.f32 %v2886, %v2938
    %v2940 = vpop.f32.mrb[0].mxu0
    %v2941 = vadd.f32 %v2888, %v2940
    %2942 = vmatprep.mubr.bf16.mxu0 %v2277
    %2943 = vmatmul.mubr.bf16.gmra.mrb[0].mxu0 %v2276
    %v2944 = vpop.f32.mrb[0].mxu0
    %v2945 = vadd.f32 %v2892, %v2944
    %v2946 = vpop.f32.mrb[0].mxu0
    %v2947 = vadd.f32 %v2894, %v2946
    %v2948 = vpop.f32.mrb[0].mxu0
    %v2949 = vadd.f32 %v2896, %v2948
    %v2950 = vpop.f32.mrb[0].mxu0
    %v2951 = vadd.f32 %v2898, %v2950
    %2952 = vdwg.mxu0
    %2953 = vmatprep.subr.bf16.mxu0 %v2603
    %2954 = vmatpush1.bf16.msra.mxu0 %v2602
    %2955 = vmatprep.subr.bf16.mxu0 %v2607
    %2956 = vmatpush1.bf16.msra.mxu0 %v2606
    %2957 = vmatprep.subr.bf16.mxu0 %v2611
    %2958 = vmatpush1.bf16.msra.mxu0 %v2610
    %2959 = vmatprep.subr.bf16.mxu0 %v2615
    %2960 = vmatpush1.bf16.msra.mxu0 %v2614
    %2961 = vmatprep.subr.bf16.mxu0 %v2619
    %2962 = vmatpush1.bf16.msra.mxu0 %v2618
    %2963 = vmatprep.subr.bf16.mxu0 %v2623
    %2964 = vmatpush1.bf16.msra.mxu0 %v2622
    %2965 = vmatprep.subr.bf16.mxu0 %v2627
    %2966 = vmatpush1.bf16.msra.mxu0 %v2626
    %2967 = vmatprep.subr.bf16.mxu0 %v2631
    %2968 = vmatpush1.bf16.msra.mxu0 %v2630
    %2969 = vmatprep.subr.bf16.mxu0 %v2635
    %2970 = vmatpush1.bf16.msra.mxu0 %v2634
    %2971 = vmatprep.subr.bf16.mxu0 %v2639
    %2972 = vmatpush1.bf16.msra.mxu0 %v2638
    %2973 = vmatprep.subr.bf16.mxu0 %v2643
    %2974 = vmatpush1.bf16.msra.mxu0 %v2642
    %2975 = vmatprep.subr.bf16.mxu0 %v2647
    %2976 = vmatpush1.bf16.msra.mxu0 %v2646
    %2977 = vmatprep.subr.bf16.mxu0 %v2651
    %2978 = vmatpush1.bf16.msra.mxu0 %v2650
    %2979 = vmatprep.subr.bf16.mxu0 %v2655
    %2980 = vmatpush1.bf16.msra.mxu0 %v2654
    %2981 = vmatprep.subr.bf16.mxu0 %v2659
    %2982 = vmatpush1.bf16.msra.mxu0 %v2658
    %2983 = vmatprep.subr.bf16.mxu0 %v2663
    %2984 = vmatpush1.bf16.msra.mxu0 %v2662
    %2985 = vmatprep.mubr.bf16.mxu0 %v2275
    %2986 = vmatmul.mubr.bf16.gmra.mrb[0].mxu0 %v2274
    %v2987 = vpop.f32.mrb[0].mxu0
    %v2988 = vadd.f32 %v2935, %v2987
    %v2989 = vpop.f32.mrb[0].mxu0
    %v2990 = vadd.f32 %v2937, %v2989
    %v2991 = vpop.f32.mrb[0].mxu0
    %v2992 = vadd.f32 %v2939, %v2991
    %v2993 = vpop.f32.mrb[0].mxu0
    %v2994 = vadd.f32 %v2941, %v2993
    %2995 = vmatprep.mubr.bf16.mxu0 %v2279
    %2996 = vmatmul.mubr.bf16.gmra.mrb[0].mxu0 %v2278
    %v2997 = vpop.f32.mrb[0].mxu0
    %v2998 = vadd.f32 %v2945, %v2997
    %v2999 = vpop.f32.mrb[0].mxu0
    %v3000 = vadd.f32 %v2947, %v2999
    %v3001 = vpop.f32.mrb[0].mxu0
    %v3002 = vadd.f32 %v2949, %v3001
    %v3003 = vpop.f32.mrb[0].mxu0
    %v3004 = vadd.f32 %v2951, %v3003
    %3005 = vdwg.mxu0
    %3006 = vmatprep.subr.bf16.mxu0 %v2285
    %3007 = vmatpush1.bf16.msra.mxu0 %v2284
    %3008 = vmatprep.subr.bf16.mxu0 %v2289
    %3009 = vmatpush1.bf16.msra.mxu0 %v2288
    %3010 = vmatprep.subr.bf16.mxu0 %v2293
    %3011 = vmatpush1.bf16.msra.mxu0 %v2292
    %3012 = vmatprep.subr.bf16.mxu0 %v2297
    %3013 = vmatpush1.bf16.msra.mxu0 %v2296
    %3014 = vmatprep.subr.bf16.mxu0 %v2301
    %3015 = vmatpush1.bf16.msra.mxu0 %v2300
    %3016 = vmatprep.subr.bf16.mxu0 %v2305
    %3017 = vmatpush1.bf16.msra.mxu0 %v2304
    %3018 = vmatprep.subr.bf16.mxu0 %v2309
    %3019 = vmatpush1.bf16.msra.mxu0 %v2308
    %3020 = vmatprep.subr.bf16.mxu0 %v2313
    %3021 = vmatpush1.bf16.msra.mxu0 %v2312
    %3022 = vmatprep.subr.bf16.mxu0 %v2317
    %3023 = vmatpush1.bf16.msra.mxu0 %v2316
    %3024 = vmatprep.subr.bf16.mxu0 %v2321
    %3025 = vmatpush1.bf16.msra.mxu0 %v2320
    %3026 = vmatprep.subr.bf16.mxu0 %v2325
    %3027 = vmatpush1.bf16.msra.mxu0 %v2324
    %3028 = vmatprep.subr.bf16.mxu0 %v2329
    %3029 = vmatpush1.bf16.msra.mxu0 %v2328
    %3030 = vmatprep.subr.bf16.mxu0 %v2333
    %3031 = vmatpush1.bf16.msra.mxu0 %v2332
    %3032 = vmatprep.subr.bf16.mxu0 %v2337
    %3033 = vmatpush1.bf16.msra.mxu0 %v2336
    %3034 = vmatprep.subr.bf16.mxu0 %v2341
    %3035 = vmatpush1.bf16.msra.mxu0 %v2340
    %3036 = vmatprep.subr.bf16.mxu0 %v2345
    %3037 = vmatpush1.bf16.msra.mxu0 %v2344
    %3038 = vmatprep.mubr.bf16.mxu0 %v2209
    %3039 = vmatmul.mubr.bf16.gmra.mrb[0].mxu0 %v2208
    %v3040 = vpop.f32.mrb[0].mxu0
    %v3041 = vadd.f32 %v2679, %v3040
    %v3042 = vpop.f32.mrb[0].mxu0
    %v3043 = vadd.f32 %v2683, %v3042
    %v3044 = vpop.f32.mrb[0].mxu0
    %v3045 = vadd.f32 %v2679, %v3044
    %v3046 = vpop.f32.mrb[0].mxu0
    %v3047 = vadd.f32 %v2683, %v3046
    %3048 = vmatprep.mubr.bf16.mxu0 %v2213
    %3049 = vmatmul.mubr.bf16.gmra.mrb[0].mxu0 %v2212
    %v3050 = vpop.f32.mrb[0].mxu0
    %v3051 = vadd.f32 %v2679, %v3050
    %v3052 = vpop.f32.mrb[0].mxu0
    %v3053 = vadd.f32 %v2683, %v3052
    %v3054 = vpop.f32.mrb[0].mxu0
    %v3055 = vadd.f32 %v2679, %v3054
    %v3056 = vpop.f32.mrb[0].mxu0
    %v3057 = vadd.f32 %v2683, %v3056
    %3058 = vdwg.mxu0
    %3059 = vmatprep.subr.bf16.mxu0 %v2349
    %3060 = vmatpush1.bf16.msra.mxu0 %v2348
    %3061 = vmatprep.subr.bf16.mxu0 %v2353
    %3062 = vmatpush1.bf16.msra.mxu0 %v2352
    %3063 = vmatprep.subr.bf16.mxu0 %v2357
    %3064 = vmatpush1.bf16.msra.mxu0 %v2356
    %3065 = vmatprep.subr.bf16.mxu0 %v2361
    %3066 = vmatpush1.bf16.msra.mxu0 %v2360
    %3067 = vmatprep.subr.bf16.mxu0 %v2365
    %3068 = vmatpush1.bf16.msra.mxu0 %v2364
    %3069 = vmatprep.subr.bf16.mxu0 %v2369
    %3070 = vmatpush1.bf16.msra.mxu0 %v2368
    %3071 = vmatprep.subr.bf16.mxu0 %v2373
    %3072 = vmatpush1.bf16.msra.mxu0 %v2372
    %3073 = vmatprep.subr.bf16.mxu0 %v2377
    %3074 = vmatpush1.bf16.msra.mxu0 %v2376
    %3075 = vmatprep.subr.bf16.mxu0 %v2381
    %3076 = vmatpush1.bf16.msra.mxu0 %v2380
    %3077 = vmatprep.subr.bf16.mxu0 %v2385
    %3078 = vmatpush1.bf16.msra.mxu0 %v2384
    %3079 = vmatprep.subr.bf16.mxu0 %v2389
    %3080 = vmatpush1.bf16.msra.mxu0 %v2388
    %3081 = vmatprep.subr.bf16.mxu0 %v2393
    %3082 = vmatpush1.bf16.msra.mxu0 %v2392
    %3083 = vmatprep.subr.bf16.mxu0 %v2397
    %3084 = vmatpush1.bf16.msra.mxu0 %v2396
    %3085 = vmatprep.subr.bf16.mxu0 %v2401
    %3086 = vmatpush1.bf16.msra.mxu0 %v2400
    %3087 = vmatprep.subr.bf16.mxu0 %v2405
    %3088 = vmatpush1.bf16.msra.mxu0 %v2404
    %3089 = vmatprep.subr.bf16.mxu0 %v2409
    %3090 = vmatpush1.bf16.msra.mxu0 %v2408
    %3091 = vmatprep.mubr.bf16.mxu0 %v2211
    %3092 = vmatmul.mubr.bf16.gmra.mrb[0].mxu0 %v2210
    %v3093 = vpop.f32.mrb[0].mxu0
    %v3094 = vadd.f32 %v3041, %v3093
    %v3095 = vpop.f32.mrb[0].mxu0
    %v3096 = vadd.f32 %v3043, %v3095
    %v3097 = vpop.f32.mrb[0].mxu0
    %v3098 = vadd.f32 %v3045, %v3097
    %v3099 = vpop.f32.mrb[0].mxu0
    %v3100 = vadd.f32 %v3047, %v3099
    %3101 = vmatprep.mubr.bf16.mxu0 %v2215
    %3102 = vmatmul.mubr.bf16.gmra.mrb[0].mxu0 %v2214
    %v3103 = vpop.f32.mrb[0].mxu0
    %v3104 = vadd.f32 %v3051, %v3103
    %v3105 = vpop.f32.mrb[0].mxu0
    %v3106 = vadd.f32 %v3053, %v3105
    %v3107 = vpop.f32.mrb[0].mxu0
    %v3108 = vadd.f32 %v3055, %v3107
    %v3109 = vpop.f32.mrb[0].mxu0
    %v3110 = vadd.f32 %v3057, %v3109
    %3111 = vdwg.mxu0
    %3112 = vmatprep.subr.bf16.mxu0 %v2413
    %3113 = vmatpush1.bf16.msra.mxu0 %v2412
    %3114 = vmatprep.subr.bf16.mxu0 %v2417
    %3115 = vmatpush1.bf16.msra.mxu0 %v2416
    %3116 = vmatprep.subr.bf16.mxu0 %v2421
    %3117 = vmatpush1.bf16.msra.mxu0 %v2420
    %3118 = vmatprep.subr.bf16.mxu0 %v2425
    %3119 = vmatpush1.bf16.msra.mxu0 %v2424
    %3120 = vmatprep.subr.bf16.mxu0 %v2429
    %3121 = vmatpush1.bf16.msra.mxu0 %v2428
    %3122 = vmatprep.subr.bf16.mxu0 %v2433
    %3123 = vmatpush1.bf16.msra.mxu0 %v2432
    %3124 = vmatprep.subr.bf16.mxu0 %v2437
    %3125 = vmatpush1.bf16.msra.mxu0 %v2436
    %3126 = vmatprep.subr.bf16.mxu0 %v2441
    %3127 = vmatpush1.bf16.msra.mxu0 %v2440
    %3128 = vmatprep.subr.bf16.mxu0 %v2445
    %3129 = vmatpush1.bf16.msra.mxu0 %v2444
    %3130 = vmatprep.subr.bf16.mxu0 %v2449
    %3131 = vmatpush1.bf16.msra.mxu0 %v2448
    %3132 = vmatprep.subr.bf16.mxu0 %v2453
    %3133 = vmatpush1.bf16.msra.mxu0 %v2452
    %3134 = vmatprep.subr.bf16.mxu0 %v2457
    %3135 = vmatpush1.bf16.msra.mxu0 %v2456
    %3136 = vmatprep.subr.bf16.mxu0 %v2461
    %3137 = vmatpush1.bf16.msra.mxu0 %v2460
    %3138 = vmatprep.subr.bf16.mxu0 %v2465
    %3139 = vmatpush1.bf16.msra.mxu0 %v2464
    %3140 = vmatprep.subr.bf16.mxu0 %v2469
    %3141 = vmatpush1.bf16.msra.mxu0 %v2468
    %3142 = vmatprep.subr.bf16.mxu0 %v2473
    %3143 = vmatpush1.bf16.msra.mxu0 %v2472
    %3144 = vmatprep.mubr.bf16.mxu0 %v2217
    %3145 = vmatmul.mubr.bf16.gmra.mrb[0].mxu0 %v2216
    %v3146 = vpop.f32.mrb[0].mxu0
    %v3147 = vadd.f32 %v3094, %v3146
    %v3148 = vpop.f32.mrb[0].mxu0
    %v3149 = vadd.f32 %v3096, %v3148
    %v3150 = vpop.f32.mrb[0].mxu0
    %v3151 = vadd.f32 %v3098, %v3150
    %v3152 = vpop.f32.mrb[0].mxu0
    %v3153 = vadd.f32 %v3100, %v3152
    %3154 = vmatprep.mubr.bf16.mxu0 %v2221
    %3155 = vmatmul.mubr.bf16.gmra.mrb[0].mxu0 %v2220
    %v3156 = vpop.f32.mrb[0].mxu0
    %v3157 = vadd.f32 %v3104, %v3156
    %v3158 = vpop.f32.mrb[0].mxu0
    %v3159 = vadd.f32 %v3106, %v3158
    %v3160 = vpop.f32.mrb[0].mxu0
    %v3161 = vadd.f32 %v3108, %v3160
    %v3162 = vpop.f32.mrb[0].mxu0
    %v3163 = vadd.f32 %v3110, %v3162
    %3164 = vdwg.mxu0
    %3165 = vmatprep.subr.bf16.mxu0 %v2477
    %3166 = vmatpush1.bf16.msra.mxu0 %v2476
    %3167 = vmatprep.subr.bf16.mxu0 %v2481
    %3168 = vmatpush1.bf16.msra.mxu0 %v2480
    %3169 = vmatprep.subr.bf16.mxu0 %v2485
    %3170 = vmatpush1.bf16.msra.mxu0 %v2484
    %3171 = vmatprep.subr.bf16.mxu0 %v2489
    %3172 = vmatpush1.bf16.msra.mxu0 %v2488
    %3173 = vmatprep.subr.bf16.mxu0 %v2493
    %3174 = vmatpush1.bf16.msra.mxu0 %v2492
    %3175 = vmatprep.subr.bf16.mxu0 %v2497
    %3176 = vmatpush1.bf16.msra.mxu0 %v2496
    %3177 = vmatprep.subr.bf16.mxu0 %v2501
    %3178 = vmatpush1.bf16.msra.mxu0 %v2500
    %3179 = vmatprep.subr.bf16.mxu0 %v2505
    %3180 = vmatpush1.bf16.msra.mxu0 %v2504
    %3181 = vmatprep.subr.bf16.mxu0 %v2509
    %3182 = vmatpush1.bf16.msra.mxu0 %v2508
    %3183 = vmatprep.subr.bf16.mxu0 %v2513
    %3184 = vmatpush1.bf16.msra.mxu0 %v2512
    %3185 = vmatprep.subr.bf16.mxu0 %v2517
    %3186 = vmatpush1.bf16.msra.mxu0 %v2516
    %3187 = vmatprep.subr.bf16.mxu0 %v2521
    %3188 = vmatpush1.bf16.msra.mxu0 %v2520
    %3189 = vmatprep.subr.bf16.mxu0 %v2525
    %3190 = vmatpush1.bf16.msra.mxu0 %v2524
    %3191 = vmatprep.subr.bf16.mxu0 %v2529
    %3192 = vmatpush1.bf16.msra.mxu0 %v2528
    %3193 = vmatprep.subr.bf16.mxu0 %v2533
    %3194 = vmatpush1.bf16.msra.mxu0 %v2532
    %3195 = vmatprep.subr.bf16.mxu0 %v2537
    %3196 = vmatpush1.bf16.msra.mxu0 %v2536
    %3197 = vmatprep.mubr.bf16.mxu0 %v2219
    %3198 = vmatmul.mubr.bf16.gmra.mrb[0].mxu0 %v2218
    %v3199 = vpop.f32.mrb[0].mxu0
    %v3200 = vadd.f32 %v3147, %v3199
    %v3201 = vpop.f32.mrb[0].mxu0
    %v3202 = vadd.f32 %v3149, %v3201
    %v3203 = vpop.f32.mrb[0].mxu0
    %v3204 = vadd.f32 %v3151, %v3203
    %v3205 = vpop.f32.mrb[0].mxu0
    %v3206 = vadd.f32 %v3153, %v3205
    %3207 = vmatprep.mubr.bf16.mxu0 %v2223
    %3208 = vmatmul.mubr.bf16.gmra.mrb[0].mxu0 %v2222
    %v3209 = vpop.f32.mrb[0].mxu0
    %v3210 = vadd.f32 %v3157, %v3209
    %v3211 = vpop.f32.mrb[0].mxu0
    %v3212 = vadd.f32 %v3159, %v3211
    %v3213 = vpop.f32.mrb[0].mxu0
    %v3214 = vadd.f32 %v3161, %v3213
    %v3215 = vpop.f32.mrb[0].mxu0
    %v3216 = vadd.f32 %v3163, %v3215
    %3217 = vdwg.mxu0
    %3218 = vmatprep.subr.bf16.mxu0 %v2541
    %3219 = vmatpush1.bf16.msra.mxu0 %v2540
    %3220 = vmatprep.subr.bf16.mxu0 %v2545
    %3221 = vmatpush1.bf16.msra.mxu0 %v2544
    %3222 = vmatprep.subr.bf16.mxu0 %v2549
    %3223 = vmatpush1.bf16.msra.mxu0 %v2548
    %3224 = vmatprep.subr.bf16.mxu0 %v2553
    %3225 = vmatpush1.bf16.msra.mxu0 %v2552
    %3226 = vmatprep.subr.bf16.mxu0 %v2557
    %3227 = vmatpush1.bf16.msra.mxu0 %v2556
    %3228 = vmatprep.subr.bf16.mxu0 %v2561
    %3229 = vmatpush1.bf16.msra.mxu0 %v2560
    %3230 = vmatprep.subr.bf16.mxu0 %v2565
    %3231 = vmatpush1.bf16.msra.mxu0 %v2564
    %3232 = vmatprep.subr.bf16.mxu0 %v2569
    %3233 = vmatpush1.bf16.msra.mxu0 %v2568
    %3234 = vmatprep.subr.bf16.mxu0 %v2573
    %3235 = vmatpush1.bf16.msra.mxu0 %v2572
    %3236 = vmatprep.subr.bf16.mxu0 %v2577
    %3237 = vmatpush1.bf16.msra.mxu0 %v2576
    %3238 = vmatprep.subr.bf16.mxu0 %v2581
    %3239 = vmatpush1.bf16.msra.mxu0 %v2580
    %3240 = vmatprep.subr.bf16.mxu0 %v2585
    %3241 = vmatpush1.bf16.msra.mxu0 %v2584
    %3242 = vmatprep.subr.bf16.mxu0 %v2589
    %3243 = vmatpush1.bf16.msra.mxu0 %v2588
    %3244 = vmatprep.subr.bf16.mxu0 %v2593
    %3245 = vmatpush1.bf16.msra.mxu0 %v2592
    %3246 = vmatprep.subr.bf16.mxu0 %v2597
    %3247 = vmatpush1.bf16.msra.mxu0 %v2596
    %3248 = vmatprep.subr.bf16.mxu0 %v2601
    %3249 = vmatpush1.bf16.msra.mxu0 %v2600
    %3250 = vmatprep.mubr.bf16.mxu0 %v2273
    %3251 = vmatmul.mubr.bf16.gmra.mrb[0].mxu0 %v2272
    %v3252 = vpop.f32.mrb[0].mxu0
    %v3253 = vadd.f32 %v3200, %v3252
    %v3254 = vpop.f32.mrb[0].mxu0
    %v3255 = vadd.f32 %v3202, %v3254
    %v3256 = vpop.f32.mrb[0].mxu0
    %v3257 = vadd.f32 %v3204, %v3256
    %v3258 = vpop.f32.mrb[0].mxu0
    %v3259 = vadd.f32 %v3206, %v3258
    %3260 = vmatprep.mubr.bf16.mxu0 %v2277
    %3261 = vmatmul.mubr.bf16.gmra.mrb[0].mxu0 %v2276
    %v3262 = vpop.f32.mrb[0].mxu0
    %v3263 = vadd.f32 %v3210, %v3262
    %v3264 = vpop.f32.mrb[0].mxu0
    %v3265 = vadd.f32 %v3212, %v3264
    %v3266 = vpop.f32.mrb[0].mxu0
    %v3267 = vadd.f32 %v3214, %v3266
    %v3268 = vpop.f32.mrb[0].mxu0
    %v3269 = vadd.f32 %v3216, %v3268
    %3270 = vdwg.mxu0
    %3271 = vmatprep.subr.bf16.mxu0 %v2605
    %3272 = vmatpush1.bf16.msra.mxu0 %v2604
    %3273 = vmatprep.subr.bf16.mxu0 %v2609
    %3274 = vmatpush1.bf16.msra.mxu0 %v2608
    %3275 = vmatprep.subr.bf16.mxu0 %v2613
    %3276 = vmatpush1.bf16.msra.mxu0 %v2612
    %3277 = vmatprep.subr.bf16.mxu0 %v2617
    %3278 = vmatpush1.bf16.msra.mxu0 %v2616
    %3279 = vmatprep.subr.bf16.mxu0 %v2621
    %3280 = vmatpush1.bf16.msra.mxu0 %v2620
    %3281 = vmatprep.subr.bf16.mxu0 %v2625
    %3282 = vmatpush1.bf16.msra.mxu0 %v2624
    %3283 = vmatprep.subr.bf16.mxu0 %v2629
    %3284 = vmatpush1.bf16.msra.mxu0 %v2628
    %3285 = vmatprep.subr.bf16.mxu0 %v2633
    %3286 = vmatpush1.bf16.msra.mxu0 %v2632
    %3287 = vmatprep.subr.bf16.mxu0 %v2637
    %3288 = vmatpush1.bf16.msra.mxu0 %v2636
    %3289 = vmatprep.subr.bf16.mxu0 %v2641
    %3290 = vmatpush1.bf16.msra.mxu0 %v2640
    %3291 = vmatprep.subr.bf16.mxu0 %v2645
    %3292 = vmatpush1.bf16.msra.mxu0 %v2644
    %3293 = vmatprep.subr.bf16.mxu0 %v2649
    %3294 = vmatpush1.bf16.msra.mxu0 %v2648
    %3295 = vmatprep.subr.bf16.mxu0 %v2653
    %3296 = vmatpush1.bf16.msra.mxu0 %v2652
    %3297 = vmatprep.subr.bf16.mxu0 %v2657
    %3298 = vmatpush1.bf16.msra.mxu0 %v2656
    %3299 = vmatprep.subr.bf16.mxu0 %v2661
    %3300 = vmatpush1.bf16.msra.mxu0 %v2660
    %3301 = vmatprep.subr.bf16.mxu0 %v2665
    %3302 = vmatpush1.bf16.msra.mxu0 %v2664
    %3303 = vmatprep.mubr.bf16.mxu0 %v2275
    %3304 = vmatmul.mubr.bf16.gmra.mrb[0].mxu0 %v2274
    %v3305 = vpop.f32.mrb[0].mxu0
    %v3306 = vadd.f32 %v3253, %v3305
    %v3307 = vpop.f32.mrb[0].mxu0
    %v3308 = vadd.f32 %v3255, %v3307
    %v3309 = vpop.f32.mrb[0].mxu0
    %v3310 = vadd.f32 %v3257, %v3309
    %v3311 = vpop.f32.mrb[0].mxu0
    %v3312 = vadd.f32 %v3259, %v3311
    %3313 = vmatprep.mubr.bf16.mxu0 %v2279
    %3314 = vmatmul.mubr.bf16.gmra.mrb[0].mxu0 %v2278
    %v3315 = vpop.f32.mrb[0].mxu0
    %v3316 = vadd.f32 %v3263, %v3315
    %v3317 = vpop.f32.mrb[0].mxu0
    %v3318 = vadd.f32 %v3265, %v3317
    %v3319 = vpop.f32.mrb[0].mxu0
    %v3320 = vadd.f32 %v3267, %v3319
    %v3321 = vpop.f32.mrb[0].mxu0
    %v3322 = vadd.f32 %v3269, %v3321
    %3323 = vdwg.mxu0
    %v3324 = vmax.f32 %v2988, 0.0
    %v3325 = vmax.f32 %v2990, 0.0
    %v3326 = vmax.f32 %v3306, 0.0
    %v3327 = vmax.f32 %v3308, 0.0
    %v3328 = vmax.f32 %v2992, 0.0
    %v3329 = vmax.f32 %v2994, 0.0
    %v3330 = vmax.f32 %v3310, 0.0
    %v3331 = vmax.f32 %v3312, 0.0
    %v3332 = vmax.f32 %v2998, 0.0
    %v3333 = vmax.f32 %v3000, 0.0
    %v3334 = vmax.f32 %v3316, 0.0
    %v3335 = vmax.f32 %v3318, 0.0
    %v3336 = vmax.f32 %v3002, 0.0
    %v3337 = vmax.f32 %v3004, 0.0
    %v3338 = vmax.f32 %v3320, 0.0
    %v3339 = vmax.f32 %v3322, 0.0
    %v3340 = vpack.c.bf16 %v3328, %v3324
    %v3341 = vpack.c.bf16 %v3329, %v3325
    %v3342 = vpack.c.bf16 %v3330, %v3326
    %v3343 = vpack.c.bf16 %v3331, %v3327
    %v3344 = vpack.c.bf16 %v3336, %v3332
    %v3345 = vpack.c.bf16 %v3337, %v3333
    %v3346 = vpack.c.bf16 %v3338, %v3334
    %v3347 = vpack.c.bf16 %v3339, %v3335
    %s3348 = smul.u32 4, 64
    %s3349 = smul.u32 %s3348, 12
    %s3350 = sshll.u32 %s3349, 4
    %3351 = dma.done %s221, %s3350
    %v3352 = vld [vmem:[#allocation5] sm:$0xff]
    %v3353 = vld [vmem:[#allocation5 + $0x8] sm:$0xff]
    %v3354 = vld [vmem:[#allocation5 + $0x10] sm:$0xff]
    %v3355 = vld [vmem:[#allocation5 + $0x18] sm:$0xff]
    %v3356 = vld [vmem:[#allocation5 + $0x20] sm:$0xff]
    %v3357 = vld [vmem:[#allocation5 + $0x28] sm:$0xff]
    %v3358 = vld [vmem:[#allocation5 + $0x30] sm:$0xff]
    %v3359 = vld [vmem:[#allocation5 + $0x38] sm:$0xff]
    %v3360 = vld [vmem:[#allocation5 + $0x40] sm:$0xff]
    %v3361 = vld [vmem:[#allocation5 + $0x48] sm:$0xff]
    %v3362 = vld [vmem:[#allocation5 + $0x50] sm:$0xff]
    %v3363 = vld [vmem:[#allocation5 + $0x58] sm:$0xff]
    %v3364 = vld [vmem:[#allocation5 + $0x60] sm:$0xff]
    %v3365 = vld [vmem:[#allocation5 + $0x68] sm:$0xff]
    %v3366 = vld [vmem:[#allocation5 + $0x70] sm:$0xff]
    %v3367 = vld [vmem:[#allocation5 + $0x78] sm:$0xff]
    %v3368 = vld [vmem:[#allocation5 + $0x80] sm:$0xff]
    %v3369 = vld [vmem:[#allocation5 + $0x88] sm:$0xff]
    %v3370 = vld [vmem:[#allocation5 + $0x90] sm:$0xff]
    %v3371 = vld [vmem:[#allocation5 + $0x98] sm:$0xff]
    %v3372 = vld [vmem:[#allocation5 + $0xa0] sm:$0xff]
    %v3373 = vld [vmem:[#allocation5 + $0xa8] sm:$0xff]
    %v3374 = vld [vmem:[#allocation5 + $0xb0] sm:$0xff]
    %v3375 = vld [vmem:[#allocation5 + $0xb8] sm:$0xff]
    %v3376 = vld [vmem:[#allocation5 + $0xc0] sm:$0xff]
    %v3377 = vld [vmem:[#allocation5 + $0xc8] sm:$0xff]
    %v3378 = vld [vmem:[#allocation5 + $0xd0] sm:$0xff]
    %v3379 = vld [vmem:[#allocation5 + $0xd8] sm:$0xff]
    %v3380 = vld [vmem:[#allocation5 + $0xe0] sm:$0xff]
    %v3381 = vld [vmem:[#allocation5 + $0xe8] sm:$0xff]
    %v3382 = vld [vmem:[#allocation5 + $0xf0] sm:$0xff]
    %v3383 = vld [vmem:[#allocation5 + $0xf8] sm:$0xff]
    %v3384 = vld [vmem:[#allocation5 + $0x100] sm:$0xff]
    %v3385 = vld [vmem:[#allocation5 + $0x108] sm:$0xff]
    %v3386 = vld [vmem:[#allocation5 + $0x110] sm:$0xff]
    %v3387 = vld [vmem:[#allocation5 + $0x118] sm:$0xff]
    %v3388 = vld [vmem:[#allocation5 + $0x120] sm:$0xff]
    %v3389 = vld [vmem:[#allocation5 + $0x128] sm:$0xff]
    %v3390 = vld [vmem:[#allocation5 + $0x130] sm:$0xff]
    %v3391 = vld [vmem:[#allocation5 + $0x138] sm:$0xff]
    %v3392 = vld [vmem:[#allocation5 + $0x140] sm:$0xff]
    %v3393 = vld [vmem:[#allocation5 + $0x148] sm:$0xff]
    %v3394 = vld [vmem:[#allocation5 + $0x150] sm:$0xff]
    %v3395 = vld [vmem:[#allocation5 + $0x158] sm:$0xff]
    %v3396 = vld [vmem:[#allocation5 + $0x160] sm:$0xff]
    %v3397 = vld [vmem:[#allocation5 + $0x168] sm:$0xff]
    %v3398 = vld [vmem:[#allocation5 + $0x170] sm:$0xff]
    %v3399 = vld [vmem:[#allocation5 + $0x178] sm:$0xff]
    %v3400 = vld [vmem:[#allocation5 + $0x180] sm:$0xff]
    %v3401 = vld [vmem:[#allocation5 + $0x188] sm:$0xff]
    %v3402 = vld [vmem:[#allocation5 + $0x190] sm:$0xff]
    %v3403 = vld [vmem:[#allocation5 + $0x198] sm:$0xff]
    %v3404 = vld [vmem:[#allocation5 + $0x1a0] sm:$0xff]
    %v3405 = vld [vmem:[#allocation5 + $0x1a8] sm:$0xff]
    %v3406 = vld [vmem:[#allocation5 + $0x1b0] sm:$0xff]
    %v3407 = vld [vmem:[#allocation5 + $0x1b8] sm:$0xff]
    %v3408 = vld [vmem:[#allocation5 + $0x1c0] sm:$0xff]
    %v3409 = vld [vmem:[#allocation5 + $0x1c8] sm:$0xff]
    %v3410 = vld [vmem:[#allocation5 + $0x1d0] sm:$0xff]
    %v3411 = vld [vmem:[#allocation5 + $0x1d8] sm:$0xff]
    %v3412 = vld [vmem:[#allocation5 + $0x1e0] sm:$0xff]
    %v3413 = vld [vmem:[#allocation5 + $0x1e8] sm:$0xff]
    %v3414 = vld [vmem:[#allocation5 + $0x1f0] sm:$0xff]
    %v3415 = vld [vmem:[#allocation5 + $0x1f8] sm:$0xff]
    %v3416 = vld [vmem:[#allocation5 + $0x200] sm:$0xff]
    %v3417 = vld [vmem:[#allocation5 + $0x208] sm:$0xff]
    %v3418 = vld [vmem:[#allocation5 + $0x210] sm:$0xff]
    %v3419 = vld [vmem:[#allocation5 + $0x218] sm:$0xff]
    %v3420 = vld [vmem:[#allocation5 + $0x220] sm:$0xff]
    %v3421 = vld [vmem:[#allocation5 + $0x228] sm:$0xff]
    %v3422 = vld [vmem:[#allocation5 + $0x230] sm:$0xff]
    %v3423 = vld [vmem:[#allocation5 + $0x238] sm:$0xff]
    %v3424 = vld [vmem:[#allocation5 + $0x240] sm:$0xff]
    %v3425 = vld [vmem:[#allocation5 + $0x248] sm:$0xff]
    %v3426 = vld [vmem:[#allocation5 + $0x250] sm:$0xff]
    %v3427 = vld [vmem:[#allocation5 + $0x258] sm:$0xff]
    %v3428 = vld [vmem:[#allocation5 + $0x260] sm:$0xff]
    %v3429 = vld [vmem:[#allocation5 + $0x268] sm:$0xff]
    %v3430 = vld [vmem:[#allocation5 + $0x270] sm:$0xff]
    %v3431 = vld [vmem:[#allocation5 + $0x278] sm:$0xff]
    %v3432 = vld [vmem:[#allocation5 + $0x280] sm:$0xff]
    %v3433 = vld [vmem:[#allocation5 + $0x288] sm:$0xff]
    %v3434 = vld [vmem:[#allocation5 + $0x290] sm:$0xff]
    %v3435 = vld [vmem:[#allocation5 + $0x298] sm:$0xff]
    %v3436 = vld [vmem:[#allocation5 + $0x2a0] sm:$0xff]
    %v3437 = vld [vmem:[#allocation5 + $0x2a8] sm:$0xff]
    %v3438 = vld [vmem:[#allocation5 + $0x2b0] sm:$0xff]
    %v3439 = vld [vmem:[#allocation5 + $0x2b8] sm:$0xff]
    %v3440 = vld [vmem:[#allocation5 + $0x2c0] sm:$0xff]
    %v3441 = vld [vmem:[#allocation5 + $0x2c8] sm:$0xff]
    %v3442 = vld [vmem:[#allocation5 + $0x2d0] sm:$0xff]
    %v3443 = vld [vmem:[#allocation5 + $0x2d8] sm:$0xff]
    %v3444 = vld [vmem:[#allocation5 + $0x2e0] sm:$0xff]
    %v3445 = vld [vmem:[#allocation5 + $0x2e8] sm:$0xff]
    %v3446 = vld [vmem:[#allocation5 + $0x2f0] sm:$0xff]
    %v3447 = vld [vmem:[#allocation5 + $0x2f8] sm:$0xff]
    %v3448 = vld [vmem:[#allocation5 + $0x300] sm:$0xff]
    %v3449 = vld [vmem:[#allocation5 + $0x308] sm:$0xff]
    %v3450 = vld [vmem:[#allocation5 + $0x310] sm:$0xff]
    %v3451 = vld [vmem:[#allocation5 + $0x318] sm:$0xff]
    %v3452 = vld [vmem:[#allocation5 + $0x320] sm:$0xff]
    %v3453 = vld [vmem:[#allocation5 + $0x328] sm:$0xff]
    %v3454 = vld [vmem:[#allocation5 + $0x330] sm:$0xff]
    %v3455 = vld [vmem:[#allocation5 + $0x338] sm:$0xff]
    %v3456 = vld [vmem:[#allocation5 + $0x340] sm:$0xff]
    %v3457 = vld [vmem:[#allocation5 + $0x348] sm:$0xff]
    %v3458 = vld [vmem:[#allocation5 + $0x350] sm:$0xff]
    %v3459 = vld [vmem:[#allocation5 + $0x358] sm:$0xff]
    %v3460 = vld [vmem:[#allocation5 + $0x360] sm:$0xff]
    %v3461 = vld [vmem:[#allocation5 + $0x368] sm:$0xff]
    %v3462 = vld [vmem:[#allocation5 + $0x370] sm:$0xff]
    %v3463 = vld [vmem:[#allocation5 + $0x378] sm:$0xff]
    %v3464 = vld [vmem:[#allocation5 + $0x380] sm:$0xff]
    %v3465 = vld [vmem:[#allocation5 + $0x388] sm:$0xff]
    %v3466 = vld [vmem:[#allocation5 + $0x390] sm:$0xff]
    %v3467 = vld [vmem:[#allocation5 + $0x398] sm:$0xff]
    %v3468 = vld [vmem:[#allocation5 + $0x3a0] sm:$0xff]
    %v3469 = vld [vmem:[#allocation5 + $0x3a8] sm:$0xff]
    %v3470 = vld [vmem:[#allocation5 + $0x3b0] sm:$0xff]
    %v3471 = vld [vmem:[#allocation5 + $0x3b8] sm:$0xff]
    %v3472 = vld [vmem:[#allocation5 + $0x3c0] sm:$0xff]
    %v3473 = vld [vmem:[#allocation5 + $0x3c8] sm:$0xff]
    %v3474 = vld [vmem:[#allocation5 + $0x3d0] sm:$0xff]
    %v3475 = vld [vmem:[#allocation5 + $0x3d8] sm:$0xff]
    %v3476 = vld [vmem:[#allocation5 + $0x3e0] sm:$0xff]
    %v3477 = vld [vmem:[#allocation5 + $0x3e8] sm:$0xff]
    %v3478 = vld [vmem:[#allocation5 + $0x3f0] sm:$0xff]
    %v3479 = vld [vmem:[#allocation5 + $0x3f8] sm:$0xff]
    %v3480 = vld [vmem:[#allocation5 + $0x400] sm:$0xff]
    %v3481 = vld [vmem:[#allocation5 + $0x408] sm:$0xff]
    %v3482 = vld [vmem:[#allocation5 + $0x410] sm:$0xff]
    %v3483 = vld [vmem:[#allocation5 + $0x418] sm:$0xff]
    %v3484 = vld [vmem:[#allocation5 + $0x420] sm:$0xff]
    %v3485 = vld [vmem:[#allocation5 + $0x428] sm:$0xff]
    %v3486 = vld [vmem:[#allocation5 + $0x430] sm:$0xff]
    %v3487 = vld [vmem:[#allocation5 + $0x438] sm:$0xff]
    %v3488 = vld [vmem:[#allocation5 + $0x440] sm:$0xff]
    %v3489 = vld [vmem:[#allocation5 + $0x448] sm:$0xff]
    %v3490 = vld [vmem:[#allocation5 + $0x450] sm:$0xff]
    %v3491 = vld [vmem:[#allocation5 + $0x458] sm:$0xff]
    %v3492 = vld [vmem:[#allocation5 + $0x460] sm:$0xff]
    %v3493 = vld [vmem:[#allocation5 + $0x468] sm:$0xff]
    %v3494 = vld [vmem:[#allocation5 + $0x470] sm:$0xff]
    %v3495 = vld [vmem:[#allocation5 + $0x478] sm:$0xff]
    %v3496 = vld [vmem:[#allocation5 + $0x480] sm:$0xff]
    %v3497 = vld [vmem:[#allocation5 + $0x488] sm:$0xff]
    %v3498 = vld [vmem:[#allocation5 + $0x490] sm:$0xff]
    %v3499 = vld [vmem:[#allocation5 + $0x498] sm:$0xff]
    %v3500 = vld [vmem:[#allocation5 + $0x4a0] sm:$0xff]
    %v3501 = vld [vmem:[#allocation5 + $0x4a8] sm:$0xff]
    %v3502 = vld [vmem:[#allocation5 + $0x4b0] sm:$0xff]
    %v3503 = vld [vmem:[#allocation5 + $0x4b8] sm:$0xff]
    %v3504 = vld [vmem:[#allocation5 + $0x4c0] sm:$0xff]
    %v3505 = vld [vmem:[#allocation5 + $0x4c8] sm:$0xff]
    %v3506 = vld [vmem:[#allocation5 + $0x4d0] sm:$0xff]
    %v3507 = vld [vmem:[#allocation5 + $0x4d8] sm:$0xff]
    %v3508 = vld [vmem:[#allocation5 + $0x4e0] sm:$0xff]
    %v3509 = vld [vmem:[#allocation5 + $0x4e8] sm:$0xff]
    %v3510 = vld [vmem:[#allocation5 + $0x4f0] sm:$0xff]
    %v3511 = vld [vmem:[#allocation5 + $0x4f8] sm:$0xff]
    %v3512 = vld [vmem:[#allocation5 + $0x500] sm:$0xff]
    %v3513 = vld [vmem:[#allocation5 + $0x508] sm:$0xff]
    %v3514 = vld [vmem:[#allocation5 + $0x510] sm:$0xff]
    %v3515 = vld [vmem:[#allocation5 + $0x518] sm:$0xff]
    %v3516 = vld [vmem:[#allocation5 + $0x520] sm:$0xff]
    %v3517 = vld [vmem:[#allocation5 + $0x528] sm:$0xff]
    %v3518 = vld [vmem:[#allocation5 + $0x530] sm:$0xff]
    %v3519 = vld [vmem:[#allocation5 + $0x538] sm:$0xff]
    %v3520 = vld [vmem:[#allocation5 + $0x540] sm:$0xff]
    %v3521 = vld [vmem:[#allocation5 + $0x548] sm:$0xff]
    %v3522 = vld [vmem:[#allocation5 + $0x550] sm:$0xff]
    %v3523 = vld [vmem:[#allocation5 + $0x558] sm:$0xff]
    %v3524 = vld [vmem:[#allocation5 + $0x560] sm:$0xff]
    %v3525 = vld [vmem:[#allocation5 + $0x568] sm:$0xff]
    %v3526 = vld [vmem:[#allocation5 + $0x570] sm:$0xff]
    %v3527 = vld [vmem:[#allocation5 + $0x578] sm:$0xff]
    %v3528 = vld [vmem:[#allocation5 + $0x580] sm:$0xff]
    %v3529 = vld [vmem:[#allocation5 + $0x588] sm:$0xff]
    %v3530 = vld [vmem:[#allocation5 + $0x590] sm:$0xff]
    %v3531 = vld [vmem:[#allocation5 + $0x598] sm:$0xff]
    %v3532 = vld [vmem:[#allocation5 + $0x5a0] sm:$0xff]
    %v3533 = vld [vmem:[#allocation5 + $0x5a8] sm:$0xff]
    %v3534 = vld [vmem:[#allocation5 + $0x5b0] sm:$0xff]
    %v3535 = vld [vmem:[#allocation5 + $0x5b8] sm:$0xff]
    %v3536 = vld [vmem:[#allocation5 + $0x5c0] sm:$0xff]
    %v3537 = vld [vmem:[#allocation5 + $0x5c8] sm:$0xff]
    %v3538 = vld [vmem:[#allocation5 + $0x5d0] sm:$0xff]
    %v3539 = vld [vmem:[#allocation5 + $0x5d8] sm:$0xff]
    %v3540 = vld [vmem:[#allocation5 + $0x5e0] sm:$0xff]
    %v3541 = vld [vmem:[#allocation5 + $0x5e8] sm:$0xff]
    %v3542 = vld [vmem:[#allocation5 + $0x5f0] sm:$0xff]
    %v3543 = vld [vmem:[#allocation5 + $0x5f8] sm:$0xff]
    %v3544 = vld [vmem:[#allocation5 + $0x600] sm:$0xff]
    %v3545 = vld [vmem:[#allocation5 + $0x608] sm:$0xff]
    %v3546 = vld [vmem:[#allocation5 + $0x610] sm:$0xff]
    %v3547 = vld [vmem:[#allocation5 + $0x618] sm:$0xff]
    %v3548 = vld [vmem:[#allocation5 + $0x620] sm:$0xff]
    %v3549 = vld [vmem:[#allocation5 + $0x628] sm:$0xff]
    %v3550 = vld [vmem:[#allocation5 + $0x630] sm:$0xff]
    %v3551 = vld [vmem:[#allocation5 + $0x638] sm:$0xff]
    %v3552 = vld [vmem:[#allocation5 + $0x640] sm:$0xff]
    %v3553 = vld [vmem:[#allocation5 + $0x648] sm:$0xff]
    %v3554 = vld [vmem:[#allocation5 + $0x650] sm:$0xff]
    %v3555 = vld [vmem:[#allocation5 + $0x658] sm:$0xff]
    %v3556 = vld [vmem:[#allocation5 + $0x660] sm:$0xff]
    %v3557 = vld [vmem:[#allocation5 + $0x668] sm:$0xff]
    %v3558 = vld [vmem:[#allocation5 + $0x670] sm:$0xff]
    %v3559 = vld [vmem:[#allocation5 + $0x678] sm:$0xff]
    %v3560 = vld [vmem:[#allocation5 + $0x680] sm:$0xff]
    %v3561 = vld [vmem:[#allocation5 + $0x688] sm:$0xff]
    %v3562 = vld [vmem:[#allocation5 + $0x690] sm:$0xff]
    %v3563 = vld [vmem:[#allocation5 + $0x698] sm:$0xff]
    %v3564 = vld [vmem:[#allocation5 + $0x6a0] sm:$0xff]
    %v3565 = vld [vmem:[#allocation5 + $0x6a8] sm:$0xff]
    %v3566 = vld [vmem:[#allocation5 + $0x6b0] sm:$0xff]
    %v3567 = vld [vmem:[#allocation5 + $0x6b8] sm:$0xff]
    %v3568 = vld [vmem:[#allocation5 + $0x6c0] sm:$0xff]
    %v3569 = vld [vmem:[#allocation5 + $0x6c8] sm:$0xff]
    %v3570 = vld [vmem:[#allocation5 + $0x6d0] sm:$0xff]
    %v3571 = vld [vmem:[#allocation5 + $0x6d8] sm:$0xff]
    %v3572 = vld [vmem:[#allocation5 + $0x6e0] sm:$0xff]
    %v3573 = vld [vmem:[#allocation5 + $0x6e8] sm:$0xff]
    %v3574 = vld [vmem:[#allocation5 + $0x6f0] sm:$0xff]
    %v3575 = vld [vmem:[#allocation5 + $0x6f8] sm:$0xff]
    %v3576 = vld [vmem:[#allocation5 + $0x700] sm:$0xff]
    %v3577 = vld [vmem:[#allocation5 + $0x708] sm:$0xff]
    %v3578 = vld [vmem:[#allocation5 + $0x710] sm:$0xff]
    %v3579 = vld [vmem:[#allocation5 + $0x718] sm:$0xff]
    %v3580 = vld [vmem:[#allocation5 + $0x720] sm:$0xff]
    %v3581 = vld [vmem:[#allocation5 + $0x728] sm:$0xff]
    %v3582 = vld [vmem:[#allocation5 + $0x730] sm:$0xff]
    %v3583 = vld [vmem:[#allocation5 + $0x738] sm:$0xff]
    %v3584 = vld [vmem:[#allocation5 + $0x740] sm:$0xff]
    %v3585 = vld [vmem:[#allocation5 + $0x748] sm:$0xff]
    %v3586 = vld [vmem:[#allocation5 + $0x750] sm:$0xff]
    %v3587 = vld [vmem:[#allocation5 + $0x758] sm:$0xff]
    %v3588 = vld [vmem:[#allocation5 + $0x760] sm:$0xff]
    %v3589 = vld [vmem:[#allocation5 + $0x768] sm:$0xff]
    %v3590 = vld [vmem:[#allocation5 + $0x770] sm:$0xff]
    %v3591 = vld [vmem:[#allocation5 + $0x778] sm:$0xff]
    %v3592 = vld [vmem:[#allocation5 + $0x780] sm:$0xff]
    %v3593 = vld [vmem:[#allocation5 + $0x788] sm:$0xff]
    %v3594 = vld [vmem:[#allocation5 + $0x790] sm:$0xff]
    %v3595 = vld [vmem:[#allocation5 + $0x798] sm:$0xff]
    %v3596 = vld [vmem:[#allocation5 + $0x7a0] sm:$0xff]
    %v3597 = vld [vmem:[#allocation5 + $0x7a8] sm:$0xff]
    %v3598 = vld [vmem:[#allocation5 + $0x7b0] sm:$0xff]
    %v3599 = vld [vmem:[#allocation5 + $0x7b8] sm:$0xff]
    %v3600 = vld [vmem:[#allocation5 + $0x7c0] sm:$0xff]
    %v3601 = vld [vmem:[#allocation5 + $0x7c8] sm:$0xff]
    %v3602 = vld [vmem:[#allocation5 + $0x7d0] sm:$0xff]
    %v3603 = vld [vmem:[#allocation5 + $0x7d8] sm:$0xff]
    %v3604 = vld [vmem:[#allocation5 + $0x7e0] sm:$0xff]
    %v3605 = vld [vmem:[#allocation5 + $0x7e8] sm:$0xff]
    %v3606 = vld [vmem:[#allocation5 + $0x7f0] sm:$0xff]
    %v3607 = vld [vmem:[#allocation5 + $0x7f8] sm:$0xff]
    %v3608 = vld [vmem:[#allocation5 + $0x800] sm:$0xff]
    %v3609 = vld [vmem:[#allocation5 + $0x808] sm:$0xff]
    %v3610 = vld [vmem:[#allocation5 + $0x810] sm:$0xff]
    %v3611 = vld [vmem:[#allocation5 + $0x818] sm:$0xff]
    %v3612 = vld [vmem:[#allocation5 + $0x820] sm:$0xff]
    %v3613 = vld [vmem:[#allocation5 + $0x828] sm:$0xff]
    %v3614 = vld [vmem:[#allocation5 + $0x830] sm:$0xff]
    %v3615 = vld [vmem:[#allocation5 + $0x838] sm:$0xff]
    %v3616 = vld [vmem:[#allocation5 + $0x840] sm:$0xff]
    %v3617 = vld [vmem:[#allocation5 + $0x848] sm:$0xff]
    %v3618 = vld [vmem:[#allocation5 + $0x850] sm:$0xff]
    %v3619 = vld [vmem:[#allocation5 + $0x858] sm:$0xff]
    %v3620 = vld [vmem:[#allocation5 + $0x860] sm:$0xff]
    %v3621 = vld [vmem:[#allocation5 + $0x868] sm:$0xff]
    %v3622 = vld [vmem:[#allocation5 + $0x870] sm:$0xff]
    %v3623 = vld [vmem:[#allocation5 + $0x878] sm:$0xff]
    %v3624 = vld [vmem:[#allocation5 + $0x880] sm:$0xff]
    %v3625 = vld [vmem:[#allocation5 + $0x888] sm:$0xff]
    %v3626 = vld [vmem:[#allocation5 + $0x890] sm:$0xff]
    %v3627 = vld [vmem:[#allocation5 + $0x898] sm:$0xff]
    %v3628 = vld [vmem:[#allocation5 + $0x8a0] sm:$0xff]
    %v3629 = vld [vmem:[#allocation5 + $0x8a8] sm:$0xff]
    %v3630 = vld [vmem:[#allocation5 + $0x8b0] sm:$0xff]
    %v3631 = vld [vmem:[#allocation5 + $0x8b8] sm:$0xff]
    %v3632 = vld [vmem:[#allocation5 + $0x8c0] sm:$0xff]
    %v3633 = vld [vmem:[#allocation5 + $0x8c8] sm:$0xff]
    %v3634 = vld [vmem:[#allocation5 + $0x8d0] sm:$0xff]
    %v3635 = vld [vmem:[#allocation5 + $0x8d8] sm:$0xff]
    %v3636 = vld [vmem:[#allocation5 + $0x8e0] sm:$0xff]
    %v3637 = vld [vmem:[#allocation5 + $0x8e8] sm:$0xff]
    %v3638 = vld [vmem:[#allocation5 + $0x8f0] sm:$0xff]
    %v3639 = vld [vmem:[#allocation5 + $0x8f8] sm:$0xff]
    %v3640 = vld [vmem:[#allocation5 + $0x900] sm:$0xff]
    %v3641 = vld [vmem:[#allocation5 + $0x908] sm:$0xff]
    %v3642 = vld [vmem:[#allocation5 + $0x910] sm:$0xff]
    %v3643 = vld [vmem:[#allocation5 + $0x918] sm:$0xff]
    %v3644 = vld [vmem:[#allocation5 + $0x920] sm:$0xff]
    %v3645 = vld [vmem:[#allocation5 + $0x928] sm:$0xff]
    %v3646 = vld [vmem:[#allocation5 + $0x930] sm:$0xff]
    %v3647 = vld [vmem:[#allocation5 + $0x938] sm:$0xff]
    %v3648 = vld [vmem:[#allocation5 + $0x940] sm:$0xff]
    %v3649 = vld [vmem:[#allocation5 + $0x948] sm:$0xff]
    %v3650 = vld [vmem:[#allocation5 + $0x950] sm:$0xff]
    %v3651 = vld [vmem:[#allocation5 + $0x958] sm:$0xff]
    %v3652 = vld [vmem:[#allocation5 + $0x960] sm:$0xff]
    %v3653 = vld [vmem:[#allocation5 + $0x968] sm:$0xff]
    %v3654 = vld [vmem:[#allocation5 + $0x970] sm:$0xff]
    %v3655 = vld [vmem:[#allocation5 + $0x978] sm:$0xff]
    %v3656 = vld [vmem:[#allocation5 + $0x980] sm:$0xff]
    %v3657 = vld [vmem:[#allocation5 + $0x988] sm:$0xff]
    %v3658 = vld [vmem:[#allocation5 + $0x990] sm:$0xff]
    %v3659 = vld [vmem:[#allocation5 + $0x998] sm:$0xff]
    %v3660 = vld [vmem:[#allocation5 + $0x9a0] sm:$0xff]
    %v3661 = vld [vmem:[#allocation5 + $0x9a8] sm:$0xff]
    %v3662 = vld [vmem:[#allocation5 + $0x9b0] sm:$0xff]
    %v3663 = vld [vmem:[#allocation5 + $0x9b8] sm:$0xff]
    %v3664 = vld [vmem:[#allocation5 + $0x9c0] sm:$0xff]
    %v3665 = vld [vmem:[#allocation5 + $0x9c8] sm:$0xff]
    %v3666 = vld [vmem:[#allocation5 + $0x9d0] sm:$0xff]
    %v3667 = vld [vmem:[#allocation5 + $0x9d8] sm:$0xff]
    %v3668 = vld [vmem:[#allocation5 + $0x9e0] sm:$0xff]
    %v3669 = vld [vmem:[#allocation5 + $0x9e8] sm:$0xff]
    %v3670 = vld [vmem:[#allocation5 + $0x9f0] sm:$0xff]
    %v3671 = vld [vmem:[#allocation5 + $0x9f8] sm:$0xff]
    %v3672 = vld [vmem:[#allocation5 + $0xa00] sm:$0xff]
    %v3673 = vld [vmem:[#allocation5 + $0xa08] sm:$0xff]
    %v3674 = vld [vmem:[#allocation5 + $0xa10] sm:$0xff]
    %v3675 = vld [vmem:[#allocation5 + $0xa18] sm:$0xff]
    %v3676 = vld [vmem:[#allocation5 + $0xa20] sm:$0xff]
    %v3677 = vld [vmem:[#allocation5 + $0xa28] sm:$0xff]
    %v3678 = vld [vmem:[#allocation5 + $0xa30] sm:$0xff]
    %v3679 = vld [vmem:[#allocation5 + $0xa38] sm:$0xff]
    %v3680 = vld [vmem:[#allocation5 + $0xa40] sm:$0xff]
    %v3681 = vld [vmem:[#allocation5 + $0xa48] sm:$0xff]
    %v3682 = vld [vmem:[#allocation5 + $0xa50] sm:$0xff]
    %v3683 = vld [vmem:[#allocation5 + $0xa58] sm:$0xff]
    %v3684 = vld [vmem:[#allocation5 + $0xa60] sm:$0xff]
    %v3685 = vld [vmem:[#allocation5 + $0xa68] sm:$0xff]
    %v3686 = vld [vmem:[#allocation5 + $0xa70] sm:$0xff]
    %v3687 = vld [vmem:[#allocation5 + $0xa78] sm:$0xff]
    %v3688 = vld [vmem:[#allocation5 + $0xa80] sm:$0xff]
    %v3689 = vld [vmem:[#allocation5 + $0xa88] sm:$0xff]
    %v3690 = vld [vmem:[#allocation5 + $0xa90] sm:$0xff]
    %v3691 = vld [vmem:[#allocation5 + $0xa98] sm:$0xff]
    %v3692 = vld [vmem:[#allocation5 + $0xaa0] sm:$0xff]
    %v3693 = vld [vmem:[#allocation5 + $0xaa8] sm:$0xff]
    %v3694 = vld [vmem:[#allocation5 + $0xab0] sm:$0xff]
    %v3695 = vld [vmem:[#allocation5 + $0xab8] sm:$0xff]
    %v3696 = vld [vmem:[#allocation5 + $0xac0] sm:$0xff]
    %v3697 = vld [vmem:[#allocation5 + $0xac8] sm:$0xff]
    %v3698 = vld [vmem:[#allocation5 + $0xad0] sm:$0xff]
    %v3699 = vld [vmem:[#allocation5 + $0xad8] sm:$0xff]
    %v3700 = vld [vmem:[#allocation5 + $0xae0] sm:$0xff]
    %v3701 = vld [vmem:[#allocation5 + $0xae8] sm:$0xff]
    %v3702 = vld [vmem:[#allocation5 + $0xaf0] sm:$0xff]
    %v3703 = vld [vmem:[#allocation5 + $0xaf8] sm:$0xff]
    %v3704 = vld [vmem:[#allocation5 + $0xb00] sm:$0xff]
    %v3705 = vld [vmem:[#allocation5 + $0xb08] sm:$0xff]
    %v3706 = vld [vmem:[#allocation5 + $0xb10] sm:$0xff]
    %v3707 = vld [vmem:[#allocation5 + $0xb18] sm:$0xff]
    %v3708 = vld [vmem:[#allocation5 + $0xb20] sm:$0xff]
    %v3709 = vld [vmem:[#allocation5 + $0xb28] sm:$0xff]
    %v3710 = vld [vmem:[#allocation5 + $0xb30] sm:$0xff]
    %v3711 = vld [vmem:[#allocation5 + $0xb38] sm:$0xff]
    %v3712 = vld [vmem:[#allocation5 + $0xb40] sm:$0xff]
    %v3713 = vld [vmem:[#allocation5 + $0xb48] sm:$0xff]
    %v3714 = vld [vmem:[#allocation5 + $0xb50] sm:$0xff]
    %v3715 = vld [vmem:[#allocation5 + $0xb58] sm:$0xff]
    %v3716 = vld [vmem:[#allocation5 + $0xb60] sm:$0xff]
    %v3717 = vld [vmem:[#allocation5 + $0xb68] sm:$0xff]
    %v3718 = vld [vmem:[#allocation5 + $0xb70] sm:$0xff]
    %v3719 = vld [vmem:[#allocation5 + $0xb78] sm:$0xff]
    %v3720 = vld [vmem:[#allocation5 + $0xb80] sm:$0xff]
    %v3721 = vld [vmem:[#allocation5 + $0xb88] sm:$0xff]
    %v3722 = vld [vmem:[#allocation5 + $0xb90] sm:$0xff]
    %v3723 = vld [vmem:[#allocation5 + $0xb98] sm:$0xff]
    %v3724 = vld [vmem:[#allocation5 + $0xba0] sm:$0xff]
    %v3725 = vld [vmem:[#allocation5 + $0xba8] sm:$0xff]
    %v3726 = vld [vmem:[#allocation5 + $0xbb0] sm:$0xff]
    %v3727 = vld [vmem:[#allocation5 + $0xbb8] sm:$0xff]
    %v3728 = vld [vmem:[#allocation5 + $0xbc0] sm:$0xff]
    %v3729 = vld [vmem:[#allocation5 + $0xbc8] sm:$0xff]
    %v3730 = vld [vmem:[#allocation5 + $0xbd0] sm:$0xff]
    %v3731 = vld [vmem:[#allocation5 + $0xbd8] sm:$0xff]
    %v3732 = vld [vmem:[#allocation5 + $0xbe0] sm:$0xff]
    %v3733 = vld [vmem:[#allocation5 + $0xbe8] sm:$0xff]
    %v3734 = vld [vmem:[#allocation5 + $0xbf0] sm:$0xff]
    %v3735 = vld [vmem:[#allocation5 + $0xbf8] sm:$0xff]
    %v3736 = vld [vmem:[#allocation16] sm:$0xff]
    %v3737 = vld [vmem:[#allocation16 + $0x8] sm:$0xf]
    %v3740 = vlaneseq
    %v3741 = vshrl.u32 %v3740, 7
    %v3742 = vsub.s32 0, %v3741
    %v3743 = vrot.slane %v3736, %v3742
    %v3744 = vlaneseq
    %v3745 = vshrl.u32 %v3744, 7
    %v3746 = vsub.s32 1, %v3745
    %v3747 = vrot.slane %v3736, %v3746
    %v3748 = vlaneseq
    %v3749 = vshrl.u32 %v3748, 7
    %v3750 = vsub.s32 2, %v3749
    %v3751 = vrot.slane %v3736, %v3750
    %v3752 = vlaneseq
    %v3753 = vshrl.u32 %v3752, 7
    %v3754 = vsub.s32 3, %v3753
    %v3755 = vrot.slane %v3736, %v3754
    %v3756 = vlaneseq
    %v3757 = vshrl.u32 %v3756, 7
    %v3758 = vsub.s32 4, %v3757
    %v3759 = vrot.slane %v3736, %v3758
    %v3760 = vlaneseq
    %v3761 = vshrl.u32 %v3760, 7
    %v3762 = vsub.s32 5, %v3761
    %v3763 = vrot.slane %v3736, %v3762
    %v3764 = vlaneseq
    %v3765 = vshrl.u32 %v3764, 7
    %v3766 = vsub.s32 6, %v3765
    %v3767 = vrot.slane %v3736, %v3766
    %v3768 = vlaneseq
    %v3769 = vshrl.u32 %v3768, 7
    %v3770 = vsub.s32 7, %v3769
    %v3771 = vrot.slane %v3736, %v3770
    %v3772 = vlaneseq
    %v3773 = vshrl.u32 %v3772, 7
    %v3774 = vsub.s32 0, %v3773
    %v3775 = vrot.slane %v3737, %v3774
    %v3776 = vlaneseq
    %v3777 = vshrl.u32 %v3776, 7
    %v3778 = vsub.s32 1, %v3777
    %v3779 = vrot.slane %v3737, %v3778
    %v3780 = vlaneseq
    %v3781 = vshrl.u32 %v3780, 7
    %v3782 = vsub.s32 2, %v3781
    %v3783 = vrot.slane %v3737, %v3782
    %v3784 = vlaneseq
    %v3785 = vshrl.u32 %v3784, 7
    %v3786 = vsub.s32 3, %v3785
    %v3787 = vrot.slane %v3737, %v3786
    %3800 = vmatprep.subr.bf16.mxu0 %v3353
    %3801 = vmatpush1.bf16.msra.mxu0 %v3352
    %3802 = vmatprep.subr.bf16.mxu0 %v3365
    %3803 = vmatpush1.bf16.msra.mxu0 %v3364
    %3804 = vmatprep.subr.bf16.mxu0 %v3377
    %3805 = vmatpush1.bf16.msra.mxu0 %v3376
    %3806 = vmatprep.subr.bf16.mxu0 %v3389
    %3807 = vmatpush1.bf16.msra.mxu0 %v3388
    %3808 = vmatprep.subr.bf16.mxu0 %v3401
    %3809 = vmatpush1.bf16.msra.mxu0 %v3400
    %3810 = vmatprep.subr.bf16.mxu0 %v3413
    %3811 = vmatpush1.bf16.msra.mxu0 %v3412
    %3812 = vmatprep.subr.bf16.mxu0 %v3425
    %3813 = vmatpush1.bf16.msra.mxu0 %v3424
    %3814 = vmatprep.subr.bf16.mxu0 %v3437
    %3815 = vmatpush1.bf16.msra.mxu0 %v3436
    %3816 = vmatprep.subr.bf16.mxu0 %v3449
    %3817 = vmatpush1.bf16.msra.mxu0 %v3448
    %3818 = vmatprep.subr.bf16.mxu0 %v3461
    %3819 = vmatpush1.bf16.msra.mxu0 %v3460
    %3820 = vmatprep.subr.bf16.mxu0 %v3473
    %3821 = vmatpush1.bf16.msra.mxu0 %v3472
    %3822 = vmatprep.subr.bf16.mxu0 %v3485
    %3823 = vmatpush1.bf16.msra.mxu0 %v3484
    %3824 = vmatprep.subr.bf16.mxu0 %v3497
    %3825 = vmatpush1.bf16.msra.mxu0 %v3496
    %3826 = vmatprep.subr.bf16.mxu0 %v3509
    %3827 = vmatpush1.bf16.msra.mxu0 %v3508
    %3828 = vmatprep.subr.bf16.mxu0 %v3521
    %3829 = vmatpush1.bf16.msra.mxu0 %v3520
    %3830 = vmatprep.subr.bf16.mxu0 %v3533
    %3831 = vmatpush1.bf16.msra.mxu0 %v3532
    %3832 = vmatprep.mubr.bf16.mxu0 %v3341
    %3833 = vmatmul.mubr.bf16.gmra.mrb[0].mxu0 %v3340
    %v3834 = vpop.f32.mrb[0].mxu0
    %v3835 = vadd.f32 %v3743, %v3834
    %v3836 = vpop.f32.mrb[0].mxu0
    %v3837 = vadd.f32 %v3747, %v3836
    %v3838 = vpop.f32.mrb[0].mxu0
    %v3839 = vadd.f32 %v3743, %v3838
    %v3840 = vpop.f32.mrb[0].mxu0
    %v3841 = vadd.f32 %v3747, %v3840
    %3842 = vmatprep.mubr.bf16.mxu0 %v3345
    %3843 = vmatmul.mubr.bf16.gmra.mrb[0].mxu0 %v3344
    %v3844 = vpop.f32.mrb[0].mxu0
    %v3845 = vadd.f32 %v3743, %v3844
    %v3846 = vpop.f32.mrb[0].mxu0
    %v3847 = vadd.f32 %v3747, %v3846
    %v3848 = vpop.f32.mrb[0].mxu0
    %v3849 = vadd.f32 %v3743, %v3848
    %v3850 = vpop.f32.mrb[0].mxu0
    %v3851 = vadd.f32 %v3747, %v3850
    %3852 = vdwg.mxu0
    %3853 = vmatprep.subr.bf16.mxu0 %v3545
    %3854 = vmatpush1.bf16.msra.mxu0 %v3544
    %3855 = vmatprep.subr.bf16.mxu0 %v3557
    %3856 = vmatpush1.bf16.msra.mxu0 %v3556
    %3857 = vmatprep.subr.bf16.mxu0 %v3569
    %3858 = vmatpush1.bf16.msra.mxu0 %v3568
    %3859 = vmatprep.subr.bf16.mxu0 %v3581
    %3860 = vmatpush1.bf16.msra.mxu0 %v3580
    %3861 = vmatprep.subr.bf16.mxu0 %v3593
    %3862 = vmatpush1.bf16.msra.mxu0 %v3592
    %3863 = vmatprep.subr.bf16.mxu0 %v3605
    %3864 = vmatpush1.bf16.msra.mxu0 %v3604
    %3865 = vmatprep.subr.bf16.mxu0 %v3617
    %3866 = vmatpush1.bf16.msra.mxu0 %v3616
    %3867 = vmatprep.subr.bf16.mxu0 %v3629
    %3868 = vmatpush1.bf16.msra.mxu0 %v3628
    %3869 = vmatprep.subr.bf16.mxu0 %v3641
    %3870 = vmatpush1.bf16.msra.mxu0 %v3640
    %3871 = vmatprep.subr.bf16.mxu0 %v3653
    %3872 = vmatpush1.bf16.msra.mxu0 %v3652
    %3873 = vmatprep.subr.bf16.mxu0 %v3665
    %3874 = vmatpush1.bf16.msra.mxu0 %v3664
    %3875 = vmatprep.subr.bf16.mxu0 %v3677
    %3876 = vmatpush1.bf16.msra.mxu0 %v3676
    %3877 = vmatprep.subr.bf16.mxu0 %v3689
    %3878 = vmatpush1.bf16.msra.mxu0 %v3688
    %3879 = vmatprep.subr.bf16.mxu0 %v3701
    %3880 = vmatpush1.bf16.msra.mxu0 %v3700
    %3881 = vmatprep.subr.bf16.mxu0 %v3713
    %3882 = vmatpush1.bf16.msra.mxu0 %v3712
    %3883 = vmatprep.subr.bf16.mxu0 %v3725
    %3884 = vmatpush1.bf16.msra.mxu0 %v3724
    %3885 = vmatprep.mubr.bf16.mxu0 %v3343
    %3886 = vmatmul.mubr.bf16.gmra.mrb[0].mxu0 %v3342
    %v3887 = vpop.f32.mrb[0].mxu0
    %v3888 = vadd.f32 %v3835, %v3887
    %v3889 = vpop.f32.mrb[0].mxu0
    %v3890 = vadd.f32 %v3837, %v3889
    %v3891 = vpop.f32.mrb[0].mxu0
    %v3892 = vadd.f32 %v3839, %v3891
    %v3893 = vpop.f32.mrb[0].mxu0
    %v3894 = vadd.f32 %v3841, %v3893
    %3895 = vmatprep.mubr.bf16.mxu0 %v3347
    %3896 = vmatmul.mubr.bf16.gmra.mrb[0].mxu0 %v3346
    %v3897 = vpop.f32.mrb[0].mxu0
    %v3898 = vadd.f32 %v3845, %v3897
    %v3899 = vpop.f32.mrb[0].mxu0
    %v3900 = vadd.f32 %v3847, %v3899
    %v3901 = vpop.f32.mrb[0].mxu0
    %v3902 = vadd.f32 %v3849, %v3901
    %v3903 = vpop.f32.mrb[0].mxu0
    %v3904 = vadd.f32 %v3851, %v3903
    %3905 = vdwg.mxu0
    %3906 = vmatprep.subr.bf16.mxu0 %v3355
    %3907 = vmatpush1.bf16.msra.mxu0 %v3354
    %3908 = vmatprep.subr.bf16.mxu0 %v3367
    %3909 = vmatpush1.bf16.msra.mxu0 %v3366
    %3910 = vmatprep.subr.bf16.mxu0 %v3379
    %3911 = vmatpush1.bf16.msra.mxu0 %v3378
    %3912 = vmatprep.subr.bf16.mxu0 %v3391
    %3913 = vmatpush1.bf16.msra.mxu0 %v3390
    %3914 = vmatprep.subr.bf16.mxu0 %v3403
    %3915 = vmatpush1.bf16.msra.mxu0 %v3402
    %3916 = vmatprep.subr.bf16.mxu0 %v3415
    %3917 = vmatpush1.bf16.msra.mxu0 %v3414
    %3918 = vmatprep.subr.bf16.mxu0 %v3427
    %3919 = vmatpush1.bf16.msra.mxu0 %v3426
    %3920 = vmatprep.subr.bf16.mxu0 %v3439
    %3921 = vmatpush1.bf16.msra.mxu0 %v3438
    %3922 = vmatprep.subr.bf16.mxu0 %v3451
    %3923 = vmatpush1.bf16.msra.mxu0 %v3450
    %3924 = vmatprep.subr.bf16.mxu0 %v3463
    %3925 = vmatpush1.bf16.msra.mxu0 %v3462
    %3926 = vmatprep.subr.bf16.mxu0 %v3475
    %3927 = vmatpush1.bf16.msra.mxu0 %v3474
    %3928 = vmatprep.subr.bf16.mxu0 %v3487
    %3929 = vmatpush1.bf16.msra.mxu0 %v3486
    %3930 = vmatprep.subr.bf16.mxu0 %v3499
    %3931 = vmatpush1.bf16.msra.mxu0 %v3498
    %3932 = vmatprep.subr.bf16.mxu0 %v3511
    %3933 = vmatpush1.bf16.msra.mxu0 %v3510
    %3934 = vmatprep.subr.bf16.mxu0 %v3523
    %3935 = vmatpush1.bf16.msra.mxu0 %v3522
    %3936 = vmatprep.subr.bf16.mxu0 %v3535
    %3937 = vmatpush1.bf16.msra.mxu0 %v3534
    %3938 = vmatprep.mubr.bf16.mxu0 %v3341
    %3939 = vmatmul.mubr.bf16.gmra.mrb[0].mxu0 %v3340
    %v3940 = vpop.f32.mrb[0].mxu0
    %v3941 = vadd.f32 %v3751, %v3940
    %v3942 = vpop.f32.mrb[0].mxu0
    %v3943 = vadd.f32 %v3755, %v3942
    %v3944 = vpop.f32.mrb[0].mxu0
    %v3945 = vadd.f32 %v3751, %v3944
    %v3946 = vpop.f32.mrb[0].mxu0
    %v3947 = vadd.f32 %v3755, %v3946
    %3948 = vmatprep.mubr.bf16.mxu0 %v3345
    %3949 = vmatmul.mubr.bf16.gmra.mrb[0].mxu0 %v3344
    %v3950 = vpop.f32.mrb[0].mxu0
    %v3951 = vadd.f32 %v3751, %v3950
    %v3952 = vpop.f32.mrb[0].mxu0
    %v3953 = vadd.f32 %v3755, %v3952
    %v3954 = vpop.f32.mrb[0].mxu0
    %v3955 = vadd.f32 %v3751, %v3954
    %v3956 = vpop.f32.mrb[0].mxu0
    %v3957 = vadd.f32 %v3755, %v3956
    %3958 = vdwg.mxu0
    %3959 = vmatprep.subr.bf16.mxu0 %v3547
    %3960 = vmatpush1.bf16.msra.mxu0 %v3546
    %3961 = vmatprep.subr.bf16.mxu0 %v3559
    %3962 = vmatpush1.bf16.msra.mxu0 %v3558
    %3963 = vmatprep.subr.bf16.mxu0 %v3571
    %3964 = vmatpush1.bf16.msra.mxu0 %v3570
    %3965 = vmatprep.subr.bf16.mxu0 %v3583
    %3966 = vmatpush1.bf16.msra.mxu0 %v3582
    %3967 = vmatprep.subr.bf16.mxu0 %v3595
    %3968 = vmatpush1.bf16.msra.mxu0 %v3594
    %3969 = vmatprep.subr.bf16.mxu0 %v3607
    %3970 = vmatpush1.bf16.msra.mxu0 %v3606
    %3971 = vmatprep.subr.bf16.mxu0 %v3619
    %3972 = vmatpush1.bf16.msra.mxu0 %v3618
    %3973 = vmatprep.subr.bf16.mxu0 %v3631
    %3974 = vmatpush1.bf16.msra.mxu0 %v3630
    %3975 = vmatprep.subr.bf16.mxu0 %v3643
    %3976 = vmatpush1.bf16.msra.mxu0 %v3642
    %3977 = vmatprep.subr.bf16.mxu0 %v3655
    %3978 = vmatpush1.bf16.msra.mxu0 %v3654
    %3979 = vmatprep.subr.bf16.mxu0 %v3667
    %3980 = vmatpush1.bf16.msra.mxu0 %v3666
    %3981 = vmatprep.subr.bf16.mxu0 %v3679
    %3982 = vmatpush1.bf16.msra.mxu0 %v3678
    %3983 = vmatprep.subr.bf16.mxu0 %v3691
    %3984 = vmatpush1.bf16.msra.mxu0 %v3690
    %3985 = vmatprep.subr.bf16.mxu0 %v3703
    %3986 = vmatpush1.bf16.msra.mxu0 %v3702
    %3987 = vmatprep.subr.bf16.mxu0 %v3715
    %3988 = vmatpush1.bf16.msra.mxu0 %v3714
    %3989 = vmatprep.subr.bf16.mxu0 %v3727
    %3990 = vmatpush1.bf16.msra.mxu0 %v3726
    %3991 = vmatprep.mubr.bf16.mxu0 %v3343
    %3992 = vmatmul.mubr.bf16.gmra.mrb[0].mxu0 %v3342
    %v3993 = vpop.f32.mrb[0].mxu0
    %v3994 = vadd.f32 %v3941, %v3993
    %v3995 = vpop.f32.mrb[0].mxu0
    %v3996 = vadd.f32 %v3943, %v3995
    %v3997 = vpop.f32.mrb[0].mxu0
    %v3998 = vadd.f32 %v3945, %v3997
    %v3999 = vpop.f32.mrb[0].mxu0
    %v4000 = vadd.f32 %v3947, %v3999
    %4001 = vmatprep.mubr.bf16.mxu0 %v3347
    %4002 = vmatmul.mubr.bf16.gmra.mrb[0].mxu0 %v3346
    %v4003 = vpop.f32.mrb[0].mxu0
    %v4004 = vadd.f32 %v3951, %v4003
    %v4005 = vpop.f32.mrb[0].mxu0
    %v4006 = vadd.f32 %v3953, %v4005
    %v4007 = vpop.f32.mrb[0].mxu0
    %v4008 = vadd.f32 %v3955, %v4007
    %v4009 = vpop.f32.mrb[0].mxu0
    %v4010 = vadd.f32 %v3957, %v4009
    %4011 = vdwg.mxu0
    %4012 = vmatprep.subr.bf16.mxu0 %v3357
    %4013 = vmatpush1.bf16.msra.mxu0 %v3356
    %4014 = vmatprep.subr.bf16.mxu0 %v3369
    %4015 = vmatpush1.bf16.msra.mxu0 %v3368
    %4016 = vmatprep.subr.bf16.mxu0 %v3381
    %4017 = vmatpush1.bf16.msra.mxu0 %v3380
    %4018 = vmatprep.subr.bf16.mxu0 %v3393
    %4019 = vmatpush1.bf16.msra.mxu0 %v3392
    %4020 = vmatprep.subr.bf16.mxu0 %v3405
    %4021 = vmatpush1.bf16.msra.mxu0 %v3404
    %4022 = vmatprep.subr.bf16.mxu0 %v3417
    %4023 = vmatpush1.bf16.msra.mxu0 %v3416
    %4024 = vmatprep.subr.bf16.mxu0 %v3429
    %4025 = vmatpush1.bf16.msra.mxu0 %v3428
    %4026 = vmatprep.subr.bf16.mxu0 %v3441
    %4027 = vmatpush1.bf16.msra.mxu0 %v3440
    %4028 = vmatprep.subr.bf16.mxu0 %v3453
    %4029 = vmatpush1.bf16.msra.mxu0 %v3452
    %4030 = vmatprep.subr.bf16.mxu0 %v3465
    %4031 = vmatpush1.bf16.msra.mxu0 %v3464
    %4032 = vmatprep.subr.bf16.mxu0 %v3477
    %4033 = vmatpush1.bf16.msra.mxu0 %v3476
    %4034 = vmatprep.subr.bf16.mxu0 %v3489
    %4035 = vmatpush1.bf16.msra.mxu0 %v3488
    %4036 = vmatprep.subr.bf16.mxu0 %v3501
    %4037 = vmatpush1.bf16.msra.mxu0 %v3500
    %4038 = vmatprep.subr.bf16.mxu0 %v3513
    %4039 = vmatpush1.bf16.msra.mxu0 %v3512
    %4040 = vmatprep.subr.bf16.mxu0 %v3525
    %4041 = vmatpush1.bf16.msra.mxu0 %v3524
    %4042 = vmatprep.subr.bf16.mxu0 %v3537
    %4043 = vmatpush1.bf16.msra.mxu0 %v3536
    %4044 = vmatprep.mubr.bf16.mxu0 %v3341
    %4045 = vmatmul.mubr.bf16.gmra.mrb[0].mxu0 %v3340
    %v4046 = vpop.f32.mrb[0].mxu0
    %v4047 = vadd.f32 %v3759, %v4046
    %v4048 = vpop.f32.mrb[0].mxu0
    %v4049 = vadd.f32 %v3763, %v4048
    %v4050 = vpop.f32.mrb[0].mxu0
    %v4051 = vadd.f32 %v3759, %v4050
    %v4052 = vpop.f32.mrb[0].mxu0
    %v4053 = vadd.f32 %v3763, %v4052
    %4054 = vmatprep.mubr.bf16.mxu0 %v3345
    %4055 = vmatmul.mubr.bf16.gmra.mrb[0].mxu0 %v3344
    %v4056 = vpop.f32.mrb[0].mxu0
    %v4057 = vadd.f32 %v3759, %v4056
    %v4058 = vpop.f32.mrb[0].mxu0
    %v4059 = vadd.f32 %v3763, %v4058
    %v4060 = vpop.f32.mrb[0].mxu0
    %v4061 = vadd.f32 %v3759, %v4060
    %v4062 = vpop.f32.mrb[0].mxu0
    %v4063 = vadd.f32 %v3763, %v4062
    %4064 = vdwg.mxu0
    %4065 = vmatprep.subr.bf16.mxu0 %v3549
    %4066 = vmatpush1.bf16.msra.mxu0 %v3548
    %4067 = vmatprep.subr.bf16.mxu0 %v3561
    %4068 = vmatpush1.bf16.msra.mxu0 %v3560
    %4069 = vmatprep.subr.bf16.mxu0 %v3573
    %4070 = vmatpush1.bf16.msra.mxu0 %v3572
    %4071 = vmatprep.subr.bf16.mxu0 %v3585
    %4072 = vmatpush1.bf16.msra.mxu0 %v3584
    %4073 = vmatprep.subr.bf16.mxu0 %v3597
    %4074 = vmatpush1.bf16.msra.mxu0 %v3596
    %4075 = vmatprep.subr.bf16.mxu0 %v3609
    %4076 = vmatpush1.bf16.msra.mxu0 %v3608
    %4077 = vmatprep.subr.bf16.mxu0 %v3621
    %4078 = vmatpush1.bf16.msra.mxu0 %v3620
    %4079 = vmatprep.subr.bf16.mxu0 %v3633
    %4080 = vmatpush1.bf16.msra.mxu0 %v3632
    %4081 = vmatprep.subr.bf16.mxu0 %v3645
    %4082 = vmatpush1.bf16.msra.mxu0 %v3644
    %4083 = vmatprep.subr.bf16.mxu0 %v3657
    %4084 = vmatpush1.bf16.msra.mxu0 %v3656
    %4085 = vmatprep.subr.bf16.mxu0 %v3669
    %4086 = vmatpush1.bf16.msra.mxu0 %v3668
    %4087 = vmatprep.subr.bf16.mxu0 %v3681
    %4088 = vmatpush1.bf16.msra.mxu0 %v3680
    %4089 = vmatprep.subr.bf16.mxu0 %v3693
    %4090 = vmatpush1.bf16.msra.mxu0 %v3692
    %4091 = vmatprep.subr.bf16.mxu0 %v3705
    %4092 = vmatpush1.bf16.msra.mxu0 %v3704
    %4093 = vmatprep.subr.bf16.mxu0 %v3717
    %4094 = vmatpush1.bf16.msra.mxu0 %v3716
    %4095 = vmatprep.subr.bf16.mxu0 %v3729
    %4096 = vmatpush1.bf16.msra.mxu0 %v3728
    %4097 = vmatprep.mubr.bf16.mxu0 %v3343
    %4098 = vmatmul.mubr.bf16.gmra.mrb[0].mxu0 %v3342
    %v4099 = vpop.f32.mrb[0].mxu0
    %v4100 = vadd.f32 %v4047, %v4099
    %v4101 = vpop.f32.mrb[0].mxu0
    %v4102 = vadd.f32 %v4049, %v4101
    %v4103 = vpop.f32.mrb[0].mxu0
    %v4104 = vadd.f32 %v4051, %v4103
    %v4105 = vpop.f32.mrb[0].mxu0
    %v4106 = vadd.f32 %v4053, %v4105
    %4107 = vmatprep.mubr.bf16.mxu0 %v3347
    %4108 = vmatmul.mubr.bf16.gmra.mrb[0].mxu0 %v3346
    %v4109 = vpop.f32.mrb[0].mxu0
    %v4110 = vadd.f32 %v4057, %v4109
    %v4111 = vpop.f32.mrb[0].mxu0
    %v4112 = vadd.f32 %v4059, %v4111
    %v4113 = vpop.f32.mrb[0].mxu0
    %v4114 = vadd.f32 %v4061, %v4113
    %v4115 = vpop.f32.mrb[0].mxu0
    %v4116 = vadd.f32 %v4063, %v4115
    %4117 = vdwg.mxu0
    %4118 = vmatprep.subr.bf16.mxu0 %v3359
    %4119 = vmatpush1.bf16.msra.mxu0 %v3358
    %4120 = vmatprep.subr.bf16.mxu0 %v3371
    %4121 = vmatpush1.bf16.msra.mxu0 %v3370
    %4122 = vmatprep.subr.bf16.mxu0 %v3383
    %4123 = vmatpush1.bf16.msra.mxu0 %v3382
    %4124 = vmatprep.subr.bf16.mxu0 %v3395
    %4125 = vmatpush1.bf16.msra.mxu0 %v3394
    %4126 = vmatprep.subr.bf16.mxu0 %v3407
    %4127 = vmatpush1.bf16.msra.mxu0 %v3406
    %4128 = vmatprep.subr.bf16.mxu0 %v3419
    %4129 = vmatpush1.bf16.msra.mxu0 %v3418
    %4130 = vmatprep.subr.bf16.mxu0 %v3431
    %4131 = vmatpush1.bf16.msra.mxu0 %v3430
    %4132 = vmatprep.subr.bf16.mxu0 %v3443
    %4133 = vmatpush1.bf16.msra.mxu0 %v3442
    %4134 = vmatprep.subr.bf16.mxu0 %v3455
    %4135 = vmatpush1.bf16.msra.mxu0 %v3454
    %4136 = vmatprep.subr.bf16.mxu0 %v3467
    %4137 = vmatpush1.bf16.msra.mxu0 %v3466
    %4138 = vmatprep.subr.bf16.mxu0 %v3479
    %4139 = vmatpush1.bf16.msra.mxu0 %v3478
    %4140 = vmatprep.subr.bf16.mxu0 %v3491
    %4141 = vmatpush1.bf16.msra.mxu0 %v3490
    %4142 = vmatprep.subr.bf16.mxu0 %v3503
    %4143 = vmatpush1.bf16.msra.mxu0 %v3502
    %4144 = vmatprep.subr.bf16.mxu0 %v3515
    %4145 = vmatpush1.bf16.msra.mxu0 %v3514
    %4146 = vmatprep.subr.bf16.mxu0 %v3527
    %4147 = vmatpush1.bf16.msra.mxu0 %v3526
    %4148 = vmatprep.subr.bf16.mxu0 %v3539
    %4149 = vmatpush1.bf16.msra.mxu0 %v3538
    %4150 = vmatprep.mubr.bf16.mxu0 %v3341
    %4151 = vmatmul.mubr.bf16.gmra.mrb[0].mxu0 %v3340
    %v4152 = vpop.f32.mrb[0].mxu0
    %v4153 = vadd.f32 %v3767, %v4152
    %v4154 = vpop.f32.mrb[0].mxu0
    %v4155 = vadd.f32 %v3771, %v4154
    %v4156 = vpop.f32.mrb[0].mxu0
    %v4157 = vadd.f32 %v3767, %v4156
    %v4158 = vpop.f32.mrb[0].mxu0
    %v4159 = vadd.f32 %v3771, %v4158
    %4160 = vmatprep.mubr.bf16.mxu0 %v3345
    %4161 = vmatmul.mubr.bf16.gmra.mrb[0].mxu0 %v3344
    %v4162 = vpop.f32.mrb[0].mxu0
    %v4163 = vadd.f32 %v3767, %v4162
    %v4164 = vpop.f32.mrb[0].mxu0
    %v4165 = vadd.f32 %v3771, %v4164
    %v4166 = vpop.f32.mrb[0].mxu0
    %v4167 = vadd.f32 %v3767, %v4166
    %v4168 = vpop.f32.mrb[0].mxu0
    %v4169 = vadd.f32 %v3771, %v4168
    %4170 = vdwg.mxu0
    %4171 = vmatprep.subr.bf16.mxu0 %v3551
    %4172 = vmatpush1.bf16.msra.mxu0 %v3550
    %4173 = vmatprep.subr.bf16.mxu0 %v3563
    %4174 = vmatpush1.bf16.msra.mxu0 %v3562
    %4175 = vmatprep.subr.bf16.mxu0 %v3575
    %4176 = vmatpush1.bf16.msra.mxu0 %v3574
    %4177 = vmatprep.subr.bf16.mxu0 %v3587
    %4178 = vmatpush1.bf16.msra.mxu0 %v3586
    %4179 = vmatprep.subr.bf16.mxu0 %v3599
    %4180 = vmatpush1.bf16.msra.mxu0 %v3598
    %4181 = vmatprep.subr.bf16.mxu0 %v3611
    %4182 = vmatpush1.bf16.msra.mxu0 %v3610
    %4183 = vmatprep.subr.bf16.mxu0 %v3623
    %4184 = vmatpush1.bf16.msra.mxu0 %v3622
    %4185 = vmatprep.subr.bf16.mxu0 %v3635
    %4186 = vmatpush1.bf16.msra.mxu0 %v3634
    %4187 = vmatprep.subr.bf16.mxu0 %v3647
    %4188 = vmatpush1.bf16.msra.mxu0 %v3646
    %4189 = vmatprep.subr.bf16.mxu0 %v3659
    %4190 = vmatpush1.bf16.msra.mxu0 %v3658
    %4191 = vmatprep.subr.bf16.mxu0 %v3671
    %4192 = vmatpush1.bf16.msra.mxu0 %v3670
    %4193 = vmatprep.subr.bf16.mxu0 %v3683
    %4194 = vmatpush1.bf16.msra.mxu0 %v3682
    %4195 = vmatprep.subr.bf16.mxu0 %v3695
    %4196 = vmatpush1.bf16.msra.mxu0 %v3694
    %4197 = vmatprep.subr.bf16.mxu0 %v3707
    %4198 = vmatpush1.bf16.msra.mxu0 %v3706
    %4199 = vmatprep.subr.bf16.mxu0 %v3719
    %4200 = vmatpush1.bf16.msra.mxu0 %v3718
    %4201 = vmatprep.subr.bf16.mxu0 %v3731
    %4202 = vmatpush1.bf16.msra.mxu0 %v3730
    %4203 = vmatprep.mubr.bf16.mxu0 %v3343
    %4204 = vmatmul.mubr.bf16.gmra.mrb[0].mxu0 %v3342
    %v4205 = vpop.f32.mrb[0].mxu0
    %v4206 = vadd.f32 %v4153, %v4205
    %v4207 = vpop.f32.mrb[0].mxu0
    %v4208 = vadd.f32 %v4155, %v4207
    %v4209 = vpop.f32.mrb[0].mxu0
    %v4210 = vadd.f32 %v4157, %v4209
    %v4211 = vpop.f32.mrb[0].mxu0
    %v4212 = vadd.f32 %v4159, %v4211
    %4213 = vmatprep.mubr.bf16.mxu0 %v3347
    %4214 = vmatmul.mubr.bf16.gmra.mrb[0].mxu0 %v3346
    %v4215 = vpop.f32.mrb[0].mxu0
    %v4216 = vadd.f32 %v4163, %v4215
    %v4217 = vpop.f32.mrb[0].mxu0
    %v4218 = vadd.f32 %v4165, %v4217
    %v4219 = vpop.f32.mrb[0].mxu0
    %v4220 = vadd.f32 %v4167, %v4219
    %v4221 = vpop.f32.mrb[0].mxu0
    %v4222 = vadd.f32 %v4169, %v4221
    %4223 = vdwg.mxu0
    %4224 = vmatprep.subr.bf16.mxu0 %v3361
    %4225 = vmatpush1.bf16.msra.mxu0 %v3360
    %4226 = vmatprep.subr.bf16.mxu0 %v3373
    %4227 = vmatpush1.bf16.msra.mxu0 %v3372
    %4228 = vmatprep.subr.bf16.mxu0 %v3385
    %4229 = vmatpush1.bf16.msra.mxu0 %v3384
    %4230 = vmatprep.subr.bf16.mxu0 %v3397
    %4231 = vmatpush1.bf16.msra.mxu0 %v3396
    %4232 = vmatprep.subr.bf16.mxu0 %v3409
    %4233 = vmatpush1.bf16.msra.mxu0 %v3408
    %4234 = vmatprep.subr.bf16.mxu0 %v3421
    %4235 = vmatpush1.bf16.msra.mxu0 %v3420
    %4236 = vmatprep.subr.bf16.mxu0 %v3433
    %4237 = vmatpush1.bf16.msra.mxu0 %v3432
    %4238 = vmatprep.subr.bf16.mxu0 %v3445
    %4239 = vmatpush1.bf16.msra.mxu0 %v3444
    %4240 = vmatprep.subr.bf16.mxu0 %v3457
    %4241 = vmatpush1.bf16.msra.mxu0 %v3456
    %4242 = vmatprep.subr.bf16.mxu0 %v3469
    %4243 = vmatpush1.bf16.msra.mxu0 %v3468
    %4244 = vmatprep.subr.bf16.mxu0 %v3481
    %4245 = vmatpush1.bf16.msra.mxu0 %v3480
    %4246 = vmatprep.subr.bf16.mxu0 %v3493
    %4247 = vmatpush1.bf16.msra.mxu0 %v3492
    %4248 = vmatprep.subr.bf16.mxu0 %v3505
    %4249 = vmatpush1.bf16.msra.mxu0 %v3504
    %4250 = vmatprep.subr.bf16.mxu0 %v3517
    %4251 = vmatpush1.bf16.msra.mxu0 %v3516
    %4252 = vmatprep.subr.bf16.mxu0 %v3529
    %4253 = vmatpush1.bf16.msra.mxu0 %v3528
    %4254 = vmatprep.subr.bf16.mxu0 %v3541
    %4255 = vmatpush1.bf16.msra.mxu0 %v3540
    %4256 = vmatprep.mubr.bf16.mxu0 %v3341
    %4257 = vmatmul.mubr.bf16.gmra.mrb[0].mxu0 %v3340
    %v4258 = vpop.f32.mrb[0].mxu0
    %v4259 = vadd.f32 %v3775, %v4258
    %v4260 = vpop.f32.mrb[0].mxu0
    %v4261 = vadd.f32 %v3779, %v4260
    %v4262 = vpop.f32.mrb[0].mxu0
    %v4263 = vadd.f32 %v3775, %v4262
    %v4264 = vpop.f32.mrb[0].mxu0
    %v4265 = vadd.f32 %v3779, %v4264
    %4266 = vmatprep.mubr.bf16.mxu0 %v3345
    %4267 = vmatmul.mubr.bf16.gmra.mrb[0].mxu0 %v3344
    %v4268 = vpop.f32.mrb[0].mxu0
    %v4269 = vadd.f32 %v3775, %v4268
    %v4270 = vpop.f32.mrb[0].mxu0
    %v4271 = vadd.f32 %v3779, %v4270
    %v4272 = vpop.f32.mrb[0].mxu0
    %v4273 = vadd.f32 %v3775, %v4272
    %v4274 = vpop.f32.mrb[0].mxu0
    %v4275 = vadd.f32 %v3779, %v4274
    %4276 = vdwg.mxu0
    %4277 = vmatprep.subr.bf16.mxu0 %v3553
    %4278 = vmatpush1.bf16.msra.mxu0 %v3552
    %4279 = vmatprep.subr.bf16.mxu0 %v3565
    %4280 = vmatpush1.bf16.msra.mxu0 %v3564
    %4281 = vmatprep.subr.bf16.mxu0 %v3577
    %4282 = vmatpush1.bf16.msra.mxu0 %v3576
    %4283 = vmatprep.subr.bf16.mxu0 %v3589
    %4284 = vmatpush1.bf16.msra.mxu0 %v3588
    %4285 = vmatprep.subr.bf16.mxu0 %v3601
    %4286 = vmatpush1.bf16.msra.mxu0 %v3600
    %4287 = vmatprep.subr.bf16.mxu0 %v3613
    %4288 = vmatpush1.bf16.msra.mxu0 %v3612
    %4289 = vmatprep.subr.bf16.mxu0 %v3625
    %4290 = vmatpush1.bf16.msra.mxu0 %v3624
    %4291 = vmatprep.subr.bf16.mxu0 %v3637
    %4292 = vmatpush1.bf16.msra.mxu0 %v3636
    %4293 = vmatprep.subr.bf16.mxu0 %v3649
    %4294 = vmatpush1.bf16.msra.mxu0 %v3648
    %4295 = vmatprep.subr.bf16.mxu0 %v3661
    %4296 = vmatpush1.bf16.msra.mxu0 %v3660
    %4297 = vmatprep.subr.bf16.mxu0 %v3673
    %4298 = vmatpush1.bf16.msra.mxu0 %v3672
    %4299 = vmatprep.subr.bf16.mxu0 %v3685
    %4300 = vmatpush1.bf16.msra.mxu0 %v3684
    %4301 = vmatprep.subr.bf16.mxu0 %v3697
    %4302 = vmatpush1.bf16.msra.mxu0 %v3696
    %4303 = vmatprep.subr.bf16.mxu0 %v3709
    %4304 = vmatpush1.bf16.msra.mxu0 %v3708
    %4305 = vmatprep.subr.bf16.mxu0 %v3721
    %4306 = vmatpush1.bf16.msra.mxu0 %v3720
    %4307 = vmatprep.subr.bf16.mxu0 %v3733
    %4308 = vmatpush1.bf16.msra.mxu0 %v3732
    %4309 = vmatprep.mubr.bf16.mxu0 %v3343
    %4310 = vmatmul.mubr.bf16.gmra.mrb[0].mxu0 %v3342
    %v4311 = vpop.f32.mrb[0].mxu0
    %v4312 = vadd.f32 %v4259, %v4311
    %v4313 = vpop.f32.mrb[0].mxu0
    %v4314 = vadd.f32 %v4261, %v4313
    %v4315 = vpop.f32.mrb[0].mxu0
    %v4316 = vadd.f32 %v4263, %v4315
    %v4317 = vpop.f32.mrb[0].mxu0
    %v4318 = vadd.f32 %v4265, %v4317
    %4319 = vmatprep.mubr.bf16.mxu0 %v3347
    %4320 = vmatmul.mubr.bf16.gmra.mrb[0].mxu0 %v3346
    %v4321 = vpop.f32.mrb[0].mxu0
    %v4322 = vadd.f32 %v4269, %v4321
    %v4323 = vpop.f32.mrb[0].mxu0
    %v4324 = vadd.f32 %v4271, %v4323
    %v4325 = vpop.f32.mrb[0].mxu0
    %v4326 = vadd.f32 %v4273, %v4325
    %v4327 = vpop.f32.mrb[0].mxu0
    %v4328 = vadd.f32 %v4275, %v4327
    %4329 = vdwg.mxu0
    %4330 = vmatprep.subr.bf16.mxu0 %v3363
    %4331 = vmatpush1.bf16.msra.mxu0 %v3362
    %4332 = vmatprep.subr.bf16.mxu0 %v3375
    %4333 = vmatpush1.bf16.msra.mxu0 %v3374
    %4334 = vmatprep.subr.bf16.mxu0 %v3387
    %4335 = vmatpush1.bf16.msra.mxu0 %v3386
    %4336 = vmatprep.subr.bf16.mxu0 %v3399
    %4337 = vmatpush1.bf16.msra.mxu0 %v3398
    %4338 = vmatprep.subr.bf16.mxu0 %v3411
    %4339 = vmatpush1.bf16.msra.mxu0 %v3410
    %4340 = vmatprep.subr.bf16.mxu0 %v3423
    %4341 = vmatpush1.bf16.msra.mxu0 %v3422
    %4342 = vmatprep.subr.bf16.mxu0 %v3435
    %4343 = vmatpush1.bf16.msra.mxu0 %v3434
    %4344 = vmatprep.subr.bf16.mxu0 %v3447
    %4345 = vmatpush1.bf16.msra.mxu0 %v3446
    %4346 = vmatprep.subr.bf16.mxu0 %v3459
    %4347 = vmatpush1.bf16.msra.mxu0 %v3458
    %4348 = vmatprep.subr.bf16.mxu0 %v3471
    %4349 = vmatpush1.bf16.msra.mxu0 %v3470
    %4350 = vmatprep.subr.bf16.mxu0 %v3483
    %4351 = vmatpush1.bf16.msra.mxu0 %v3482
    %4352 = vmatprep.subr.bf16.mxu0 %v3495
    %4353 = vmatpush1.bf16.msra.mxu0 %v3494
    %4354 = vmatprep.subr.bf16.mxu0 %v3507
    %4355 = vmatpush1.bf16.msra.mxu0 %v3506
    %4356 = vmatprep.subr.bf16.mxu0 %v3519
    %4357 = vmatpush1.bf16.msra.mxu0 %v3518
    %4358 = vmatprep.subr.bf16.mxu0 %v3531
    %4359 = vmatpush1.bf16.msra.mxu0 %v3530
    %4360 = vmatprep.subr.bf16.mxu0 %v3543
    %4361 = vmatpush1.bf16.msra.mxu0 %v3542
    %4362 = vmatprep.mubr.bf16.mxu0 %v3341
    %4363 = vmatmul.mubr.bf16.gmra.mrb[0].mxu0 %v3340
    %v4364 = vpop.f32.mrb[0].mxu0
    %v4365 = vadd.f32 %v3783, %v4364
    %v4366 = vpop.f32.mrb[0].mxu0
    %v4367 = vadd.f32 %v3787, %v4366
    %v4368 = vpop.f32.mrb[0].mxu0
    %v4369 = vadd.f32 %v3783, %v4368
    %v4370 = vpop.f32.mrb[0].mxu0
    %v4371 = vadd.f32 %v3787, %v4370
    %4372 = vmatprep.mubr.bf16.mxu0 %v3345
    %4373 = vmatmul.mubr.bf16.gmra.mrb[0].mxu0 %v3344
    %v4374 = vpop.f32.mrb[0].mxu0
    %v4375 = vadd.f32 %v3783, %v4374
    %v4376 = vpop.f32.mrb[0].mxu0
    %v4377 = vadd.f32 %v3787, %v4376
    %v4378 = vpop.f32.mrb[0].mxu0
    %v4379 = vadd.f32 %v3783, %v4378
    %v4380 = vpop.f32.mrb[0].mxu0
    %v4381 = vadd.f32 %v3787, %v4380
    %4382 = vdwg.mxu0
    %4383 = vmatprep.subr.bf16.mxu0 %v3555
    %4384 = vmatpush1.bf16.msra.mxu0 %v3554
    %4385 = vmatprep.subr.bf16.mxu0 %v3567
    %4386 = vmatpush1.bf16.msra.mxu0 %v3566
    %4387 = vmatprep.subr.bf16.mxu0 %v3579
    %4388 = vmatpush1.bf16.msra.mxu0 %v3578
    %4389 = vmatprep.subr.bf16.mxu0 %v3591
    %4390 = vmatpush1.bf16.msra.mxu0 %v3590
    %4391 = vmatprep.subr.bf16.mxu0 %v3603
    %4392 = vmatpush1.bf16.msra.mxu0 %v3602
    %4393 = vmatprep.subr.bf16.mxu0 %v3615
    %4394 = vmatpush1.bf16.msra.mxu0 %v3614
    %4395 = vmatprep.subr.bf16.mxu0 %v3627
    %4396 = vmatpush1.bf16.msra.mxu0 %v3626
    %4397 = vmatprep.subr.bf16.mxu0 %v3639
    %4398 = vmatpush1.bf16.msra.mxu0 %v3638
    %4399 = vmatprep.subr.bf16.mxu0 %v3651
    %4400 = vmatpush1.bf16.msra.mxu0 %v3650
    %4401 = vmatprep.subr.bf16.mxu0 %v3663
    %4402 = vmatpush1.bf16.msra.mxu0 %v3662
    %4403 = vmatprep.subr.bf16.mxu0 %v3675
    %4404 = vmatpush1.bf16.msra.mxu0 %v3674
    %4405 = vmatprep.subr.bf16.mxu0 %v3687
    %4406 = vmatpush1.bf16.msra.mxu0 %v3686
    %4407 = vmatprep.subr.bf16.mxu0 %v3699
    %4408 = vmatpush1.bf16.msra.mxu0 %v3698
    %4409 = vmatprep.subr.bf16.mxu0 %v3711
    %4410 = vmatpush1.bf16.msra.mxu0 %v3710
    %4411 = vmatprep.subr.bf16.mxu0 %v3723
    %4412 = vmatpush1.bf16.msra.mxu0 %v3722
    %4413 = vmatprep.subr.bf16.mxu0 %v3735
    %4414 = vmatpush1.bf16.msra.mxu0 %v3734
    %4415 = vmatprep.mubr.bf16.mxu0 %v3343
    %4416 = vmatmul.mubr.bf16.gmra.mrb[0].mxu0 %v3342
    %v4417 = vpop.f32.mrb[0].mxu0
    %v4418 = vadd.f32 %v4365, %v4417
    %v4419 = vpop.f32.mrb[0].mxu0
    %v4420 = vadd.f32 %v4367, %v4419
    %v4421 = vpop.f32.mrb[0].mxu0
    %v4422 = vadd.f32 %v4369, %v4421
    %v4423 = vpop.f32.mrb[0].mxu0
    %v4424 = vadd.f32 %v4371, %v4423
    %4425 = vmatprep.mubr.bf16.mxu0 %v3347
    %4426 = vmatmul.mubr.bf16.gmra.mrb[0].mxu0 %v3346
    %v4427 = vpop.f32.mrb[0].mxu0
    %v4428 = vadd.f32 %v4375, %v4427
    %v4429 = vpop.f32.mrb[0].mxu0
    %v4430 = vadd.f32 %v4377, %v4429
    %v4431 = vpop.f32.mrb[0].mxu0
    %v4432 = vadd.f32 %v4379, %v4431
    %v4433 = vpop.f32.mrb[0].mxu0
    %v4434 = vadd.f32 %v4381, %v4433
    %4435 = vdwg.mxu0
    %v4436 = vmax.f32 %v3888, 0.0
    %v4437 = vmax.f32 %v3890, 0.0
    %v4438 = vmax.f32 %v3994, 0.0
    %v4439 = vmax.f32 %v3996, 0.0
    %v4440 = vmax.f32 %v4100, 0.0
    %v4441 = vmax.f32 %v4102, 0.0
    %v4442 = vmax.f32 %v4206, 0.0
    %v4443 = vmax.f32 %v4208, 0.0
    %v4444 = vmax.f32 %v4312, 0.0
    %v4445 = vmax.f32 %v4314, 0.0
    %v4446 = vmax.f32 %v4418, 0.0
    %v4447 = vmax.f32 %v4420, 0.0
    %v4448 = vmax.f32 %v3892, 0.0
    %v4449 = vmax.f32 %v3894, 0.0
    %v4450 = vmax.f32 %v3998, 0.0
    %v4451 = vmax.f32 %v4000, 0.0
    %v4452 = vmax.f32 %v4104, 0.0
    %v4453 = vmax.f32 %v4106, 0.0
    %v4454 = vmax.f32 %v4210, 0.0
    %v4455 = vmax.f32 %v4212, 0.0
    %v4456 = vmax.f32 %v4316, 0.0
    %v4457 = vmax.f32 %v4318, 0.0
    %v4458 = vmax.f32 %v4422, 0.0
    %v4459 = vmax.f32 %v4424, 0.0
    %v4460 = vmax.f32 %v3898, 0.0
    %v4461 = vmax.f32 %v3900, 0.0
    %v4462 = vmax.f32 %v4004, 0.0
    %v4463 = vmax.f32 %v4006, 0.0
    %v4464 = vmax.f32 %v4110, 0.0
    %v4465 = vmax.f32 %v4112, 0.0
    %v4466 = vmax.f32 %v4216, 0.0
    %v4467 = vmax.f32 %v4218, 0.0
    %v4468 = vmax.f32 %v4322, 0.0
    %v4469 = vmax.f32 %v4324, 0.0
    %v4470 = vmax.f32 %v4428, 0.0
    %v4471 = vmax.f32 %v4430, 0.0
    %v4472 = vmax.f32 %v3902, 0.0
    %v4473 = vmax.f32 %v3904, 0.0
    %v4474 = vmax.f32 %v4008, 0.0
    %v4475 = vmax.f32 %v4010, 0.0
    %v4476 = vmax.f32 %v4114, 0.0
    %v4477 = vmax.f32 %v4116, 0.0
    %v4478 = vmax.f32 %v4220, 0.0
    %v4479 = vmax.f32 %v4222, 0.0
    %v4480 = vmax.f32 %v4326, 0.0
    %v4481 = vmax.f32 %v4328, 0.0
    %v4482 = vmax.f32 %v4432, 0.0
    %v4483 = vmax.f32 %v4434, 0.0
    %v4484 = vld [vmem:[#allocation19] sm:$0x1]
    %v4485 = vpack.c.bf16 %v4448, %v4436
    %v4486 = vpack.c.bf16 %v4449, %v4437
    %v4487 = vpack.c.bf16 %v4450, %v4438
    %v4488 = vpack.c.bf16 %v4451, %v4439
    %v4489 = vpack.c.bf16 %v4452, %v4440
    %v4490 = vpack.c.bf16 %v4453, %v4441
    %v4491 = vpack.c.bf16 %v4454, %v4442
    %v4492 = vpack.c.bf16 %v4455, %v4443
    %v4493 = vpack.c.bf16 %v4456, %v4444
    %v4494 = vpack.c.bf16 %v4457, %v4445
    %v4495 = vpack.c.bf16 %v4458, %v4446
    %v4496 = vpack.c.bf16 %v4459, %v4447
    %v4497 = vpack.c.bf16 %v4472, %v4460
    %v4498 = vpack.c.bf16 %v4473, %v4461
    %v4499 = vpack.c.bf16 %v4474, %v4462
    %v4500 = vpack.c.bf16 %v4475, %v4463
    %v4501 = vpack.c.bf16 %v4476, %v4464
    %v4502 = vpack.c.bf16 %v4477, %v4465
    %v4503 = vpack.c.bf16 %v4478, %v4466
    %v4504 = vpack.c.bf16 %v4479, %v4467
    %v4505 = vpack.c.bf16 %v4480, %v4468
    %v4506 = vpack.c.bf16 %v4481, %v4469
    %v4507 = vpack.c.bf16 %v4482, %v4470
    %v4508 = vpack.c.bf16 %v4483, %v4471
    %vm4509 = vcmask 261120
    %v4511 = vsel %vm4509, %v4484, 0
    %4513 = vmatprep.subr.bf16.mxu0 %v4486
    %4514 = vmatpush1.bf16.msra.mxu0 %v4485
    %4515 = vmatprep.subr.bf16.mxu0 %v4498
    %4516 = vmatpush1.bf16.msra.mxu0 %v4497
    %4517 = vmatprep.subr.bf16.mxu0 0
    %4518 = vmatpush1.bf16.msra.mxu0 0
    %4519 = vmatprep.subr.bf16.mxu0 0
    %4520 = vmatpush1.bf16.msra.mxu0 0
    %4521 = vmatprep.subr.bf16.mxu0 0
    %4522 = vmatpush1.bf16.msra.mxu0 0
    %4523 = vmatprep.subr.bf16.mxu0 0
    %4524 = vmatpush1.bf16.msra.mxu0 0
    %4525 = vmatprep.subr.bf16.mxu0 0
    %4526 = vmatpush1.bf16.msra.mxu0 0
    %4527 = vmatprep.subr.bf16.mxu0 0
    %4528 = vmatpush1.bf16.msra.mxu0 0
    %4529 = vmatprep.subr.bf16.mxu0 0
    %4530 = vmatpush1.bf16.msra.mxu0 0
    %4531 = vmatprep.subr.bf16.mxu0 0
    %4532 = vmatpush1.bf16.msra.mxu0 0
    %4533 = vmatprep.subr.bf16.mxu0 0
    %4534 = vmatpush1.bf16.msra.mxu0 0
    %4535 = vmatprep.subr.bf16.mxu0 0
    %4536 = vmatpush1.bf16.msra.mxu0 0
    %4537 = vmatprep.subr.bf16.mxu0 0
    %4538 = vmatpush1.bf16.msra.mxu0 0
    %4539 = vmatprep.subr.bf16.mxu0 0
    %4540 = vmatpush1.bf16.msra.mxu0 0
    %4541 = vmatprep.subr.bf16.mxu0 0
    %4542 = vmatpush1.bf16.msra.mxu0 0
    %4543 = vmatprep.subr.bf16.mxu0 0
    %4544 = vmatpush1.bf16.msra.mxu0 0
    %4545 = vmatprep.mubr.bf16.mxu0 0
    %4546 = vmatmul.mubr.bf16.gmra.mrb[0].mxu0 %v4511
    %v4547 = vpop.f32.mrb[0].mxu0
    %v4548 = vadd.f32 0.0, %v4547
    %v4549 = vpop.f32.mrb[0].mxu0
    %v4550 = vadd.f32 0.0, %v4549
    %v4551 = vpop.f32.mrb[0].mxu0
    %v4552 = vpop.f32.mrb[0].mxu0
    %4553 = vdwg.mxu0
    %4554 = vmatprep.subr.bf16.mxu0 %v4488
    %4555 = vmatpush1.bf16.msra.mxu0 %v4487
    %4556 = vmatprep.subr.bf16.mxu0 %v4500
    %4557 = vmatpush1.bf16.msra.mxu0 %v4499
    %4558 = vmatprep.subr.bf16.mxu0 0
    %4559 = vmatpush1.bf16.msra.mxu0 0
    %4560 = vmatprep.subr.bf16.mxu0 0
    %4561 = vmatpush1.bf16.msra.mxu0 0
    %4562 = vmatprep.subr.bf16.mxu0 0
    %4563 = vmatpush1.bf16.msra.mxu0 0
    %4564 = vmatprep.subr.bf16.mxu0 0
    %4565 = vmatpush1.bf16.msra.mxu0 0
    %4566 = vmatprep.subr.bf16.mxu0 0
    %4567 = vmatpush1.bf16.msra.mxu0 0
    %4568 = vmatprep.subr.bf16.mxu0 0
    %4569 = vmatpush1.bf16.msra.mxu0 0
    %4570 = vmatprep.subr.bf16.mxu0 0
    %4571 = vmatpush1.bf16.msra.mxu0 0
    %4572 = vmatprep.subr.bf16.mxu0 0
    %4573 = vmatpush1.bf16.msra.mxu0 0
    %4574 = vmatprep.subr.bf16.mxu0 0
    %4575 = vmatpush1.bf16.msra.mxu0 0
    %4576 = vmatprep.subr.bf16.mxu0 0
    %4577 = vmatpush1.bf16.msra.mxu0 0
    %4578 = vmatprep.subr.bf16.mxu0 0
    %4579 = vmatpush1.bf16.msra.mxu0 0
    %4580 = vmatprep.subr.bf16.mxu0 0
    %4581 = vmatpush1.bf16.msra.mxu0 0
    %4582 = vmatprep.subr.bf16.mxu0 0
    %4583 = vmatpush1.bf16.msra.mxu0 0
    %4584 = vmatprep.subr.bf16.mxu0 0
    %4585 = vmatpush1.bf16.msra.mxu0 0
    %4586 = vmatprep.mubr.bf16.mxu0 0
    %4587 = vmatmul.mubr.bf16.gmra.mrb[0].mxu0 %v4511
    %v4588 = vpop.f32.mrb[0].mxu0
    %v4589 = vadd.f32 0.0, %v4588
    %v4590 = vpop.f32.mrb[0].mxu0
    %v4591 = vadd.f32 0.0, %v4590
    %v4592 = vpop.f32.mrb[0].mxu0
    %v4593 = vpop.f32.mrb[0].mxu0
    %4594 = vdwg.mxu0
    %4595 = vmatprep.subr.bf16.mxu0 %v4490
    %4596 = vmatpush1.bf16.msra.mxu0 %v4489
    %4597 = vmatprep.subr.bf16.mxu0 %v4502
    %4598 = vmatpush1.bf16.msra.mxu0 %v4501
    %4599 = vmatprep.subr.bf16.mxu0 0
    %4600 = vmatpush1.bf16.msra.mxu0 0
    %4601 = vmatprep.subr.bf16.mxu0 0
    %4602 = vmatpush1.bf16.msra.mxu0 0
    %4603 = vmatprep.subr.bf16.mxu0 0
    %4604 = vmatpush1.bf16.msra.mxu0 0
    %4605 = vmatprep.subr.bf16.mxu0 0
    %4606 = vmatpush1.bf16.msra.mxu0 0
    %4607 = vmatprep.subr.bf16.mxu0 0
    %4608 = vmatpush1.bf16.msra.mxu0 0
    %4609 = vmatprep.subr.bf16.mxu0 0
    %4610 = vmatpush1.bf16.msra.mxu0 0
    %4611 = vmatprep.subr.bf16.mxu0 0
    %4612 = vmatpush1.bf16.msra.mxu0 0
    %4613 = vmatprep.subr.bf16.mxu0 0
    %4614 = vmatpush1.bf16.msra.mxu0 0
    %4615 = vmatprep.subr.bf16.mxu0 0
    %4616 = vmatpush1.bf16.msra.mxu0 0
    %4617 = vmatprep.subr.bf16.mxu0 0
    %4618 = vmatpush1.bf16.msra.mxu0 0
    %4619 = vmatprep.subr.bf16.mxu0 0
    %4620 = vmatpush1.bf16.msra.mxu0 0
    %4621 = vmatprep.subr.bf16.mxu0 0
    %4622 = vmatpush1.bf16.msra.mxu0 0
    %4623 = vmatprep.subr.bf16.mxu0 0
    %4624 = vmatpush1.bf16.msra.mxu0 0
    %4625 = vmatprep.subr.bf16.mxu0 0
    %4626 = vmatpush1.bf16.msra.mxu0 0
    %4627 = vmatprep.mubr.bf16.mxu0 0
    %4628 = vmatmul.mubr.bf16.gmra.mrb[0].mxu0 %v4511
    %v4629 = vpop.f32.mrb[0].mxu0
    %v4630 = vadd.f32 0.0, %v4629
    %v4631 = vpop.f32.mrb[0].mxu0
    %v4632 = vadd.f32 0.0, %v4631
    %v4633 = vpop.f32.mrb[0].mxu0
    %v4634 = vpop.f32.mrb[0].mxu0
    %4635 = vdwg.mxu0
    %4636 = vmatprep.subr.bf16.mxu0 %v4492
    %4637 = vmatpush1.bf16.msra.mxu0 %v4491
    %4638 = vmatprep.subr.bf16.mxu0 %v4504
    %4639 = vmatpush1.bf16.msra.mxu0 %v4503
    %4640 = vmatprep.subr.bf16.mxu0 0
    %4641 = vmatpush1.bf16.msra.mxu0 0
    %4642 = vmatprep.subr.bf16.mxu0 0
    %4643 = vmatpush1.bf16.msra.mxu0 0
    %4644 = vmatprep.subr.bf16.mxu0 0
    %4645 = vmatpush1.bf16.msra.mxu0 0
    %4646 = vmatprep.subr.bf16.mxu0 0
    %4647 = vmatpush1.bf16.msra.mxu0 0
    %4648 = vmatprep.subr.bf16.mxu0 0
    %4649 = vmatpush1.bf16.msra.mxu0 0
    %4650 = vmatprep.subr.bf16.mxu0 0
    %4651 = vmatpush1.bf16.msra.mxu0 0
    %4652 = vmatprep.subr.bf16.mxu0 0
    %4653 = vmatpush1.bf16.msra.mxu0 0
    %4654 = vmatprep.subr.bf16.mxu0 0
    %4655 = vmatpush1.bf16.msra.mxu0 0
    %4656 = vmatprep.subr.bf16.mxu0 0
    %4657 = vmatpush1.bf16.msra.mxu0 0
    %4658 = vmatprep.subr.bf16.mxu0 0
    %4659 = vmatpush1.bf16.msra.mxu0 0
    %4660 = vmatprep.subr.bf16.mxu0 0
    %4661 = vmatpush1.bf16.msra.mxu0 0
    %4662 = vmatprep.subr.bf16.mxu0 0
    %4663 = vmatpush1.bf16.msra.mxu0 0
    %4664 = vmatprep.subr.bf16.mxu0 0
    %4665 = vmatpush1.bf16.msra.mxu0 0
    %4666 = vmatprep.subr.bf16.mxu0 0
    %4667 = vmatpush1.bf16.msra.mxu0 0
    %4668 = vmatprep.mubr.bf16.mxu0 0
    %4669 = vmatmul.mubr.bf16.gmra.mrb[0].mxu0 %v4511
    %v4670 = vpop.f32.mrb[0].mxu0
    %v4671 = vadd.f32 0.0, %v4670
    %v4672 = vpop.f32.mrb[0].mxu0
    %v4673 = vadd.f32 0.0, %v4672
    %v4674 = vpop.f32.mrb[0].mxu0
    %v4675 = vpop.f32.mrb[0].mxu0
    %4676 = vdwg.mxu0
    %4677 = vmatprep.subr.bf16.mxu0 %v4494
    %4678 = vmatpush1.bf16.msra.mxu0 %v4493
    %4679 = vmatprep.subr.bf16.mxu0 %v4506
    %4680 = vmatpush1.bf16.msra.mxu0 %v4505
    %4681 = vmatprep.subr.bf16.mxu0 0
    %4682 = vmatpush1.bf16.msra.mxu0 0
    %4683 = vmatprep.subr.bf16.mxu0 0
    %4684 = vmatpush1.bf16.msra.mxu0 0
    %4685 = vmatprep.subr.bf16.mxu0 0
    %4686 = vmatpush1.bf16.msra.mxu0 0
    %4687 = vmatprep.subr.bf16.mxu0 0
    %4688 = vmatpush1.bf16.msra.mxu0 0
    %4689 = vmatprep.subr.bf16.mxu0 0
    %4690 = vmatpush1.bf16.msra.mxu0 0
    %4691 = vmatprep.subr.bf16.mxu0 0
    %4692 = vmatpush1.bf16.msra.mxu0 0
    %4693 = vmatprep.subr.bf16.mxu0 0
    %4694 = vmatpush1.bf16.msra.mxu0 0
    %4695 = vmatprep.subr.bf16.mxu0 0
    %4696 = vmatpush1.bf16.msra.mxu0 0
    %4697 = vmatprep.subr.bf16.mxu0 0
    %4698 = vmatpush1.bf16.msra.mxu0 0
    %4699 = vmatprep.subr.bf16.mxu0 0
    %4700 = vmatpush1.bf16.msra.mxu0 0
    %4701 = vmatprep.subr.bf16.mxu0 0
    %4702 = vmatpush1.bf16.msra.mxu0 0
    %4703 = vmatprep.subr.bf16.mxu0 0
    %4704 = vmatpush1.bf16.msra.mxu0 0
    %4705 = vmatprep.subr.bf16.mxu0 0
    %4706 = vmatpush1.bf16.msra.mxu0 0
    %4707 = vmatprep.subr.bf16.mxu0 0
    %4708 = vmatpush1.bf16.msra.mxu0 0
    %4709 = vmatprep.mubr.bf16.mxu0 0
    %4710 = vmatmul.mubr.bf16.gmra.mrb[0].mxu0 %v4511
    %v4711 = vpop.f32.mrb[0].mxu0
    %v4712 = vadd.f32 0.0, %v4711
    %v4713 = vpop.f32.mrb[0].mxu0
    %v4714 = vadd.f32 0.0, %v4713
    %v4715 = vpop.f32.mrb[0].mxu0
    %v4716 = vpop.f32.mrb[0].mxu0
    %4717 = vdwg.mxu0
    %4718 = vmatprep.subr.bf16.mxu0 %v4496
    %4719 = vmatpush1.bf16.msra.mxu0 %v4495
    %4720 = vmatprep.subr.bf16.mxu0 %v4508
    %4721 = vmatpush1.bf16.msra.mxu0 %v4507
    %4722 = vmatprep.subr.bf16.mxu0 0
    %4723 = vmatpush1.bf16.msra.mxu0 0
    %4724 = vmatprep.subr.bf16.mxu0 0
    %4725 = vmatpush1.bf16.msra.mxu0 0
    %4726 = vmatprep.subr.bf16.mxu0 0
    %4727 = vmatpush1.bf16.msra.mxu0 0
    %4728 = vmatprep.subr.bf16.mxu0 0
    %4729 = vmatpush1.bf16.msra.mxu0 0
    %4730 = vmatprep.subr.bf16.mxu0 0
    %4731 = vmatpush1.bf16.msra.mxu0 0
    %4732 = vmatprep.subr.bf16.mxu0 0
    %4733 = vmatpush1.bf16.msra.mxu0 0
    %4734 = vmatprep.subr.bf16.mxu0 0
    %4735 = vmatpush1.bf16.msra.mxu0 0
    %4736 = vmatprep.subr.bf16.mxu0 0
    %4737 = vmatpush1.bf16.msra.mxu0 0
    %4738 = vmatprep.subr.bf16.mxu0 0
    %4739 = vmatpush1.bf16.msra.mxu0 0
    %4740 = vmatprep.subr.bf16.mxu0 0
    %4741 = vmatpush1.bf16.msra.mxu0 0
    %4742 = vmatprep.subr.bf16.mxu0 0
    %4743 = vmatpush1.bf16.msra.mxu0 0
    %4744 = vmatprep.subr.bf16.mxu0 0
    %4745 = vmatpush1.bf16.msra.mxu0 0
    %4746 = vmatprep.subr.bf16.mxu0 0
    %4747 = vmatpush1.bf16.msra.mxu0 0
    %4748 = vmatprep.subr.bf16.mxu0 0
    %4749 = vmatpush1.bf16.msra.mxu0 0
    %4750 = vmatprep.mubr.bf16.mxu0 0
    %4751 = vmatmul.mubr.bf16.gmra.mrb[0].mxu0 %v4511
    %v4752 = vpop.f32.mrb[0].mxu0
    %v4753 = vadd.f32 0.0, %v4752
    %v4754 = vpop.f32.mrb[0].mxu0
    %v4755 = vadd.f32 0.0, %v4754
    %v4756 = vpop.f32.mrb[0].mxu0
    %v4757 = vpop.f32.mrb[0].mxu0
    %4758 = vdwg.mxu0
    %s4759 = smul.u32 %s1098, 2
    %s4760 = sshll.u32 %s4759, 4
    %4761 = dma.done %s256, %s4760
    %v4762 = vpack.c.bf16 %v4548, %v4548
    %v4763 = vpack.c.bf16 %v4550, %v4550
    %v4764 = vpack.c.bf16 %v4589, %v4589
    %v4765 = vpack.c.bf16 %v4591, %v4591
    %v4766 = vpack.c.bf16 %v4630, %v4630
    %v4767 = vpack.c.bf16 %v4632, %v4632
    %v4768 = vpack.c.bf16 %v4671, %v4671
    %v4769 = vpack.c.bf16 %v4673, %v4673
    %v4770 = vpack.c.bf16 %v4712, %v4712
    %v4771 = vpack.c.bf16 %v4714, %v4714
    %v4772 = vpack.c.bf16 %v4753, %v4753
    %v4773 = vpack.c.bf16 %v4755, %v4755
    %v4774 = vld [vmem:[#allocation6] sm:$0xff]
    %v4775 = vld [vmem:[#allocation6 + $0x8] sm:$0xff]
    %v4776 = vld [vmem:[#allocation6 + $0x10] sm:$0xff]
    %v4777 = vld [vmem:[#allocation6 + $0x18] sm:$0xff]
    %v4778 = vld [vmem:[#allocation6 + $0x20] sm:$0xff]
    %v4779 = vld [vmem:[#allocation6 + $0x28] sm:$0xff]
    %v4780 = vld [vmem:[#allocation6 + $0x30] sm:$0xff]
    %v4781 = vld [vmem:[#allocation6 + $0x38] sm:$0xff]
    %v4782 = vld [vmem:[#allocation6 + $0x40] sm:$0xff]
    %v4783 = vld [vmem:[#allocation6 + $0x48] sm:$0xff]
    %v4784 = vld [vmem:[#allocation6 + $0x50] sm:$0xff]
    %v4785 = vld [vmem:[#allocation6 + $0x58] sm:$0xff]
    %v4786 = vld [vmem:[#allocation6 + $0x60] sm:$0xff]
    %v4787 = vld [vmem:[#allocation6 + $0x68] sm:$0xff]
    %v4788 = vld [vmem:[#allocation6 + $0x70] sm:$0xff]
    %v4789 = vld [vmem:[#allocation6 + $0x78] sm:$0xff]
    %v4790 = vld [vmem:[#allocation6 + $0x80] sm:$0xff]
    %v4791 = vld [vmem:[#allocation6 + $0x88] sm:$0xff]
    %v4792 = vld [vmem:[#allocation6 + $0x90] sm:$0xff]
    %v4793 = vld [vmem:[#allocation6 + $0x98] sm:$0xff]
    %v4794 = vld [vmem:[#allocation6 + $0xa0] sm:$0xff]
    %v4795 = vld [vmem:[#allocation6 + $0xa8] sm:$0xff]
    %v4796 = vld [vmem:[#allocation6 + $0xb0] sm:$0xff]
    %v4797 = vld [vmem:[#allocation6 + $0xb8] sm:$0xff]
    %v4798 = vld [vmem:[#allocation6 + $0xc0] sm:$0xff]
    %v4799 = vld [vmem:[#allocation6 + $0xc8] sm:$0xff]
    %v4800 = vld [vmem:[#allocation6 + $0xd0] sm:$0xff]
    %v4801 = vld [vmem:[#allocation6 + $0xd8] sm:$0xff]
    %v4802 = vld [vmem:[#allocation6 + $0xe0] sm:$0xff]
    %v4803 = vld [vmem:[#allocation6 + $0xe8] sm:$0xff]
    %v4804 = vld [vmem:[#allocation6 + $0xf0] sm:$0xff]
    %v4805 = vld [vmem:[#allocation6 + $0xf8] sm:$0xff]
    %v4806 = vld [vmem:[#allocation6 + $0x100] sm:$0xff]
    %v4807 = vld [vmem:[#allocation6 + $0x108] sm:$0xff]
    %v4808 = vld [vmem:[#allocation6 + $0x110] sm:$0xff]
    %v4809 = vld [vmem:[#allocation6 + $0x118] sm:$0xff]
    %v4810 = vld [vmem:[#allocation6 + $0x120] sm:$0xff]
    %v4811 = vld [vmem:[#allocation6 + $0x128] sm:$0xff]
    %v4812 = vld [vmem:[#allocation6 + $0x130] sm:$0xff]
    %v4813 = vld [vmem:[#allocation6 + $0x138] sm:$0xff]
    %v4814 = vld [vmem:[#allocation6 + $0x140] sm:$0xff]
    %v4815 = vld [vmem:[#allocation6 + $0x148] sm:$0xff]
    %v4816 = vld [vmem:[#allocation6 + $0x150] sm:$0xff]
    %v4817 = vld [vmem:[#allocation6 + $0x158] sm:$0xff]
    %v4818 = vld [vmem:[#allocation6 + $0x160] sm:$0xff]
    %v4819 = vld [vmem:[#allocation6 + $0x168] sm:$0xff]
    %v4820 = vld [vmem:[#allocation6 + $0x170] sm:$0xff]
    %v4821 = vld [vmem:[#allocation6 + $0x178] sm:$0xff]
    %v4822 = vld [vmem:[#allocation6 + $0x180] sm:$0xff]
    %v4823 = vld [vmem:[#allocation6 + $0x188] sm:$0xff]
    %v4824 = vld [vmem:[#allocation6 + $0x190] sm:$0xff]
    %v4825 = vld [vmem:[#allocation6 + $0x198] sm:$0xff]
    %v4826 = vld [vmem:[#allocation6 + $0x1a0] sm:$0xff]
    %v4827 = vld [vmem:[#allocation6 + $0x1a8] sm:$0xff]
    %v4828 = vld [vmem:[#allocation6 + $0x1b0] sm:$0xff]
    %v4829 = vld [vmem:[#allocation6 + $0x1b8] sm:$0xff]
    %v4830 = vld [vmem:[#allocation6 + $0x1c0] sm:$0xff]
    %v4831 = vld [vmem:[#allocation6 + $0x1c8] sm:$0xff]
    %v4832 = vld [vmem:[#allocation6 + $0x1d0] sm:$0xff]
    %v4833 = vld [vmem:[#allocation6 + $0x1d8] sm:$0xff]
    %v4834 = vld [vmem:[#allocation6 + $0x1e0] sm:$0xff]
    %v4835 = vld [vmem:[#allocation6 + $0x1e8] sm:$0xff]
    %v4836 = vld [vmem:[#allocation6 + $0x1f0] sm:$0xff]
    %v4837 = vld [vmem:[#allocation6 + $0x1f8] sm:$0xff]
    %v4838 = vld [vmem:[#allocation6 + $0x200] sm:$0xff]
    %v4839 = vld [vmem:[#allocation6 + $0x208] sm:$0xff]
    %v4840 = vld [vmem:[#allocation6 + $0x210] sm:$0xff]
    %v4841 = vld [vmem:[#allocation6 + $0x218] sm:$0xff]
    %v4842 = vld [vmem:[#allocation6 + $0x220] sm:$0xff]
    %v4843 = vld [vmem:[#allocation6 + $0x228] sm:$0xff]
    %v4844 = vld [vmem:[#allocation6 + $0x230] sm:$0xff]
    %v4845 = vld [vmem:[#allocation6 + $0x238] sm:$0xff]
    %v4846 = vld [vmem:[#allocation6 + $0x240] sm:$0xff]
    %v4847 = vld [vmem:[#allocation6 + $0x248] sm:$0xff]
    %v4848 = vld [vmem:[#allocation6 + $0x250] sm:$0xff]
    %v4849 = vld [vmem:[#allocation6 + $0x258] sm:$0xff]
    %v4850 = vld [vmem:[#allocation6 + $0x260] sm:$0xff]
    %v4851 = vld [vmem:[#allocation6 + $0x268] sm:$0xff]
    %v4852 = vld [vmem:[#allocation6 + $0x270] sm:$0xff]
    %v4853 = vld [vmem:[#allocation6 + $0x278] sm:$0xff]
    %v4854 = vld [vmem:[#allocation6 + $0x280] sm:$0xff]
    %v4855 = vld [vmem:[#allocation6 + $0x288] sm:$0xff]
    %v4856 = vld [vmem:[#allocation6 + $0x290] sm:$0xff]
    %v4857 = vld [vmem:[#allocation6 + $0x298] sm:$0xff]
    %v4858 = vld [vmem:[#allocation6 + $0x2a0] sm:$0xff]
    %v4859 = vld [vmem:[#allocation6 + $0x2a8] sm:$0xff]
    %v4860 = vld [vmem:[#allocation6 + $0x2b0] sm:$0xff]
    %v4861 = vld [vmem:[#allocation6 + $0x2b8] sm:$0xff]
    %v4862 = vld [vmem:[#allocation6 + $0x2c0] sm:$0xff]
    %v4863 = vld [vmem:[#allocation6 + $0x2c8] sm:$0xff]
    %v4864 = vld [vmem:[#allocation6 + $0x2d0] sm:$0xff]
    %v4865 = vld [vmem:[#allocation6 + $0x2d8] sm:$0xff]
    %v4866 = vld [vmem:[#allocation6 + $0x2e0] sm:$0xff]
    %v4867 = vld [vmem:[#allocation6 + $0x2e8] sm:$0xff]
    %v4868 = vld [vmem:[#allocation6 + $0x2f0] sm:$0xff]
    %v4869 = vld [vmem:[#allocation6 + $0x2f8] sm:$0xff]
    %v4870 = vld [vmem:[#allocation6 + $0x300] sm:$0xff]
    %v4871 = vld [vmem:[#allocation6 + $0x308] sm:$0xff]
    %v4872 = vld [vmem:[#allocation6 + $0x310] sm:$0xff]
    %v4873 = vld [vmem:[#allocation6 + $0x318] sm:$0xff]
    %v4874 = vld [vmem:[#allocation6 + $0x320] sm:$0xff]
    %v4875 = vld [vmem:[#allocation6 + $0x328] sm:$0xff]
    %v4876 = vld [vmem:[#allocation6 + $0x330] sm:$0xff]
    %v4877 = vld [vmem:[#allocation6 + $0x338] sm:$0xff]
    %v4878 = vld [vmem:[#allocation6 + $0x340] sm:$0xff]
    %v4879 = vld [vmem:[#allocation6 + $0x348] sm:$0xff]
    %v4880 = vld [vmem:[#allocation6 + $0x350] sm:$0xff]
    %v4881 = vld [vmem:[#allocation6 + $0x358] sm:$0xff]
    %v4882 = vld [vmem:[#allocation6 + $0x360] sm:$0xff]
    %v4883 = vld [vmem:[#allocation6 + $0x368] sm:$0xff]
    %v4884 = vld [vmem:[#allocation6 + $0x370] sm:$0xff]
    %v4885 = vld [vmem:[#allocation6 + $0x378] sm:$0xff]
    %v4886 = vld [vmem:[#allocation6 + $0x380] sm:$0xff]
    %v4887 = vld [vmem:[#allocation6 + $0x388] sm:$0xff]
    %v4888 = vld [vmem:[#allocation6 + $0x390] sm:$0xff]
    %v4889 = vld [vmem:[#allocation6 + $0x398] sm:$0xff]
    %v4890 = vld [vmem:[#allocation6 + $0x3a0] sm:$0xff]
    %v4891 = vld [vmem:[#allocation6 + $0x3a8] sm:$0xff]
    %v4892 = vld [vmem:[#allocation6 + $0x3b0] sm:$0xff]
    %v4893 = vld [vmem:[#allocation6 + $0x3b8] sm:$0xff]
    %v4894 = vld [vmem:[#allocation6 + $0x3c0] sm:$0xff]
    %v4895 = vld [vmem:[#allocation6 + $0x3c8] sm:$0xff]
    %v4896 = vld [vmem:[#allocation6 + $0x3d0] sm:$0xff]
    %v4897 = vld [vmem:[#allocation6 + $0x3d8] sm:$0xff]
    %v4898 = vld [vmem:[#allocation6 + $0x3e0] sm:$0xff]
    %v4899 = vld [vmem:[#allocation6 + $0x3e8] sm:$0xff]
    %v4900 = vld [vmem:[#allocation6 + $0x3f0] sm:$0xff]
    %v4901 = vld [vmem:[#allocation6 + $0x3f8] sm:$0xff]
    %v4902 = vld [vmem:[#allocation6 + $0x400] sm:$0xff]
    %v4903 = vld [vmem:[#allocation6 + $0x408] sm:$0xff]
    %v4904 = vld [vmem:[#allocation6 + $0x410] sm:$0xff]
    %v4905 = vld [vmem:[#allocation6 + $0x418] sm:$0xff]
    %v4906 = vld [vmem:[#allocation6 + $0x420] sm:$0xff]
    %v4907 = vld [vmem:[#allocation6 + $0x428] sm:$0xff]
    %v4908 = vld [vmem:[#allocation6 + $0x430] sm:$0xff]
    %v4909 = vld [vmem:[#allocation6 + $0x438] sm:$0xff]
    %v4910 = vld [vmem:[#allocation6 + $0x440] sm:$0xff]
    %v4911 = vld [vmem:[#allocation6 + $0x448] sm:$0xff]
    %v4912 = vld [vmem:[#allocation6 + $0x450] sm:$0xff]
    %v4913 = vld [vmem:[#allocation6 + $0x458] sm:$0xff]
    %v4914 = vld [vmem:[#allocation6 + $0x460] sm:$0xff]
    %v4915 = vld [vmem:[#allocation6 + $0x468] sm:$0xff]
    %v4916 = vld [vmem:[#allocation6 + $0x470] sm:$0xff]
    %v4917 = vld [vmem:[#allocation6 + $0x478] sm:$0xff]
    %v4918 = vld [vmem:[#allocation6 + $0x480] sm:$0xff]
    %v4919 = vld [vmem:[#allocation6 + $0x488] sm:$0xff]
    %v4920 = vld [vmem:[#allocation6 + $0x490] sm:$0xff]
    %v4921 = vld [vmem:[#allocation6 + $0x498] sm:$0xff]
    %v4922 = vld [vmem:[#allocation6 + $0x4a0] sm:$0xff]
    %v4923 = vld [vmem:[#allocation6 + $0x4a8] sm:$0xff]
    %v4924 = vld [vmem:[#allocation6 + $0x4b0] sm:$0xff]
    %v4925 = vld [vmem:[#allocation6 + $0x4b8] sm:$0xff]
    %v4926 = vld [vmem:[#allocation6 + $0x4c0] sm:$0xff]
    %v4927 = vld [vmem:[#allocation6 + $0x4c8] sm:$0xff]
    %v4928 = vld [vmem:[#allocation6 + $0x4d0] sm:$0xff]
    %v4929 = vld [vmem:[#allocation6 + $0x4d8] sm:$0xff]
    %v4930 = vld [vmem:[#allocation6 + $0x4e0] sm:$0xff]
    %v4931 = vld [vmem:[#allocation6 + $0x4e8] sm:$0xff]
    %v4932 = vld [vmem:[#allocation6 + $0x4f0] sm:$0xff]
    %v4933 = vld [vmem:[#allocation6 + $0x4f8] sm:$0xff]
    %v4934 = vld [vmem:[#allocation6 + $0x500] sm:$0xff]
    %v4935 = vld [vmem:[#allocation6 + $0x508] sm:$0xff]
    %v4936 = vld [vmem:[#allocation6 + $0x510] sm:$0xff]
    %v4937 = vld [vmem:[#allocation6 + $0x518] sm:$0xff]
    %v4938 = vld [vmem:[#allocation6 + $0x520] sm:$0xff]
    %v4939 = vld [vmem:[#allocation6 + $0x528] sm:$0xff]
    %v4940 = vld [vmem:[#allocation6 + $0x530] sm:$0xff]
    %v4941 = vld [vmem:[#allocation6 + $0x538] sm:$0xff]
    %v4942 = vld [vmem:[#allocation6 + $0x540] sm:$0xff]
    %v4943 = vld [vmem:[#allocation6 + $0x548] sm:$0xff]
    %v4944 = vld [vmem:[#allocation6 + $0x550] sm:$0xff]
    %v4945 = vld [vmem:[#allocation6 + $0x558] sm:$0xff]
    %v4946 = vld [vmem:[#allocation6 + $0x560] sm:$0xff]
    %v4947 = vld [vmem:[#allocation6 + $0x568] sm:$0xff]
    %v4948 = vld [vmem:[#allocation6 + $0x570] sm:$0xff]
    %v4949 = vld [vmem:[#allocation6 + $0x578] sm:$0xff]
    %v4950 = vld [vmem:[#allocation6 + $0x580] sm:$0xff]
    %v4951 = vld [vmem:[#allocation6 + $0x588] sm:$0xff]
    %v4952 = vld [vmem:[#allocation6 + $0x590] sm:$0xff]
    %v4953 = vld [vmem:[#allocation6 + $0x598] sm:$0xff]
    %v4954 = vld [vmem:[#allocation6 + $0x5a0] sm:$0xff]
    %v4955 = vld [vmem:[#allocation6 + $0x5a8] sm:$0xff]
    %v4956 = vld [vmem:[#allocation6 + $0x5b0] sm:$0xff]
    %v4957 = vld [vmem:[#allocation6 + $0x5b8] sm:$0xff]
    %v4958 = vld [vmem:[#allocation6 + $0x5c0] sm:$0xff]
    %v4959 = vld [vmem:[#allocation6 + $0x5c8] sm:$0xff]
    %v4960 = vld [vmem:[#allocation6 + $0x5d0] sm:$0xff]
    %v4961 = vld [vmem:[#allocation6 + $0x5d8] sm:$0xff]
    %v4962 = vld [vmem:[#allocation6 + $0x5e0] sm:$0xff]
    %v4963 = vld [vmem:[#allocation6 + $0x5e8] sm:$0xff]
    %v4964 = vld [vmem:[#allocation6 + $0x5f0] sm:$0xff]
    %v4965 = vld [vmem:[#allocation6 + $0x5f8] sm:$0xff]
    %v4966 = vld [vmem:[#allocation17] sm:$0x3]
    %v4968 = vlaneseq
    %v4969 = vshrl.u32 %v4968, 7
    %v4970 = vsub.s32 0, %v4969
    %v4971 = vrot.slane %v4966, %v4970
    %v4972 = vlaneseq
    %v4973 = vshrl.u32 %v4972, 7
    %v4974 = vsub.s32 1, %v4973
    %v4975 = vrot.slane %v4966, %v4974
    %4978 = vmatprep.subr.bf16.mxu0 %v4775
    %4979 = vmatpush1.bf16.msra.mxu0 %v4774
    %4980 = vmatprep.subr.bf16.mxu0 %v4777
    %4981 = vmatpush1.bf16.msra.mxu0 %v4776
    %4982 = vmatprep.subr.bf16.mxu0 %v4779
    %4983 = vmatpush1.bf16.msra.mxu0 %v4778
    %4984 = vmatprep.subr.bf16.mxu0 %v4781
    %4985 = vmatpush1.bf16.msra.mxu0 %v4780
    %4986 = vmatprep.subr.bf16.mxu0 %v4783
    %4987 = vmatpush1.bf16.msra.mxu0 %v4782
    %4988 = vmatprep.subr.bf16.mxu0 %v4785
    %4989 = vmatpush1.bf16.msra.mxu0 %v4784
    %4990 = vmatprep.subr.bf16.mxu0 %v4787
    %4991 = vmatpush1.bf16.msra.mxu0 %v4786
    %4992 = vmatprep.subr.bf16.mxu0 %v4789
    %4993 = vmatpush1.bf16.msra.mxu0 %v4788
    %4994 = vmatprep.subr.bf16.mxu0 %v4791
    %4995 = vmatpush1.bf16.msra.mxu0 %v4790
    %4996 = vmatprep.subr.bf16.mxu0 %v4793
    %4997 = vmatpush1.bf16.msra.mxu0 %v4792
    %4998 = vmatprep.subr.bf16.mxu0 %v4795
    %4999 = vmatpush1.bf16.msra.mxu0 %v4794
    %5000 = vmatprep.subr.bf16.mxu0 %v4797
    %5001 = vmatpush1.bf16.msra.mxu0 %v4796
    %5002 = vmatprep.subr.bf16.mxu0 %v4799
    %5003 = vmatpush1.bf16.msra.mxu0 %v4798
    %5004 = vmatprep.subr.bf16.mxu0 %v4801
    %5005 = vmatpush1.bf16.msra.mxu0 %v4800
    %5006 = vmatprep.subr.bf16.mxu0 %v4803
    %5007 = vmatpush1.bf16.msra.mxu0 %v4802
    %5008 = vmatprep.subr.bf16.mxu0 %v4805
    %5009 = vmatpush1.bf16.msra.mxu0 %v4804
    %5010 = vmatprep.mubr.bf16.mxu0 %v4763
    %5011 = vmatmul.mubr.bf16.gmra.mrb[0].mxu0 %v4762
    %v5012 = vpop.f32.mrb[0].mxu0
    %v5013 = vadd.f32 %v4971, %v5012
    %v5014 = vpop.f32.mrb[0].mxu0
    %v5015 = vadd.f32 %v4975, %v5014
    %v5016 = vpop.f32.mrb[0].mxu0
    %v5017 = vpop.f32.mrb[0].mxu0
    %5018 = vdwg.mxu0
    %5019 = vmatprep.subr.bf16.mxu0 %v4807
    %5020 = vmatpush1.bf16.msra.mxu0 %v4806
    %5021 = vmatprep.subr.bf16.mxu0 %v4809
    %5022 = vmatpush1.bf16.msra.mxu0 %v4808
    %5023 = vmatprep.subr.bf16.mxu0 %v4811
    %5024 = vmatpush1.bf16.msra.mxu0 %v4810
    %5025 = vmatprep.subr.bf16.mxu0 %v4813
    %5026 = vmatpush1.bf16.msra.mxu0 %v4812
    %5027 = vmatprep.subr.bf16.mxu0 %v4815
    %5028 = vmatpush1.bf16.msra.mxu0 %v4814
    %5029 = vmatprep.subr.bf16.mxu0 %v4817
    %5030 = vmatpush1.bf16.msra.mxu0 %v4816
    %5031 = vmatprep.subr.bf16.mxu0 %v4819
    %5032 = vmatpush1.bf16.msra.mxu0 %v4818
    %5033 = vmatprep.subr.bf16.mxu0 %v4821
    %5034 = vmatpush1.bf16.msra.mxu0 %v4820
    %5035 = vmatprep.subr.bf16.mxu0 %v4823
    %5036 = vmatpush1.bf16.msra.mxu0 %v4822
    %5037 = vmatprep.subr.bf16.mxu0 %v4825
    %5038 = vmatpush1.bf16.msra.mxu0 %v4824
    %5039 = vmatprep.subr.bf16.mxu0 %v4827
    %5040 = vmatpush1.bf16.msra.mxu0 %v4826
    %5041 = vmatprep.subr.bf16.mxu0 %v4829
    %5042 = vmatpush1.bf16.msra.mxu0 %v4828
    %5043 = vmatprep.subr.bf16.mxu0 %v4831
    %5044 = vmatpush1.bf16.msra.mxu0 %v4830
    %5045 = vmatprep.subr.bf16.mxu0 %v4833
    %5046 = vmatpush1.bf16.msra.mxu0 %v4832
    %5047 = vmatprep.subr.bf16.mxu0 %v4835
    %5048 = vmatpush1.bf16.msra.mxu0 %v4834
    %5049 = vmatprep.subr.bf16.mxu0 %v4837
    %5050 = vmatpush1.bf16.msra.mxu0 %v4836
    %5051 = vmatprep.mubr.bf16.mxu0 %v4765
    %5052 = vmatmul.mubr.bf16.gmra.mrb[0].mxu0 %v4764
    %v5053 = vpop.f32.mrb[0].mxu0
    %v5054 = vadd.f32 %v5013, %v5053
    %v5055 = vpop.f32.mrb[0].mxu0
    %v5056 = vadd.f32 %v5015, %v5055
    %v5057 = vpop.f32.mrb[0].mxu0
    %v5058 = vpop.f32.mrb[0].mxu0
    %5059 = vdwg.mxu0
    %5060 = vmatprep.subr.bf16.mxu0 %v4839
    %5061 = vmatpush1.bf16.msra.mxu0 %v4838
    %5062 = vmatprep.subr.bf16.mxu0 %v4841
    %5063 = vmatpush1.bf16.msra.mxu0 %v4840
    %5064 = vmatprep.subr.bf16.mxu0 %v4843
    %5065 = vmatpush1.bf16.msra.mxu0 %v4842
    %5066 = vmatprep.subr.bf16.mxu0 %v4845
    %5067 = vmatpush1.bf16.msra.mxu0 %v4844
    %5068 = vmatprep.subr.bf16.mxu0 %v4847
    %5069 = vmatpush1.bf16.msra.mxu0 %v4846
    %5070 = vmatprep.subr.bf16.mxu0 %v4849
    %5071 = vmatpush1.bf16.msra.mxu0 %v4848
    %5072 = vmatprep.subr.bf16.mxu0 %v4851
    %5073 = vmatpush1.bf16.msra.mxu0 %v4850
    %5074 = vmatprep.subr.bf16.mxu0 %v4853
    %5075 = vmatpush1.bf16.msra.mxu0 %v4852
    %5076 = vmatprep.subr.bf16.mxu0 %v4855
    %5077 = vmatpush1.bf16.msra.mxu0 %v4854
    %5078 = vmatprep.subr.bf16.mxu0 %v4857
    %5079 = vmatpush1.bf16.msra.mxu0 %v4856
    %5080 = vmatprep.subr.bf16.mxu0 %v4859
    %5081 = vmatpush1.bf16.msra.mxu0 %v4858
    %5082 = vmatprep.subr.bf16.mxu0 %v4861
    %5083 = vmatpush1.bf16.msra.mxu0 %v4860
    %5084 = vmatprep.subr.bf16.mxu0 %v4863
    %5085 = vmatpush1.bf16.msra.mxu0 %v4862
    %5086 = vmatprep.subr.bf16.mxu0 %v4865
    %5087 = vmatpush1.bf16.msra.mxu0 %v4864
    %5088 = vmatprep.subr.bf16.mxu0 %v4867
    %5089 = vmatpush1.bf16.msra.mxu0 %v4866
    %5090 = vmatprep.subr.bf16.mxu0 %v4869
    %5091 = vmatpush1.bf16.msra.mxu0 %v4868
    %5092 = vmatprep.mubr.bf16.mxu0 %v4767
    %5093 = vmatmul.mubr.bf16.gmra.mrb[0].mxu0 %v4766
    %v5094 = vpop.f32.mrb[0].mxu0
    %v5095 = vadd.f32 %v5054, %v5094
    %v5096 = vpop.f32.mrb[0].mxu0
    %v5097 = vadd.f32 %v5056, %v5096
    %v5098 = vpop.f32.mrb[0].mxu0
    %v5099 = vpop.f32.mrb[0].mxu0
    %5100 = vdwg.mxu0
    %5101 = vmatprep.subr.bf16.mxu0 %v4871
    %5102 = vmatpush1.bf16.msra.mxu0 %v4870
    %5103 = vmatprep.subr.bf16.mxu0 %v4873
    %5104 = vmatpush1.bf16.msra.mxu0 %v4872
    %5105 = vmatprep.subr.bf16.mxu0 %v4875
    %5106 = vmatpush1.bf16.msra.mxu0 %v4874
    %5107 = vmatprep.subr.bf16.mxu0 %v4877
    %5108 = vmatpush1.bf16.msra.mxu0 %v4876
    %5109 = vmatprep.subr.bf16.mxu0 %v4879
    %5110 = vmatpush1.bf16.msra.mxu0 %v4878
    %5111 = vmatprep.subr.bf16.mxu0 %v4881
    %5112 = vmatpush1.bf16.msra.mxu0 %v4880
    %5113 = vmatprep.subr.bf16.mxu0 %v4883
    %5114 = vmatpush1.bf16.msra.mxu0 %v4882
    %5115 = vmatprep.subr.bf16.mxu0 %v4885
    %5116 = vmatpush1.bf16.msra.mxu0 %v4884
    %5117 = vmatprep.subr.bf16.mxu0 %v4887
    %5118 = vmatpush1.bf16.msra.mxu0 %v4886
    %5119 = vmatprep.subr.bf16.mxu0 %v4889
    %5120 = vmatpush1.bf16.msra.mxu0 %v4888
    %5121 = vmatprep.subr.bf16.mxu0 %v4891
    %5122 = vmatpush1.bf16.msra.mxu0 %v4890
    %5123 = vmatprep.subr.bf16.mxu0 %v4893
    %5124 = vmatpush1.bf16.msra.mxu0 %v4892
    %5125 = vmatprep.subr.bf16.mxu0 %v4895
    %5126 = vmatpush1.bf16.msra.mxu0 %v4894
    %5127 = vmatprep.subr.bf16.mxu0 %v4897
    %5128 = vmatpush1.bf16.msra.mxu0 %v4896
    %5129 = vmatprep.subr.bf16.mxu0 %v4899
    %5130 = vmatpush1.bf16.msra.mxu0 %v4898
    %5131 = vmatprep.subr.bf16.mxu0 %v4901
    %5132 = vmatpush1.bf16.msra.mxu0 %v4900
    %5133 = vmatprep.mubr.bf16.mxu0 %v4769
    %5134 = vmatmul.mubr.bf16.gmra.mrb[0].mxu0 %v4768
    %v5135 = vpop.f32.mrb[0].mxu0
    %v5136 = vadd.f32 %v5095, %v5135
    %v5137 = vpop.f32.mrb[0].mxu0
    %v5138 = vadd.f32 %v5097, %v5137
    %v5139 = vpop.f32.mrb[0].mxu0
    %v5140 = vpop.f32.mrb[0].mxu0
    %5141 = vdwg.mxu0
    %5142 = vmatprep.subr.bf16.mxu0 %v4903
    %5143 = vmatpush1.bf16.msra.mxu0 %v4902
    %5144 = vmatprep.subr.bf16.mxu0 %v4905
    %5145 = vmatpush1.bf16.msra.mxu0 %v4904
    %5146 = vmatprep.subr.bf16.mxu0 %v4907
    %5147 = vmatpush1.bf16.msra.mxu0 %v4906
    %5148 = vmatprep.subr.bf16.mxu0 %v4909
    %5149 = vmatpush1.bf16.msra.mxu0 %v4908
    %5150 = vmatprep.subr.bf16.mxu0 %v4911
    %5151 = vmatpush1.bf16.msra.mxu0 %v4910
    %5152 = vmatprep.subr.bf16.mxu0 %v4913
    %5153 = vmatpush1.bf16.msra.mxu0 %v4912
    %5154 = vmatprep.subr.bf16.mxu0 %v4915
    %5155 = vmatpush1.bf16.msra.mxu0 %v4914
    %5156 = vmatprep.subr.bf16.mxu0 %v4917
    %5157 = vmatpush1.bf16.msra.mxu0 %v4916
    %5158 = vmatprep.subr.bf16.mxu0 %v4919
    %5159 = vmatpush1.bf16.msra.mxu0 %v4918
    %5160 = vmatprep.subr.bf16.mxu0 %v4921
    %5161 = vmatpush1.bf16.msra.mxu0 %v4920
    %5162 = vmatprep.subr.bf16.mxu0 %v4923
    %5163 = vmatpush1.bf16.msra.mxu0 %v4922
    %5164 = vmatprep.subr.bf16.mxu0 %v4925
    %5165 = vmatpush1.bf16.msra.mxu0 %v4924
    %5166 = vmatprep.subr.bf16.mxu0 %v4927
    %5167 = vmatpush1.bf16.msra.mxu0 %v4926
    %5168 = vmatprep.subr.bf16.mxu0 %v4929
    %5169 = vmatpush1.bf16.msra.mxu0 %v4928
    %5170 = vmatprep.subr.bf16.mxu0 %v4931
    %5171 = vmatpush1.bf16.msra.mxu0 %v4930
    %5172 = vmatprep.subr.bf16.mxu0 %v4933
    %5173 = vmatpush1.bf16.msra.mxu0 %v4932
    %5174 = vmatprep.mubr.bf16.mxu0 %v4771
    %5175 = vmatmul.mubr.bf16.gmra.mrb[0].mxu0 %v4770
    %v5176 = vpop.f32.mrb[0].mxu0
    %v5177 = vadd.f32 %v5136, %v5176
    %v5178 = vpop.f32.mrb[0].mxu0
    %v5179 = vadd.f32 %v5138, %v5178
    %v5180 = vpop.f32.mrb[0].mxu0
    %v5181 = vpop.f32.mrb[0].mxu0
    %5182 = vdwg.mxu0
    %5183 = vmatprep.subr.bf16.mxu0 %v4935
    %5184 = vmatpush1.bf16.msra.mxu0 %v4934
    %5185 = vmatprep.subr.bf16.mxu0 %v4937
    %5186 = vmatpush1.bf16.msra.mxu0 %v4936
    %5187 = vmatprep.subr.bf16.mxu0 %v4939
    %5188 = vmatpush1.bf16.msra.mxu0 %v4938
    %5189 = vmatprep.subr.bf16.mxu0 %v4941
    %5190 = vmatpush1.bf16.msra.mxu0 %v4940
    %5191 = vmatprep.subr.bf16.mxu0 %v4943
    %5192 = vmatpush1.bf16.msra.mxu0 %v4942
    %5193 = vmatprep.subr.bf16.mxu0 %v4945
    %5194 = vmatpush1.bf16.msra.mxu0 %v4944
    %5195 = vmatprep.subr.bf16.mxu0 %v4947
    %5196 = vmatpush1.bf16.msra.mxu0 %v4946
    %5197 = vmatprep.subr.bf16.mxu0 %v4949
    %5198 = vmatpush1.bf16.msra.mxu0 %v4948
    %5199 = vmatprep.subr.bf16.mxu0 %v4951
    %5200 = vmatpush1.bf16.msra.mxu0 %v4950
    %5201 = vmatprep.subr.bf16.mxu0 %v4953
    %5202 = vmatpush1.bf16.msra.mxu0 %v4952
    %5203 = vmatprep.subr.bf16.mxu0 %v4955
    %5204 = vmatpush1.bf16.msra.mxu0 %v4954
    %5205 = vmatprep.subr.bf16.mxu0 %v4957
    %5206 = vmatpush1.bf16.msra.mxu0 %v4956
    %5207 = vmatprep.subr.bf16.mxu0 %v4959
    %5208 = vmatpush1.bf16.msra.mxu0 %v4958
    %5209 = vmatprep.subr.bf16.mxu0 %v4961
    %5210 = vmatpush1.bf16.msra.mxu0 %v4960
    %5211 = vmatprep.subr.bf16.mxu0 %v4963
    %5212 = vmatpush1.bf16.msra.mxu0 %v4962
    %5213 = vmatprep.subr.bf16.mxu0 %v4965
    %5214 = vmatpush1.bf16.msra.mxu0 %v4964
    %5215 = vmatprep.mubr.bf16.mxu0 %v4773
    %5216 = vmatmul.mubr.bf16.gmra.mrb[0].mxu0 %v4772
    %v5217 = vpop.f32.mrb[0].mxu0
    %v5218 = vadd.f32 %v5177, %v5217
    %v5219 = vpop.f32.mrb[0].mxu0
    %v5220 = vadd.f32 %v5179, %v5219
    %v5221 = vpop.f32.mrb[0].mxu0
    %v5222 = vpop.f32.mrb[0].mxu0
    %5223 = vdwg.mxu0
    %v5226 = vcombine.low %v5218, %v5220
    %v5228 = vunpack.c.l.s4 1983009808
    %v5229 = vunpack.c.0.s8 %v5228
    %v5230 = vlaneseq
    %v5231 = vshrl.u32 %v5230, 7
    %v5232 = vsub.s32 %v5229, %v5231
    %v5233 = vrot.slane %v5226, %v5232
    %5235 = vst [vmem:[#allocation20] sm:$0xf] %v5233
    // Predicated region
    $region58: #{tpu_custom_call.1} parent=1 // pred_check
      _
    $region59: #{tpu_custom_call.1} parent=1 // pred_check_branch
      %5237 = sbr.rel (0) target = $region61
    $region60: #{tpu_custom_call.1} parent=1 // pred_region
      %s5239 = ssub.s32 64, 64
      %5240 = vsyncadd [#allocation10], %s5239
      %s5242 = sshll.u32 [#allocation20], 4
      %s5243 = int_to_ptr.vmem [resolvable:$true] %s5242
      %5245 = dma.vmem_to_hbm [thread:$0]  %s5243, 64, %s12, [#allocation10]
    $region61: #{tpu_custom_call.1} parent=1 // pred_fallthru
      _
    // Predicated region
    $region62: #{tpu_custom_call.1} parent=1 // pred_check
      _
    $region63: #{tpu_custom_call.1} parent=1 // pred_check_branch
      %5247 = sbr.rel (0) target = $region65
    $region64: #{tpu_custom_call.1} parent=1 // pred_region
      %5248 = dma.done [#allocation10], 64
    $region65: #{tpu_custom_call.1} parent=1 // pred_fallthru
      _
    %5249 = vsyncpa [#allocation9], 1
    %5250 = vsyncpa [#allocation12], 1
    %5251 = vsyncpa [#allocation15], 1
    %5252 = vsyncpa [#allocation18], 1
    %5253 = vsyncpa [#allocation10], 1
  %5254 = vsyncmov [#allocation7]
  %s5255 = vpop.sfrf %5254
  %p5256 = scmp.eq.s32.totalorder %s5255, 0
  %p5257 = pneg %p5256
  %5259 = shalt.err (%p5257)
  %s5260 = scalar_lea.sflag [#allocation7], 1
  %5261 = vsyncmov %s5260
  %s5262 = vpop.sfrf %5261
  %p5263 = scmp.eq.s32.totalorder %s5262, 0
  %p5264 = pneg %p5263
  %5266 = shalt.err (%p5264)
  %s5267 = scalar_lea.sflag [#allocation7], 2
  %5268 = vsyncmov %s5267
  %s5269 = vpop.sfrf %5268
  %p5270 = scmp.eq.s32.totalorder %s5269, 0
  %p5271 = pneg %p5270
  %5273 = shalt.err (%p5271)
  %s5274 = scalar_lea.sflag [#allocation7], 3
  %5275 = vsyncmov %s5274
  %s5276 = vpop.sfrf %5275
  %p5277 = scmp.eq.s32.totalorder %s5276, 0
  %p5278 = pneg %p5277
  %5280 = shalt.err (%p5278)
  %s5281 = scalar_lea.sflag [#allocation7], 4
  %5282 = vsyncmov %s5281
  %s5283 = vpop.sfrf %5282
  %p5284 = scmp.eq.s32.totalorder %s5283, 0
  %p5285 = pneg %p5284
  %5287 = shalt.err (%p5285)

</llo_original>
